<compile_context>
chip_gen: v5e
topology: v5e:2x2
jax: 0.10.0
libtpu: 0.0.40
codegen_flags: <defaults>
</compile_context>

<pallas_src>
import functools

import jax
import jax.numpy as jnp
from jax.experimental import pallas as pl
from jax.experimental.pallas import tpu as pltpu


def _discriminator_kernel(x_ref,
                          w1_ref, b1_ref,
                          w2_ref, b2_ref,
                          w3_ref, b3_ref,
                          w4_ref, b4_ref,
                          o_ref):
    # x_ref: (TILE_B, input_dim) bf16.  Weights bf16, biases f32.
    x = x_ref[...]

    h1 = jnp.dot(x, w1_ref[...], preferred_element_type=jnp.float32) + b1_ref[...]
    h1 = jnp.maximum(h1, 0.0).astype(jnp.bfloat16)

    h2 = jnp.dot(h1, w2_ref[...], preferred_element_type=jnp.float32) + b2_ref[...]
    h2 = jnp.maximum(h2, 0.0).astype(jnp.bfloat16)

    h3 = jnp.dot(h2, w3_ref[...], preferred_element_type=jnp.float32) + b3_ref[...]
    h3 = jnp.maximum(h3, 0.0)  # keep f32 for the VPU/XLU reduction below

    # fc4 has N=1: an MXU pass would waste the whole systolic array, so do it
    # as an elementwise multiply + lane reduction instead. w4_ref is (1, 256).
    z = jnp.sum(h3 * w4_ref[...], axis=-1, keepdims=True) + b4_ref[...]

    # Sigmoid via EUP exp + approximate reciprocal (EUP slot has slack).
    e = jnp.exp(-z)
    o_ref[...] = pl.reciprocal(1.0 + e, approx=True)


@functools.partial(jax.jit, static_argnames=("tile_b",))
def discriminator_forward(x, params, *, tile_b=256):
    """x: (B, input_dim) f32. params: dict of w1..w4 (in,out) and b1..b4 (1,out)."""
    B, input_dim = x.shape

    # Pad batch to a multiple of TILE_B (TILE_B is a multiple of 128 so every
    # MXU pass is a full one). Padded rows are computed and sliced away.
    n_tiles = pl.cdiv(B, tile_b)
    b_pad = n_tiles * tile_b
    if b_pad != B:
        x = jnp.pad(x, ((0, b_pad - B), (0, 0)))

    # bf16 operands for the MXU; f32 accumulation inside the kernel.
    x_bf = x.astype(jnp.bfloat16)
    w1 = params["w1"].astype(jnp.bfloat16)
    w2 = params["w2"].astype(jnp.bfloat16)
    w3 = params["w3"].astype(jnp.bfloat16)
    # Final layer weight as an f32 lane-row (1, 256) for the VPU reduction.
    w4_row = params["w4"].reshape(1, 256).astype(jnp.float32)
    b1, b2, b3, b4 = params["b1"], params["b2"], params["b3"], params["b4"]

    # Weights/biases: constant index_map -> loaded once, VMEM-resident.
    const = lambda shape: pl.BlockSpec(shape, lambda i: (0, 0))

    grid_spec = pltpu.PrefetchScalarGridSpec(
        num_scalar_prefetch=0,
        grid=(n_tiles,),
        in_specs=[
            pl.BlockSpec((tile_b, input_dim), lambda i: (i, 0)),  # x tile
            const((input_dim, 1024)), const((1, 1024)),           # fc1
            const((1024, 512)),       const((1, 512)),            # fc2
            const((512, 256)),        const((1, 256)),            # fc3
            const((1, 256)),          const((1, 1)),              # fc4 (row)
        ],
        out_specs=pl.BlockSpec((tile_b, 1), lambda i: (i, 0)),
    )

    out = pl.pallas_call(
        _discriminator_kernel,
        out_shape=jax.ShapeDtypeStruct((b_pad, 1), jnp.float32),
        grid_spec=grid_spec,
        compiler_params=pltpu.CompilerParams(
            # Batch tiles are independent -> shard across TCs on v7x megacore.
            dimension_semantics=("parallel",),
            # Explicit scoped-VMEM budget: bf16 weights (~1.4 MiB) + resident
            # biases + double-buffered x/out tiles + live activations at
            # TILE_B<=1024 stay far below this on all of v5e/v6e/v7x (64 MiB
            # physical on v7x).
            vmem_limit_bytes=32 * 1024 * 1024,
        ),
    )(x_bf, w1, b1, w2, b2, w3, b3, w4_row, b4)

    return out[:B]


def init_params(key, input_dim):
    """Deterministic init mirroring nn.Linear's U(-1/sqrt(fan_in), 1/sqrt(fan_in))."""
    dims = [(input_dim, 1024), (1024, 512), (512, 256), (256, 1)]
    params = {}
    for i, (fan_in, fan_out) in enumerate(dims, start=1):
        key, kw, kb = jax.random.split(key, 3)
        bound = 1.0 / jnp.sqrt(float(fan_in))
        params[f"w{i}"] = jax.random.uniform(
            kw, (fan_in, fan_out), jnp.float32, -bound, bound)
        params[f"b{i}"] = jax.random.uniform(
            kb, (1, fan_out), jnp.float32, -bound, bound)
    return params


def reference_forward(x, p):
    """Pure-JAX f32 reference matching the PyTorch module semantics."""
    h = jnp.maximum(x @ p["w1"] + p["b1"], 0.0)
    h = jnp.maximum(h @ p["w2"] + p["b2"], 0.0)
    h = jnp.maximum(h @ p["w3"] + p["b3"], 0.0)
    return jax.nn.sigmoid(h @ p["w4"] + p["b4"])


if __name__ == "__main__":
    key = jax.random.PRNGKey(0)
    batch, input_dim = 2, 32

    key, kx = jax.random.split(key)
    x = jax.random.normal(kx, (batch, input_dim), jnp.float32)
    params = init_params(key, input_dim)

    out = discriminator_forward(x, params)
    out = jax.block_until_ready(out)

    ref = reference_forward(x, params)
    assert out.shape == (batch, 1)
    # bf16 matmuls (f32 accumulation) + approx reciprocal -> loosened tolerance
    # vs the pure-f32 reference.
    assert jnp.allclose(out, ref, atol=2e-2, rtol=2e-2), (out, ref)

    print("KERNEL_OK")
</pallas_src>

<mosaic_0001>
module attributes {stable_mosaic.version = 11 : i64} {
  func.func @_discriminator_kernel(%arg0: i32, %arg1: memref<256x32xbf16, #tpu.memory_space<vmem>>, %arg2: memref<32x1024xbf16, #tpu.memory_space<vmem>>, %arg3: memref<1x1024xf32, #tpu.memory_space<vmem>>, %arg4: memref<1024x512xbf16, #tpu.memory_space<vmem>>, %arg5: memref<1x512xf32, #tpu.memory_space<vmem>>, %arg6: memref<512x256xbf16, #tpu.memory_space<vmem>>, %arg7: memref<1x256xf32, #tpu.memory_space<vmem>>, %arg8: memref<1x256xf32, #tpu.memory_space<vmem>>, %arg9: memref<1x1xf32, #tpu.memory_space<vmem>>, %arg10: memref<256x1xf32, #tpu.memory_space<vmem>>) attributes {dimension_semantics = [#tpu.dimension_semantics<parallel>], iteration_bounds = array<i64: 1>, scalar_prefetch = 0 : i64, scratch_operands = 0 : i64, tpu.core_type = #tpu.core_type<tc>, window_params = [{transform_indices = @transform_0, window_bounds = array<i64: 256, 32>}, {pipeline_mode = #tpu.pipeline_mode<synchronous>, transform_indices = @transform_1, window_bounds = array<i64: 32, 1024>}, {pipeline_mode = #tpu.pipeline_mode<synchronous>, transform_indices = @transform_2, window_bounds = array<i64: 1, 1024>}, {pipeline_mode = #tpu.pipeline_mode<synchronous>, transform_indices = @transform_3, window_bounds = array<i64: 1024, 512>}, {pipeline_mode = #tpu.pipeline_mode<synchronous>, transform_indices = @transform_4, window_bounds = array<i64: 1, 512>}, {pipeline_mode = #tpu.pipeline_mode<synchronous>, transform_indices = @transform_5, window_bounds = array<i64: 512, 256>}, {pipeline_mode = #tpu.pipeline_mode<synchronous>, transform_indices = @transform_6, window_bounds = array<i64: 1, 256>}, {pipeline_mode = #tpu.pipeline_mode<synchronous>, transform_indices = @transform_7, window_bounds = array<i64: 1, 256>}, {pipeline_mode = #tpu.pipeline_mode<synchronous>, transform_indices = @transform_8, window_bounds = array<i64: 1, 1>}, {transform_indices = @transform_9, window_bounds = array<i64: 256, 1>}]} {
    %c0 = arith.constant 0 : index
    %c0_0 = arith.constant 0 : index
    %0 = vector.load %arg1[%c0, %c0_0] : memref<256x32xbf16, #tpu.memory_space<vmem>>, vector<256x32xbf16>
    %c0_1 = arith.constant 0 : index
    %c0_2 = arith.constant 0 : index
    %1 = vector.load %arg2[%c0_1, %c0_2] : memref<32x1024xbf16, #tpu.memory_space<vmem>>, vector<32x1024xbf16>
    %cst = arith.constant dense<0.000000e+00> : vector<256x1024xf32>
    %2 = tpu.matmul %0, %1, %cst {dimension_numbers = #tpu.dot_dimension_numbers<[1], [0], [0], [1], [0, 0, 1, 1], [], []>} : vector<256x32xbf16>, vector<32x1024xbf16>, vector<256x1024xf32> -> vector<256x1024xf32>
    %c0_3 = arith.constant 0 : index
    %c0_4 = arith.constant 0 : index
    %3 = vector.load %arg3[%c0_3, %c0_4] : memref<1x1024xf32, #tpu.memory_space<vmem>>, vector<1x1024xf32>
    %4 = vector.broadcast %3 : vector<1x1024xf32> to vector<256x1024xf32>
    %5 = arith.addf %2, %4 : vector<256x1024xf32>
    %cst_5 = arith.constant 0.000000e+00 : f32
    %6 = vector.broadcast %cst_5 : f32 to vector<256x1024xf32>
    %7 = arith.maximumf %5, %6 : vector<256x1024xf32>
    %8 = arith.truncf %7 : vector<256x1024xf32> to vector<256x1024xbf16>
    %c0_6 = arith.constant 0 : index
    %c0_7 = arith.constant 0 : index
    %9 = vector.load %arg4[%c0_6, %c0_7] : memref<1024x512xbf16, #tpu.memory_space<vmem>>, vector<1024x512xbf16>
    %cst_8 = arith.constant dense<0.000000e+00> : vector<256x512xf32>
    %10 = tpu.matmul %8, %9, %cst_8 {dimension_numbers = #tpu.dot_dimension_numbers<[1], [0], [0], [1], [0, 0, 1, 1], [], []>} : vector<256x1024xbf16>, vector<1024x512xbf16>, vector<256x512xf32> -> vector<256x512xf32>
    %c0_9 = arith.constant 0 : index
    %c0_10 = arith.constant 0 : index
    %11 = vector.load %arg5[%c0_9, %c0_10] : memref<1x512xf32, #tpu.memory_space<vmem>>, vector<1x512xf32>
    %12 = vector.broadcast %11 : vector<1x512xf32> to vector<256x512xf32>
    %13 = arith.addf %10, %12 : vector<256x512xf32>
    %cst_11 = arith.constant 0.000000e+00 : f32
    %14 = vector.broadcast %cst_11 : f32 to vector<256x512xf32>
    %15 = arith.maximumf %13, %14 : vector<256x512xf32>
    %16 = arith.truncf %15 : vector<256x512xf32> to vector<256x512xbf16>
    %c0_12 = arith.constant 0 : index
    %c0_13 = arith.constant 0 : index
    %17 = vector.load %arg6[%c0_12, %c0_13] : memref<512x256xbf16, #tpu.memory_space<vmem>>, vector<512x256xbf16>
    %cst_14 = arith.constant dense<0.000000e+00> : vector<256x256xf32>
    %18 = tpu.matmul %16, %17, %cst_14 {dimension_numbers = #tpu.dot_dimension_numbers<[1], [0], [0], [1], [0, 0, 1, 1], [], []>} : vector<256x512xbf16>, vector<512x256xbf16>, vector<256x256xf32> -> vector<256x256xf32>
    %c0_15 = arith.constant 0 : index
    %c0_16 = arith.constant 0 : index
    %19 = vector.load %arg7[%c0_15, %c0_16] : memref<1x256xf32, #tpu.memory_space<vmem>>, vector<1x256xf32>
    %20 = vector.broadcast %19 : vector<1x256xf32> to vector<256x256xf32>
    %21 = arith.addf %18, %20 : vector<256x256xf32>
    %cst_17 = arith.constant 0.000000e+00 : f32
    %22 = vector.broadcast %cst_17 : f32 to vector<256x256xf32>
    %23 = arith.maximumf %21, %22 : vector<256x256xf32>
    %c0_18 = arith.constant 0 : index
    %c0_19 = arith.constant 0 : index
    %24 = vector.load %arg8[%c0_18, %c0_19] : memref<1x256xf32, #tpu.memory_space<vmem>>, vector<1x256xf32>
    %25 = vector.broadcast %24 : vector<1x256xf32> to vector<256x256xf32>
    %26 = arith.mulf %23, %25 : vector<256x256xf32>
    %cst_20 = arith.constant dense<0.000000e+00> : vector<256xf32>
    %27 = vector.multi_reduction <add>, %26, %cst_20 [1] : vector<256x256xf32> to vector<256xf32>
    %28 = vector.shape_cast %27 : vector<256xf32> to vector<256x1xf32>
    %c0_21 = arith.constant 0 : index
    %c0_22 = arith.constant 0 : index
    %29 = vector.load %arg9[%c0_21, %c0_22] : memref<1x1xf32, #tpu.memory_space<vmem>>, vector<1x1xf32>
    %30 = vector.broadcast %29 : vector<1x1xf32> to vector<256x1xf32>
    %31 = arith.addf %28, %30 : vector<256x1xf32>
    %cst_23 = arith.constant 0.000000e+00 : f32
    %32 = vector.broadcast %cst_23 : f32 to vector<256x1xf32>
    %33 = arith.subf %32, %31 : vector<256x1xf32>
    %34 = math.exp %33 : vector<256x1xf32>
    %cst_24 = arith.constant 1.000000e+00 : f32
    %35 = vector.broadcast %cst_24 : f32 to vector<256x1xf32>
    %36 = arith.addf %35, %34 : vector<256x1xf32>
    %37 = tpu.reciprocal %36 {approx = true} : vector<256x1xf32> -> vector<256x1xf32>
    %c0_25 = arith.constant 0 : index
    %c0_26 = arith.constant 0 : index
    %38 = vector.load %arg10[%c0_25, %c0_26] : memref<256x1xf32, #tpu.memory_space<vmem>>, vector<256x1xf32>
    tpu.vector_store %arg10[%c0_25, %c0_26], %37 {strides = array<i32>} : memref<256x1xf32, #tpu.memory_space<vmem>>, vector<256x1xf32>,
    return
  }
  func.func @transform_0(%arg0: i32) -> (i32, i32) {
    %c0_i32 = arith.constant 0 : i32
    %c0_i32_0 = arith.constant 0 : i32
    return %arg0, %c0_i32 : i32, i32
  }
  func.func @transform_1(%arg0: i32) -> (i32, i32) {
    %c0_i32 = arith.constant 0 : i32
    %c0_i32_0 = arith.constant 0 : i32
    %c0_i32_1 = arith.constant 0 : i32
    return %c0_i32, %c0_i32_0 : i32, i32
  }
  func.func @transform_2(%arg0: i32) -> (i32, i32) {
    %c0_i32 = arith.constant 0 : i32
    %c0_i32_0 = arith.constant 0 : i32
    %c0_i32_1 = arith.constant 0 : i32
    return %c0_i32, %c0_i32_0 : i32, i32
  }
  func.func @transform_3(%arg0: i32) -> (i32, i32) {
    %c0_i32 = arith.constant 0 : i32
    %c0_i32_0 = arith.constant 0 : i32
    %c0_i32_1 = arith.constant 0 : i32
    return %c0_i32, %c0_i32_0 : i32, i32
  }
  func.func @transform_4(%arg0: i32) -> (i32, i32) {
    %c0_i32 = arith.constant 0 : i32
    %c0_i32_0 = arith.constant 0 : i32
    %c0_i32_1 = arith.constant 0 : i32
    return %c0_i32, %c0_i32_0 : i32, i32
  }
  func.func @transform_5(%arg0: i32) -> (i32, i32) {
    %c0_i32 = arith.constant 0 : i32
    %c0_i32_0 = arith.constant 0 : i32
    %c0_i32_1 = arith.constant 0 : i32
    return %c0_i32, %c0_i32_0 : i32, i32
  }
  func.func @transform_6(%arg0: i32) -> (i32, i32) {
    %c0_i32 = arith.constant 0 : i32
    %c0_i32_0 = arith.constant 0 : i32
    %c0_i32_1 = arith.constant 0 : i32
    return %c0_i32, %c0_i32_0 : i32, i32
  }
  func.func @transform_7(%arg0: i32) -> (i32, i32) {
    %c0_i32 = arith.constant 0 : i32
    %c0_i32_0 = arith.constant 0 : i32
    %c0_i32_1 = arith.constant 0 : i32
    return %c0_i32, %c0_i32_0 : i32, i32
  }
  func.func @transform_8(%arg0: i32) -> (i32, i32) {
    %c0_i32 = arith.constant 0 : i32
    %c0_i32_0 = arith.constant 0 : i32
    %c0_i32_1 = arith.constant 0 : i32
    return %c0_i32, %c0_i32_0 : i32, i32
  }
  func.func @transform_9(%arg0: i32) -> (i32, i32) {
    %c0_i32 = arith.constant 0 : i32
    %c0_i32_0 = arith.constant 0 : i32
    return %arg0, %c0_i32 : i32, i32
  }
}

</mosaic_0001>

<llo_original>
// kernel: discriminator_forward.1
$region0: #{discriminator_forward.1}
  #allocation0 [shape = 'u32[]', space=smem, size = 0x4, offset = 0x4, fixed_abs, tag = 'smem constant byte address 0x4 - core index']
  #allocation1 [shape = 'u32[72,128]{1,0:T(1,128)}', space=vmem, size = 0x9000, scoped, tag = 'internal scratch']
  #allocation2 [shape = 'f32[1,1]{1,0:T(1,128)S(1)}', space=vmem, size = 0x200, scoped, tag = 'scoped memory for discriminator_forward.1']
  %s0 = inlined_call_operand.vmem [shape: bf16[256,32], index: 0, kind: input, shape index: {}]
  %s1 = inlined_call_operand.vmem [shape: bf16[32,1024], index: 1, kind: input, shape index: {}]
  %s2 = inlined_call_operand.vmem [shape: f32[1,1024], index: 2, kind: input, shape index: {}]
  %s3 = inlined_call_operand.vmem [shape: bf16[1024,512], index: 3, kind: input, shape index: {}]
  %s4 = inlined_call_operand.vmem [shape: f32[1,512], index: 4, kind: input, shape index: {}]
  %s5 = inlined_call_operand.vmem [shape: bf16[512,256], index: 5, kind: input, shape index: {}]
  %s6 = inlined_call_operand.vmem [shape: f32[1,256], index: 6, kind: input, shape index: {}]
  %s7 = inlined_call_operand.vmem [shape: f32[1,256], index: 7, kind: input, shape index: {}]
  %s8 = inlined_call_operand.<no memory space> [shape: f32[1,1], index: 8, kind: input, shape index: {}]
  %s9 = inlined_call_operand.vmem [shape: f32[256,1], index: 9, kind: output, shape index: {}]
  %s10 = sld [smem:[#allocation0]]
  $region46: #{discriminator_forward.1} parent=0
    _
  %s12 = ssub.s32 1, %s10
  %s13 = scalar_select 0, %s12, %s10
  %v14 = vstv %s8
  %15 = vst [vmem:[#allocation2] sm:$0x1] %v14
  // Predicated region
  $region2: #{discriminator_forward.1} parent=0 // pred_check
    _
  $region3: #{discriminator_forward.1} parent=0 // pred_check_branch
    %17 = sbr.rel (0) target = $region5
  $region4: #{discriminator_forward.1} parent=0 // pred_region
    _
  $region5: #{discriminator_forward.1} parent=0 // pred_fallthru
    _
  // Predicated region
  $region6: #{discriminator_forward.1} parent=0 // pred_check
    _
  $region7: #{discriminator_forward.1} parent=0 // pred_check_branch
    %19 = sbr.rel (0) target = $region9
  $region8: #{discriminator_forward.1} parent=0 // pred_region
    _
  $region9: #{discriminator_forward.1} parent=0 // pred_fallthru
    _
  // Predicated region
  $region10: #{discriminator_forward.1} parent=0 // pred_check
    _
  $region11: #{discriminator_forward.1} parent=0 // pred_check_branch
    %21 = sbr.rel (0) target = $region13
  $region12: #{discriminator_forward.1} parent=0 // pred_region
    _
  $region13: #{discriminator_forward.1} parent=0 // pred_fallthru
    _
  // Predicated region
  $region14: #{discriminator_forward.1} parent=0 // pred_check
    _
  $region15: #{discriminator_forward.1} parent=0 // pred_check_branch
    %23 = sbr.rel (0) target = $region17
  $region16: #{discriminator_forward.1} parent=0 // pred_region
    _
  $region17: #{discriminator_forward.1} parent=0 // pred_fallthru
    _
  // Predicated region
  $region18: #{discriminator_forward.1} parent=0 // pred_check
    _
  $region19: #{discriminator_forward.1} parent=0 // pred_check_branch
    %25 = sbr.rel (0) target = $region21
  $region20: #{discriminator_forward.1} parent=0 // pred_region
    _
  $region21: #{discriminator_forward.1} parent=0 // pred_fallthru
    _
  // Predicated region
  $region22: #{discriminator_forward.1} parent=0 // pred_check
    _
  $region23: #{discriminator_forward.1} parent=0 // pred_check_branch
    %27 = sbr.rel (0) target = $region25
  $region24: #{discriminator_forward.1} parent=0 // pred_region
    _
  $region25: #{discriminator_forward.1} parent=0 // pred_fallthru
    _
  // Predicated region
  $region26: #{discriminator_forward.1} parent=0 // pred_check
    _
  $region27: #{discriminator_forward.1} parent=0 // pred_check_branch
    %29 = sbr.rel (0) target = $region29
  $region28: #{discriminator_forward.1} parent=0 // pred_region
    _
  $region29: #{discriminator_forward.1} parent=0 // pred_fallthru
    _
  // Predicated region
  $region30: #{discriminator_forward.1} parent=0 // pred_check
    _
  $region31: #{discriminator_forward.1} parent=0 // pred_check_branch
    %31 = sbr.rel (0) target = $region33
  $region32: #{discriminator_forward.1} parent=0 // pred_region
    _
  $region33: #{discriminator_forward.1} parent=0 // pred_fallthru
    _
  // Predicated region
  $region34: #{discriminator_forward.1} parent=0 // pred_check
    _
  $region35: #{discriminator_forward.1} parent=0 // pred_check_branch
    %33 = sbr.rel (0) target = $region37
  $region36: #{discriminator_forward.1} parent=0 // pred_region
    _
  $region37: #{discriminator_forward.1} parent=0 // pred_fallthru
    _
  %v35 = vld [vmem:[%s0] sm:$0xf]
  %v36 = vld [vmem:[%s0 + $0x4] sm:$0xf]
  %v37 = vld [vmem:[%s0 + $0x8] sm:$0xf]
  %v38 = vld [vmem:[%s0 + $0xc] sm:$0xf]
  %v39 = vld [vmem:[%s0 + $0x10] sm:$0xf]
  %v40 = vld [vmem:[%s0 + $0x14] sm:$0xf]
  %v41 = vld [vmem:[%s0 + $0x18] sm:$0xf]
  %v42 = vld [vmem:[%s0 + $0x1c] sm:$0xf]
  %v43 = vld [vmem:[%s0 + $0x20] sm:$0xf]
  %v44 = vld [vmem:[%s0 + $0x24] sm:$0xf]
  %v45 = vld [vmem:[%s0 + $0x28] sm:$0xf]
  %v46 = vld [vmem:[%s0 + $0x2c] sm:$0xf]
  %v47 = vld [vmem:[%s0 + $0x30] sm:$0xf]
  %v48 = vld [vmem:[%s0 + $0x34] sm:$0xf]
  %v49 = vld [vmem:[%s0 + $0x38] sm:$0xf]
  %v50 = vld [vmem:[%s0 + $0x3c] sm:$0xf]
  %v51 = vld [vmem:[%s0 + $0x40] sm:$0xf]
  %v52 = vld [vmem:[%s0 + $0x44] sm:$0xf]
  %v53 = vld [vmem:[%s0 + $0x48] sm:$0xf]
  %v54 = vld [vmem:[%s0 + $0x4c] sm:$0xf]
  %v55 = vld [vmem:[%s0 + $0x50] sm:$0xf]
  %v56 = vld [vmem:[%s0 + $0x54] sm:$0xf]
  %v57 = vld [vmem:[%s0 + $0x58] sm:$0xf]
  %v58 = vld [vmem:[%s0 + $0x5c] sm:$0xf]
  %v59 = vld [vmem:[%s0 + $0x60] sm:$0xf]
  %v60 = vld [vmem:[%s0 + $0x64] sm:$0xf]
  %v61 = vld [vmem:[%s0 + $0x68] sm:$0xf]
  %v62 = vld [vmem:[%s0 + $0x6c] sm:$0xf]
  %v63 = vld [vmem:[%s0 + $0x70] sm:$0xf]
  %v64 = vld [vmem:[%s0 + $0x74] sm:$0xf]
  %v65 = vld [vmem:[%s0 + $0x78] sm:$0xf]
  %v66 = vld [vmem:[%s0 + $0x7c] sm:$0xf]
  %v67 = vld [vmem:[%s1] sm:$0xff]
  %v68 = vld [vmem:[%s1 + $0x8] sm:$0xff]
  %v69 = vld [vmem:[%s1 + $0x10] sm:$0xff]
  %v70 = vld [vmem:[%s1 + $0x18] sm:$0xff]
  %v71 = vld [vmem:[%s1 + $0x20] sm:$0xff]
  %v72 = vld [vmem:[%s1 + $0x28] sm:$0xff]
  %v73 = vld [vmem:[%s1 + $0x30] sm:$0xff]
  %v74 = vld [vmem:[%s1 + $0x38] sm:$0xff]
  %v75 = vld [vmem:[%s1 + $0x40] sm:$0xff]
  %v76 = vld [vmem:[%s1 + $0x48] sm:$0xff]
  %v77 = vld [vmem:[%s1 + $0x50] sm:$0xff]
  %v78 = vld [vmem:[%s1 + $0x58] sm:$0xff]
  %v79 = vld [vmem:[%s1 + $0x60] sm:$0xff]
  %v80 = vld [vmem:[%s1 + $0x68] sm:$0xff]
  %v81 = vld [vmem:[%s1 + $0x70] sm:$0xff]
  %v82 = vld [vmem:[%s1 + $0x78] sm:$0xff]
  %v83 = vld [vmem:[%s2] sm:$0xff]
  %v85 = vperm.slane %v83, 0
  %v86 = vperm.slane %v83, 1
  %v87 = vperm.slane %v83, 2
  %v88 = vperm.slane %v83, 3
  %v89 = vperm.slane %v83, 4
  %v90 = vperm.slane %v83, 5
  %v91 = vperm.slane %v83, 6
  %v92 = vperm.slane %v83, 7
  %v133 = vunpack.c.l.b16 %v35
  %v134 = vunpack.c.l.b16 %v36
  %v135 = vunpack.c.l.b16 %v37
  %v136 = vunpack.c.l.b16 %v38
  %v137 = vunpack.c.l.b16 %v39
  %v138 = vunpack.c.l.b16 %v40
  %v139 = vunpack.c.l.b16 %v41
  %v140 = vunpack.c.l.b16 %v42
  %v141 = vunpack.c.l.b16 %v43
  %v142 = vunpack.c.l.b16 %v44
  %v143 = vunpack.c.l.b16 %v45
  %v144 = vunpack.c.l.b16 %v46
  %v145 = vunpack.c.l.b16 %v47
  %v146 = vunpack.c.l.b16 %v48
  %v147 = vunpack.c.l.b16 %v49
  %v148 = vunpack.c.l.b16 %v50
  %v149 = vunpack.c.l.b16 %v51
  %v150 = vunpack.c.l.b16 %v52
  %v151 = vunpack.c.l.b16 %v53
  %v152 = vunpack.c.l.b16 %v54
  %v153 = vunpack.c.l.b16 %v55
  %v154 = vunpack.c.l.b16 %v56
  %v155 = vunpack.c.l.b16 %v57
  %v156 = vunpack.c.l.b16 %v58
  %v157 = vunpack.c.l.b16 %v59
  %v158 = vunpack.c.l.b16 %v60
  %v159 = vunpack.c.l.b16 %v61
  %v160 = vunpack.c.l.b16 %v62
  %v161 = vunpack.c.l.b16 %v63
  %v162 = vunpack.c.l.b16 %v64
  %v163 = vunpack.c.l.b16 %v65
  %v164 = vunpack.c.l.b16 %v66
  %v165 = vpack.c.b16 %v134, %v133
  %v166 = vpack.c.b16 %v136, %v135
  %v167 = vpack.c.b16 %v138, %v137
  %v168 = vpack.c.b16 %v140, %v139
  %v169 = vpack.c.b16 %v142, %v141
  %v170 = vpack.c.b16 %v144, %v143
  %v171 = vpack.c.b16 %v146, %v145
  %v172 = vpack.c.b16 %v148, %v147
  %v173 = vpack.c.b16 %v150, %v149
  %v174 = vpack.c.b16 %v152, %v151
  %v175 = vpack.c.b16 %v154, %v153
  %v176 = vpack.c.b16 %v156, %v155
  %v177 = vpack.c.b16 %v158, %v157
  %v178 = vpack.c.b16 %v160, %v159
  %v179 = vpack.c.b16 %v162, %v161
  %v180 = vpack.c.b16 %v164, %v163
  %v197 = vunpack.c.l.b16 %v67
  %v198 = vunpack.c.h.b16 %v67
  %v199 = vunpack.c.l.b16 %v68
  %v200 = vunpack.c.h.b16 %v68
  %v201 = vunpack.c.l.b16 %v69
  %v202 = vunpack.c.h.b16 %v69
  %v203 = vunpack.c.l.b16 %v70
  %v204 = vunpack.c.h.b16 %v70
  %v205 = vunpack.c.l.b16 %v71
  %v206 = vunpack.c.h.b16 %v71
  %v207 = vunpack.c.l.b16 %v72
  %v208 = vunpack.c.h.b16 %v72
  %v209 = vunpack.c.l.b16 %v73
  %v210 = vunpack.c.h.b16 %v73
  %v211 = vunpack.c.l.b16 %v74
  %v212 = vunpack.c.h.b16 %v74
  %v213 = vunpack.c.l.b16 %v75
  %v214 = vunpack.c.h.b16 %v75
  %v215 = vunpack.c.l.b16 %v76
  %v216 = vunpack.c.h.b16 %v76
  %v217 = vunpack.c.l.b16 %v77
  %v218 = vunpack.c.h.b16 %v77
  %v219 = vunpack.c.l.b16 %v78
  %v220 = vunpack.c.h.b16 %v78
  %v221 = vunpack.c.l.b16 %v79
  %v222 = vunpack.c.h.b16 %v79
  %v223 = vunpack.c.l.b16 %v80
  %v224 = vunpack.c.h.b16 %v80
  %v225 = vunpack.c.l.b16 %v81
  %v226 = vunpack.c.h.b16 %v81
  %v227 = vunpack.c.l.b16 %v82
  %v228 = vunpack.c.h.b16 %v82
  %v229 = vpack.c.b16 %v205, %v197
  %v230 = vpack.c.b16 %v206, %v198
  %v231 = vpack.c.b16 %v207, %v199
  %v232 = vpack.c.b16 %v208, %v200
  %v233 = vpack.c.b16 %v209, %v201
  %v234 = vpack.c.b16 %v210, %v202
  %v235 = vpack.c.b16 %v211, %v203
  %v236 = vpack.c.b16 %v212, %v204
  %v237 = vpack.c.b16 %v221, %v213
  %v238 = vpack.c.b16 %v222, %v214
  %v239 = vpack.c.b16 %v223, %v215
  %v240 = vpack.c.b16 %v224, %v216
  %v241 = vpack.c.b16 %v225, %v217
  %v242 = vpack.c.b16 %v226, %v218
  %v243 = vpack.c.b16 %v227, %v219
  %v244 = vpack.c.b16 %v228, %v220
  %vm261 = vcmask 261120
  %v263 = vsel %vm261, %v165, 0
  %v266 = vsel %vm261, %v166, 0
  %v269 = vsel %vm261, %v167, 0
  %v272 = vsel %vm261, %v168, 0
  %v275 = vsel %vm261, %v169, 0
  %v278 = vsel %vm261, %v170, 0
  %v281 = vsel %vm261, %v171, 0
  %v284 = vsel %vm261, %v172, 0
  %v287 = vsel %vm261, %v173, 0
  %v290 = vsel %vm261, %v174, 0
  %v293 = vsel %vm261, %v175, 0
  %v296 = vsel %vm261, %v176, 0
  %v299 = vsel %vm261, %v177, 0
  %v302 = vsel %vm261, %v178, 0
  %v305 = vsel %vm261, %v179, 0
  %v308 = vsel %vm261, %v180, 0
  %310 = vmatpush.bf16.msra.mxu0 0
  %311 = vmatpush.bf16.msra.mxu0 0
  %312 = vmatpush.bf16.msra.mxu0 0
  %313 = vmatpush.bf16.msra.mxu0 0
  %314 = vmatpush.bf16.msra.mxu0 0
  %315 = vmatpush.bf16.msra.mxu0 0
  %316 = vmatpush.bf16.msra.mxu0 %v237
  %317 = vmatpush.bf16.msra.mxu0 %v229
  %318 = vmatmul.bf16.gmra.mxu0 %v263
  %v319 = vpop.f32.mrf.mxu0
  %v320 = vadd.f32 %v85, %v319
  %v321 = vpop.f32.mrf.mxu0
  %v322 = vadd.f32 %v85, %v321
  %323 = vmatmul.bf16.gmra.mxu0 %v266
  %v324 = vpop.f32.mrf.mxu0
  %v325 = vadd.f32 %v85, %v324
  %v326 = vpop.f32.mrf.mxu0
  %v327 = vadd.f32 %v85, %v326
  %328 = vmatmul.bf16.gmra.mxu0 %v269
  %v329 = vpop.f32.mrf.mxu0
  %v330 = vadd.f32 %v85, %v329
  %v331 = vpop.f32.mrf.mxu0
  %v332 = vadd.f32 %v85, %v331
  %333 = vmatmul.bf16.gmra.mxu0 %v272
  %v334 = vpop.f32.mrf.mxu0
  %v335 = vadd.f32 %v85, %v334
  %v336 = vpop.f32.mrf.mxu0
  %v337 = vadd.f32 %v85, %v336
  %338 = vmatmul.bf16.gmra.mxu0 %v275
  %v339 = vpop.f32.mrf.mxu0
  %v340 = vadd.f32 %v85, %v339
  %v341 = vpop.f32.mrf.mxu0
  %v342 = vadd.f32 %v85, %v341
  %343 = vmatmul.bf16.gmra.mxu0 %v278
  %v344 = vpop.f32.mrf.mxu0
  %v345 = vadd.f32 %v85, %v344
  %v346 = vpop.f32.mrf.mxu0
  %v347 = vadd.f32 %v85, %v346
  %348 = vmatmul.bf16.gmra.mxu0 %v281
  %v349 = vpop.f32.mrf.mxu0
  %v350 = vadd.f32 %v85, %v349
  %v351 = vpop.f32.mrf.mxu0
  %v352 = vadd.f32 %v85, %v351
  %353 = vmatmul.bf16.gmra.mxu0 %v284
  %v354 = vpop.f32.mrf.mxu0
  %v355 = vadd.f32 %v85, %v354
  %v356 = vpop.f32.mrf.mxu0
  %v357 = vadd.f32 %v85, %v356
  %358 = vmatmul.bf16.gmra.mxu0 %v287
  %v359 = vpop.f32.mrf.mxu0
  %v360 = vadd.f32 %v85, %v359
  %v361 = vpop.f32.mrf.mxu0
  %v362 = vadd.f32 %v85, %v361
  %363 = vmatmul.bf16.gmra.mxu0 %v290
  %v364 = vpop.f32.mrf.mxu0
  %v365 = vadd.f32 %v85, %v364
  %v366 = vpop.f32.mrf.mxu0
  %v367 = vadd.f32 %v85, %v366
  %368 = vmatmul.bf16.gmra.mxu0 %v293
  %v369 = vpop.f32.mrf.mxu0
  %v370 = vadd.f32 %v85, %v369
  %v371 = vpop.f32.mrf.mxu0
  %v372 = vadd.f32 %v85, %v371
  %373 = vmatmul.bf16.gmra.mxu0 %v296
  %v374 = vpop.f32.mrf.mxu0
  %v375 = vadd.f32 %v85, %v374
  %v376 = vpop.f32.mrf.mxu0
  %v377 = vadd.f32 %v85, %v376
  %378 = vmatmul.bf16.gmra.mxu0 %v299
  %v379 = vpop.f32.mrf.mxu0
  %v380 = vadd.f32 %v85, %v379
  %v381 = vpop.f32.mrf.mxu0
  %v382 = vadd.f32 %v85, %v381
  %383 = vmatmul.bf16.gmra.mxu0 %v302
  %v384 = vpop.f32.mrf.mxu0
  %v385 = vadd.f32 %v85, %v384
  %v386 = vpop.f32.mrf.mxu0
  %v387 = vadd.f32 %v85, %v386
  %388 = vmatmul.bf16.gmra.mxu0 %v305
  %v389 = vpop.f32.mrf.mxu0
  %v390 = vadd.f32 %v85, %v389
  %v391 = vpop.f32.mrf.mxu0
  %v392 = vadd.f32 %v85, %v391
  %393 = vmatmul.bf16.gmra.mxu0 %v308
  %v394 = vpop.f32.mrf.mxu0
  %v395 = vadd.f32 %v85, %v394
  %v396 = vpop.f32.mrf.mxu0
  %v397 = vadd.f32 %v85, %v396
  %398 = vdwg.mxu0
  %399 = vmatpush.bf16.msra.mxu0 0
  %400 = vmatpush.bf16.msra.mxu0 0
  %401 = vmatpush.bf16.msra.mxu0 0
  %402 = vmatpush.bf16.msra.mxu0 0
  %403 = vmatpush.bf16.msra.mxu0 0
  %404 = vmatpush.bf16.msra.mxu0 0
  %405 = vmatpush.bf16.msra.mxu0 %v238
  %406 = vmatpush.bf16.msra.mxu0 %v230
  %407 = vmatmul.bf16.gmra.mxu0 %v263
  %v408 = vpop.f32.mrf.mxu0
  %v409 = vadd.f32 %v86, %v408
  %v410 = vpop.f32.mrf.mxu0
  %v411 = vadd.f32 %v86, %v410
  %412 = vmatmul.bf16.gmra.mxu0 %v266
  %v413 = vpop.f32.mrf.mxu0
  %v414 = vadd.f32 %v86, %v413
  %v415 = vpop.f32.mrf.mxu0
  %v416 = vadd.f32 %v86, %v415
  %417 = vmatmul.bf16.gmra.mxu0 %v269
  %v418 = vpop.f32.mrf.mxu0
  %v419 = vadd.f32 %v86, %v418
  %v420 = vpop.f32.mrf.mxu0
  %v421 = vadd.f32 %v86, %v420
  %422 = vmatmul.bf16.gmra.mxu0 %v272
  %v423 = vpop.f32.mrf.mxu0
  %v424 = vadd.f32 %v86, %v423
  %v425 = vpop.f32.mrf.mxu0
  %v426 = vadd.f32 %v86, %v425
  %427 = vmatmul.bf16.gmra.mxu0 %v275
  %v428 = vpop.f32.mrf.mxu0
  %v429 = vadd.f32 %v86, %v428
  %v430 = vpop.f32.mrf.mxu0
  %v431 = vadd.f32 %v86, %v430
  %432 = vmatmul.bf16.gmra.mxu0 %v278
  %v433 = vpop.f32.mrf.mxu0
  %v434 = vadd.f32 %v86, %v433
  %v435 = vpop.f32.mrf.mxu0
  %v436 = vadd.f32 %v86, %v435
  %437 = vmatmul.bf16.gmra.mxu0 %v281
  %v438 = vpop.f32.mrf.mxu0
  %v439 = vadd.f32 %v86, %v438
  %v440 = vpop.f32.mrf.mxu0
  %v441 = vadd.f32 %v86, %v440
  %442 = vmatmul.bf16.gmra.mxu0 %v284
  %v443 = vpop.f32.mrf.mxu0
  %v444 = vadd.f32 %v86, %v443
  %v445 = vpop.f32.mrf.mxu0
  %v446 = vadd.f32 %v86, %v445
  %447 = vmatmul.bf16.gmra.mxu0 %v287
  %v448 = vpop.f32.mrf.mxu0
  %v449 = vadd.f32 %v86, %v448
  %v450 = vpop.f32.mrf.mxu0
  %v451 = vadd.f32 %v86, %v450
  %452 = vmatmul.bf16.gmra.mxu0 %v290
  %v453 = vpop.f32.mrf.mxu0
  %v454 = vadd.f32 %v86, %v453
  %v455 = vpop.f32.mrf.mxu0
  %v456 = vadd.f32 %v86, %v455
  %457 = vmatmul.bf16.gmra.mxu0 %v293
  %v458 = vpop.f32.mrf.mxu0
  %v459 = vadd.f32 %v86, %v458
  %v460 = vpop.f32.mrf.mxu0
  %v461 = vadd.f32 %v86, %v460
  %462 = vmatmul.bf16.gmra.mxu0 %v296
  %v463 = vpop.f32.mrf.mxu0
  %v464 = vadd.f32 %v86, %v463
  %v465 = vpop.f32.mrf.mxu0
  %v466 = vadd.f32 %v86, %v465
  %467 = vmatmul.bf16.gmra.mxu0 %v299
  %v468 = vpop.f32.mrf.mxu0
  %v469 = vadd.f32 %v86, %v468
  %v470 = vpop.f32.mrf.mxu0
  %v471 = vadd.f32 %v86, %v470
  %472 = vmatmul.bf16.gmra.mxu0 %v302
  %v473 = vpop.f32.mrf.mxu0
  %v474 = vadd.f32 %v86, %v473
  %v475 = vpop.f32.mrf.mxu0
  %v476 = vadd.f32 %v86, %v475
  %477 = vmatmul.bf16.gmra.mxu0 %v305
  %v478 = vpop.f32.mrf.mxu0
  %v479 = vadd.f32 %v86, %v478
  %v480 = vpop.f32.mrf.mxu0
  %v481 = vadd.f32 %v86, %v480
  %482 = vmatmul.bf16.gmra.mxu0 %v308
  %v483 = vpop.f32.mrf.mxu0
  %v484 = vadd.f32 %v86, %v483
  %v485 = vpop.f32.mrf.mxu0
  %v486 = vadd.f32 %v86, %v485
  %487 = vdwg.mxu0
  %488 = vmatpush.bf16.msra.mxu0 0
  %489 = vmatpush.bf16.msra.mxu0 0
  %490 = vmatpush.bf16.msra.mxu0 0
  %491 = vmatpush.bf16.msra.mxu0 0
  %492 = vmatpush.bf16.msra.mxu0 0
  %493 = vmatpush.bf16.msra.mxu0 0
  %494 = vmatpush.bf16.msra.mxu0 %v239
  %495 = vmatpush.bf16.msra.mxu0 %v231
  %496 = vmatmul.bf16.gmra.mxu0 %v263
  %v497 = vpop.f32.mrf.mxu0
  %v498 = vadd.f32 %v87, %v497
  %v499 = vpop.f32.mrf.mxu0
  %v500 = vadd.f32 %v87, %v499
  %501 = vmatmul.bf16.gmra.mxu0 %v266
  %v502 = vpop.f32.mrf.mxu0
  %v503 = vadd.f32 %v87, %v502
  %v504 = vpop.f32.mrf.mxu0
  %v505 = vadd.f32 %v87, %v504
  %506 = vmatmul.bf16.gmra.mxu0 %v269
  %v507 = vpop.f32.mrf.mxu0
  %v508 = vadd.f32 %v87, %v507
  %v509 = vpop.f32.mrf.mxu0
  %v510 = vadd.f32 %v87, %v509
  %511 = vmatmul.bf16.gmra.mxu0 %v272
  %v512 = vpop.f32.mrf.mxu0
  %v513 = vadd.f32 %v87, %v512
  %v514 = vpop.f32.mrf.mxu0
  %v515 = vadd.f32 %v87, %v514
  %516 = vmatmul.bf16.gmra.mxu0 %v275
  %v517 = vpop.f32.mrf.mxu0
  %v518 = vadd.f32 %v87, %v517
  %v519 = vpop.f32.mrf.mxu0
  %v520 = vadd.f32 %v87, %v519
  %521 = vmatmul.bf16.gmra.mxu0 %v278
  %v522 = vpop.f32.mrf.mxu0
  %v523 = vadd.f32 %v87, %v522
  %v524 = vpop.f32.mrf.mxu0
  %v525 = vadd.f32 %v87, %v524
  %526 = vmatmul.bf16.gmra.mxu0 %v281
  %v527 = vpop.f32.mrf.mxu0
  %v528 = vadd.f32 %v87, %v527
  %v529 = vpop.f32.mrf.mxu0
  %v530 = vadd.f32 %v87, %v529
  %531 = vmatmul.bf16.gmra.mxu0 %v284
  %v532 = vpop.f32.mrf.mxu0
  %v533 = vadd.f32 %v87, %v532
  %v534 = vpop.f32.mrf.mxu0
  %v535 = vadd.f32 %v87, %v534
  %536 = vmatmul.bf16.gmra.mxu0 %v287
  %v537 = vpop.f32.mrf.mxu0
  %v538 = vadd.f32 %v87, %v537
  %v539 = vpop.f32.mrf.mxu0
  %v540 = vadd.f32 %v87, %v539
  %541 = vmatmul.bf16.gmra.mxu0 %v290
  %v542 = vpop.f32.mrf.mxu0
  %v543 = vadd.f32 %v87, %v542
  %v544 = vpop.f32.mrf.mxu0
  %v545 = vadd.f32 %v87, %v544
  %546 = vmatmul.bf16.gmra.mxu0 %v293
  %v547 = vpop.f32.mrf.mxu0
  %v548 = vadd.f32 %v87, %v547
  %v549 = vpop.f32.mrf.mxu0
  %v550 = vadd.f32 %v87, %v549
  %551 = vmatmul.bf16.gmra.mxu0 %v296
  %v552 = vpop.f32.mrf.mxu0
  %v553 = vadd.f32 %v87, %v552
  %v554 = vpop.f32.mrf.mxu0
  %v555 = vadd.f32 %v87, %v554
  %556 = vmatmul.bf16.gmra.mxu0 %v299
  %v557 = vpop.f32.mrf.mxu0
  %v558 = vadd.f32 %v87, %v557
  %v559 = vpop.f32.mrf.mxu0
  %v560 = vadd.f32 %v87, %v559
  %561 = vmatmul.bf16.gmra.mxu0 %v302
  %v562 = vpop.f32.mrf.mxu0
  %v563 = vadd.f32 %v87, %v562
  %v564 = vpop.f32.mrf.mxu0
  %v565 = vadd.f32 %v87, %v564
  %566 = vmatmul.bf16.gmra.mxu0 %v305
  %v567 = vpop.f32.mrf.mxu0
  %v568 = vadd.f32 %v87, %v567
  %v569 = vpop.f32.mrf.mxu0
  %v570 = vadd.f32 %v87, %v569
  %571 = vmatmul.bf16.gmra.mxu0 %v308
  %v572 = vpop.f32.mrf.mxu0
  %v573 = vadd.f32 %v87, %v572
  %v574 = vpop.f32.mrf.mxu0
  %v575 = vadd.f32 %v87, %v574
  %576 = vdwg.mxu0
  %577 = vmatpush.bf16.msra.mxu0 0
  %578 = vmatpush.bf16.msra.mxu0 0
  %579 = vmatpush.bf16.msra.mxu0 0
  %580 = vmatpush.bf16.msra.mxu0 0
  %581 = vmatpush.bf16.msra.mxu0 0
  %582 = vmatpush.bf16.msra.mxu0 0
  %583 = vmatpush.bf16.msra.mxu0 %v240
  %584 = vmatpush.bf16.msra.mxu0 %v232
  %585 = vmatmul.bf16.gmra.mxu0 %v263
  %v586 = vpop.f32.mrf.mxu0
  %v587 = vadd.f32 %v88, %v586
  %v588 = vpop.f32.mrf.mxu0
  %v589 = vadd.f32 %v88, %v588
  %590 = vmatmul.bf16.gmra.mxu0 %v266
  %v591 = vpop.f32.mrf.mxu0
  %v592 = vadd.f32 %v88, %v591
  %v593 = vpop.f32.mrf.mxu0
  %v594 = vadd.f32 %v88, %v593
  %595 = vmatmul.bf16.gmra.mxu0 %v269
  %v596 = vpop.f32.mrf.mxu0
  %v597 = vadd.f32 %v88, %v596
  %v598 = vpop.f32.mrf.mxu0
  %v599 = vadd.f32 %v88, %v598
  %600 = vmatmul.bf16.gmra.mxu0 %v272
  %v601 = vpop.f32.mrf.mxu0
  %v602 = vadd.f32 %v88, %v601
  %v603 = vpop.f32.mrf.mxu0
  %v604 = vadd.f32 %v88, %v603
  %605 = vmatmul.bf16.gmra.mxu0 %v275
  %v606 = vpop.f32.mrf.mxu0
  %v607 = vadd.f32 %v88, %v606
  %v608 = vpop.f32.mrf.mxu0
  %v609 = vadd.f32 %v88, %v608
  %610 = vmatmul.bf16.gmra.mxu0 %v278
  %v611 = vpop.f32.mrf.mxu0
  %v612 = vadd.f32 %v88, %v611
  %v613 = vpop.f32.mrf.mxu0
  %v614 = vadd.f32 %v88, %v613
  %615 = vmatmul.bf16.gmra.mxu0 %v281
  %v616 = vpop.f32.mrf.mxu0
  %v617 = vadd.f32 %v88, %v616
  %v618 = vpop.f32.mrf.mxu0
  %v619 = vadd.f32 %v88, %v618
  %620 = vmatmul.bf16.gmra.mxu0 %v284
  %v621 = vpop.f32.mrf.mxu0
  %v622 = vadd.f32 %v88, %v621
  %v623 = vpop.f32.mrf.mxu0
  %v624 = vadd.f32 %v88, %v623
  %625 = vmatmul.bf16.gmra.mxu0 %v287
  %v626 = vpop.f32.mrf.mxu0
  %v627 = vadd.f32 %v88, %v626
  %v628 = vpop.f32.mrf.mxu0
  %v629 = vadd.f32 %v88, %v628
  %630 = vmatmul.bf16.gmra.mxu0 %v290
  %v631 = vpop.f32.mrf.mxu0
  %v632 = vadd.f32 %v88, %v631
  %v633 = vpop.f32.mrf.mxu0
  %v634 = vadd.f32 %v88, %v633
  %635 = vmatmul.bf16.gmra.mxu0 %v293
  %v636 = vpop.f32.mrf.mxu0
  %v637 = vadd.f32 %v88, %v636
  %v638 = vpop.f32.mrf.mxu0
  %v639 = vadd.f32 %v88, %v638
  %640 = vmatmul.bf16.gmra.mxu0 %v296
  %v641 = vpop.f32.mrf.mxu0
  %v642 = vadd.f32 %v88, %v641
  %v643 = vpop.f32.mrf.mxu0
  %v644 = vadd.f32 %v88, %v643
  %645 = vmatmul.bf16.gmra.mxu0 %v299
  %v646 = vpop.f32.mrf.mxu0
  %v647 = vadd.f32 %v88, %v646
  %v648 = vpop.f32.mrf.mxu0
  %v649 = vadd.f32 %v88, %v648
  %650 = vmatmul.bf16.gmra.mxu0 %v302
  %v651 = vpop.f32.mrf.mxu0
  %v652 = vadd.f32 %v88, %v651
  %v653 = vpop.f32.mrf.mxu0
  %v654 = vadd.f32 %v88, %v653
  %655 = vmatmul.bf16.gmra.mxu0 %v305
  %v656 = vpop.f32.mrf.mxu0
  %v657 = vadd.f32 %v88, %v656
  %v658 = vpop.f32.mrf.mxu0
  %v659 = vadd.f32 %v88, %v658
  %660 = vmatmul.bf16.gmra.mxu0 %v308
  %v661 = vpop.f32.mrf.mxu0
  %v662 = vadd.f32 %v88, %v661
  %v663 = vpop.f32.mrf.mxu0
  %v664 = vadd.f32 %v88, %v663
  %665 = vdwg.mxu0
  %666 = vmatpush.bf16.msra.mxu0 0
  %667 = vmatpush.bf16.msra.mxu0 0
  %668 = vmatpush.bf16.msra.mxu0 0
  %669 = vmatpush.bf16.msra.mxu0 0
  %670 = vmatpush.bf16.msra.mxu0 0
  %671 = vmatpush.bf16.msra.mxu0 0
  %672 = vmatpush.bf16.msra.mxu0 %v241
  %673 = vmatpush.bf16.msra.mxu0 %v233
  %674 = vmatmul.bf16.gmra.mxu0 %v263
  %v675 = vpop.f32.mrf.mxu0
  %v676 = vadd.f32 %v89, %v675
  %v677 = vpop.f32.mrf.mxu0
  %v678 = vadd.f32 %v89, %v677
  %679 = vmatmul.bf16.gmra.mxu0 %v266
  %v680 = vpop.f32.mrf.mxu0
  %v681 = vadd.f32 %v89, %v680
  %v682 = vpop.f32.mrf.mxu0
  %v683 = vadd.f32 %v89, %v682
  %684 = vmatmul.bf16.gmra.mxu0 %v269
  %v685 = vpop.f32.mrf.mxu0
  %v686 = vadd.f32 %v89, %v685
  %v687 = vpop.f32.mrf.mxu0
  %v688 = vadd.f32 %v89, %v687
  %689 = vmatmul.bf16.gmra.mxu0 %v272
  %v690 = vpop.f32.mrf.mxu0
  %v691 = vadd.f32 %v89, %v690
  %v692 = vpop.f32.mrf.mxu0
  %v693 = vadd.f32 %v89, %v692
  %694 = vmatmul.bf16.gmra.mxu0 %v275
  %v695 = vpop.f32.mrf.mxu0
  %v696 = vadd.f32 %v89, %v695
  %v697 = vpop.f32.mrf.mxu0
  %v698 = vadd.f32 %v89, %v697
  %699 = vmatmul.bf16.gmra.mxu0 %v278
  %v700 = vpop.f32.mrf.mxu0
  %v701 = vadd.f32 %v89, %v700
  %v702 = vpop.f32.mrf.mxu0
  %v703 = vadd.f32 %v89, %v702
  %704 = vmatmul.bf16.gmra.mxu0 %v281
  %v705 = vpop.f32.mrf.mxu0
  %v706 = vadd.f32 %v89, %v705
  %v707 = vpop.f32.mrf.mxu0
  %v708 = vadd.f32 %v89, %v707
  %709 = vmatmul.bf16.gmra.mxu0 %v284
  %v710 = vpop.f32.mrf.mxu0
  %v711 = vadd.f32 %v89, %v710
  %v712 = vpop.f32.mrf.mxu0
  %v713 = vadd.f32 %v89, %v712
  %714 = vmatmul.bf16.gmra.mxu0 %v287
  %v715 = vpop.f32.mrf.mxu0
  %v716 = vadd.f32 %v89, %v715
  %v717 = vpop.f32.mrf.mxu0
  %v718 = vadd.f32 %v89, %v717
  %719 = vmatmul.bf16.gmra.mxu0 %v290
  %v720 = vpop.f32.mrf.mxu0
  %v721 = vadd.f32 %v89, %v720
  %v722 = vpop.f32.mrf.mxu0
  %v723 = vadd.f32 %v89, %v722
  %724 = vmatmul.bf16.gmra.mxu0 %v293
  %v725 = vpop.f32.mrf.mxu0
  %v726 = vadd.f32 %v89, %v725
  %v727 = vpop.f32.mrf.mxu0
  %v728 = vadd.f32 %v89, %v727
  %729 = vmatmul.bf16.gmra.mxu0 %v296
  %v730 = vpop.f32.mrf.mxu0
  %v731 = vadd.f32 %v89, %v730
  %v732 = vpop.f32.mrf.mxu0
  %v733 = vadd.f32 %v89, %v732
  %734 = vmatmul.bf16.gmra.mxu0 %v299
  %v735 = vpop.f32.mrf.mxu0
  %v736 = vadd.f32 %v89, %v735
  %v737 = vpop.f32.mrf.mxu0
  %v738 = vadd.f32 %v89, %v737
  %739 = vmatmul.bf16.gmra.mxu0 %v302
  %v740 = vpop.f32.mrf.mxu0
  %v741 = vadd.f32 %v89, %v740
  %v742 = vpop.f32.mrf.mxu0
  %v743 = vadd.f32 %v89, %v742
  %744 = vmatmul.bf16.gmra.mxu0 %v305
  %v745 = vpop.f32.mrf.mxu0
  %v746 = vadd.f32 %v89, %v745
  %v747 = vpop.f32.mrf.mxu0
  %v748 = vadd.f32 %v89, %v747
  %749 = vmatmul.bf16.gmra.mxu0 %v308
  %v750 = vpop.f32.mrf.mxu0
  %v751 = vadd.f32 %v89, %v750
  %v752 = vpop.f32.mrf.mxu0
  %v753 = vadd.f32 %v89, %v752
  %754 = vdwg.mxu0
  %755 = vmatpush.bf16.msra.mxu0 0
  %756 = vmatpush.bf16.msra.mxu0 0
  %757 = vmatpush.bf16.msra.mxu0 0
  %758 = vmatpush.bf16.msra.mxu0 0
  %759 = vmatpush.bf16.msra.mxu0 0
  %760 = vmatpush.bf16.msra.mxu0 0
  %761 = vmatpush.bf16.msra.mxu0 %v242
  %762 = vmatpush.bf16.msra.mxu0 %v234
  %763 = vmatmul.bf16.gmra.mxu0 %v263
  %v764 = vpop.f32.mrf.mxu0
  %v765 = vadd.f32 %v90, %v764
  %v766 = vpop.f32.mrf.mxu0
  %v767 = vadd.f32 %v90, %v766
  %768 = vmatmul.bf16.gmra.mxu0 %v266
  %v769 = vpop.f32.mrf.mxu0
  %v770 = vadd.f32 %v90, %v769
  %v771 = vpop.f32.mrf.mxu0
  %v772 = vadd.f32 %v90, %v771
  %773 = vmatmul.bf16.gmra.mxu0 %v269
  %v774 = vpop.f32.mrf.mxu0
  %v775 = vadd.f32 %v90, %v774
  %v776 = vpop.f32.mrf.mxu0
  %v777 = vadd.f32 %v90, %v776
  %778 = vmatmul.bf16.gmra.mxu0 %v272
  %v779 = vpop.f32.mrf.mxu0
  %v780 = vadd.f32 %v90, %v779
  %v781 = vpop.f32.mrf.mxu0
  %v782 = vadd.f32 %v90, %v781
  %783 = vmatmul.bf16.gmra.mxu0 %v275
  %v784 = vpop.f32.mrf.mxu0
  %v785 = vadd.f32 %v90, %v784
  %v786 = vpop.f32.mrf.mxu0
  %v787 = vadd.f32 %v90, %v786
  %788 = vmatmul.bf16.gmra.mxu0 %v278
  %v789 = vpop.f32.mrf.mxu0
  %v790 = vadd.f32 %v90, %v789
  %v791 = vpop.f32.mrf.mxu0
  %v792 = vadd.f32 %v90, %v791
  %793 = vmatmul.bf16.gmra.mxu0 %v281
  %v794 = vpop.f32.mrf.mxu0
  %v795 = vadd.f32 %v90, %v794
  %v796 = vpop.f32.mrf.mxu0
  %v797 = vadd.f32 %v90, %v796
  %798 = vmatmul.bf16.gmra.mxu0 %v284
  %v799 = vpop.f32.mrf.mxu0
  %v800 = vadd.f32 %v90, %v799
  %v801 = vpop.f32.mrf.mxu0
  %v802 = vadd.f32 %v90, %v801
  %803 = vmatmul.bf16.gmra.mxu0 %v287
  %v804 = vpop.f32.mrf.mxu0
  %v805 = vadd.f32 %v90, %v804
  %v806 = vpop.f32.mrf.mxu0
  %v807 = vadd.f32 %v90, %v806
  %808 = vmatmul.bf16.gmra.mxu0 %v290
  %v809 = vpop.f32.mrf.mxu0
  %v810 = vadd.f32 %v90, %v809
  %v811 = vpop.f32.mrf.mxu0
  %v812 = vadd.f32 %v90, %v811
  %813 = vmatmul.bf16.gmra.mxu0 %v293
  %v814 = vpop.f32.mrf.mxu0
  %v815 = vadd.f32 %v90, %v814
  %v816 = vpop.f32.mrf.mxu0
  %v817 = vadd.f32 %v90, %v816
  %818 = vmatmul.bf16.gmra.mxu0 %v296
  %v819 = vpop.f32.mrf.mxu0
  %v820 = vadd.f32 %v90, %v819
  %v821 = vpop.f32.mrf.mxu0
  %v822 = vadd.f32 %v90, %v821
  %823 = vmatmul.bf16.gmra.mxu0 %v299
  %v824 = vpop.f32.mrf.mxu0
  %v825 = vadd.f32 %v90, %v824
  %v826 = vpop.f32.mrf.mxu0
  %v827 = vadd.f32 %v90, %v826
  %828 = vmatmul.bf16.gmra.mxu0 %v302
  %v829 = vpop.f32.mrf.mxu0
  %v830 = vadd.f32 %v90, %v829
  %v831 = vpop.f32.mrf.mxu0
  %v832 = vadd.f32 %v90, %v831
  %833 = vmatmul.bf16.gmra.mxu0 %v305
  %v834 = vpop.f32.mrf.mxu0
  %v835 = vadd.f32 %v90, %v834
  %v836 = vpop.f32.mrf.mxu0
  %v837 = vadd.f32 %v90, %v836
  %838 = vmatmul.bf16.gmra.mxu0 %v308
  %v839 = vpop.f32.mrf.mxu0
  %v840 = vadd.f32 %v90, %v839
  %v841 = vpop.f32.mrf.mxu0
  %v842 = vadd.f32 %v90, %v841
  %843 = vdwg.mxu0
  %844 = vmatpush.bf16.msra.mxu0 0
  %845 = vmatpush.bf16.msra.mxu0 0
  %846 = vmatpush.bf16.msra.mxu0 0
  %847 = vmatpush.bf16.msra.mxu0 0
  %848 = vmatpush.bf16.msra.mxu0 0
  %849 = vmatpush.bf16.msra.mxu0 0
  %850 = vmatpush.bf16.msra.mxu0 %v243
  %851 = vmatpush.bf16.msra.mxu0 %v235
  %852 = vmatmul.bf16.gmra.mxu0 %v263
  %v853 = vpop.f32.mrf.mxu0
  %v854 = vadd.f32 %v91, %v853
  %v855 = vpop.f32.mrf.mxu0
  %v856 = vadd.f32 %v91, %v855
  %857 = vmatmul.bf16.gmra.mxu0 %v266
  %v858 = vpop.f32.mrf.mxu0
  %v859 = vadd.f32 %v91, %v858
  %v860 = vpop.f32.mrf.mxu0
  %v861 = vadd.f32 %v91, %v860
  %862 = vmatmul.bf16.gmra.mxu0 %v269
  %v863 = vpop.f32.mrf.mxu0
  %v864 = vadd.f32 %v91, %v863
  %v865 = vpop.f32.mrf.mxu0
  %v866 = vadd.f32 %v91, %v865
  %867 = vmatmul.bf16.gmra.mxu0 %v272
  %v868 = vpop.f32.mrf.mxu0
  %v869 = vadd.f32 %v91, %v868
  %v870 = vpop.f32.mrf.mxu0
  %v871 = vadd.f32 %v91, %v870
  %872 = vmatmul.bf16.gmra.mxu0 %v275
  %v873 = vpop.f32.mrf.mxu0
  %v874 = vadd.f32 %v91, %v873
  %v875 = vpop.f32.mrf.mxu0
  %v876 = vadd.f32 %v91, %v875
  %877 = vmatmul.bf16.gmra.mxu0 %v278
  %v878 = vpop.f32.mrf.mxu0
  %v879 = vadd.f32 %v91, %v878
  %v880 = vpop.f32.mrf.mxu0
  %v881 = vadd.f32 %v91, %v880
  %882 = vmatmul.bf16.gmra.mxu0 %v281
  %v883 = vpop.f32.mrf.mxu0
  %v884 = vadd.f32 %v91, %v883
  %v885 = vpop.f32.mrf.mxu0
  %v886 = vadd.f32 %v91, %v885
  %887 = vmatmul.bf16.gmra.mxu0 %v284
  %v888 = vpop.f32.mrf.mxu0
  %v889 = vadd.f32 %v91, %v888
  %v890 = vpop.f32.mrf.mxu0
  %v891 = vadd.f32 %v91, %v890
  %892 = vmatmul.bf16.gmra.mxu0 %v287
  %v893 = vpop.f32.mrf.mxu0
  %v894 = vadd.f32 %v91, %v893
  %v895 = vpop.f32.mrf.mxu0
  %v896 = vadd.f32 %v91, %v895
  %897 = vmatmul.bf16.gmra.mxu0 %v290
  %v898 = vpop.f32.mrf.mxu0
  %v899 = vadd.f32 %v91, %v898
  %v900 = vpop.f32.mrf.mxu0
  %v901 = vadd.f32 %v91, %v900
  %902 = vmatmul.bf16.gmra.mxu0 %v293
  %v903 = vpop.f32.mrf.mxu0
  %v904 = vadd.f32 %v91, %v903
  %v905 = vpop.f32.mrf.mxu0
  %v906 = vadd.f32 %v91, %v905
  %907 = vmatmul.bf16.gmra.mxu0 %v296
  %v908 = vpop.f32.mrf.mxu0
  %v909 = vadd.f32 %v91, %v908
  %v910 = vpop.f32.mrf.mxu0
  %v911 = vadd.f32 %v91, %v910
  %912 = vmatmul.bf16.gmra.mxu0 %v299
  %v913 = vpop.f32.mrf.mxu0
  %v914 = vadd.f32 %v91, %v913
  %v915 = vpop.f32.mrf.mxu0
  %v916 = vadd.f32 %v91, %v915
  %917 = vmatmul.bf16.gmra.mxu0 %v302
  %v918 = vpop.f32.mrf.mxu0
  %v919 = vadd.f32 %v91, %v918
  %v920 = vpop.f32.mrf.mxu0
  %v921 = vadd.f32 %v91, %v920
  %922 = vmatmul.bf16.gmra.mxu0 %v305
  %v923 = vpop.f32.mrf.mxu0
  %v924 = vadd.f32 %v91, %v923
  %v925 = vpop.f32.mrf.mxu0
  %v926 = vadd.f32 %v91, %v925
  %927 = vmatmul.bf16.gmra.mxu0 %v308
  %v928 = vpop.f32.mrf.mxu0
  %v929 = vadd.f32 %v91, %v928
  %v930 = vpop.f32.mrf.mxu0
  %v931 = vadd.f32 %v91, %v930
  %932 = vdwg.mxu0
  %933 = vmatpush.bf16.msra.mxu0 0
  %934 = vmatpush.bf16.msra.mxu0 0
  %935 = vmatpush.bf16.msra.mxu0 0
  %936 = vmatpush.bf16.msra.mxu0 0
  %937 = vmatpush.bf16.msra.mxu0 0
  %938 = vmatpush.bf16.msra.mxu0 0
  %939 = vmatpush.bf16.msra.mxu0 %v244
  %940 = vmatpush.bf16.msra.mxu0 %v236
  %941 = vmatmul.bf16.gmra.mxu0 %v263
  %v942 = vpop.f32.mrf.mxu0
  %v943 = vadd.f32 %v92, %v942
  %v944 = vpop.f32.mrf.mxu0
  %v945 = vadd.f32 %v92, %v944
  %946 = vmatmul.bf16.gmra.mxu0 %v266
  %v947 = vpop.f32.mrf.mxu0
  %v948 = vadd.f32 %v92, %v947
  %v949 = vpop.f32.mrf.mxu0
  %v950 = vadd.f32 %v92, %v949
  %951 = vmatmul.bf16.gmra.mxu0 %v269
  %v952 = vpop.f32.mrf.mxu0
  %v953 = vadd.f32 %v92, %v952
  %v954 = vpop.f32.mrf.mxu0
  %v955 = vadd.f32 %v92, %v954
  %956 = vmatmul.bf16.gmra.mxu0 %v272
  %v957 = vpop.f32.mrf.mxu0
  %v958 = vadd.f32 %v92, %v957
  %v959 = vpop.f32.mrf.mxu0
  %v960 = vadd.f32 %v92, %v959
  %961 = vmatmul.bf16.gmra.mxu0 %v275
  %v962 = vpop.f32.mrf.mxu0
  %v963 = vadd.f32 %v92, %v962
  %v964 = vpop.f32.mrf.mxu0
  %v965 = vadd.f32 %v92, %v964
  %966 = vmatmul.bf16.gmra.mxu0 %v278
  %v967 = vpop.f32.mrf.mxu0
  %v968 = vadd.f32 %v92, %v967
  %v969 = vpop.f32.mrf.mxu0
  %v970 = vadd.f32 %v92, %v969
  %971 = vmatmul.bf16.gmra.mxu0 %v281
  %v972 = vpop.f32.mrf.mxu0
  %v973 = vadd.f32 %v92, %v972
  %v974 = vpop.f32.mrf.mxu0
  %v975 = vadd.f32 %v92, %v974
  %976 = vmatmul.bf16.gmra.mxu0 %v284
  %v977 = vpop.f32.mrf.mxu0
  %v978 = vadd.f32 %v92, %v977
  %v979 = vpop.f32.mrf.mxu0
  %v980 = vadd.f32 %v92, %v979
  %981 = vmatmul.bf16.gmra.mxu0 %v287
  %v982 = vpop.f32.mrf.mxu0
  %v983 = vadd.f32 %v92, %v982
  %v984 = vpop.f32.mrf.mxu0
  %v985 = vadd.f32 %v92, %v984
  %986 = vmatmul.bf16.gmra.mxu0 %v290
  %v987 = vpop.f32.mrf.mxu0
  %v988 = vadd.f32 %v92, %v987
  %v989 = vpop.f32.mrf.mxu0
  %v990 = vadd.f32 %v92, %v989
  %991 = vmatmul.bf16.gmra.mxu0 %v293
  %v992 = vpop.f32.mrf.mxu0
  %v993 = vadd.f32 %v92, %v992
  %v994 = vpop.f32.mrf.mxu0
  %v995 = vadd.f32 %v92, %v994
  %996 = vmatmul.bf16.gmra.mxu0 %v296
  %v997 = vpop.f32.mrf.mxu0
  %v998 = vadd.f32 %v92, %v997
  %v999 = vpop.f32.mrf.mxu0
  %v1000 = vadd.f32 %v92, %v999
  %1001 = vmatmul.bf16.gmra.mxu0 %v299
  %v1002 = vpop.f32.mrf.mxu0
  %v1003 = vadd.f32 %v92, %v1002
  %v1004 = vpop.f32.mrf.mxu0
  %v1005 = vadd.f32 %v92, %v1004
  %1006 = vmatmul.bf16.gmra.mxu0 %v302
  %v1007 = vpop.f32.mrf.mxu0
  %v1008 = vadd.f32 %v92, %v1007
  %v1009 = vpop.f32.mrf.mxu0
  %v1010 = vadd.f32 %v92, %v1009
  %1011 = vmatmul.bf16.gmra.mxu0 %v305
  %v1012 = vpop.f32.mrf.mxu0
  %v1013 = vadd.f32 %v92, %v1012
  %v1014 = vpop.f32.mrf.mxu0
  %v1015 = vadd.f32 %v92, %v1014
  %1016 = vmatmul.bf16.gmra.mxu0 %v308
  %v1017 = vpop.f32.mrf.mxu0
  %v1018 = vadd.f32 %v92, %v1017
  %v1019 = vpop.f32.mrf.mxu0
  %v1020 = vadd.f32 %v92, %v1019
  %1021 = vdwg.mxu0
  %v1022 = vmax.f32 %v320, 0.0
  %v1023 = vmax.f32 %v409, 0.0
  %v1024 = vmax.f32 %v498, 0.0
  %v1025 = vmax.f32 %v587, 0.0
  %v1026 = vmax.f32 %v676, 0.0
  %v1027 = vmax.f32 %v765, 0.0
  %v1028 = vmax.f32 %v854, 0.0
  %v1029 = vmax.f32 %v943, 0.0
  %v1030 = vmax.f32 %v322, 0.0
  %v1031 = vmax.f32 %v411, 0.0
  %v1032 = vmax.f32 %v500, 0.0
  %v1033 = vmax.f32 %v589, 0.0
  %v1034 = vmax.f32 %v678, 0.0
  %v1035 = vmax.f32 %v767, 0.0
  %v1036 = vmax.f32 %v856, 0.0
  %v1037 = vmax.f32 %v945, 0.0
  %v1038 = vmax.f32 %v325, 0.0
  %v1039 = vmax.f32 %v414, 0.0
  %v1040 = vmax.f32 %v503, 0.0
  %v1041 = vmax.f32 %v592, 0.0
  %v1042 = vmax.f32 %v681, 0.0
  %v1043 = vmax.f32 %v770, 0.0
  %v1044 = vmax.f32 %v859, 0.0
  %v1045 = vmax.f32 %v948, 0.0
  %v1046 = vmax.f32 %v327, 0.0
  %v1047 = vmax.f32 %v416, 0.0
  %v1048 = vmax.f32 %v505, 0.0
  %v1049 = vmax.f32 %v594, 0.0
  %v1050 = vmax.f32 %v683, 0.0
  %v1051 = vmax.f32 %v772, 0.0
  %v1052 = vmax.f32 %v861, 0.0
  %v1053 = vmax.f32 %v950, 0.0
  %v1054 = vmax.f32 %v330, 0.0
  %v1055 = vmax.f32 %v419, 0.0
  %v1056 = vmax.f32 %v508, 0.0
  %v1057 = vmax.f32 %v597, 0.0
  %v1058 = vmax.f32 %v686, 0.0
  %v1059 = vmax.f32 %v775, 0.0
  %v1060 = vmax.f32 %v864, 0.0
  %v1061 = vmax.f32 %v953, 0.0
  %v1062 = vmax.f32 %v332, 0.0
  %v1063 = vmax.f32 %v421, 0.0
  %v1064 = vmax.f32 %v510, 0.0
  %v1065 = vmax.f32 %v599, 0.0
  %v1066 = vmax.f32 %v688, 0.0
  %v1067 = vmax.f32 %v777, 0.0
  %v1068 = vmax.f32 %v866, 0.0
  %v1069 = vmax.f32 %v955, 0.0
  %v1070 = vmax.f32 %v335, 0.0
  %v1071 = vmax.f32 %v424, 0.0
  %v1072 = vmax.f32 %v513, 0.0
  %v1073 = vmax.f32 %v602, 0.0
  %v1074 = vmax.f32 %v691, 0.0
  %v1075 = vmax.f32 %v780, 0.0
  %v1076 = vmax.f32 %v869, 0.0
  %v1077 = vmax.f32 %v958, 0.0
  %v1078 = vmax.f32 %v337, 0.0
  %v1079 = vmax.f32 %v426, 0.0
  %v1080 = vmax.f32 %v515, 0.0
  %v1081 = vmax.f32 %v604, 0.0
  %v1082 = vmax.f32 %v693, 0.0
  %v1083 = vmax.f32 %v782, 0.0
  %v1084 = vmax.f32 %v871, 0.0
  %v1085 = vmax.f32 %v960, 0.0
  %v1086 = vmax.f32 %v340, 0.0
  %v1087 = vmax.f32 %v429, 0.0
  %v1088 = vmax.f32 %v518, 0.0
  %v1089 = vmax.f32 %v607, 0.0
  %v1090 = vmax.f32 %v696, 0.0
  %v1091 = vmax.f32 %v785, 0.0
  %v1092 = vmax.f32 %v874, 0.0
  %v1093 = vmax.f32 %v963, 0.0
  %v1094 = vmax.f32 %v342, 0.0
  %v1095 = vmax.f32 %v431, 0.0
  %v1096 = vmax.f32 %v520, 0.0
  %v1097 = vmax.f32 %v609, 0.0
  %v1098 = vmax.f32 %v698, 0.0
  %v1099 = vmax.f32 %v787, 0.0
  %v1100 = vmax.f32 %v876, 0.0
  %v1101 = vmax.f32 %v965, 0.0
  %v1102 = vmax.f32 %v345, 0.0
  %v1103 = vmax.f32 %v434, 0.0
  %v1104 = vmax.f32 %v523, 0.0
  %v1105 = vmax.f32 %v612, 0.0
  %v1106 = vmax.f32 %v701, 0.0
  %v1107 = vmax.f32 %v790, 0.0
  %v1108 = vmax.f32 %v879, 0.0
  %v1109 = vmax.f32 %v968, 0.0
  %v1110 = vmax.f32 %v347, 0.0
  %v1111 = vmax.f32 %v436, 0.0
  %v1112 = vmax.f32 %v525, 0.0
  %v1113 = vmax.f32 %v614, 0.0
  %v1114 = vmax.f32 %v703, 0.0
  %v1115 = vmax.f32 %v792, 0.0
  %v1116 = vmax.f32 %v881, 0.0
  %v1117 = vmax.f32 %v970, 0.0
  %v1118 = vmax.f32 %v350, 0.0
  %v1119 = vmax.f32 %v439, 0.0
  %v1120 = vmax.f32 %v528, 0.0
  %v1121 = vmax.f32 %v617, 0.0
  %v1122 = vmax.f32 %v706, 0.0
  %v1123 = vmax.f32 %v795, 0.0
  %v1124 = vmax.f32 %v884, 0.0
  %v1125 = vmax.f32 %v973, 0.0
  %v1126 = vmax.f32 %v352, 0.0
  %v1127 = vmax.f32 %v441, 0.0
  %v1128 = vmax.f32 %v530, 0.0
  %v1129 = vmax.f32 %v619, 0.0
  %v1130 = vmax.f32 %v708, 0.0
  %v1131 = vmax.f32 %v797, 0.0
  %v1132 = vmax.f32 %v886, 0.0
  %v1133 = vmax.f32 %v975, 0.0
  %v1134 = vmax.f32 %v355, 0.0
  %v1135 = vmax.f32 %v444, 0.0
  %v1136 = vmax.f32 %v533, 0.0
  %v1137 = vmax.f32 %v622, 0.0
  %v1138 = vmax.f32 %v711, 0.0
  %v1139 = vmax.f32 %v800, 0.0
  %v1140 = vmax.f32 %v889, 0.0
  %v1141 = vmax.f32 %v978, 0.0
  %v1142 = vmax.f32 %v357, 0.0
  %v1143 = vmax.f32 %v446, 0.0
  %v1144 = vmax.f32 %v535, 0.0
  %v1145 = vmax.f32 %v624, 0.0
  %v1146 = vmax.f32 %v713, 0.0
  %v1147 = vmax.f32 %v802, 0.0
  %v1148 = vmax.f32 %v891, 0.0
  %v1149 = vmax.f32 %v980, 0.0
  %v1150 = vmax.f32 %v360, 0.0
  %v1151 = vmax.f32 %v449, 0.0
  %v1152 = vmax.f32 %v538, 0.0
  %v1153 = vmax.f32 %v627, 0.0
  %v1154 = vmax.f32 %v716, 0.0
  %v1155 = vmax.f32 %v805, 0.0
  %v1156 = vmax.f32 %v894, 0.0
  %v1157 = vmax.f32 %v983, 0.0
  %v1158 = vmax.f32 %v362, 0.0
  %v1159 = vmax.f32 %v451, 0.0
  %v1160 = vmax.f32 %v540, 0.0
  %v1161 = vmax.f32 %v629, 0.0
  %v1162 = vmax.f32 %v718, 0.0
  %v1163 = vmax.f32 %v807, 0.0
  %v1164 = vmax.f32 %v896, 0.0
  %v1165 = vmax.f32 %v985, 0.0
  %v1166 = vmax.f32 %v365, 0.0
  %v1167 = vmax.f32 %v454, 0.0
  %v1168 = vmax.f32 %v543, 0.0
  %v1169 = vmax.f32 %v632, 0.0
  %v1170 = vmax.f32 %v721, 0.0
  %v1171 = vmax.f32 %v810, 0.0
  %v1172 = vmax.f32 %v899, 0.0
  %v1173 = vmax.f32 %v988, 0.0
  %v1174 = vmax.f32 %v367, 0.0
  %v1175 = vmax.f32 %v456, 0.0
  %v1176 = vmax.f32 %v545, 0.0
  %v1177 = vmax.f32 %v634, 0.0
  %v1178 = vmax.f32 %v723, 0.0
  %v1179 = vmax.f32 %v812, 0.0
  %v1180 = vmax.f32 %v901, 0.0
  %v1181 = vmax.f32 %v990, 0.0
  %v1182 = vmax.f32 %v370, 0.0
  %v1183 = vmax.f32 %v459, 0.0
  %v1184 = vmax.f32 %v548, 0.0
  %v1185 = vmax.f32 %v637, 0.0
  %v1186 = vmax.f32 %v726, 0.0
  %v1187 = vmax.f32 %v815, 0.0
  %v1188 = vmax.f32 %v904, 0.0
  %v1189 = vmax.f32 %v993, 0.0
  %v1190 = vmax.f32 %v372, 0.0
  %v1191 = vmax.f32 %v461, 0.0
  %v1192 = vmax.f32 %v550, 0.0
  %v1193 = vmax.f32 %v639, 0.0
  %v1194 = vmax.f32 %v728, 0.0
  %v1195 = vmax.f32 %v817, 0.0
  %v1196 = vmax.f32 %v906, 0.0
  %v1197 = vmax.f32 %v995, 0.0
  %v1198 = vmax.f32 %v375, 0.0
  %v1199 = vmax.f32 %v464, 0.0
  %v1200 = vmax.f32 %v553, 0.0
  %v1201 = vmax.f32 %v642, 0.0
  %v1202 = vmax.f32 %v731, 0.0
  %v1203 = vmax.f32 %v820, 0.0
  %v1204 = vmax.f32 %v909, 0.0
  %v1205 = vmax.f32 %v998, 0.0
  %v1206 = vmax.f32 %v377, 0.0
  %v1207 = vmax.f32 %v466, 0.0
  %v1208 = vmax.f32 %v555, 0.0
  %v1209 = vmax.f32 %v644, 0.0
  %v1210 = vmax.f32 %v733, 0.0
  %v1211 = vmax.f32 %v822, 0.0
  %v1212 = vmax.f32 %v911, 0.0
  %v1213 = vmax.f32 %v1000, 0.0
  %v1214 = vmax.f32 %v380, 0.0
  %v1215 = vmax.f32 %v469, 0.0
  %v1216 = vmax.f32 %v558, 0.0
  %v1217 = vmax.f32 %v647, 0.0
  %v1218 = vmax.f32 %v736, 0.0
  %v1219 = vmax.f32 %v825, 0.0
  %v1220 = vmax.f32 %v914, 0.0
  %v1221 = vmax.f32 %v1003, 0.0
  %v1222 = vmax.f32 %v382, 0.0
  %v1223 = vmax.f32 %v471, 0.0
  %v1224 = vmax.f32 %v560, 0.0
  %v1225 = vmax.f32 %v649, 0.0
  %v1226 = vmax.f32 %v738, 0.0
  %v1227 = vmax.f32 %v827, 0.0
  %v1228 = vmax.f32 %v916, 0.0
  %v1229 = vmax.f32 %v1005, 0.0
  %v1230 = vmax.f32 %v385, 0.0
  %v1231 = vmax.f32 %v474, 0.0
  %v1232 = vmax.f32 %v563, 0.0
  %v1233 = vmax.f32 %v652, 0.0
  %v1234 = vmax.f32 %v741, 0.0
  %v1235 = vmax.f32 %v830, 0.0
  %v1236 = vmax.f32 %v919, 0.0
  %v1237 = vmax.f32 %v1008, 0.0
  %v1238 = vmax.f32 %v387, 0.0
  %v1239 = vmax.f32 %v476, 0.0
  %v1240 = vmax.f32 %v565, 0.0
  %v1241 = vmax.f32 %v654, 0.0
  %v1242 = vmax.f32 %v743, 0.0
  %v1243 = vmax.f32 %v832, 0.0
  %v1244 = vmax.f32 %v921, 0.0
  %v1245 = vmax.f32 %v1010, 0.0
  %v1246 = vmax.f32 %v390, 0.0
  %v1247 = vmax.f32 %v479, 0.0
  %v1248 = vmax.f32 %v568, 0.0
  %v1249 = vmax.f32 %v657, 0.0
  %v1250 = vmax.f32 %v746, 0.0
  %v1251 = vmax.f32 %v835, 0.0
  %v1252 = vmax.f32 %v924, 0.0
  %v1253 = vmax.f32 %v1013, 0.0
  %v1254 = vmax.f32 %v392, 0.0
  %v1255 = vmax.f32 %v481, 0.0
  %v1256 = vmax.f32 %v570, 0.0
  %v1257 = vmax.f32 %v659, 0.0
  %v1258 = vmax.f32 %v748, 0.0
  %v1259 = vmax.f32 %v837, 0.0
  %v1260 = vmax.f32 %v926, 0.0
  %v1261 = vmax.f32 %v1015, 0.0
  %v1262 = vmax.f32 %v395, 0.0
  %v1263 = vmax.f32 %v484, 0.0
  %v1264 = vmax.f32 %v573, 0.0
  %v1265 = vmax.f32 %v662, 0.0
  %v1266 = vmax.f32 %v751, 0.0
  %v1267 = vmax.f32 %v840, 0.0
  %v1268 = vmax.f32 %v929, 0.0
  %v1269 = vmax.f32 %v1018, 0.0
  %v1270 = vmax.f32 %v397, 0.0
  %v1271 = vmax.f32 %v486, 0.0
  %v1272 = vmax.f32 %v575, 0.0
  %v1273 = vmax.f32 %v664, 0.0
  %v1274 = vmax.f32 %v753, 0.0
  %v1275 = vmax.f32 %v842, 0.0
  %v1276 = vmax.f32 %v931, 0.0
  %v1277 = vmax.f32 %v1020, 0.0
  %v1278 = vpack.c.bf16 %v1030, %v1022
  %v1279 = vpack.c.bf16 %v1031, %v1023
  %v1280 = vpack.c.bf16 %v1032, %v1024
  %v1281 = vpack.c.bf16 %v1033, %v1025
  %v1282 = vpack.c.bf16 %v1034, %v1026
  %v1283 = vpack.c.bf16 %v1035, %v1027
  %v1284 = vpack.c.bf16 %v1036, %v1028
  %v1285 = vpack.c.bf16 %v1037, %v1029
  %v1286 = vpack.c.bf16 %v1046, %v1038
  %v1287 = vpack.c.bf16 %v1047, %v1039
  %v1288 = vpack.c.bf16 %v1048, %v1040
  %v1289 = vpack.c.bf16 %v1049, %v1041
  %v1290 = vpack.c.bf16 %v1050, %v1042
  %v1291 = vpack.c.bf16 %v1051, %v1043
  %v1292 = vpack.c.bf16 %v1052, %v1044
  %v1293 = vpack.c.bf16 %v1053, %v1045
  %v1294 = vpack.c.bf16 %v1062, %v1054
  %v1295 = vpack.c.bf16 %v1063, %v1055
  %v1296 = vpack.c.bf16 %v1064, %v1056
  %v1297 = vpack.c.bf16 %v1065, %v1057
  %v1298 = vpack.c.bf16 %v1066, %v1058
  %v1299 = vpack.c.bf16 %v1067, %v1059
  %v1300 = vpack.c.bf16 %v1068, %v1060
  %v1301 = vpack.c.bf16 %v1069, %v1061
  %v1302 = vpack.c.bf16 %v1078, %v1070
  %v1303 = vpack.c.bf16 %v1079, %v1071
  %v1304 = vpack.c.bf16 %v1080, %v1072
  %v1305 = vpack.c.bf16 %v1081, %v1073
  %v1306 = vpack.c.bf16 %v1082, %v1074
  %v1307 = vpack.c.bf16 %v1083, %v1075
  %v1308 = vpack.c.bf16 %v1084, %v1076
  %v1309 = vpack.c.bf16 %v1085, %v1077
  %v1310 = vpack.c.bf16 %v1094, %v1086
  %v1311 = vpack.c.bf16 %v1095, %v1087
  %v1312 = vpack.c.bf16 %v1096, %v1088
  %v1313 = vpack.c.bf16 %v1097, %v1089
  %v1314 = vpack.c.bf16 %v1098, %v1090
  %v1315 = vpack.c.bf16 %v1099, %v1091
  %v1316 = vpack.c.bf16 %v1100, %v1092
  %v1317 = vpack.c.bf16 %v1101, %v1093
  %v1318 = vpack.c.bf16 %v1110, %v1102
  %v1319 = vpack.c.bf16 %v1111, %v1103
  %v1320 = vpack.c.bf16 %v1112, %v1104
  %v1321 = vpack.c.bf16 %v1113, %v1105
  %v1322 = vpack.c.bf16 %v1114, %v1106
  %v1323 = vpack.c.bf16 %v1115, %v1107
  %v1324 = vpack.c.bf16 %v1116, %v1108
  %v1325 = vpack.c.bf16 %v1117, %v1109
  %v1326 = vpack.c.bf16 %v1126, %v1118
  %v1327 = vpack.c.bf16 %v1127, %v1119
  %v1328 = vpack.c.bf16 %v1128, %v1120
  %v1329 = vpack.c.bf16 %v1129, %v1121
  %v1330 = vpack.c.bf16 %v1130, %v1122
  %v1331 = vpack.c.bf16 %v1131, %v1123
  %v1332 = vpack.c.bf16 %v1132, %v1124
  %v1333 = vpack.c.bf16 %v1133, %v1125
  %v1334 = vpack.c.bf16 %v1142, %v1134
  %v1335 = vpack.c.bf16 %v1143, %v1135
  %v1336 = vpack.c.bf16 %v1144, %v1136
  %v1337 = vpack.c.bf16 %v1145, %v1137
  %v1338 = vpack.c.bf16 %v1146, %v1138
  %v1339 = vpack.c.bf16 %v1147, %v1139
  %v1340 = vpack.c.bf16 %v1148, %v1140
  %v1341 = vpack.c.bf16 %v1149, %v1141
  %v1342 = vpack.c.bf16 %v1158, %v1150
  %v1343 = vpack.c.bf16 %v1159, %v1151
  %v1344 = vpack.c.bf16 %v1160, %v1152
  %v1345 = vpack.c.bf16 %v1161, %v1153
  %v1346 = vpack.c.bf16 %v1162, %v1154
  %v1347 = vpack.c.bf16 %v1163, %v1155
  %v1348 = vpack.c.bf16 %v1164, %v1156
  %v1349 = vpack.c.bf16 %v1165, %v1157
  %v1350 = vpack.c.bf16 %v1174, %v1166
  %v1351 = vpack.c.bf16 %v1175, %v1167
  %v1352 = vpack.c.bf16 %v1176, %v1168
  %v1353 = vpack.c.bf16 %v1177, %v1169
  %v1354 = vpack.c.bf16 %v1178, %v1170
  %v1355 = vpack.c.bf16 %v1179, %v1171
  %v1356 = vpack.c.bf16 %v1180, %v1172
  %v1357 = vpack.c.bf16 %v1181, %v1173
  %v1358 = vpack.c.bf16 %v1190, %v1182
  %v1359 = vpack.c.bf16 %v1191, %v1183
  %v1360 = vpack.c.bf16 %v1192, %v1184
  %v1361 = vpack.c.bf16 %v1193, %v1185
  %v1362 = vpack.c.bf16 %v1194, %v1186
  %v1363 = vpack.c.bf16 %v1195, %v1187
  %v1364 = vpack.c.bf16 %v1196, %v1188
  %v1365 = vpack.c.bf16 %v1197, %v1189
  %v1366 = vpack.c.bf16 %v1206, %v1198
  %v1367 = vpack.c.bf16 %v1207, %v1199
  %v1368 = vpack.c.bf16 %v1208, %v1200
  %v1369 = vpack.c.bf16 %v1209, %v1201
  %v1370 = vpack.c.bf16 %v1210, %v1202
  %v1371 = vpack.c.bf16 %v1211, %v1203
  %v1372 = vpack.c.bf16 %v1212, %v1204
  %v1373 = vpack.c.bf16 %v1213, %v1205
  %v1374 = vpack.c.bf16 %v1222, %v1214
  %v1375 = vpack.c.bf16 %v1223, %v1215
  %v1376 = vpack.c.bf16 %v1224, %v1216
  %v1377 = vpack.c.bf16 %v1225, %v1217
  %v1378 = vpack.c.bf16 %v1226, %v1218
  %v1379 = vpack.c.bf16 %v1227, %v1219
  %v1380 = vpack.c.bf16 %v1228, %v1220
  %v1381 = vpack.c.bf16 %v1229, %v1221
  %v1382 = vpack.c.bf16 %v1238, %v1230
  %v1383 = vpack.c.bf16 %v1239, %v1231
  %v1384 = vpack.c.bf16 %v1240, %v1232
  %v1385 = vpack.c.bf16 %v1241, %v1233
  %v1386 = vpack.c.bf16 %v1242, %v1234
  %v1387 = vpack.c.bf16 %v1243, %v1235
  %v1388 = vpack.c.bf16 %v1244, %v1236
  %v1389 = vpack.c.bf16 %v1245, %v1237
  %v1390 = vpack.c.bf16 %v1254, %v1246
  %v1391 = vpack.c.bf16 %v1255, %v1247
  %v1392 = vpack.c.bf16 %v1256, %v1248
  %v1393 = vpack.c.bf16 %v1257, %v1249
  %v1394 = vpack.c.bf16 %v1258, %v1250
  %v1395 = vpack.c.bf16 %v1259, %v1251
  %v1396 = vpack.c.bf16 %v1260, %v1252
  %v1397 = vpack.c.bf16 %v1261, %v1253
  %v1398 = vpack.c.bf16 %v1270, %v1262
  %v1399 = vpack.c.bf16 %v1271, %v1263
  %v1400 = vpack.c.bf16 %v1272, %v1264
  %v1401 = vpack.c.bf16 %v1273, %v1265
  %v1402 = vpack.c.bf16 %v1274, %v1266
  %v1403 = vpack.c.bf16 %v1275, %v1267
  %v1404 = vpack.c.bf16 %v1276, %v1268
  %v1405 = vpack.c.bf16 %v1277, %v1269
  %v1406 = vld [vmem:[%s3] sm:$0xff]
  %v1407 = vld [vmem:[%s3 + $0x8] sm:$0xff]
  %v1408 = vld [vmem:[%s3 + $0x10] sm:$0xff]
  %v1409 = vld [vmem:[%s3 + $0x18] sm:$0xff]
  %v1410 = vld [vmem:[%s3 + $0x20] sm:$0xff]
  %v1411 = vld [vmem:[%s3 + $0x28] sm:$0xff]
  %v1412 = vld [vmem:[%s3 + $0x30] sm:$0xff]
  %v1413 = vld [vmem:[%s3 + $0x38] sm:$0xff]
  %v1414 = vld [vmem:[%s3 + $0x40] sm:$0xff]
  %v1415 = vld [vmem:[%s3 + $0x48] sm:$0xff]
  %v1416 = vld [vmem:[%s3 + $0x50] sm:$0xff]
  %v1417 = vld [vmem:[%s3 + $0x58] sm:$0xff]
  %v1418 = vld [vmem:[%s3 + $0x60] sm:$0xff]
  %v1419 = vld [vmem:[%s3 + $0x68] sm:$0xff]
  %v1420 = vld [vmem:[%s3 + $0x70] sm:$0xff]
  %v1421 = vld [vmem:[%s3 + $0x78] sm:$0xff]
  %v1422 = vld [vmem:[%s3 + $0x80] sm:$0xff]
  %v1423 = vld [vmem:[%s3 + $0x88] sm:$0xff]
  %v1424 = vld [vmem:[%s3 + $0x90] sm:$0xff]
  %v1425 = vld [vmem:[%s3 + $0x98] sm:$0xff]
  %v1426 = vld [vmem:[%s3 + $0xa0] sm:$0xff]
  %v1427 = vld [vmem:[%s3 + $0xa8] sm:$0xff]
  %v1428 = vld [vmem:[%s3 + $0xb0] sm:$0xff]
  %v1429 = vld [vmem:[%s3 + $0xb8] sm:$0xff]
  %v1430 = vld [vmem:[%s3 + $0xc0] sm:$0xff]
  %v1431 = vld [vmem:[%s3 + $0xc8] sm:$0xff]
  %v1432 = vld [vmem:[%s3 + $0xd0] sm:$0xff]
  %v1433 = vld [vmem:[%s3 + $0xd8] sm:$0xff]
  %v1434 = vld [vmem:[%s3 + $0xe0] sm:$0xff]
  %v1435 = vld [vmem:[%s3 + $0xe8] sm:$0xff]
  %v1436 = vld [vmem:[%s3 + $0xf0] sm:$0xff]
  %v1437 = vld [vmem:[%s3 + $0xf8] sm:$0xff]
  %v1438 = vld [vmem:[%s3 + $0x100] sm:$0xff]
  %v1439 = vld [vmem:[%s3 + $0x108] sm:$0xff]
  %v1440 = vld [vmem:[%s3 + $0x110] sm:$0xff]
  %v1441 = vld [vmem:[%s3 + $0x118] sm:$0xff]
  %v1442 = vld [vmem:[%s3 + $0x120] sm:$0xff]
  %v1443 = vld [vmem:[%s3 + $0x128] sm:$0xff]
  %v1444 = vld [vmem:[%s3 + $0x130] sm:$0xff]
  %v1445 = vld [vmem:[%s3 + $0x138] sm:$0xff]
  %v1446 = vld [vmem:[%s3 + $0x140] sm:$0xff]
  %v1447 = vld [vmem:[%s3 + $0x148] sm:$0xff]
  %v1448 = vld [vmem:[%s3 + $0x150] sm:$0xff]
  %v1449 = vld [vmem:[%s3 + $0x158] sm:$0xff]
  %v1450 = vld [vmem:[%s3 + $0x160] sm:$0xff]
  %v1451 = vld [vmem:[%s3 + $0x168] sm:$0xff]
  %v1452 = vld [vmem:[%s3 + $0x170] sm:$0xff]
  %v1453 = vld [vmem:[%s3 + $0x178] sm:$0xff]
  %v1454 = vld [vmem:[%s3 + $0x180] sm:$0xff]
  %v1455 = vld [vmem:[%s3 + $0x188] sm:$0xff]
  %v1456 = vld [vmem:[%s3 + $0x190] sm:$0xff]
  %v1457 = vld [vmem:[%s3 + $0x198] sm:$0xff]
  %v1458 = vld [vmem:[%s3 + $0x1a0] sm:$0xff]
  %v1459 = vld [vmem:[%s3 + $0x1a8] sm:$0xff]
  %v1460 = vld [vmem:[%s3 + $0x1b0] sm:$0xff]
  %v1461 = vld [vmem:[%s3 + $0x1b8] sm:$0xff]
  %v1462 = vld [vmem:[%s3 + $0x1c0] sm:$0xff]
  %v1463 = vld [vmem:[%s3 + $0x1c8] sm:$0xff]
  %v1464 = vld [vmem:[%s3 + $0x1d0] sm:$0xff]
  %v1465 = vld [vmem:[%s3 + $0x1d8] sm:$0xff]
  %v1466 = vld [vmem:[%s3 + $0x1e0] sm:$0xff]
  %v1467 = vld [vmem:[%s3 + $0x1e8] sm:$0xff]
  %v1468 = vld [vmem:[%s3 + $0x1f0] sm:$0xff]
  %v1469 = vld [vmem:[%s3 + $0x1f8] sm:$0xff]
  %v1470 = vld [vmem:[%s3 + $0x200] sm:$0xff]
  %v1471 = vld [vmem:[%s3 + $0x208] sm:$0xff]
  %v1472 = vld [vmem:[%s3 + $0x210] sm:$0xff]
  %v1473 = vld [vmem:[%s3 + $0x218] sm:$0xff]
  %v1474 = vld [vmem:[%s3 + $0x220] sm:$0xff]
  %v1475 = vld [vmem:[%s3 + $0x228] sm:$0xff]
  %v1476 = vld [vmem:[%s3 + $0x230] sm:$0xff]
  %v1477 = vld [vmem:[%s3 + $0x238] sm:$0xff]
  %v1478 = vld [vmem:[%s3 + $0x240] sm:$0xff]
  %v1479 = vld [vmem:[%s3 + $0x248] sm:$0xff]
  %v1480 = vld [vmem:[%s3 + $0x250] sm:$0xff]
  %v1481 = vld [vmem:[%s3 + $0x258] sm:$0xff]
  %v1482 = vld [vmem:[%s3 + $0x260] sm:$0xff]
  %v1483 = vld [vmem:[%s3 + $0x268] sm:$0xff]
  %v1484 = vld [vmem:[%s3 + $0x270] sm:$0xff]
  %v1485 = vld [vmem:[%s3 + $0x278] sm:$0xff]
  %v1486 = vld [vmem:[%s3 + $0x280] sm:$0xff]
  %v1487 = vld [vmem:[%s3 + $0x288] sm:$0xff]
  %v1488 = vld [vmem:[%s3 + $0x290] sm:$0xff]
  %v1489 = vld [vmem:[%s3 + $0x298] sm:$0xff]
  %v1490 = vld [vmem:[%s3 + $0x2a0] sm:$0xff]
  %v1491 = vld [vmem:[%s3 + $0x2a8] sm:$0xff]
  %v1492 = vld [vmem:[%s3 + $0x2b0] sm:$0xff]
  %v1493 = vld [vmem:[%s3 + $0x2b8] sm:$0xff]
  %v1494 = vld [vmem:[%s3 + $0x2c0] sm:$0xff]
  %v1495 = vld [vmem:[%s3 + $0x2c8] sm:$0xff]
  %v1496 = vld [vmem:[%s3 + $0x2d0] sm:$0xff]
  %v1497 = vld [vmem:[%s3 + $0x2d8] sm:$0xff]
  %v1498 = vld [vmem:[%s3 + $0x2e0] sm:$0xff]
  %v1499 = vld [vmem:[%s3 + $0x2e8] sm:$0xff]
  %v1500 = vld [vmem:[%s3 + $0x2f0] sm:$0xff]
  %v1501 = vld [vmem:[%s3 + $0x2f8] sm:$0xff]
  %v1502 = vld [vmem:[%s3 + $0x300] sm:$0xff]
  %v1503 = vld [vmem:[%s3 + $0x308] sm:$0xff]
  %v1504 = vld [vmem:[%s3 + $0x310] sm:$0xff]
  %v1505 = vld [vmem:[%s3 + $0x318] sm:$0xff]
  %v1506 = vld [vmem:[%s3 + $0x320] sm:$0xff]
  %v1507 = vld [vmem:[%s3 + $0x328] sm:$0xff]
  %v1508 = vld [vmem:[%s3 + $0x330] sm:$0xff]
  %v1509 = vld [vmem:[%s3 + $0x338] sm:$0xff]
  %v1510 = vld [vmem:[%s3 + $0x340] sm:$0xff]
  %v1511 = vld [vmem:[%s3 + $0x348] sm:$0xff]
  %v1512 = vld [vmem:[%s3 + $0x350] sm:$0xff]
  %v1513 = vld [vmem:[%s3 + $0x358] sm:$0xff]
  %v1514 = vld [vmem:[%s3 + $0x360] sm:$0xff]
  %v1515 = vld [vmem:[%s3 + $0x368] sm:$0xff]
  %v1516 = vld [vmem:[%s3 + $0x370] sm:$0xff]
  %v1517 = vld [vmem:[%s3 + $0x378] sm:$0xff]
  %v1518 = vld [vmem:[%s3 + $0x380] sm:$0xff]
  %v1519 = vld [vmem:[%s3 + $0x388] sm:$0xff]
  %v1520 = vld [vmem:[%s3 + $0x390] sm:$0xff]
  %v1521 = vld [vmem:[%s3 + $0x398] sm:$0xff]
  %v1522 = vld [vmem:[%s3 + $0x3a0] sm:$0xff]
  %v1523 = vld [vmem:[%s3 + $0x3a8] sm:$0xff]
  %v1524 = vld [vmem:[%s3 + $0x3b0] sm:$0xff]
  %v1525 = vld [vmem:[%s3 + $0x3b8] sm:$0xff]
  %v1526 = vld [vmem:[%s3 + $0x3c0] sm:$0xff]
  %v1527 = vld [vmem:[%s3 + $0x3c8] sm:$0xff]
  %v1528 = vld [vmem:[%s3 + $0x3d0] sm:$0xff]
  %v1529 = vld [vmem:[%s3 + $0x3d8] sm:$0xff]
  %v1530 = vld [vmem:[%s3 + $0x3e0] sm:$0xff]
  %v1531 = vld [vmem:[%s3 + $0x3e8] sm:$0xff]
  %v1532 = vld [vmem:[%s3 + $0x3f0] sm:$0xff]
  %v1533 = vld [vmem:[%s3 + $0x3f8] sm:$0xff]
  %v1534 = vld [vmem:[%s3 + $0x400] sm:$0xff]
  %v1535 = vld [vmem:[%s3 + $0x408] sm:$0xff]
  %v1536 = vld [vmem:[%s3 + $0x410] sm:$0xff]
  %v1537 = vld [vmem:[%s3 + $0x418] sm:$0xff]
  %v1538 = vld [vmem:[%s3 + $0x420] sm:$0xff]
  %v1539 = vld [vmem:[%s3 + $0x428] sm:$0xff]
  %v1540 = vld [vmem:[%s3 + $0x430] sm:$0xff]
  %v1541 = vld [vmem:[%s3 + $0x438] sm:$0xff]
  %v1542 = vld [vmem:[%s3 + $0x440] sm:$0xff]
  %v1543 = vld [vmem:[%s3 + $0x448] sm:$0xff]
  %v1544 = vld [vmem:[%s3 + $0x450] sm:$0xff]
  %v1545 = vld [vmem:[%s3 + $0x458] sm:$0xff]
  %v1546 = vld [vmem:[%s3 + $0x460] sm:$0xff]
  %v1547 = vld [vmem:[%s3 + $0x468] sm:$0xff]
  %v1548 = vld [vmem:[%s3 + $0x470] sm:$0xff]
  %v1549 = vld [vmem:[%s3 + $0x478] sm:$0xff]
  %v1550 = vld [vmem:[%s3 + $0x480] sm:$0xff]
  %v1551 = vld [vmem:[%s3 + $0x488] sm:$0xff]
  %v1552 = vld [vmem:[%s3 + $0x490] sm:$0xff]
  %v1553 = vld [vmem:[%s3 + $0x498] sm:$0xff]
  %v1554 = vld [vmem:[%s3 + $0x4a0] sm:$0xff]
  %v1555 = vld [vmem:[%s3 + $0x4a8] sm:$0xff]
  %v1556 = vld [vmem:[%s3 + $0x4b0] sm:$0xff]
  %v1557 = vld [vmem:[%s3 + $0x4b8] sm:$0xff]
  %v1558 = vld [vmem:[%s3 + $0x4c0] sm:$0xff]
  %v1559 = vld [vmem:[%s3 + $0x4c8] sm:$0xff]
  %v1560 = vld [vmem:[%s3 + $0x4d0] sm:$0xff]
  %v1561 = vld [vmem:[%s3 + $0x4d8] sm:$0xff]
  %v1562 = vld [vmem:[%s3 + $0x4e0] sm:$0xff]
  %v1563 = vld [vmem:[%s3 + $0x4e8] sm:$0xff]
  %v1564 = vld [vmem:[%s3 + $0x4f0] sm:$0xff]
  %v1565 = vld [vmem:[%s3 + $0x4f8] sm:$0xff]
  %v1566 = vld [vmem:[%s3 + $0x500] sm:$0xff]
  %v1567 = vld [vmem:[%s3 + $0x508] sm:$0xff]
  %v1568 = vld [vmem:[%s3 + $0x510] sm:$0xff]
  %v1569 = vld [vmem:[%s3 + $0x518] sm:$0xff]
  %v1570 = vld [vmem:[%s3 + $0x520] sm:$0xff]
  %v1571 = vld [vmem:[%s3 + $0x528] sm:$0xff]
  %v1572 = vld [vmem:[%s3 + $0x530] sm:$0xff]
  %v1573 = vld [vmem:[%s3 + $0x538] sm:$0xff]
  %v1574 = vld [vmem:[%s3 + $0x540] sm:$0xff]
  %v1575 = vld [vmem:[%s3 + $0x548] sm:$0xff]
  %v1576 = vld [vmem:[%s3 + $0x550] sm:$0xff]
  %v1577 = vld [vmem:[%s3 + $0x558] sm:$0xff]
  %v1578 = vld [vmem:[%s3 + $0x560] sm:$0xff]
  %v1579 = vld [vmem:[%s3 + $0x568] sm:$0xff]
  %v1580 = vld [vmem:[%s3 + $0x570] sm:$0xff]
  %v1581 = vld [vmem:[%s3 + $0x578] sm:$0xff]
  %v1582 = vld [vmem:[%s3 + $0x580] sm:$0xff]
  %v1583 = vld [vmem:[%s3 + $0x588] sm:$0xff]
  %v1584 = vld [vmem:[%s3 + $0x590] sm:$0xff]
  %v1585 = vld [vmem:[%s3 + $0x598] sm:$0xff]
  %v1586 = vld [vmem:[%s3 + $0x5a0] sm:$0xff]
  %v1587 = vld [vmem:[%s3 + $0x5a8] sm:$0xff]
  %v1588 = vld [vmem:[%s3 + $0x5b0] sm:$0xff]
  %v1589 = vld [vmem:[%s3 + $0x5b8] sm:$0xff]
  %v1590 = vld [vmem:[%s3 + $0x5c0] sm:$0xff]
  %v1591 = vld [vmem:[%s3 + $0x5c8] sm:$0xff]
  %v1592 = vld [vmem:[%s3 + $0x5d0] sm:$0xff]
  %v1593 = vld [vmem:[%s3 + $0x5d8] sm:$0xff]
  %v1594 = vld [vmem:[%s3 + $0x5e0] sm:$0xff]
  %v1595 = vld [vmem:[%s3 + $0x5e8] sm:$0xff]
  %v1596 = vld [vmem:[%s3 + $0x5f0] sm:$0xff]
  %v1597 = vld [vmem:[%s3 + $0x5f8] sm:$0xff]
  %v1598 = vld [vmem:[%s3 + $0x600] sm:$0xff]
  %v1599 = vld [vmem:[%s3 + $0x608] sm:$0xff]
  %v1600 = vld [vmem:[%s3 + $0x610] sm:$0xff]
  %v1601 = vld [vmem:[%s3 + $0x618] sm:$0xff]
  %v1602 = vld [vmem:[%s3 + $0x620] sm:$0xff]
  %v1603 = vld [vmem:[%s3 + $0x628] sm:$0xff]
  %v1604 = vld [vmem:[%s3 + $0x630] sm:$0xff]
  %v1605 = vld [vmem:[%s3 + $0x638] sm:$0xff]
  %v1606 = vld [vmem:[%s3 + $0x640] sm:$0xff]
  %v1607 = vld [vmem:[%s3 + $0x648] sm:$0xff]
  %v1608 = vld [vmem:[%s3 + $0x650] sm:$0xff]
  %v1609 = vld [vmem:[%s3 + $0x658] sm:$0xff]
  %v1610 = vld [vmem:[%s3 + $0x660] sm:$0xff]
  %v1611 = vld [vmem:[%s3 + $0x668] sm:$0xff]
  %v1612 = vld [vmem:[%s3 + $0x670] sm:$0xff]
  %v1613 = vld [vmem:[%s3 + $0x678] sm:$0xff]
  %v1614 = vld [vmem:[%s3 + $0x680] sm:$0xff]
  %v1615 = vld [vmem:[%s3 + $0x688] sm:$0xff]
  %v1616 = vld [vmem:[%s3 + $0x690] sm:$0xff]
  %v1617 = vld [vmem:[%s3 + $0x698] sm:$0xff]
  %v1618 = vld [vmem:[%s3 + $0x6a0] sm:$0xff]
  %v1619 = vld [vmem:[%s3 + $0x6a8] sm:$0xff]
  %v1620 = vld [vmem:[%s3 + $0x6b0] sm:$0xff]
  %v1621 = vld [vmem:[%s3 + $0x6b8] sm:$0xff]
  %v1622 = vld [vmem:[%s3 + $0x6c0] sm:$0xff]
  %v1623 = vld [vmem:[%s3 + $0x6c8] sm:$0xff]
  %v1624 = vld [vmem:[%s3 + $0x6d0] sm:$0xff]
  %v1625 = vld [vmem:[%s3 + $0x6d8] sm:$0xff]
  %v1626 = vld [vmem:[%s3 + $0x6e0] sm:$0xff]
  %v1627 = vld [vmem:[%s3 + $0x6e8] sm:$0xff]
  %v1628 = vld [vmem:[%s3 + $0x6f0] sm:$0xff]
  %v1629 = vld [vmem:[%s3 + $0x6f8] sm:$0xff]
  %v1630 = vld [vmem:[%s3 + $0x700] sm:$0xff]
  %v1631 = vld [vmem:[%s3 + $0x708] sm:$0xff]
  %v1632 = vld [vmem:[%s3 + $0x710] sm:$0xff]
  %v1633 = vld [vmem:[%s3 + $0x718] sm:$0xff]
  %v1634 = vld [vmem:[%s3 + $0x720] sm:$0xff]
  %v1635 = vld [vmem:[%s3 + $0x728] sm:$0xff]
  %v1636 = vld [vmem:[%s3 + $0x730] sm:$0xff]
  %v1637 = vld [vmem:[%s3 + $0x738] sm:$0xff]
  %v1638 = vld [vmem:[%s3 + $0x740] sm:$0xff]
  %v1639 = vld [vmem:[%s3 + $0x748] sm:$0xff]
  %v1640 = vld [vmem:[%s3 + $0x750] sm:$0xff]
  %v1641 = vld [vmem:[%s3 + $0x758] sm:$0xff]
  %v1642 = vld [vmem:[%s3 + $0x760] sm:$0xff]
  %v1643 = vld [vmem:[%s3 + $0x768] sm:$0xff]
  %v1644 = vld [vmem:[%s3 + $0x770] sm:$0xff]
  %v1645 = vld [vmem:[%s3 + $0x778] sm:$0xff]
  %v1646 = vld [vmem:[%s3 + $0x780] sm:$0xff]
  %v1647 = vld [vmem:[%s3 + $0x788] sm:$0xff]
  %v1648 = vld [vmem:[%s3 + $0x790] sm:$0xff]
  %v1649 = vld [vmem:[%s3 + $0x798] sm:$0xff]
  %v1650 = vld [vmem:[%s3 + $0x7a0] sm:$0xff]
  %v1651 = vld [vmem:[%s3 + $0x7a8] sm:$0xff]
  %v1652 = vld [vmem:[%s3 + $0x7b0] sm:$0xff]
  %v1653 = vld [vmem:[%s3 + $0x7b8] sm:$0xff]
  %v1654 = vld [vmem:[%s3 + $0x7c0] sm:$0xff]
  %v1655 = vld [vmem:[%s3 + $0x7c8] sm:$0xff]
  %v1656 = vld [vmem:[%s3 + $0x7d0] sm:$0xff]
  %v1657 = vld [vmem:[%s3 + $0x7d8] sm:$0xff]
  %v1658 = vld [vmem:[%s3 + $0x7e0] sm:$0xff]
  %v1659 = vld [vmem:[%s3 + $0x7e8] sm:$0xff]
  %v1660 = vld [vmem:[%s3 + $0x7f0] sm:$0xff]
  %v1661 = vld [vmem:[%s3 + $0x7f8] sm:$0xff]
  %v1662 = vld [vmem:[%s4] sm:$0xf]
  %v1664 = vperm.slane %v1662, 0
  %v1665 = vperm.slane %v1662, 1
  %v1666 = vperm.slane %v1662, 2
  %v1667 = vperm.slane %v1662, 3
  %v1928 = vunpack.c.l.b16 %v1406
  %v1929 = vunpack.c.h.b16 %v1406
  %v1930 = vunpack.c.l.b16 %v1407
  %v1931 = vunpack.c.h.b16 %v1407
  %v1932 = vunpack.c.l.b16 %v1408
  %v1933 = vunpack.c.h.b16 %v1408
  %v1934 = vunpack.c.l.b16 %v1409
  %v1935 = vunpack.c.h.b16 %v1409
  %v1936 = vunpack.c.l.b16 %v1410
  %v1937 = vunpack.c.h.b16 %v1410
  %v1938 = vunpack.c.l.b16 %v1411
  %v1939 = vunpack.c.h.b16 %v1411
  %v1940 = vunpack.c.l.b16 %v1412
  %v1941 = vunpack.c.h.b16 %v1412
  %v1942 = vunpack.c.l.b16 %v1413
  %v1943 = vunpack.c.h.b16 %v1413
  %v1944 = vunpack.c.l.b16 %v1414
  %v1945 = vunpack.c.h.b16 %v1414
  %v1946 = vunpack.c.l.b16 %v1415
  %v1947 = vunpack.c.h.b16 %v1415
  %v1948 = vunpack.c.l.b16 %v1416
  %v1949 = vunpack.c.h.b16 %v1416
  %v1950 = vunpack.c.l.b16 %v1417
  %v1951 = vunpack.c.h.b16 %v1417
  %v1952 = vunpack.c.l.b16 %v1418
  %v1953 = vunpack.c.h.b16 %v1418
  %v1954 = vunpack.c.l.b16 %v1419
  %v1955 = vunpack.c.h.b16 %v1419
  %v1956 = vunpack.c.l.b16 %v1420
  %v1957 = vunpack.c.h.b16 %v1420
  %v1958 = vunpack.c.l.b16 %v1421
  %v1959 = vunpack.c.h.b16 %v1421
  %v1960 = vunpack.c.l.b16 %v1422
  %v1961 = vunpack.c.h.b16 %v1422
  %v1962 = vunpack.c.l.b16 %v1423
  %v1963 = vunpack.c.h.b16 %v1423
  %v1964 = vunpack.c.l.b16 %v1424
  %v1965 = vunpack.c.h.b16 %v1424
  %v1966 = vunpack.c.l.b16 %v1425
  %v1967 = vunpack.c.h.b16 %v1425
  %v1968 = vunpack.c.l.b16 %v1426
  %v1969 = vunpack.c.h.b16 %v1426
  %v1970 = vunpack.c.l.b16 %v1427
  %v1971 = vunpack.c.h.b16 %v1427
  %v1972 = vunpack.c.l.b16 %v1428
  %v1973 = vunpack.c.h.b16 %v1428
  %v1974 = vunpack.c.l.b16 %v1429
  %v1975 = vunpack.c.h.b16 %v1429
  %v1976 = vunpack.c.l.b16 %v1430
  %v1977 = vunpack.c.h.b16 %v1430
  %v1978 = vunpack.c.l.b16 %v1431
  %v1979 = vunpack.c.h.b16 %v1431
  %v1980 = vunpack.c.l.b16 %v1432
  %v1981 = vunpack.c.h.b16 %v1432
  %v1982 = vunpack.c.l.b16 %v1433
  %v1983 = vunpack.c.h.b16 %v1433
  %v1984 = vunpack.c.l.b16 %v1434
  %v1985 = vunpack.c.h.b16 %v1434
  %v1986 = vunpack.c.l.b16 %v1435
  %v1987 = vunpack.c.h.b16 %v1435
  %v1988 = vunpack.c.l.b16 %v1436
  %v1989 = vunpack.c.h.b16 %v1436
  %v1990 = vunpack.c.l.b16 %v1437
  %v1991 = vunpack.c.h.b16 %v1437
  %v1992 = vunpack.c.l.b16 %v1438
  %v1993 = vunpack.c.h.b16 %v1438
  %v1994 = vunpack.c.l.b16 %v1439
  %v1995 = vunpack.c.h.b16 %v1439
  %v1996 = vunpack.c.l.b16 %v1440
  %v1997 = vunpack.c.h.b16 %v1440
  %v1998 = vunpack.c.l.b16 %v1441
  %v1999 = vunpack.c.h.b16 %v1441
  %v2000 = vunpack.c.l.b16 %v1442
  %v2001 = vunpack.c.h.b16 %v1442
  %v2002 = vunpack.c.l.b16 %v1443
  %v2003 = vunpack.c.h.b16 %v1443
  %v2004 = vunpack.c.l.b16 %v1444
  %v2005 = vunpack.c.h.b16 %v1444
  %v2006 = vunpack.c.l.b16 %v1445
  %v2007 = vunpack.c.h.b16 %v1445
  %v2008 = vunpack.c.l.b16 %v1446
  %v2009 = vunpack.c.h.b16 %v1446
  %v2010 = vunpack.c.l.b16 %v1447
  %v2011 = vunpack.c.h.b16 %v1447
  %v2012 = vunpack.c.l.b16 %v1448
  %v2013 = vunpack.c.h.b16 %v1448
  %v2014 = vunpack.c.l.b16 %v1449
  %v2015 = vunpack.c.h.b16 %v1449
  %v2016 = vunpack.c.l.b16 %v1450
  %v2017 = vunpack.c.h.b16 %v1450
  %v2018 = vunpack.c.l.b16 %v1451
  %v2019 = vunpack.c.h.b16 %v1451
  %v2020 = vunpack.c.l.b16 %v1452
  %v2021 = vunpack.c.h.b16 %v1452
  %v2022 = vunpack.c.l.b16 %v1453
  %v2023 = vunpack.c.h.b16 %v1453
  %v2024 = vunpack.c.l.b16 %v1454
  %v2025 = vunpack.c.h.b16 %v1454
  %v2026 = vunpack.c.l.b16 %v1455
  %v2027 = vunpack.c.h.b16 %v1455
  %v2028 = vunpack.c.l.b16 %v1456
  %v2029 = vunpack.c.h.b16 %v1456
  %v2030 = vunpack.c.l.b16 %v1457
  %v2031 = vunpack.c.h.b16 %v1457
  %v2032 = vunpack.c.l.b16 %v1458
  %v2033 = vunpack.c.h.b16 %v1458
  %v2034 = vunpack.c.l.b16 %v1459
  %v2035 = vunpack.c.h.b16 %v1459
  %v2036 = vunpack.c.l.b16 %v1460
  %v2037 = vunpack.c.h.b16 %v1460
  %v2038 = vunpack.c.l.b16 %v1461
  %v2039 = vunpack.c.h.b16 %v1461
  %v2040 = vunpack.c.l.b16 %v1462
  %v2041 = vunpack.c.h.b16 %v1462
  %v2042 = vunpack.c.l.b16 %v1463
  %v2043 = vunpack.c.h.b16 %v1463
  %v2044 = vunpack.c.l.b16 %v1464
  %v2045 = vunpack.c.h.b16 %v1464
  %v2046 = vunpack.c.l.b16 %v1465
  %v2047 = vunpack.c.h.b16 %v1465
  %v2048 = vunpack.c.l.b16 %v1466
  %v2049 = vunpack.c.h.b16 %v1466
  %v2050 = vunpack.c.l.b16 %v1467
  %v2051 = vunpack.c.h.b16 %v1467
  %v2052 = vunpack.c.l.b16 %v1468
  %v2053 = vunpack.c.h.b16 %v1468
  %v2054 = vunpack.c.l.b16 %v1469
  %v2055 = vunpack.c.h.b16 %v1469
  %v2056 = vunpack.c.l.b16 %v1470
  %v2057 = vunpack.c.h.b16 %v1470
  %v2058 = vunpack.c.l.b16 %v1471
  %v2059 = vunpack.c.h.b16 %v1471
  %v2060 = vunpack.c.l.b16 %v1472
  %v2061 = vunpack.c.h.b16 %v1472
  %v2062 = vunpack.c.l.b16 %v1473
  %v2063 = vunpack.c.h.b16 %v1473
  %v2064 = vunpack.c.l.b16 %v1474
  %v2065 = vunpack.c.h.b16 %v1474
  %v2066 = vunpack.c.l.b16 %v1475
  %v2067 = vunpack.c.h.b16 %v1475
  %v2068 = vunpack.c.l.b16 %v1476
  %v2069 = vunpack.c.h.b16 %v1476
  %v2070 = vunpack.c.l.b16 %v1477
  %v2071 = vunpack.c.h.b16 %v1477
  %v2072 = vunpack.c.l.b16 %v1478
  %v2073 = vunpack.c.h.b16 %v1478
  %v2074 = vunpack.c.l.b16 %v1479
  %v2075 = vunpack.c.h.b16 %v1479
  %v2076 = vunpack.c.l.b16 %v1480
  %v2077 = vunpack.c.h.b16 %v1480
  %v2078 = vunpack.c.l.b16 %v1481
  %v2079 = vunpack.c.h.b16 %v1481
  %v2080 = vunpack.c.l.b16 %v1482
  %v2081 = vunpack.c.h.b16 %v1482
  %v2082 = vunpack.c.l.b16 %v1483
  %v2083 = vunpack.c.h.b16 %v1483
  %v2084 = vunpack.c.l.b16 %v1484
  %v2085 = vunpack.c.h.b16 %v1484
  %v2086 = vunpack.c.l.b16 %v1485
  %v2087 = vunpack.c.h.b16 %v1485
  %v2088 = vunpack.c.l.b16 %v1486
  %v2089 = vunpack.c.h.b16 %v1486
  %v2090 = vunpack.c.l.b16 %v1487
  %v2091 = vunpack.c.h.b16 %v1487
  %v2092 = vunpack.c.l.b16 %v1488
  %v2093 = vunpack.c.h.b16 %v1488
  %v2094 = vunpack.c.l.b16 %v1489
  %v2095 = vunpack.c.h.b16 %v1489
  %v2096 = vunpack.c.l.b16 %v1490
  %v2097 = vunpack.c.h.b16 %v1490
  %v2098 = vunpack.c.l.b16 %v1491
  %v2099 = vunpack.c.h.b16 %v1491
  %v2100 = vunpack.c.l.b16 %v1492
  %v2101 = vunpack.c.h.b16 %v1492
  %v2102 = vunpack.c.l.b16 %v1493
  %v2103 = vunpack.c.h.b16 %v1493
  %v2104 = vunpack.c.l.b16 %v1494
  %v2105 = vunpack.c.h.b16 %v1494
  %v2106 = vunpack.c.l.b16 %v1495
  %v2107 = vunpack.c.h.b16 %v1495
  %v2108 = vunpack.c.l.b16 %v1496
  %v2109 = vunpack.c.h.b16 %v1496
  %v2110 = vunpack.c.l.b16 %v1497
  %v2111 = vunpack.c.h.b16 %v1497
  %v2112 = vunpack.c.l.b16 %v1498
  %v2113 = vunpack.c.h.b16 %v1498
  %v2114 = vunpack.c.l.b16 %v1499
  %v2115 = vunpack.c.h.b16 %v1499
  %v2116 = vunpack.c.l.b16 %v1500
  %v2117 = vunpack.c.h.b16 %v1500
  %v2118 = vunpack.c.l.b16 %v1501
  %v2119 = vunpack.c.h.b16 %v1501
  %v2120 = vunpack.c.l.b16 %v1502
  %v2121 = vunpack.c.h.b16 %v1502
  %v2122 = vunpack.c.l.b16 %v1503
  %v2123 = vunpack.c.h.b16 %v1503
  %v2124 = vunpack.c.l.b16 %v1504
  %v2125 = vunpack.c.h.b16 %v1504
  %v2126 = vunpack.c.l.b16 %v1505
  %v2127 = vunpack.c.h.b16 %v1505
  %v2128 = vunpack.c.l.b16 %v1506
  %v2129 = vunpack.c.h.b16 %v1506
  %v2130 = vunpack.c.l.b16 %v1507
  %v2131 = vunpack.c.h.b16 %v1507
  %v2132 = vunpack.c.l.b16 %v1508
  %v2133 = vunpack.c.h.b16 %v1508
  %v2134 = vunpack.c.l.b16 %v1509
  %v2135 = vunpack.c.h.b16 %v1509
  %v2136 = vunpack.c.l.b16 %v1510
  %v2137 = vunpack.c.h.b16 %v1510
  %v2138 = vunpack.c.l.b16 %v1511
  %v2139 = vunpack.c.h.b16 %v1511
  %v2140 = vunpack.c.l.b16 %v1512
  %v2141 = vunpack.c.h.b16 %v1512
  %v2142 = vunpack.c.l.b16 %v1513
  %v2143 = vunpack.c.h.b16 %v1513
  %v2144 = vunpack.c.l.b16 %v1514
  %v2145 = vunpack.c.h.b16 %v1514
  %v2146 = vunpack.c.l.b16 %v1515
  %v2147 = vunpack.c.h.b16 %v1515
  %v2148 = vunpack.c.l.b16 %v1516
  %v2149 = vunpack.c.h.b16 %v1516
  %v2150 = vunpack.c.l.b16 %v1517
  %v2151 = vunpack.c.h.b16 %v1517
  %v2152 = vunpack.c.l.b16 %v1518
  %v2153 = vunpack.c.h.b16 %v1518
  %v2154 = vunpack.c.l.b16 %v1519
  %v2155 = vunpack.c.h.b16 %v1519
  %v2156 = vunpack.c.l.b16 %v1520
  %v2157 = vunpack.c.h.b16 %v1520
  %v2158 = vunpack.c.l.b16 %v1521
  %v2159 = vunpack.c.h.b16 %v1521
  %v2160 = vunpack.c.l.b16 %v1522
  %v2161 = vunpack.c.h.b16 %v1522
  %v2162 = vunpack.c.l.b16 %v1523
  %v2163 = vunpack.c.h.b16 %v1523
  %v2164 = vunpack.c.l.b16 %v1524
  %v2165 = vunpack.c.h.b16 %v1524
  %v2166 = vunpack.c.l.b16 %v1525
  %v2167 = vunpack.c.h.b16 %v1525
  %v2168 = vunpack.c.l.b16 %v1526
  %v2169 = vunpack.c.h.b16 %v1526
  %v2170 = vunpack.c.l.b16 %v1527
  %v2171 = vunpack.c.h.b16 %v1527
  %v2172 = vunpack.c.l.b16 %v1528
  %v2173 = vunpack.c.h.b16 %v1528
  %v2174 = vunpack.c.l.b16 %v1529
  %v2175 = vunpack.c.h.b16 %v1529
  %v2176 = vunpack.c.l.b16 %v1530
  %v2177 = vunpack.c.h.b16 %v1530
  %v2178 = vunpack.c.l.b16 %v1531
  %v2179 = vunpack.c.h.b16 %v1531
  %v2180 = vunpack.c.l.b16 %v1532
  %v2181 = vunpack.c.h.b16 %v1532
  %v2182 = vunpack.c.l.b16 %v1533
  %v2183 = vunpack.c.h.b16 %v1533
  %v2184 = vunpack.c.l.b16 %v1534
  %v2185 = vunpack.c.h.b16 %v1534
  %v2186 = vunpack.c.l.b16 %v1535
  %v2187 = vunpack.c.h.b16 %v1535
  %v2188 = vunpack.c.l.b16 %v1536
  %v2189 = vunpack.c.h.b16 %v1536
  %v2190 = vunpack.c.l.b16 %v1537
  %v2191 = vunpack.c.h.b16 %v1537
  %v2192 = vunpack.c.l.b16 %v1538
  %v2193 = vunpack.c.h.b16 %v1538
  %v2194 = vunpack.c.l.b16 %v1539
  %v2195 = vunpack.c.h.b16 %v1539
  %v2196 = vunpack.c.l.b16 %v1540
  %v2197 = vunpack.c.h.b16 %v1540
  %v2198 = vunpack.c.l.b16 %v1541
  %v2199 = vunpack.c.h.b16 %v1541
  %v2200 = vunpack.c.l.b16 %v1542
  %v2201 = vunpack.c.h.b16 %v1542
  %v2202 = vunpack.c.l.b16 %v1543
  %v2203 = vunpack.c.h.b16 %v1543
  %v2204 = vunpack.c.l.b16 %v1544
  %v2205 = vunpack.c.h.b16 %v1544
  %v2206 = vunpack.c.l.b16 %v1545
  %v2207 = vunpack.c.h.b16 %v1545
  %v2208 = vunpack.c.l.b16 %v1546
  %v2209 = vunpack.c.h.b16 %v1546
  %v2210 = vunpack.c.l.b16 %v1547
  %v2211 = vunpack.c.h.b16 %v1547
  %v2212 = vunpack.c.l.b16 %v1548
  %v2213 = vunpack.c.h.b16 %v1548
  %v2214 = vunpack.c.l.b16 %v1549
  %v2215 = vunpack.c.h.b16 %v1549
  %v2216 = vunpack.c.l.b16 %v1550
  %v2217 = vunpack.c.h.b16 %v1550
  %v2218 = vunpack.c.l.b16 %v1551
  %v2219 = vunpack.c.h.b16 %v1551
  %v2220 = vunpack.c.l.b16 %v1552
  %v2221 = vunpack.c.h.b16 %v1552
  %v2222 = vunpack.c.l.b16 %v1553
  %v2223 = vunpack.c.h.b16 %v1553
  %v2224 = vunpack.c.l.b16 %v1554
  %v2225 = vunpack.c.h.b16 %v1554
  %v2226 = vunpack.c.l.b16 %v1555
  %v2227 = vunpack.c.h.b16 %v1555
  %v2228 = vunpack.c.l.b16 %v1556
  %v2229 = vunpack.c.h.b16 %v1556
  %v2230 = vunpack.c.l.b16 %v1557
  %v2231 = vunpack.c.h.b16 %v1557
  %v2232 = vunpack.c.l.b16 %v1558
  %v2233 = vunpack.c.h.b16 %v1558
  %v2234 = vunpack.c.l.b16 %v1559
  %v2235 = vunpack.c.h.b16 %v1559
  %v2236 = vunpack.c.l.b16 %v1560
  %v2237 = vunpack.c.h.b16 %v1560
  %v2238 = vunpack.c.l.b16 %v1561
  %v2239 = vunpack.c.h.b16 %v1561
  %v2240 = vunpack.c.l.b16 %v1562
  %v2241 = vunpack.c.h.b16 %v1562
  %v2242 = vunpack.c.l.b16 %v1563
  %v2243 = vunpack.c.h.b16 %v1563
  %v2244 = vunpack.c.l.b16 %v1564
  %v2245 = vunpack.c.h.b16 %v1564
  %v2246 = vunpack.c.l.b16 %v1565
  %v2247 = vunpack.c.h.b16 %v1565
  %v2248 = vunpack.c.l.b16 %v1566
  %v2249 = vunpack.c.h.b16 %v1566
  %v2250 = vunpack.c.l.b16 %v1567
  %v2251 = vunpack.c.h.b16 %v1567
  %v2252 = vunpack.c.l.b16 %v1568
  %v2253 = vunpack.c.h.b16 %v1568
  %v2254 = vunpack.c.l.b16 %v1569
  %v2255 = vunpack.c.h.b16 %v1569
  %v2256 = vunpack.c.l.b16 %v1570
  %v2257 = vunpack.c.h.b16 %v1570
  %v2258 = vunpack.c.l.b16 %v1571
  %v2259 = vunpack.c.h.b16 %v1571
  %v2260 = vunpack.c.l.b16 %v1572
  %v2261 = vunpack.c.h.b16 %v1572
  %v2262 = vunpack.c.l.b16 %v1573
  %v2263 = vunpack.c.h.b16 %v1573
  %v2264 = vunpack.c.l.b16 %v1574
  %v2265 = vunpack.c.h.b16 %v1574
  %v2266 = vunpack.c.l.b16 %v1575
  %v2267 = vunpack.c.h.b16 %v1575
  %v2268 = vunpack.c.l.b16 %v1576
  %v2269 = vunpack.c.h.b16 %v1576
  %v2270 = vunpack.c.l.b16 %v1577
  %v2271 = vunpack.c.h.b16 %v1577
  %v2272 = vunpack.c.l.b16 %v1578
  %v2273 = vunpack.c.h.b16 %v1578
  %v2274 = vunpack.c.l.b16 %v1579
  %v2275 = vunpack.c.h.b16 %v1579
  %v2276 = vunpack.c.l.b16 %v1580
  %v2277 = vunpack.c.h.b16 %v1580
  %v2278 = vunpack.c.l.b16 %v1581
  %v2279 = vunpack.c.h.b16 %v1581
  %v2280 = vunpack.c.l.b16 %v1582
  %v2281 = vunpack.c.h.b16 %v1582
  %v2282 = vunpack.c.l.b16 %v1583
  %v2283 = vunpack.c.h.b16 %v1583
  %v2284 = vunpack.c.l.b16 %v1584
  %v2285 = vunpack.c.h.b16 %v1584
  %v2286 = vunpack.c.l.b16 %v1585
  %v2287 = vunpack.c.h.b16 %v1585
  %v2288 = vunpack.c.l.b16 %v1586
  %v2289 = vunpack.c.h.b16 %v1586
  %v2290 = vunpack.c.l.b16 %v1587
  %v2291 = vunpack.c.h.b16 %v1587
  %v2292 = vunpack.c.l.b16 %v1588
  %v2293 = vunpack.c.h.b16 %v1588
  %v2294 = vunpack.c.l.b16 %v1589
  %v2295 = vunpack.c.h.b16 %v1589
  %v2296 = vunpack.c.l.b16 %v1590
  %v2297 = vunpack.c.h.b16 %v1590
  %v2298 = vunpack.c.l.b16 %v1591
  %v2299 = vunpack.c.h.b16 %v1591
  %v2300 = vunpack.c.l.b16 %v1592
  %v2301 = vunpack.c.h.b16 %v1592
  %v2302 = vunpack.c.l.b16 %v1593
  %v2303 = vunpack.c.h.b16 %v1593
  %v2304 = vunpack.c.l.b16 %v1594
  %v2305 = vunpack.c.h.b16 %v1594
  %v2306 = vunpack.c.l.b16 %v1595
  %v2307 = vunpack.c.h.b16 %v1595
  %v2308 = vunpack.c.l.b16 %v1596
  %v2309 = vunpack.c.h.b16 %v1596
  %v2310 = vunpack.c.l.b16 %v1597
  %v2311 = vunpack.c.h.b16 %v1597
  %v2312 = vunpack.c.l.b16 %v1598
  %v2313 = vunpack.c.h.b16 %v1598
  %v2314 = vunpack.c.l.b16 %v1599
  %v2315 = vunpack.c.h.b16 %v1599
  %v2316 = vunpack.c.l.b16 %v1600
  %v2317 = vunpack.c.h.b16 %v1600
  %v2318 = vunpack.c.l.b16 %v1601
  %v2319 = vunpack.c.h.b16 %v1601
  %v2320 = vunpack.c.l.b16 %v1602
  %v2321 = vunpack.c.h.b16 %v1602
  %v2322 = vunpack.c.l.b16 %v1603
  %v2323 = vunpack.c.h.b16 %v1603
  %v2324 = vunpack.c.l.b16 %v1604
  %v2325 = vunpack.c.h.b16 %v1604
  %v2326 = vunpack.c.l.b16 %v1605
  %v2327 = vunpack.c.h.b16 %v1605
  %v2328 = vunpack.c.l.b16 %v1606
  %v2329 = vunpack.c.h.b16 %v1606
  %v2330 = vunpack.c.l.b16 %v1607
  %v2331 = vunpack.c.h.b16 %v1607
  %v2332 = vunpack.c.l.b16 %v1608
  %v2333 = vunpack.c.h.b16 %v1608
  %v2334 = vunpack.c.l.b16 %v1609
  %v2335 = vunpack.c.h.b16 %v1609
  %v2336 = vunpack.c.l.b16 %v1610
  %v2337 = vunpack.c.h.b16 %v1610
  %v2338 = vunpack.c.l.b16 %v1611
  %v2339 = vunpack.c.h.b16 %v1611
  %v2340 = vunpack.c.l.b16 %v1612
  %v2341 = vunpack.c.h.b16 %v1612
  %v2342 = vunpack.c.l.b16 %v1613
  %v2343 = vunpack.c.h.b16 %v1613
  %v2344 = vunpack.c.l.b16 %v1614
  %v2345 = vunpack.c.h.b16 %v1614
  %v2346 = vunpack.c.l.b16 %v1615
  %v2347 = vunpack.c.h.b16 %v1615
  %v2348 = vunpack.c.l.b16 %v1616
  %v2349 = vunpack.c.h.b16 %v1616
  %v2350 = vunpack.c.l.b16 %v1617
  %v2351 = vunpack.c.h.b16 %v1617
  %v2352 = vunpack.c.l.b16 %v1618
  %v2353 = vunpack.c.h.b16 %v1618
  %v2354 = vunpack.c.l.b16 %v1619
  %v2355 = vunpack.c.h.b16 %v1619
  %v2356 = vunpack.c.l.b16 %v1620
  %v2357 = vunpack.c.h.b16 %v1620
  %v2358 = vunpack.c.l.b16 %v1621
  %v2359 = vunpack.c.h.b16 %v1621
  %v2360 = vunpack.c.l.b16 %v1622
  %v2361 = vunpack.c.h.b16 %v1622
  %v2362 = vunpack.c.l.b16 %v1623
  %v2363 = vunpack.c.h.b16 %v1623
  %v2364 = vunpack.c.l.b16 %v1624
  %v2365 = vunpack.c.h.b16 %v1624
  %v2366 = vunpack.c.l.b16 %v1625
  %v2367 = vunpack.c.h.b16 %v1625
  %v2368 = vunpack.c.l.b16 %v1626
  %v2369 = vunpack.c.h.b16 %v1626
  %v2370 = vunpack.c.l.b16 %v1627
  %v2371 = vunpack.c.h.b16 %v1627
  %v2372 = vunpack.c.l.b16 %v1628
  %v2373 = vunpack.c.h.b16 %v1628
  %v2374 = vunpack.c.l.b16 %v1629
  %v2375 = vunpack.c.h.b16 %v1629
  %v2376 = vunpack.c.l.b16 %v1630
  %v2377 = vunpack.c.h.b16 %v1630
  %v2378 = vunpack.c.l.b16 %v1631
  %v2379 = vunpack.c.h.b16 %v1631
  %v2380 = vunpack.c.l.b16 %v1632
  %v2381 = vunpack.c.h.b16 %v1632
  %v2382 = vunpack.c.l.b16 %v1633
  %v2383 = vunpack.c.h.b16 %v1633
  %v2384 = vunpack.c.l.b16 %v1634
  %v2385 = vunpack.c.h.b16 %v1634
  %v2386 = vunpack.c.l.b16 %v1635
  %v2387 = vunpack.c.h.b16 %v1635
  %v2388 = vunpack.c.l.b16 %v1636
  %v2389 = vunpack.c.h.b16 %v1636
  %v2390 = vunpack.c.l.b16 %v1637
  %v2391 = vunpack.c.h.b16 %v1637
  %v2392 = vunpack.c.l.b16 %v1638
  %v2393 = vunpack.c.h.b16 %v1638
  %v2394 = vunpack.c.l.b16 %v1639
  %v2395 = vunpack.c.h.b16 %v1639
  %v2396 = vunpack.c.l.b16 %v1640
  %v2397 = vunpack.c.h.b16 %v1640
  %v2398 = vunpack.c.l.b16 %v1641
  %v2399 = vunpack.c.h.b16 %v1641
  %v2400 = vunpack.c.l.b16 %v1642
  %v2401 = vunpack.c.h.b16 %v1642
  %v2402 = vunpack.c.l.b16 %v1643
  %v2403 = vunpack.c.h.b16 %v1643
  %v2404 = vunpack.c.l.b16 %v1644
  %v2405 = vunpack.c.h.b16 %v1644
  %v2406 = vunpack.c.l.b16 %v1645
  %v2407 = vunpack.c.h.b16 %v1645
  %v2408 = vunpack.c.l.b16 %v1646
  %v2409 = vunpack.c.h.b16 %v1646
  %v2410 = vunpack.c.l.b16 %v1647
  %v2411 = vunpack.c.h.b16 %v1647
  %v2412 = vunpack.c.l.b16 %v1648
  %v2413 = vunpack.c.h.b16 %v1648
  %v2414 = vunpack.c.l.b16 %v1649
  %v2415 = vunpack.c.h.b16 %v1649
  %v2416 = vunpack.c.l.b16 %v1650
  %v2417 = vunpack.c.h.b16 %v1650
  %v2418 = vunpack.c.l.b16 %v1651
  %v2419 = vunpack.c.h.b16 %v1651
  %v2420 = vunpack.c.l.b16 %v1652
  %v2421 = vunpack.c.h.b16 %v1652
  %v2422 = vunpack.c.l.b16 %v1653
  %v2423 = vunpack.c.h.b16 %v1653
  %v2424 = vunpack.c.l.b16 %v1654
  %v2425 = vunpack.c.h.b16 %v1654
  %v2426 = vunpack.c.l.b16 %v1655
  %v2427 = vunpack.c.h.b16 %v1655
  %v2428 = vunpack.c.l.b16 %v1656
  %v2429 = vunpack.c.h.b16 %v1656
  %v2430 = vunpack.c.l.b16 %v1657
  %v2431 = vunpack.c.h.b16 %v1657
  %v2432 = vunpack.c.l.b16 %v1658
  %v2433 = vunpack.c.h.b16 %v1658
  %v2434 = vunpack.c.l.b16 %v1659
  %v2435 = vunpack.c.h.b16 %v1659
  %v2436 = vunpack.c.l.b16 %v1660
  %v2437 = vunpack.c.h.b16 %v1660
  %v2438 = vunpack.c.l.b16 %v1661
  %v2439 = vunpack.c.h.b16 %v1661
  %v2440 = vpack.c.b16 %v1932, %v1928
  %v2441 = vpack.c.b16 %v1933, %v1929
  %v2442 = vpack.c.b16 %v1934, %v1930
  %v2443 = vpack.c.b16 %v1935, %v1931
  %v2444 = vpack.c.b16 %v1940, %v1936
  %v2445 = vpack.c.b16 %v1941, %v1937
  %v2446 = vpack.c.b16 %v1942, %v1938
  %v2447 = vpack.c.b16 %v1943, %v1939
  %v2448 = vpack.c.b16 %v1948, %v1944
  %v2449 = vpack.c.b16 %v1949, %v1945
  %v2450 = vpack.c.b16 %v1950, %v1946
  %v2451 = vpack.c.b16 %v1951, %v1947
  %v2452 = vpack.c.b16 %v1956, %v1952
  %v2453 = vpack.c.b16 %v1957, %v1953
  %v2454 = vpack.c.b16 %v1958, %v1954
  %v2455 = vpack.c.b16 %v1959, %v1955
  %v2456 = vpack.c.b16 %v1964, %v1960
  %v2457 = vpack.c.b16 %v1965, %v1961
  %v2458 = vpack.c.b16 %v1966, %v1962
  %v2459 = vpack.c.b16 %v1967, %v1963
  %v2460 = vpack.c.b16 %v1972, %v1968
  %v2461 = vpack.c.b16 %v1973, %v1969
  %v2462 = vpack.c.b16 %v1974, %v1970
  %v2463 = vpack.c.b16 %v1975, %v1971
  %v2464 = vpack.c.b16 %v1980, %v1976
  %v2465 = vpack.c.b16 %v1981, %v1977
  %v2466 = vpack.c.b16 %v1982, %v1978
  %v2467 = vpack.c.b16 %v1983, %v1979
  %v2468 = vpack.c.b16 %v1988, %v1984
  %v2469 = vpack.c.b16 %v1989, %v1985
  %v2470 = vpack.c.b16 %v1990, %v1986
  %v2471 = vpack.c.b16 %v1991, %v1987
  %v2472 = vpack.c.b16 %v1996, %v1992
  %v2473 = vpack.c.b16 %v1997, %v1993
  %v2474 = vpack.c.b16 %v1998, %v1994
  %v2475 = vpack.c.b16 %v1999, %v1995
  %v2476 = vpack.c.b16 %v2004, %v2000
  %v2477 = vpack.c.b16 %v2005, %v2001
  %v2478 = vpack.c.b16 %v2006, %v2002
  %v2479 = vpack.c.b16 %v2007, %v2003
  %v2480 = vpack.c.b16 %v2012, %v2008
  %v2481 = vpack.c.b16 %v2013, %v2009
  %v2482 = vpack.c.b16 %v2014, %v2010
  %v2483 = vpack.c.b16 %v2015, %v2011
  %v2484 = vpack.c.b16 %v2020, %v2016
  %v2485 = vpack.c.b16 %v2021, %v2017
  %v2486 = vpack.c.b16 %v2022, %v2018
  %v2487 = vpack.c.b16 %v2023, %v2019
  %v2488 = vpack.c.b16 %v2028, %v2024
  %v2489 = vpack.c.b16 %v2029, %v2025
  %v2490 = vpack.c.b16 %v2030, %v2026
  %v2491 = vpack.c.b16 %v2031, %v2027
  %v2492 = vpack.c.b16 %v2036, %v2032
  %v2493 = vpack.c.b16 %v2037, %v2033
  %v2494 = vpack.c.b16 %v2038, %v2034
  %v2495 = vpack.c.b16 %v2039, %v2035
  %v2496 = vpack.c.b16 %v2044, %v2040
  %v2497 = vpack.c.b16 %v2045, %v2041
  %v2498 = vpack.c.b16 %v2046, %v2042
  %v2499 = vpack.c.b16 %v2047, %v2043
  %v2500 = vpack.c.b16 %v2052, %v2048
  %v2501 = vpack.c.b16 %v2053, %v2049
  %v2502 = vpack.c.b16 %v2054, %v2050
  %v2503 = vpack.c.b16 %v2055, %v2051
  %v2504 = vpack.c.b16 %v2060, %v2056
  %v2505 = vpack.c.b16 %v2061, %v2057
  %v2506 = vpack.c.b16 %v2062, %v2058
  %v2507 = vpack.c.b16 %v2063, %v2059
  %v2508 = vpack.c.b16 %v2068, %v2064
  %v2509 = vpack.c.b16 %v2069, %v2065
  %v2510 = vpack.c.b16 %v2070, %v2066
  %v2511 = vpack.c.b16 %v2071, %v2067
  %v2512 = vpack.c.b16 %v2076, %v2072
  %v2513 = vpack.c.b16 %v2077, %v2073
  %v2514 = vpack.c.b16 %v2078, %v2074
  %v2515 = vpack.c.b16 %v2079, %v2075
  %v2516 = vpack.c.b16 %v2084, %v2080
  %v2517 = vpack.c.b16 %v2085, %v2081
  %v2518 = vpack.c.b16 %v2086, %v2082
  %v2519 = vpack.c.b16 %v2087, %v2083
  %v2520 = vpack.c.b16 %v2092, %v2088
  %v2521 = vpack.c.b16 %v2093, %v2089
  %v2522 = vpack.c.b16 %v2094, %v2090
  %v2523 = vpack.c.b16 %v2095, %v2091
  %v2524 = vpack.c.b16 %v2100, %v2096
  %v2525 = vpack.c.b16 %v2101, %v2097
  %v2526 = vpack.c.b16 %v2102, %v2098
  %v2527 = vpack.c.b16 %v2103, %v2099
  %v2528 = vpack.c.b16 %v2108, %v2104
  %v2529 = vpack.c.b16 %v2109, %v2105
  %v2530 = vpack.c.b16 %v2110, %v2106
  %v2531 = vpack.c.b16 %v2111, %v2107
  %v2532 = vpack.c.b16 %v2116, %v2112
  %v2533 = vpack.c.b16 %v2117, %v2113
  %v2534 = vpack.c.b16 %v2118, %v2114
  %v2535 = vpack.c.b16 %v2119, %v2115
  %v2536 = vpack.c.b16 %v2124, %v2120
  %v2537 = vpack.c.b16 %v2125, %v2121
  %v2538 = vpack.c.b16 %v2126, %v2122
  %v2539 = vpack.c.b16 %v2127, %v2123
  %v2540 = vpack.c.b16 %v2132, %v2128
  %v2541 = vpack.c.b16 %v2133, %v2129
  %v2542 = vpack.c.b16 %v2134, %v2130
  %v2543 = vpack.c.b16 %v2135, %v2131
  %v2544 = vpack.c.b16 %v2140, %v2136
  %v2545 = vpack.c.b16 %v2141, %v2137
  %v2546 = vpack.c.b16 %v2142, %v2138
  %v2547 = vpack.c.b16 %v2143, %v2139
  %v2548 = vpack.c.b16 %v2148, %v2144
  %v2549 = vpack.c.b16 %v2149, %v2145
  %v2550 = vpack.c.b16 %v2150, %v2146
  %v2551 = vpack.c.b16 %v2151, %v2147
  %v2552 = vpack.c.b16 %v2156, %v2152
  %v2553 = vpack.c.b16 %v2157, %v2153
  %v2554 = vpack.c.b16 %v2158, %v2154
  %v2555 = vpack.c.b16 %v2159, %v2155
  %v2556 = vpack.c.b16 %v2164, %v2160
  %v2557 = vpack.c.b16 %v2165, %v2161
  %v2558 = vpack.c.b16 %v2166, %v2162
  %v2559 = vpack.c.b16 %v2167, %v2163
  %v2560 = vpack.c.b16 %v2172, %v2168
  %v2561 = vpack.c.b16 %v2173, %v2169
  %v2562 = vpack.c.b16 %v2174, %v2170
  %v2563 = vpack.c.b16 %v2175, %v2171
  %v2564 = vpack.c.b16 %v2180, %v2176
  %v2565 = vpack.c.b16 %v2181, %v2177
  %v2566 = vpack.c.b16 %v2182, %v2178
  %v2567 = vpack.c.b16 %v2183, %v2179
  %v2568 = vpack.c.b16 %v2188, %v2184
  %v2569 = vpack.c.b16 %v2189, %v2185
  %v2570 = vpack.c.b16 %v2190, %v2186
  %v2571 = vpack.c.b16 %v2191, %v2187
  %v2572 = vpack.c.b16 %v2196, %v2192
  %v2573 = vpack.c.b16 %v2197, %v2193
  %v2574 = vpack.c.b16 %v2198, %v2194
  %v2575 = vpack.c.b16 %v2199, %v2195
  %v2576 = vpack.c.b16 %v2204, %v2200
  %v2577 = vpack.c.b16 %v2205, %v2201
  %v2578 = vpack.c.b16 %v2206, %v2202
  %v2579 = vpack.c.b16 %v2207, %v2203
  %v2580 = vpack.c.b16 %v2212, %v2208
  %v2581 = vpack.c.b16 %v2213, %v2209
  %v2582 = vpack.c.b16 %v2214, %v2210
  %v2583 = vpack.c.b16 %v2215, %v2211
  %v2584 = vpack.c.b16 %v2220, %v2216
  %v2585 = vpack.c.b16 %v2221, %v2217
  %v2586 = vpack.c.b16 %v2222, %v2218
  %v2587 = vpack.c.b16 %v2223, %v2219
  %v2588 = vpack.c.b16 %v2228, %v2224
  %v2589 = vpack.c.b16 %v2229, %v2225
  %v2590 = vpack.c.b16 %v2230, %v2226
  %v2591 = vpack.c.b16 %v2231, %v2227
  %v2592 = vpack.c.b16 %v2236, %v2232
  %v2593 = vpack.c.b16 %v2237, %v2233
  %v2594 = vpack.c.b16 %v2238, %v2234
  %v2595 = vpack.c.b16 %v2239, %v2235
  %v2596 = vpack.c.b16 %v2244, %v2240
  %v2597 = vpack.c.b16 %v2245, %v2241
  %v2598 = vpack.c.b16 %v2246, %v2242
  %v2599 = vpack.c.b16 %v2247, %v2243
  %v2600 = vpack.c.b16 %v2252, %v2248
  %v2601 = vpack.c.b16 %v2253, %v2249
  %v2602 = vpack.c.b16 %v2254, %v2250
  %v2603 = vpack.c.b16 %v2255, %v2251
  %v2604 = vpack.c.b16 %v2260, %v2256
  %v2605 = vpack.c.b16 %v2261, %v2257
  %v2606 = vpack.c.b16 %v2262, %v2258
  %v2607 = vpack.c.b16 %v2263, %v2259
  %v2608 = vpack.c.b16 %v2268, %v2264
  %v2609 = vpack.c.b16 %v2269, %v2265
  %v2610 = vpack.c.b16 %v2270, %v2266
  %v2611 = vpack.c.b16 %v2271, %v2267
  %v2612 = vpack.c.b16 %v2276, %v2272
  %v2613 = vpack.c.b16 %v2277, %v2273
  %v2614 = vpack.c.b16 %v2278, %v2274
  %v2615 = vpack.c.b16 %v2279, %v2275
  %v2616 = vpack.c.b16 %v2284, %v2280
  %v2617 = vpack.c.b16 %v2285, %v2281
  %v2618 = vpack.c.b16 %v2286, %v2282
  %v2619 = vpack.c.b16 %v2287, %v2283
  %v2620 = vpack.c.b16 %v2292, %v2288
  %v2621 = vpack.c.b16 %v2293, %v2289
  %v2622 = vpack.c.b16 %v2294, %v2290
  %v2623 = vpack.c.b16 %v2295, %v2291
  %v2624 = vpack.c.b16 %v2300, %v2296
  %v2625 = vpack.c.b16 %v2301, %v2297
  %v2626 = vpack.c.b16 %v2302, %v2298
  %v2627 = vpack.c.b16 %v2303, %v2299
  %v2628 = vpack.c.b16 %v2308, %v2304
  %v2629 = vpack.c.b16 %v2309, %v2305
  %v2630 = vpack.c.b16 %v2310, %v2306
  %v2631 = vpack.c.b16 %v2311, %v2307
  %v2632 = vpack.c.b16 %v2316, %v2312
  %v2633 = vpack.c.b16 %v2317, %v2313
  %v2634 = vpack.c.b16 %v2318, %v2314
  %v2635 = vpack.c.b16 %v2319, %v2315
  %v2636 = vpack.c.b16 %v2324, %v2320
  %v2637 = vpack.c.b16 %v2325, %v2321
  %v2638 = vpack.c.b16 %v2326, %v2322
  %v2639 = vpack.c.b16 %v2327, %v2323
  %v2640 = vpack.c.b16 %v2332, %v2328
  %v2641 = vpack.c.b16 %v2333, %v2329
  %v2642 = vpack.c.b16 %v2334, %v2330
  %v2643 = vpack.c.b16 %v2335, %v2331
  %v2644 = vpack.c.b16 %v2340, %v2336
  %v2645 = vpack.c.b16 %v2341, %v2337
  %v2646 = vpack.c.b16 %v2342, %v2338
  %v2647 = vpack.c.b16 %v2343, %v2339
  %v2648 = vpack.c.b16 %v2348, %v2344
  %v2649 = vpack.c.b16 %v2349, %v2345
  %v2650 = vpack.c.b16 %v2350, %v2346
  %v2651 = vpack.c.b16 %v2351, %v2347
  %v2652 = vpack.c.b16 %v2356, %v2352
  %v2653 = vpack.c.b16 %v2357, %v2353
  %v2654 = vpack.c.b16 %v2358, %v2354
  %v2655 = vpack.c.b16 %v2359, %v2355
  %v2656 = vpack.c.b16 %v2364, %v2360
  %v2657 = vpack.c.b16 %v2365, %v2361
  %v2658 = vpack.c.b16 %v2366, %v2362
  %v2659 = vpack.c.b16 %v2367, %v2363
  %v2660 = vpack.c.b16 %v2372, %v2368
  %v2661 = vpack.c.b16 %v2373, %v2369
  %v2662 = vpack.c.b16 %v2374, %v2370
  %v2663 = vpack.c.b16 %v2375, %v2371
  %v2664 = vpack.c.b16 %v2380, %v2376
  %v2665 = vpack.c.b16 %v2381, %v2377
  %v2666 = vpack.c.b16 %v2382, %v2378
  %v2667 = vpack.c.b16 %v2383, %v2379
  %v2668 = vpack.c.b16 %v2388, %v2384
  %v2669 = vpack.c.b16 %v2389, %v2385
  %v2670 = vpack.c.b16 %v2390, %v2386
  %v2671 = vpack.c.b16 %v2391, %v2387
  %v2672 = vpack.c.b16 %v2396, %v2392
  %v2673 = vpack.c.b16 %v2397, %v2393
  %v2674 = vpack.c.b16 %v2398, %v2394
  %v2675 = vpack.c.b16 %v2399, %v2395
  %v2676 = vpack.c.b16 %v2404, %v2400
  %v2677 = vpack.c.b16 %v2405, %v2401
  %v2678 = vpack.c.b16 %v2406, %v2402
  %v2679 = vpack.c.b16 %v2407, %v2403
  %v2680 = vpack.c.b16 %v2412, %v2408
  %v2681 = vpack.c.b16 %v2413, %v2409
  %v2682 = vpack.c.b16 %v2414, %v2410
  %v2683 = vpack.c.b16 %v2415, %v2411
  %v2684 = vpack.c.b16 %v2420, %v2416
  %v2685 = vpack.c.b16 %v2421, %v2417
  %v2686 = vpack.c.b16 %v2422, %v2418
  %v2687 = vpack.c.b16 %v2423, %v2419
  %v2688 = vpack.c.b16 %v2428, %v2424
  %v2689 = vpack.c.b16 %v2429, %v2425
  %v2690 = vpack.c.b16 %v2430, %v2426
  %v2691 = vpack.c.b16 %v2431, %v2427
  %v2692 = vpack.c.b16 %v2436, %v2432
  %v2693 = vpack.c.b16 %v2437, %v2433
  %v2694 = vpack.c.b16 %v2438, %v2434
  %v2695 = vpack.c.b16 %v2439, %v2435
  %2952 = vmatpush.bf16.msra.mxu0 %v2468
  %2953 = vmatpush.bf16.msra.mxu0 %v2464
  %2954 = vmatpush.bf16.msra.mxu0 %v2460
  %2955 = vmatpush.bf16.msra.mxu0 %v2456
  %2956 = vmatpush.bf16.msra.mxu0 %v2452
  %2957 = vmatpush.bf16.msra.mxu0 %v2448
  %2958 = vmatpush.bf16.msra.mxu0 %v2444
  %2959 = vmatpush.bf16.msra.mxu0 %v2440
  %2960 = vmatmul.bf16.gmra.mxu0 %v1278
  %v2961 = vpop.f32.mrf.mxu0
  %v2962 = vadd.f32 %v1664, %v2961
  %v2963 = vpop.f32.mrf.mxu0
  %v2964 = vadd.f32 %v1664, %v2963
  %2965 = vmatmul.bf16.gmra.mxu0 %v1286
  %v2966 = vpop.f32.mrf.mxu0
  %v2967 = vadd.f32 %v1664, %v2966
  %v2968 = vpop.f32.mrf.mxu0
  %v2969 = vadd.f32 %v1664, %v2968
  %2970 = vmatmul.bf16.gmra.mxu0 %v1294
  %v2971 = vpop.f32.mrf.mxu0
  %v2972 = vadd.f32 %v1664, %v2971
  %v2973 = vpop.f32.mrf.mxu0
  %v2974 = vadd.f32 %v1664, %v2973
  %2975 = vmatmul.bf16.gmra.mxu0 %v1302
  %v2976 = vpop.f32.mrf.mxu0
  %v2977 = vadd.f32 %v1664, %v2976
  %v2978 = vpop.f32.mrf.mxu0
  %v2979 = vadd.f32 %v1664, %v2978
  %2980 = vmatmul.bf16.gmra.mxu0 %v1310
  %v2981 = vpop.f32.mrf.mxu0
  %v2982 = vadd.f32 %v1664, %v2981
  %v2983 = vpop.f32.mrf.mxu0
  %v2984 = vadd.f32 %v1664, %v2983
  %2985 = vmatmul.bf16.gmra.mxu0 %v1318
  %v2986 = vpop.f32.mrf.mxu0
  %v2987 = vadd.f32 %v1664, %v2986
  %v2988 = vpop.f32.mrf.mxu0
  %v2989 = vadd.f32 %v1664, %v2988
  %2990 = vmatmul.bf16.gmra.mxu0 %v1326
  %v2991 = vpop.f32.mrf.mxu0
  %v2992 = vadd.f32 %v1664, %v2991
  %v2993 = vpop.f32.mrf.mxu0
  %v2994 = vadd.f32 %v1664, %v2993
  %2995 = vmatmul.bf16.gmra.mxu0 %v1334
  %v2996 = vpop.f32.mrf.mxu0
  %v2997 = vadd.f32 %v1664, %v2996
  %v2998 = vpop.f32.mrf.mxu0
  %v2999 = vadd.f32 %v1664, %v2998
  %3000 = vmatmul.bf16.gmra.mxu0 %v1342
  %v3001 = vpop.f32.mrf.mxu0
  %v3002 = vadd.f32 %v1664, %v3001
  %v3003 = vpop.f32.mrf.mxu0
  %v3004 = vadd.f32 %v1664, %v3003
  %3005 = vmatmul.bf16.gmra.mxu0 %v1350
  %v3006 = vpop.f32.mrf.mxu0
  %v3007 = vadd.f32 %v1664, %v3006
  %v3008 = vpop.f32.mrf.mxu0
  %v3009 = vadd.f32 %v1664, %v3008
  %3010 = vmatmul.bf16.gmra.mxu0 %v1358
  %v3011 = vpop.f32.mrf.mxu0
  %v3012 = vadd.f32 %v1664, %v3011
  %v3013 = vpop.f32.mrf.mxu0
  %v3014 = vadd.f32 %v1664, %v3013
  %3015 = vmatmul.bf16.gmra.mxu0 %v1366
  %v3016 = vpop.f32.mrf.mxu0
  %v3017 = vadd.f32 %v1664, %v3016
  %v3018 = vpop.f32.mrf.mxu0
  %v3019 = vadd.f32 %v1664, %v3018
  %3020 = vmatmul.bf16.gmra.mxu0 %v1374
  %v3021 = vpop.f32.mrf.mxu0
  %v3022 = vadd.f32 %v1664, %v3021
  %v3023 = vpop.f32.mrf.mxu0
  %v3024 = vadd.f32 %v1664, %v3023
  %3025 = vmatmul.bf16.gmra.mxu0 %v1382
  %v3026 = vpop.f32.mrf.mxu0
  %v3027 = vadd.f32 %v1664, %v3026
  %v3028 = vpop.f32.mrf.mxu0
  %v3029 = vadd.f32 %v1664, %v3028
  %3030 = vmatmul.bf16.gmra.mxu0 %v1390
  %v3031 = vpop.f32.mrf.mxu0
  %v3032 = vadd.f32 %v1664, %v3031
  %v3033 = vpop.f32.mrf.mxu0
  %v3034 = vadd.f32 %v1664, %v3033
  %3035 = vmatmul.bf16.gmra.mxu0 %v1398
  %v3036 = vpop.f32.mrf.mxu0
  %v3037 = vadd.f32 %v1664, %v3036
  %v3038 = vpop.f32.mrf.mxu0
  %v3039 = vadd.f32 %v1664, %v3038
  %3040 = vdwg.mxu0
  %3041 = vmatpush.bf16.msra.mxu0 %v2500
  %3042 = vmatpush.bf16.msra.mxu0 %v2496
  %3043 = vmatpush.bf16.msra.mxu0 %v2492
  %3044 = vmatpush.bf16.msra.mxu0 %v2488
  %3045 = vmatpush.bf16.msra.mxu0 %v2484
  %3046 = vmatpush.bf16.msra.mxu0 %v2480
  %3047 = vmatpush.bf16.msra.mxu0 %v2476
  %3048 = vmatpush.bf16.msra.mxu0 %v2472
  %3049 = vmatmul.bf16.gmra.mxu0 %v1279
  %v3050 = vpop.f32.mrf.mxu0
  %v3051 = vadd.f32 %v2962, %v3050
  %v3052 = vpop.f32.mrf.mxu0
  %v3053 = vadd.f32 %v2964, %v3052
  %3054 = vmatmul.bf16.gmra.mxu0 %v1287
  %v3055 = vpop.f32.mrf.mxu0
  %v3056 = vadd.f32 %v2967, %v3055
  %v3057 = vpop.f32.mrf.mxu0
  %v3058 = vadd.f32 %v2969, %v3057
  %3059 = vmatmul.bf16.gmra.mxu0 %v1295
  %v3060 = vpop.f32.mrf.mxu0
  %v3061 = vadd.f32 %v2972, %v3060
  %v3062 = vpop.f32.mrf.mxu0
  %v3063 = vadd.f32 %v2974, %v3062
  %3064 = vmatmul.bf16.gmra.mxu0 %v1303
  %v3065 = vpop.f32.mrf.mxu0
  %v3066 = vadd.f32 %v2977, %v3065
  %v3067 = vpop.f32.mrf.mxu0
  %v3068 = vadd.f32 %v2979, %v3067
  %3069 = vmatmul.bf16.gmra.mxu0 %v1311
  %v3070 = vpop.f32.mrf.mxu0
  %v3071 = vadd.f32 %v2982, %v3070
  %v3072 = vpop.f32.mrf.mxu0
  %v3073 = vadd.f32 %v2984, %v3072
  %3074 = vmatmul.bf16.gmra.mxu0 %v1319
  %v3075 = vpop.f32.mrf.mxu0
  %v3076 = vadd.f32 %v2987, %v3075
  %v3077 = vpop.f32.mrf.mxu0
  %v3078 = vadd.f32 %v2989, %v3077
  %3079 = vmatmul.bf16.gmra.mxu0 %v1327
  %v3080 = vpop.f32.mrf.mxu0
  %v3081 = vadd.f32 %v2992, %v3080
  %v3082 = vpop.f32.mrf.mxu0
  %v3083 = vadd.f32 %v2994, %v3082
  %3084 = vmatmul.bf16.gmra.mxu0 %v1335
  %v3085 = vpop.f32.mrf.mxu0
  %v3086 = vadd.f32 %v2997, %v3085
  %v3087 = vpop.f32.mrf.mxu0
  %v3088 = vadd.f32 %v2999, %v3087
  %3089 = vmatmul.bf16.gmra.mxu0 %v1343
  %v3090 = vpop.f32.mrf.mxu0
  %v3091 = vadd.f32 %v3002, %v3090
  %v3092 = vpop.f32.mrf.mxu0
  %v3093 = vadd.f32 %v3004, %v3092
  %3094 = vmatmul.bf16.gmra.mxu0 %v1351
  %v3095 = vpop.f32.mrf.mxu0
  %v3096 = vadd.f32 %v3007, %v3095
  %v3097 = vpop.f32.mrf.mxu0
  %v3098 = vadd.f32 %v3009, %v3097
  %3099 = vmatmul.bf16.gmra.mxu0 %v1359
  %v3100 = vpop.f32.mrf.mxu0
  %v3101 = vadd.f32 %v3012, %v3100
  %v3102 = vpop.f32.mrf.mxu0
  %v3103 = vadd.f32 %v3014, %v3102
  %3104 = vmatmul.bf16.gmra.mxu0 %v1367
  %v3105 = vpop.f32.mrf.mxu0
  %v3106 = vadd.f32 %v3017, %v3105
  %v3107 = vpop.f32.mrf.mxu0
  %v3108 = vadd.f32 %v3019, %v3107
  %3109 = vmatmul.bf16.gmra.mxu0 %v1375
  %v3110 = vpop.f32.mrf.mxu0
  %v3111 = vadd.f32 %v3022, %v3110
  %v3112 = vpop.f32.mrf.mxu0
  %v3113 = vadd.f32 %v3024, %v3112
  %3114 = vmatmul.bf16.gmra.mxu0 %v1383
  %v3115 = vpop.f32.mrf.mxu0
  %v3116 = vadd.f32 %v3027, %v3115
  %v3117 = vpop.f32.mrf.mxu0
  %v3118 = vadd.f32 %v3029, %v3117
  %3119 = vmatmul.bf16.gmra.mxu0 %v1391
  %v3120 = vpop.f32.mrf.mxu0
  %v3121 = vadd.f32 %v3032, %v3120
  %v3122 = vpop.f32.mrf.mxu0
  %v3123 = vadd.f32 %v3034, %v3122
  %3124 = vmatmul.bf16.gmra.mxu0 %v1399
  %v3125 = vpop.f32.mrf.mxu0
  %v3126 = vadd.f32 %v3037, %v3125
  %v3127 = vpop.f32.mrf.mxu0
  %v3128 = vadd.f32 %v3039, %v3127
  %3129 = vdwg.mxu0
  %3130 = vmatpush.bf16.msra.mxu0 %v2532
  %3131 = vmatpush.bf16.msra.mxu0 %v2528
  %3132 = vmatpush.bf16.msra.mxu0 %v2524
  %3133 = vmatpush.bf16.msra.mxu0 %v2520
  %3134 = vmatpush.bf16.msra.mxu0 %v2516
  %3135 = vmatpush.bf16.msra.mxu0 %v2512
  %3136 = vmatpush.bf16.msra.mxu0 %v2508
  %3137 = vmatpush.bf16.msra.mxu0 %v2504
  %3138 = vmatmul.bf16.gmra.mxu0 %v1280
  %v3139 = vpop.f32.mrf.mxu0
  %v3140 = vadd.f32 %v3051, %v3139
  %v3141 = vpop.f32.mrf.mxu0
  %v3142 = vadd.f32 %v3053, %v3141
  %3143 = vmatmul.bf16.gmra.mxu0 %v1288
  %v3144 = vpop.f32.mrf.mxu0
  %v3145 = vadd.f32 %v3056, %v3144
  %v3146 = vpop.f32.mrf.mxu0
  %v3147 = vadd.f32 %v3058, %v3146
  %3148 = vmatmul.bf16.gmra.mxu0 %v1296
  %v3149 = vpop.f32.mrf.mxu0
  %v3150 = vadd.f32 %v3061, %v3149
  %v3151 = vpop.f32.mrf.mxu0
  %v3152 = vadd.f32 %v3063, %v3151
  %3153 = vmatmul.bf16.gmra.mxu0 %v1304
  %v3154 = vpop.f32.mrf.mxu0
  %v3155 = vadd.f32 %v3066, %v3154
  %v3156 = vpop.f32.mrf.mxu0
  %v3157 = vadd.f32 %v3068, %v3156
  %3158 = vmatmul.bf16.gmra.mxu0 %v1312
  %v3159 = vpop.f32.mrf.mxu0
  %v3160 = vadd.f32 %v3071, %v3159
  %v3161 = vpop.f32.mrf.mxu0
  %v3162 = vadd.f32 %v3073, %v3161
  %3163 = vmatmul.bf16.gmra.mxu0 %v1320
  %v3164 = vpop.f32.mrf.mxu0
  %v3165 = vadd.f32 %v3076, %v3164
  %v3166 = vpop.f32.mrf.mxu0
  %v3167 = vadd.f32 %v3078, %v3166
  %3168 = vmatmul.bf16.gmra.mxu0 %v1328
  %v3169 = vpop.f32.mrf.mxu0
  %v3170 = vadd.f32 %v3081, %v3169
  %v3171 = vpop.f32.mrf.mxu0
  %v3172 = vadd.f32 %v3083, %v3171
  %3173 = vmatmul.bf16.gmra.mxu0 %v1336
  %v3174 = vpop.f32.mrf.mxu0
  %v3175 = vadd.f32 %v3086, %v3174
  %v3176 = vpop.f32.mrf.mxu0
  %v3177 = vadd.f32 %v3088, %v3176
  %3178 = vmatmul.bf16.gmra.mxu0 %v1344
  %v3179 = vpop.f32.mrf.mxu0
  %v3180 = vadd.f32 %v3091, %v3179
  %v3181 = vpop.f32.mrf.mxu0
  %v3182 = vadd.f32 %v3093, %v3181
  %3183 = vmatmul.bf16.gmra.mxu0 %v1352
  %v3184 = vpop.f32.mrf.mxu0
  %v3185 = vadd.f32 %v3096, %v3184
  %v3186 = vpop.f32.mrf.mxu0
  %v3187 = vadd.f32 %v3098, %v3186
  %3188 = vmatmul.bf16.gmra.mxu0 %v1360
  %v3189 = vpop.f32.mrf.mxu0
  %v3190 = vadd.f32 %v3101, %v3189
  %v3191 = vpop.f32.mrf.mxu0
  %v3192 = vadd.f32 %v3103, %v3191
  %3193 = vmatmul.bf16.gmra.mxu0 %v1368
  %v3194 = vpop.f32.mrf.mxu0
  %v3195 = vadd.f32 %v3106, %v3194
  %v3196 = vpop.f32.mrf.mxu0
  %v3197 = vadd.f32 %v3108, %v3196
  %3198 = vmatmul.bf16.gmra.mxu0 %v1376
  %v3199 = vpop.f32.mrf.mxu0
  %v3200 = vadd.f32 %v3111, %v3199
  %v3201 = vpop.f32.mrf.mxu0
  %v3202 = vadd.f32 %v3113, %v3201
  %3203 = vmatmul.bf16.gmra.mxu0 %v1384
  %v3204 = vpop.f32.mrf.mxu0
  %v3205 = vadd.f32 %v3116, %v3204
  %v3206 = vpop.f32.mrf.mxu0
  %v3207 = vadd.f32 %v3118, %v3206
  %3208 = vmatmul.bf16.gmra.mxu0 %v1392
  %v3209 = vpop.f32.mrf.mxu0
  %v3210 = vadd.f32 %v3121, %v3209
  %v3211 = vpop.f32.mrf.mxu0
  %v3212 = vadd.f32 %v3123, %v3211
  %3213 = vmatmul.bf16.gmra.mxu0 %v1400
  %v3214 = vpop.f32.mrf.mxu0
  %v3215 = vadd.f32 %v3126, %v3214
  %v3216 = vpop.f32.mrf.mxu0
  %v3217 = vadd.f32 %v3128, %v3216
  %3218 = vdwg.mxu0
  %3219 = vmatpush.bf16.msra.mxu0 %v2564
  %3220 = vmatpush.bf16.msra.mxu0 %v2560
  %3221 = vmatpush.bf16.msra.mxu0 %v2556
  %3222 = vmatpush.bf16.msra.mxu0 %v2552
  %3223 = vmatpush.bf16.msra.mxu0 %v2548
  %3224 = vmatpush.bf16.msra.mxu0 %v2544
  %3225 = vmatpush.bf16.msra.mxu0 %v2540
  %3226 = vmatpush.bf16.msra.mxu0 %v2536
  %3227 = vmatmul.bf16.gmra.mxu0 %v1281
  %v3228 = vpop.f32.mrf.mxu0
  %v3229 = vadd.f32 %v3140, %v3228
  %v3230 = vpop.f32.mrf.mxu0
  %v3231 = vadd.f32 %v3142, %v3230
  %3232 = vmatmul.bf16.gmra.mxu0 %v1289
  %v3233 = vpop.f32.mrf.mxu0
  %v3234 = vadd.f32 %v3145, %v3233
  %v3235 = vpop.f32.mrf.mxu0
  %v3236 = vadd.f32 %v3147, %v3235
  %3237 = vmatmul.bf16.gmra.mxu0 %v1297
  %v3238 = vpop.f32.mrf.mxu0
  %v3239 = vadd.f32 %v3150, %v3238
  %v3240 = vpop.f32.mrf.mxu0
  %v3241 = vadd.f32 %v3152, %v3240
  %3242 = vmatmul.bf16.gmra.mxu0 %v1305
  %v3243 = vpop.f32.mrf.mxu0
  %v3244 = vadd.f32 %v3155, %v3243
  %v3245 = vpop.f32.mrf.mxu0
  %v3246 = vadd.f32 %v3157, %v3245
  %3247 = vmatmul.bf16.gmra.mxu0 %v1313
  %v3248 = vpop.f32.mrf.mxu0
  %v3249 = vadd.f32 %v3160, %v3248
  %v3250 = vpop.f32.mrf.mxu0
  %v3251 = vadd.f32 %v3162, %v3250
  %3252 = vmatmul.bf16.gmra.mxu0 %v1321
  %v3253 = vpop.f32.mrf.mxu0
  %v3254 = vadd.f32 %v3165, %v3253
  %v3255 = vpop.f32.mrf.mxu0
  %v3256 = vadd.f32 %v3167, %v3255
  %3257 = vmatmul.bf16.gmra.mxu0 %v1329
  %v3258 = vpop.f32.mrf.mxu0
  %v3259 = vadd.f32 %v3170, %v3258
  %v3260 = vpop.f32.mrf.mxu0
  %v3261 = vadd.f32 %v3172, %v3260
  %3262 = vmatmul.bf16.gmra.mxu0 %v1337
  %v3263 = vpop.f32.mrf.mxu0
  %v3264 = vadd.f32 %v3175, %v3263
  %v3265 = vpop.f32.mrf.mxu0
  %v3266 = vadd.f32 %v3177, %v3265
  %3267 = vmatmul.bf16.gmra.mxu0 %v1345
  %v3268 = vpop.f32.mrf.mxu0
  %v3269 = vadd.f32 %v3180, %v3268
  %v3270 = vpop.f32.mrf.mxu0
  %v3271 = vadd.f32 %v3182, %v3270
  %3272 = vmatmul.bf16.gmra.mxu0 %v1353
  %v3273 = vpop.f32.mrf.mxu0
  %v3274 = vadd.f32 %v3185, %v3273
  %v3275 = vpop.f32.mrf.mxu0
  %v3276 = vadd.f32 %v3187, %v3275
  %3277 = vmatmul.bf16.gmra.mxu0 %v1361
  %v3278 = vpop.f32.mrf.mxu0
  %v3279 = vadd.f32 %v3190, %v3278
  %v3280 = vpop.f32.mrf.mxu0
  %v3281 = vadd.f32 %v3192, %v3280
  %3282 = vmatmul.bf16.gmra.mxu0 %v1369
  %v3283 = vpop.f32.mrf.mxu0
  %v3284 = vadd.f32 %v3195, %v3283
  %v3285 = vpop.f32.mrf.mxu0
  %v3286 = vadd.f32 %v3197, %v3285
  %3287 = vmatmul.bf16.gmra.mxu0 %v1377
  %v3288 = vpop.f32.mrf.mxu0
  %v3289 = vadd.f32 %v3200, %v3288
  %v3290 = vpop.f32.mrf.mxu0
  %v3291 = vadd.f32 %v3202, %v3290
  %3292 = vmatmul.bf16.gmra.mxu0 %v1385
  %v3293 = vpop.f32.mrf.mxu0
  %v3294 = vadd.f32 %v3205, %v3293
  %v3295 = vpop.f32.mrf.mxu0
  %v3296 = vadd.f32 %v3207, %v3295
  %3297 = vmatmul.bf16.gmra.mxu0 %v1393
  %v3298 = vpop.f32.mrf.mxu0
  %v3299 = vadd.f32 %v3210, %v3298
  %v3300 = vpop.f32.mrf.mxu0
  %v3301 = vadd.f32 %v3212, %v3300
  %3302 = vmatmul.bf16.gmra.mxu0 %v1401
  %v3303 = vpop.f32.mrf.mxu0
  %v3304 = vadd.f32 %v3215, %v3303
  %v3305 = vpop.f32.mrf.mxu0
  %v3306 = vadd.f32 %v3217, %v3305
  %3307 = vdwg.mxu0
  %3308 = vmatpush.bf16.msra.mxu0 %v2596
  %3309 = vmatpush.bf16.msra.mxu0 %v2592
  %3310 = vmatpush.bf16.msra.mxu0 %v2588
  %3311 = vmatpush.bf16.msra.mxu0 %v2584
  %3312 = vmatpush.bf16.msra.mxu0 %v2580
  %3313 = vmatpush.bf16.msra.mxu0 %v2576
  %3314 = vmatpush.bf16.msra.mxu0 %v2572
  %3315 = vmatpush.bf16.msra.mxu0 %v2568
  %3316 = vmatmul.bf16.gmra.mxu0 %v1282
  %v3317 = vpop.f32.mrf.mxu0
  %v3318 = vadd.f32 %v3229, %v3317
  %v3319 = vpop.f32.mrf.mxu0
  %v3320 = vadd.f32 %v3231, %v3319
  %3321 = vmatmul.bf16.gmra.mxu0 %v1290
  %v3322 = vpop.f32.mrf.mxu0
  %v3323 = vadd.f32 %v3234, %v3322
  %v3324 = vpop.f32.mrf.mxu0
  %v3325 = vadd.f32 %v3236, %v3324
  %3326 = vmatmul.bf16.gmra.mxu0 %v1298
  %v3327 = vpop.f32.mrf.mxu0
  %v3328 = vadd.f32 %v3239, %v3327
  %v3329 = vpop.f32.mrf.mxu0
  %v3330 = vadd.f32 %v3241, %v3329
  %3331 = vmatmul.bf16.gmra.mxu0 %v1306
  %v3332 = vpop.f32.mrf.mxu0
  %v3333 = vadd.f32 %v3244, %v3332
  %v3334 = vpop.f32.mrf.mxu0
  %v3335 = vadd.f32 %v3246, %v3334
  %3336 = vmatmul.bf16.gmra.mxu0 %v1314
  %v3337 = vpop.f32.mrf.mxu0
  %v3338 = vadd.f32 %v3249, %v3337
  %v3339 = vpop.f32.mrf.mxu0
  %v3340 = vadd.f32 %v3251, %v3339
  %3341 = vmatmul.bf16.gmra.mxu0 %v1322
  %v3342 = vpop.f32.mrf.mxu0
  %v3343 = vadd.f32 %v3254, %v3342
  %v3344 = vpop.f32.mrf.mxu0
  %v3345 = vadd.f32 %v3256, %v3344
  %3346 = vmatmul.bf16.gmra.mxu0 %v1330
  %v3347 = vpop.f32.mrf.mxu0
  %v3348 = vadd.f32 %v3259, %v3347
  %v3349 = vpop.f32.mrf.mxu0
  %v3350 = vadd.f32 %v3261, %v3349
  %3351 = vmatmul.bf16.gmra.mxu0 %v1338
  %v3352 = vpop.f32.mrf.mxu0
  %v3353 = vadd.f32 %v3264, %v3352
  %v3354 = vpop.f32.mrf.mxu0
  %v3355 = vadd.f32 %v3266, %v3354
  %3356 = vmatmul.bf16.gmra.mxu0 %v1346
  %v3357 = vpop.f32.mrf.mxu0
  %v3358 = vadd.f32 %v3269, %v3357
  %v3359 = vpop.f32.mrf.mxu0
  %v3360 = vadd.f32 %v3271, %v3359
  %3361 = vmatmul.bf16.gmra.mxu0 %v1354
  %v3362 = vpop.f32.mrf.mxu0
  %v3363 = vadd.f32 %v3274, %v3362
  %v3364 = vpop.f32.mrf.mxu0
  %v3365 = vadd.f32 %v3276, %v3364
  %3366 = vmatmul.bf16.gmra.mxu0 %v1362
  %v3367 = vpop.f32.mrf.mxu0
  %v3368 = vadd.f32 %v3279, %v3367
  %v3369 = vpop.f32.mrf.mxu0
  %v3370 = vadd.f32 %v3281, %v3369
  %3371 = vmatmul.bf16.gmra.mxu0 %v1370
  %v3372 = vpop.f32.mrf.mxu0
  %v3373 = vadd.f32 %v3284, %v3372
  %v3374 = vpop.f32.mrf.mxu0
  %v3375 = vadd.f32 %v3286, %v3374
  %3376 = vmatmul.bf16.gmra.mxu0 %v1378
  %v3377 = vpop.f32.mrf.mxu0
  %v3378 = vadd.f32 %v3289, %v3377
  %v3379 = vpop.f32.mrf.mxu0
  %v3380 = vadd.f32 %v3291, %v3379
  %3381 = vmatmul.bf16.gmra.mxu0 %v1386
  %v3382 = vpop.f32.mrf.mxu0
  %v3383 = vadd.f32 %v3294, %v3382
  %v3384 = vpop.f32.mrf.mxu0
  %v3385 = vadd.f32 %v3296, %v3384
  %3386 = vmatmul.bf16.gmra.mxu0 %v1394
  %v3387 = vpop.f32.mrf.mxu0
  %v3388 = vadd.f32 %v3299, %v3387
  %v3389 = vpop.f32.mrf.mxu0
  %v3390 = vadd.f32 %v3301, %v3389
  %3391 = vmatmul.bf16.gmra.mxu0 %v1402
  %v3392 = vpop.f32.mrf.mxu0
  %v3393 = vadd.f32 %v3304, %v3392
  %v3394 = vpop.f32.mrf.mxu0
  %v3395 = vadd.f32 %v3306, %v3394
  %3396 = vdwg.mxu0
  %3397 = vmatpush.bf16.msra.mxu0 %v2628
  %3398 = vmatpush.bf16.msra.mxu0 %v2624
  %3399 = vmatpush.bf16.msra.mxu0 %v2620
  %3400 = vmatpush.bf16.msra.mxu0 %v2616
  %3401 = vmatpush.bf16.msra.mxu0 %v2612
  %3402 = vmatpush.bf16.msra.mxu0 %v2608
  %3403 = vmatpush.bf16.msra.mxu0 %v2604
  %3404 = vmatpush.bf16.msra.mxu0 %v2600
  %3405 = vmatmul.bf16.gmra.mxu0 %v1283
  %v3406 = vpop.f32.mrf.mxu0
  %v3407 = vadd.f32 %v3318, %v3406
  %v3408 = vpop.f32.mrf.mxu0
  %v3409 = vadd.f32 %v3320, %v3408
  %3410 = vmatmul.bf16.gmra.mxu0 %v1291
  %v3411 = vpop.f32.mrf.mxu0
  %v3412 = vadd.f32 %v3323, %v3411
  %v3413 = vpop.f32.mrf.mxu0
  %v3414 = vadd.f32 %v3325, %v3413
  %3415 = vmatmul.bf16.gmra.mxu0 %v1299
  %v3416 = vpop.f32.mrf.mxu0
  %v3417 = vadd.f32 %v3328, %v3416
  %v3418 = vpop.f32.mrf.mxu0
  %v3419 = vadd.f32 %v3330, %v3418
  %3420 = vmatmul.bf16.gmra.mxu0 %v1307
  %v3421 = vpop.f32.mrf.mxu0
  %v3422 = vadd.f32 %v3333, %v3421
  %v3423 = vpop.f32.mrf.mxu0
  %v3424 = vadd.f32 %v3335, %v3423
  %3425 = vmatmul.bf16.gmra.mxu0 %v1315
  %v3426 = vpop.f32.mrf.mxu0
  %v3427 = vadd.f32 %v3338, %v3426
  %v3428 = vpop.f32.mrf.mxu0
  %v3429 = vadd.f32 %v3340, %v3428
  %3430 = vmatmul.bf16.gmra.mxu0 %v1323
  %v3431 = vpop.f32.mrf.mxu0
  %v3432 = vadd.f32 %v3343, %v3431
  %v3433 = vpop.f32.mrf.mxu0
  %v3434 = vadd.f32 %v3345, %v3433
  %3435 = vmatmul.bf16.gmra.mxu0 %v1331
  %v3436 = vpop.f32.mrf.mxu0
  %v3437 = vadd.f32 %v3348, %v3436
  %v3438 = vpop.f32.mrf.mxu0
  %v3439 = vadd.f32 %v3350, %v3438
  %3440 = vmatmul.bf16.gmra.mxu0 %v1339
  %v3441 = vpop.f32.mrf.mxu0
  %v3442 = vadd.f32 %v3353, %v3441
  %v3443 = vpop.f32.mrf.mxu0
  %v3444 = vadd.f32 %v3355, %v3443
  %3445 = vmatmul.bf16.gmra.mxu0 %v1347
  %v3446 = vpop.f32.mrf.mxu0
  %v3447 = vadd.f32 %v3358, %v3446
  %v3448 = vpop.f32.mrf.mxu0
  %v3449 = vadd.f32 %v3360, %v3448
  %3450 = vmatmul.bf16.gmra.mxu0 %v1355
  %v3451 = vpop.f32.mrf.mxu0
  %v3452 = vadd.f32 %v3363, %v3451
  %v3453 = vpop.f32.mrf.mxu0
  %v3454 = vadd.f32 %v3365, %v3453
  %3455 = vmatmul.bf16.gmra.mxu0 %v1363
  %v3456 = vpop.f32.mrf.mxu0
  %v3457 = vadd.f32 %v3368, %v3456
  %v3458 = vpop.f32.mrf.mxu0
  %v3459 = vadd.f32 %v3370, %v3458
  %3460 = vmatmul.bf16.gmra.mxu0 %v1371
  %v3461 = vpop.f32.mrf.mxu0
  %v3462 = vadd.f32 %v3373, %v3461
  %v3463 = vpop.f32.mrf.mxu0
  %v3464 = vadd.f32 %v3375, %v3463
  %3465 = vmatmul.bf16.gmra.mxu0 %v1379
  %v3466 = vpop.f32.mrf.mxu0
  %v3467 = vadd.f32 %v3378, %v3466
  %v3468 = vpop.f32.mrf.mxu0
  %v3469 = vadd.f32 %v3380, %v3468
  %3470 = vmatmul.bf16.gmra.mxu0 %v1387
  %v3471 = vpop.f32.mrf.mxu0
  %v3472 = vadd.f32 %v3383, %v3471
  %v3473 = vpop.f32.mrf.mxu0
  %v3474 = vadd.f32 %v3385, %v3473
  %3475 = vmatmul.bf16.gmra.mxu0 %v1395
  %v3476 = vpop.f32.mrf.mxu0
  %v3477 = vadd.f32 %v3388, %v3476
  %v3478 = vpop.f32.mrf.mxu0
  %v3479 = vadd.f32 %v3390, %v3478
  %3480 = vmatmul.bf16.gmra.mxu0 %v1403
  %v3481 = vpop.f32.mrf.mxu0
  %v3482 = vadd.f32 %v3393, %v3481
  %v3483 = vpop.f32.mrf.mxu0
  %v3484 = vadd.f32 %v3395, %v3483
  %3485 = vdwg.mxu0
  %3486 = vmatpush.bf16.msra.mxu0 %v2660
  %3487 = vmatpush.bf16.msra.mxu0 %v2656
  %3488 = vmatpush.bf16.msra.mxu0 %v2652
  %3489 = vmatpush.bf16.msra.mxu0 %v2648
  %3490 = vmatpush.bf16.msra.mxu0 %v2644
  %3491 = vmatpush.bf16.msra.mxu0 %v2640
  %3492 = vmatpush.bf16.msra.mxu0 %v2636
  %3493 = vmatpush.bf16.msra.mxu0 %v2632
  %3494 = vmatmul.bf16.gmra.mxu0 %v1284
  %v3495 = vpop.f32.mrf.mxu0
  %v3496 = vadd.f32 %v3407, %v3495
  %v3497 = vpop.f32.mrf.mxu0
  %v3498 = vadd.f32 %v3409, %v3497
  %3499 = vmatmul.bf16.gmra.mxu0 %v1292
  %v3500 = vpop.f32.mrf.mxu0
  %v3501 = vadd.f32 %v3412, %v3500
  %v3502 = vpop.f32.mrf.mxu0
  %v3503 = vadd.f32 %v3414, %v3502
  %3504 = vmatmul.bf16.gmra.mxu0 %v1300
  %v3505 = vpop.f32.mrf.mxu0
  %v3506 = vadd.f32 %v3417, %v3505
  %v3507 = vpop.f32.mrf.mxu0
  %v3508 = vadd.f32 %v3419, %v3507
  %3509 = vmatmul.bf16.gmra.mxu0 %v1308
  %v3510 = vpop.f32.mrf.mxu0
  %v3511 = vadd.f32 %v3422, %v3510
  %v3512 = vpop.f32.mrf.mxu0
  %v3513 = vadd.f32 %v3424, %v3512
  %3514 = vmatmul.bf16.gmra.mxu0 %v1316
  %v3515 = vpop.f32.mrf.mxu0
  %v3516 = vadd.f32 %v3427, %v3515
  %v3517 = vpop.f32.mrf.mxu0
  %v3518 = vadd.f32 %v3429, %v3517
  %3519 = vmatmul.bf16.gmra.mxu0 %v1324
  %v3520 = vpop.f32.mrf.mxu0
  %v3521 = vadd.f32 %v3432, %v3520
  %v3522 = vpop.f32.mrf.mxu0
  %v3523 = vadd.f32 %v3434, %v3522
  %3524 = vmatmul.bf16.gmra.mxu0 %v1332
  %v3525 = vpop.f32.mrf.mxu0
  %v3526 = vadd.f32 %v3437, %v3525
  %v3527 = vpop.f32.mrf.mxu0
  %v3528 = vadd.f32 %v3439, %v3527
  %3529 = vmatmul.bf16.gmra.mxu0 %v1340
  %v3530 = vpop.f32.mrf.mxu0
  %v3531 = vadd.f32 %v3442, %v3530
  %v3532 = vpop.f32.mrf.mxu0
  %v3533 = vadd.f32 %v3444, %v3532
  %3534 = vmatmul.bf16.gmra.mxu0 %v1348
  %v3535 = vpop.f32.mrf.mxu0
  %v3536 = vadd.f32 %v3447, %v3535
  %v3537 = vpop.f32.mrf.mxu0
  %v3538 = vadd.f32 %v3449, %v3537
  %3539 = vmatmul.bf16.gmra.mxu0 %v1356
  %v3540 = vpop.f32.mrf.mxu0
  %v3541 = vadd.f32 %v3452, %v3540
  %v3542 = vpop.f32.mrf.mxu0
  %v3543 = vadd.f32 %v3454, %v3542
  %3544 = vmatmul.bf16.gmra.mxu0 %v1364
  %v3545 = vpop.f32.mrf.mxu0
  %v3546 = vadd.f32 %v3457, %v3545
  %v3547 = vpop.f32.mrf.mxu0
  %v3548 = vadd.f32 %v3459, %v3547
  %3549 = vmatmul.bf16.gmra.mxu0 %v1372
  %v3550 = vpop.f32.mrf.mxu0
  %v3551 = vadd.f32 %v3462, %v3550
  %v3552 = vpop.f32.mrf.mxu0
  %v3553 = vadd.f32 %v3464, %v3552
  %3554 = vmatmul.bf16.gmra.mxu0 %v1380
  %v3555 = vpop.f32.mrf.mxu0
  %v3556 = vadd.f32 %v3467, %v3555
  %v3557 = vpop.f32.mrf.mxu0
  %v3558 = vadd.f32 %v3469, %v3557
  %3559 = vmatmul.bf16.gmra.mxu0 %v1388
  %v3560 = vpop.f32.mrf.mxu0
  %v3561 = vadd.f32 %v3472, %v3560
  %v3562 = vpop.f32.mrf.mxu0
  %v3563 = vadd.f32 %v3474, %v3562
  %3564 = vmatmul.bf16.gmra.mxu0 %v1396
  %v3565 = vpop.f32.mrf.mxu0
  %v3566 = vadd.f32 %v3477, %v3565
  %v3567 = vpop.f32.mrf.mxu0
  %v3568 = vadd.f32 %v3479, %v3567
  %3569 = vmatmul.bf16.gmra.mxu0 %v1404
  %v3570 = vpop.f32.mrf.mxu0
  %v3571 = vadd.f32 %v3482, %v3570
  %v3572 = vpop.f32.mrf.mxu0
  %v3573 = vadd.f32 %v3484, %v3572
  %3574 = vdwg.mxu0
  %3575 = vmatpush.bf16.msra.mxu0 %v2692
  %3576 = vmatpush.bf16.msra.mxu0 %v2688
  %3577 = vmatpush.bf16.msra.mxu0 %v2684
  %3578 = vmatpush.bf16.msra.mxu0 %v2680
  %3579 = vmatpush.bf16.msra.mxu0 %v2676
  %3580 = vmatpush.bf16.msra.mxu0 %v2672
  %3581 = vmatpush.bf16.msra.mxu0 %v2668
  %3582 = vmatpush.bf16.msra.mxu0 %v2664
  %3583 = vmatmul.bf16.gmra.mxu0 %v1285
  %v3584 = vpop.f32.mrf.mxu0
  %v3585 = vadd.f32 %v3496, %v3584
  %v3586 = vpop.f32.mrf.mxu0
  %v3587 = vadd.f32 %v3498, %v3586
  %3588 = vmatmul.bf16.gmra.mxu0 %v1293
  %v3589 = vpop.f32.mrf.mxu0
  %v3590 = vadd.f32 %v3501, %v3589
  %v3591 = vpop.f32.mrf.mxu0
  %v3592 = vadd.f32 %v3503, %v3591
  %3593 = vmatmul.bf16.gmra.mxu0 %v1301
  %v3594 = vpop.f32.mrf.mxu0
  %v3595 = vadd.f32 %v3506, %v3594
  %v3596 = vpop.f32.mrf.mxu0
  %v3597 = vadd.f32 %v3508, %v3596
  %3598 = vmatmul.bf16.gmra.mxu0 %v1309
  %v3599 = vpop.f32.mrf.mxu0
  %v3600 = vadd.f32 %v3511, %v3599
  %v3601 = vpop.f32.mrf.mxu0
  %v3602 = vadd.f32 %v3513, %v3601
  %3603 = vmatmul.bf16.gmra.mxu0 %v1317
  %v3604 = vpop.f32.mrf.mxu0
  %v3605 = vadd.f32 %v3516, %v3604
  %v3606 = vpop.f32.mrf.mxu0
  %v3607 = vadd.f32 %v3518, %v3606
  %3608 = vmatmul.bf16.gmra.mxu0 %v1325
  %v3609 = vpop.f32.mrf.mxu0
  %v3610 = vadd.f32 %v3521, %v3609
  %v3611 = vpop.f32.mrf.mxu0
  %v3612 = vadd.f32 %v3523, %v3611
  %3613 = vmatmul.bf16.gmra.mxu0 %v1333
  %v3614 = vpop.f32.mrf.mxu0
  %v3615 = vadd.f32 %v3526, %v3614
  %v3616 = vpop.f32.mrf.mxu0
  %v3617 = vadd.f32 %v3528, %v3616
  %3618 = vmatmul.bf16.gmra.mxu0 %v1341
  %v3619 = vpop.f32.mrf.mxu0
  %v3620 = vadd.f32 %v3531, %v3619
  %v3621 = vpop.f32.mrf.mxu0
  %v3622 = vadd.f32 %v3533, %v3621
  %3623 = vmatmul.bf16.gmra.mxu0 %v1349
  %v3624 = vpop.f32.mrf.mxu0
  %v3625 = vadd.f32 %v3536, %v3624
  %v3626 = vpop.f32.mrf.mxu0
  %v3627 = vadd.f32 %v3538, %v3626
  %3628 = vmatmul.bf16.gmra.mxu0 %v1357
  %v3629 = vpop.f32.mrf.mxu0
  %v3630 = vadd.f32 %v3541, %v3629
  %v3631 = vpop.f32.mrf.mxu0
  %v3632 = vadd.f32 %v3543, %v3631
  %3633 = vmatmul.bf16.gmra.mxu0 %v1365
  %v3634 = vpop.f32.mrf.mxu0
  %v3635 = vadd.f32 %v3546, %v3634
  %v3636 = vpop.f32.mrf.mxu0
  %v3637 = vadd.f32 %v3548, %v3636
  %3638 = vmatmul.bf16.gmra.mxu0 %v1373
  %v3639 = vpop.f32.mrf.mxu0
  %v3640 = vadd.f32 %v3551, %v3639
  %v3641 = vpop.f32.mrf.mxu0
  %v3642 = vadd.f32 %v3553, %v3641
  %3643 = vmatmul.bf16.gmra.mxu0 %v1381
  %v3644 = vpop.f32.mrf.mxu0
  %v3645 = vadd.f32 %v3556, %v3644
  %v3646 = vpop.f32.mrf.mxu0
  %v3647 = vadd.f32 %v3558, %v3646
  %3648 = vmatmul.bf16.gmra.mxu0 %v1389
  %v3649 = vpop.f32.mrf.mxu0
  %v3650 = vadd.f32 %v3561, %v3649
  %v3651 = vpop.f32.mrf.mxu0
  %v3652 = vadd.f32 %v3563, %v3651
  %3653 = vmatmul.bf16.gmra.mxu0 %v1397
  %v3654 = vpop.f32.mrf.mxu0
  %v3655 = vadd.f32 %v3566, %v3654
  %v3656 = vpop.f32.mrf.mxu0
  %v3657 = vadd.f32 %v3568, %v3656
  %3658 = vmatmul.bf16.gmra.mxu0 %v1405
  %v3659 = vpop.f32.mrf.mxu0
  %v3660 = vadd.f32 %v3571, %v3659
  %v3661 = vpop.f32.mrf.mxu0
  %v3662 = vadd.f32 %v3573, %v3661
  %3663 = vdwg.mxu0
  %3664 = vmatpush.bf16.msra.mxu0 %v2469
  %3665 = vmatpush.bf16.msra.mxu0 %v2465
  %3666 = vmatpush.bf16.msra.mxu0 %v2461
  %3667 = vmatpush.bf16.msra.mxu0 %v2457
  %3668 = vmatpush.bf16.msra.mxu0 %v2453
  %3669 = vmatpush.bf16.msra.mxu0 %v2449
  %3670 = vmatpush.bf16.msra.mxu0 %v2445
  %3671 = vmatpush.bf16.msra.mxu0 %v2441
  %3672 = vmatmul.bf16.gmra.mxu0 %v1278
  %v3673 = vpop.f32.mrf.mxu0
  %v3674 = vadd.f32 %v1665, %v3673
  %v3675 = vpop.f32.mrf.mxu0
  %v3676 = vadd.f32 %v1665, %v3675
  %3677 = vmatmul.bf16.gmra.mxu0 %v1286
  %v3678 = vpop.f32.mrf.mxu0
  %v3679 = vadd.f32 %v1665, %v3678
  %v3680 = vpop.f32.mrf.mxu0
  %v3681 = vadd.f32 %v1665, %v3680
  %3682 = vmatmul.bf16.gmra.mxu0 %v1294
  %v3683 = vpop.f32.mrf.mxu0
  %v3684 = vadd.f32 %v1665, %v3683
  %v3685 = vpop.f32.mrf.mxu0
  %v3686 = vadd.f32 %v1665, %v3685
  %3687 = vmatmul.bf16.gmra.mxu0 %v1302
  %v3688 = vpop.f32.mrf.mxu0
  %v3689 = vadd.f32 %v1665, %v3688
  %v3690 = vpop.f32.mrf.mxu0
  %v3691 = vadd.f32 %v1665, %v3690
  %3692 = vmatmul.bf16.gmra.mxu0 %v1310
  %v3693 = vpop.f32.mrf.mxu0
  %v3694 = vadd.f32 %v1665, %v3693
  %v3695 = vpop.f32.mrf.mxu0
  %v3696 = vadd.f32 %v1665, %v3695
  %3697 = vmatmul.bf16.gmra.mxu0 %v1318
  %v3698 = vpop.f32.mrf.mxu0
  %v3699 = vadd.f32 %v1665, %v3698
  %v3700 = vpop.f32.mrf.mxu0
  %v3701 = vadd.f32 %v1665, %v3700
  %3702 = vmatmul.bf16.gmra.mxu0 %v1326
  %v3703 = vpop.f32.mrf.mxu0
  %v3704 = vadd.f32 %v1665, %v3703
  %v3705 = vpop.f32.mrf.mxu0
  %v3706 = vadd.f32 %v1665, %v3705
  %3707 = vmatmul.bf16.gmra.mxu0 %v1334
  %v3708 = vpop.f32.mrf.mxu0
  %v3709 = vadd.f32 %v1665, %v3708
  %v3710 = vpop.f32.mrf.mxu0
  %v3711 = vadd.f32 %v1665, %v3710
  %3712 = vmatmul.bf16.gmra.mxu0 %v1342
  %v3713 = vpop.f32.mrf.mxu0
  %v3714 = vadd.f32 %v1665, %v3713
  %v3715 = vpop.f32.mrf.mxu0
  %v3716 = vadd.f32 %v1665, %v3715
  %3717 = vmatmul.bf16.gmra.mxu0 %v1350
  %v3718 = vpop.f32.mrf.mxu0
  %v3719 = vadd.f32 %v1665, %v3718
  %v3720 = vpop.f32.mrf.mxu0
  %v3721 = vadd.f32 %v1665, %v3720
  %3722 = vmatmul.bf16.gmra.mxu0 %v1358
  %v3723 = vpop.f32.mrf.mxu0
  %v3724 = vadd.f32 %v1665, %v3723
  %v3725 = vpop.f32.mrf.mxu0
  %v3726 = vadd.f32 %v1665, %v3725
  %3727 = vmatmul.bf16.gmra.mxu0 %v1366
  %v3728 = vpop.f32.mrf.mxu0
  %v3729 = vadd.f32 %v1665, %v3728
  %v3730 = vpop.f32.mrf.mxu0
  %v3731 = vadd.f32 %v1665, %v3730
  %3732 = vmatmul.bf16.gmra.mxu0 %v1374
  %v3733 = vpop.f32.mrf.mxu0
  %v3734 = vadd.f32 %v1665, %v3733
  %v3735 = vpop.f32.mrf.mxu0
  %v3736 = vadd.f32 %v1665, %v3735
  %3737 = vmatmul.bf16.gmra.mxu0 %v1382
  %v3738 = vpop.f32.mrf.mxu0
  %v3739 = vadd.f32 %v1665, %v3738
  %v3740 = vpop.f32.mrf.mxu0
  %v3741 = vadd.f32 %v1665, %v3740
  %3742 = vmatmul.bf16.gmra.mxu0 %v1390
  %v3743 = vpop.f32.mrf.mxu0
  %v3744 = vadd.f32 %v1665, %v3743
  %v3745 = vpop.f32.mrf.mxu0
  %v3746 = vadd.f32 %v1665, %v3745
  %3747 = vmatmul.bf16.gmra.mxu0 %v1398
  %v3748 = vpop.f32.mrf.mxu0
  %v3749 = vadd.f32 %v1665, %v3748
  %v3750 = vpop.f32.mrf.mxu0
  %v3751 = vadd.f32 %v1665, %v3750
  %3752 = vdwg.mxu0
  %3753 = vmatpush.bf16.msra.mxu0 %v2501
  %3754 = vmatpush.bf16.msra.mxu0 %v2497
  %3755 = vmatpush.bf16.msra.mxu0 %v2493
  %3756 = vmatpush.bf16.msra.mxu0 %v2489
  %3757 = vmatpush.bf16.msra.mxu0 %v2485
  %3758 = vmatpush.bf16.msra.mxu0 %v2481
  %3759 = vmatpush.bf16.msra.mxu0 %v2477
  %3760 = vmatpush.bf16.msra.mxu0 %v2473
  %3761 = vmatmul.bf16.gmra.mxu0 %v1279
  %v3762 = vpop.f32.mrf.mxu0
  %v3763 = vadd.f32 %v3674, %v3762
  %v3764 = vpop.f32.mrf.mxu0
  %v3765 = vadd.f32 %v3676, %v3764
  %3766 = vmatmul.bf16.gmra.mxu0 %v1287
  %v3767 = vpop.f32.mrf.mxu0
  %v3768 = vadd.f32 %v3679, %v3767
  %v3769 = vpop.f32.mrf.mxu0
  %v3770 = vadd.f32 %v3681, %v3769
  %3771 = vmatmul.bf16.gmra.mxu0 %v1295
  %v3772 = vpop.f32.mrf.mxu0
  %v3773 = vadd.f32 %v3684, %v3772
  %v3774 = vpop.f32.mrf.mxu0
  %v3775 = vadd.f32 %v3686, %v3774
  %3776 = vmatmul.bf16.gmra.mxu0 %v1303
  %v3777 = vpop.f32.mrf.mxu0
  %v3778 = vadd.f32 %v3689, %v3777
  %v3779 = vpop.f32.mrf.mxu0
  %v3780 = vadd.f32 %v3691, %v3779
  %3781 = vmatmul.bf16.gmra.mxu0 %v1311
  %v3782 = vpop.f32.mrf.mxu0
  %v3783 = vadd.f32 %v3694, %v3782
  %v3784 = vpop.f32.mrf.mxu0
  %v3785 = vadd.f32 %v3696, %v3784
  %3786 = vmatmul.bf16.gmra.mxu0 %v1319
  %v3787 = vpop.f32.mrf.mxu0
  %v3788 = vadd.f32 %v3699, %v3787
  %v3789 = vpop.f32.mrf.mxu0
  %v3790 = vadd.f32 %v3701, %v3789
  %3791 = vmatmul.bf16.gmra.mxu0 %v1327
  %v3792 = vpop.f32.mrf.mxu0
  %v3793 = vadd.f32 %v3704, %v3792
  %v3794 = vpop.f32.mrf.mxu0
  %v3795 = vadd.f32 %v3706, %v3794
  %3796 = vmatmul.bf16.gmra.mxu0 %v1335
  %v3797 = vpop.f32.mrf.mxu0
  %v3798 = vadd.f32 %v3709, %v3797
  %v3799 = vpop.f32.mrf.mxu0
  %v3800 = vadd.f32 %v3711, %v3799
  %3801 = vmatmul.bf16.gmra.mxu0 %v1343
  %v3802 = vpop.f32.mrf.mxu0
  %v3803 = vadd.f32 %v3714, %v3802
  %v3804 = vpop.f32.mrf.mxu0
  %v3805 = vadd.f32 %v3716, %v3804
  %3806 = vmatmul.bf16.gmra.mxu0 %v1351
  %v3807 = vpop.f32.mrf.mxu0
  %v3808 = vadd.f32 %v3719, %v3807
  %v3809 = vpop.f32.mrf.mxu0
  %v3810 = vadd.f32 %v3721, %v3809
  %3811 = vmatmul.bf16.gmra.mxu0 %v1359
  %v3812 = vpop.f32.mrf.mxu0
  %v3813 = vadd.f32 %v3724, %v3812
  %v3814 = vpop.f32.mrf.mxu0
  %v3815 = vadd.f32 %v3726, %v3814
  %3816 = vmatmul.bf16.gmra.mxu0 %v1367
  %v3817 = vpop.f32.mrf.mxu0
  %v3818 = vadd.f32 %v3729, %v3817
  %v3819 = vpop.f32.mrf.mxu0
  %v3820 = vadd.f32 %v3731, %v3819
  %3821 = vmatmul.bf16.gmra.mxu0 %v1375
  %v3822 = vpop.f32.mrf.mxu0
  %v3823 = vadd.f32 %v3734, %v3822
  %v3824 = vpop.f32.mrf.mxu0
  %v3825 = vadd.f32 %v3736, %v3824
  %3826 = vmatmul.bf16.gmra.mxu0 %v1383
  %v3827 = vpop.f32.mrf.mxu0
  %v3828 = vadd.f32 %v3739, %v3827
  %v3829 = vpop.f32.mrf.mxu0
  %v3830 = vadd.f32 %v3741, %v3829
  %3831 = vmatmul.bf16.gmra.mxu0 %v1391
  %v3832 = vpop.f32.mrf.mxu0
  %v3833 = vadd.f32 %v3744, %v3832
  %v3834 = vpop.f32.mrf.mxu0
  %v3835 = vadd.f32 %v3746, %v3834
  %3836 = vmatmul.bf16.gmra.mxu0 %v1399
  %v3837 = vpop.f32.mrf.mxu0
  %v3838 = vadd.f32 %v3749, %v3837
  %v3839 = vpop.f32.mrf.mxu0
  %v3840 = vadd.f32 %v3751, %v3839
  %3841 = vdwg.mxu0
  %3842 = vmatpush.bf16.msra.mxu0 %v2533
  %3843 = vmatpush.bf16.msra.mxu0 %v2529
  %3844 = vmatpush.bf16.msra.mxu0 %v2525
  %3845 = vmatpush.bf16.msra.mxu0 %v2521
  %3846 = vmatpush.bf16.msra.mxu0 %v2517
  %3847 = vmatpush.bf16.msra.mxu0 %v2513
  %3848 = vmatpush.bf16.msra.mxu0 %v2509
  %3849 = vmatpush.bf16.msra.mxu0 %v2505
  %3850 = vmatmul.bf16.gmra.mxu0 %v1280
  %v3851 = vpop.f32.mrf.mxu0
  %v3852 = vadd.f32 %v3763, %v3851
  %v3853 = vpop.f32.mrf.mxu0
  %v3854 = vadd.f32 %v3765, %v3853
  %3855 = vmatmul.bf16.gmra.mxu0 %v1288
  %v3856 = vpop.f32.mrf.mxu0
  %v3857 = vadd.f32 %v3768, %v3856
  %v3858 = vpop.f32.mrf.mxu0
  %v3859 = vadd.f32 %v3770, %v3858
  %3860 = vmatmul.bf16.gmra.mxu0 %v1296
  %v3861 = vpop.f32.mrf.mxu0
  %v3862 = vadd.f32 %v3773, %v3861
  %v3863 = vpop.f32.mrf.mxu0
  %v3864 = vadd.f32 %v3775, %v3863
  %3865 = vmatmul.bf16.gmra.mxu0 %v1304
  %v3866 = vpop.f32.mrf.mxu0
  %v3867 = vadd.f32 %v3778, %v3866
  %v3868 = vpop.f32.mrf.mxu0
  %v3869 = vadd.f32 %v3780, %v3868
  %3870 = vmatmul.bf16.gmra.mxu0 %v1312
  %v3871 = vpop.f32.mrf.mxu0
  %v3872 = vadd.f32 %v3783, %v3871
  %v3873 = vpop.f32.mrf.mxu0
  %v3874 = vadd.f32 %v3785, %v3873
  %3875 = vmatmul.bf16.gmra.mxu0 %v1320
  %v3876 = vpop.f32.mrf.mxu0
  %v3877 = vadd.f32 %v3788, %v3876
  %v3878 = vpop.f32.mrf.mxu0
  %v3879 = vadd.f32 %v3790, %v3878
  %3880 = vmatmul.bf16.gmra.mxu0 %v1328
  %v3881 = vpop.f32.mrf.mxu0
  %v3882 = vadd.f32 %v3793, %v3881
  %v3883 = vpop.f32.mrf.mxu0
  %v3884 = vadd.f32 %v3795, %v3883
  %3885 = vmatmul.bf16.gmra.mxu0 %v1336
  %v3886 = vpop.f32.mrf.mxu0
  %v3887 = vadd.f32 %v3798, %v3886
  %v3888 = vpop.f32.mrf.mxu0
  %v3889 = vadd.f32 %v3800, %v3888
  %3890 = vmatmul.bf16.gmra.mxu0 %v1344
  %v3891 = vpop.f32.mrf.mxu0
  %v3892 = vadd.f32 %v3803, %v3891
  %v3893 = vpop.f32.mrf.mxu0
  %v3894 = vadd.f32 %v3805, %v3893
  %3895 = vmatmul.bf16.gmra.mxu0 %v1352
  %v3896 = vpop.f32.mrf.mxu0
  %v3897 = vadd.f32 %v3808, %v3896
  %v3898 = vpop.f32.mrf.mxu0
  %v3899 = vadd.f32 %v3810, %v3898
  %3900 = vmatmul.bf16.gmra.mxu0 %v1360
  %v3901 = vpop.f32.mrf.mxu0
  %v3902 = vadd.f32 %v3813, %v3901
  %v3903 = vpop.f32.mrf.mxu0
  %v3904 = vadd.f32 %v3815, %v3903
  %3905 = vmatmul.bf16.gmra.mxu0 %v1368
  %v3906 = vpop.f32.mrf.mxu0
  %v3907 = vadd.f32 %v3818, %v3906
  %v3908 = vpop.f32.mrf.mxu0
  %v3909 = vadd.f32 %v3820, %v3908
  %3910 = vmatmul.bf16.gmra.mxu0 %v1376
  %v3911 = vpop.f32.mrf.mxu0
  %v3912 = vadd.f32 %v3823, %v3911
  %v3913 = vpop.f32.mrf.mxu0
  %v3914 = vadd.f32 %v3825, %v3913
  %3915 = vmatmul.bf16.gmra.mxu0 %v1384
  %v3916 = vpop.f32.mrf.mxu0
  %v3917 = vadd.f32 %v3828, %v3916
  %v3918 = vpop.f32.mrf.mxu0
  %v3919 = vadd.f32 %v3830, %v3918
  %3920 = vmatmul.bf16.gmra.mxu0 %v1392
  %v3921 = vpop.f32.mrf.mxu0
  %v3922 = vadd.f32 %v3833, %v3921
  %v3923 = vpop.f32.mrf.mxu0
  %v3924 = vadd.f32 %v3835, %v3923
  %3925 = vmatmul.bf16.gmra.mxu0 %v1400
  %v3926 = vpop.f32.mrf.mxu0
  %v3927 = vadd.f32 %v3838, %v3926
  %v3928 = vpop.f32.mrf.mxu0
  %v3929 = vadd.f32 %v3840, %v3928
  %3930 = vdwg.mxu0
  %3931 = vmatpush.bf16.msra.mxu0 %v2565
  %3932 = vmatpush.bf16.msra.mxu0 %v2561
  %3933 = vmatpush.bf16.msra.mxu0 %v2557
  %3934 = vmatpush.bf16.msra.mxu0 %v2553
  %3935 = vmatpush.bf16.msra.mxu0 %v2549
  %3936 = vmatpush.bf16.msra.mxu0 %v2545
  %3937 = vmatpush.bf16.msra.mxu0 %v2541
  %3938 = vmatpush.bf16.msra.mxu0 %v2537
  %3939 = vmatmul.bf16.gmra.mxu0 %v1281
  %v3940 = vpop.f32.mrf.mxu0
  %v3941 = vadd.f32 %v3852, %v3940
  %v3942 = vpop.f32.mrf.mxu0
  %v3943 = vadd.f32 %v3854, %v3942
  %3944 = vmatmul.bf16.gmra.mxu0 %v1289
  %v3945 = vpop.f32.mrf.mxu0
  %v3946 = vadd.f32 %v3857, %v3945
  %v3947 = vpop.f32.mrf.mxu0
  %v3948 = vadd.f32 %v3859, %v3947
  %3949 = vmatmul.bf16.gmra.mxu0 %v1297
  %v3950 = vpop.f32.mrf.mxu0
  %v3951 = vadd.f32 %v3862, %v3950
  %v3952 = vpop.f32.mrf.mxu0
  %v3953 = vadd.f32 %v3864, %v3952
  %3954 = vmatmul.bf16.gmra.mxu0 %v1305
  %v3955 = vpop.f32.mrf.mxu0
  %v3956 = vadd.f32 %v3867, %v3955
  %v3957 = vpop.f32.mrf.mxu0
  %v3958 = vadd.f32 %v3869, %v3957
  %3959 = vmatmul.bf16.gmra.mxu0 %v1313
  %v3960 = vpop.f32.mrf.mxu0
  %v3961 = vadd.f32 %v3872, %v3960
  %v3962 = vpop.f32.mrf.mxu0
  %v3963 = vadd.f32 %v3874, %v3962
  %3964 = vmatmul.bf16.gmra.mxu0 %v1321
  %v3965 = vpop.f32.mrf.mxu0
  %v3966 = vadd.f32 %v3877, %v3965
  %v3967 = vpop.f32.mrf.mxu0
  %v3968 = vadd.f32 %v3879, %v3967
  %3969 = vmatmul.bf16.gmra.mxu0 %v1329
  %v3970 = vpop.f32.mrf.mxu0
  %v3971 = vadd.f32 %v3882, %v3970
  %v3972 = vpop.f32.mrf.mxu0
  %v3973 = vadd.f32 %v3884, %v3972
  %3974 = vmatmul.bf16.gmra.mxu0 %v1337
  %v3975 = vpop.f32.mrf.mxu0
  %v3976 = vadd.f32 %v3887, %v3975
  %v3977 = vpop.f32.mrf.mxu0
  %v3978 = vadd.f32 %v3889, %v3977
  %3979 = vmatmul.bf16.gmra.mxu0 %v1345
  %v3980 = vpop.f32.mrf.mxu0
  %v3981 = vadd.f32 %v3892, %v3980
  %v3982 = vpop.f32.mrf.mxu0
  %v3983 = vadd.f32 %v3894, %v3982
  %3984 = vmatmul.bf16.gmra.mxu0 %v1353
  %v3985 = vpop.f32.mrf.mxu0
  %v3986 = vadd.f32 %v3897, %v3985
  %v3987 = vpop.f32.mrf.mxu0
  %v3988 = vadd.f32 %v3899, %v3987
  %3989 = vmatmul.bf16.gmra.mxu0 %v1361
  %v3990 = vpop.f32.mrf.mxu0
  %v3991 = vadd.f32 %v3902, %v3990
  %v3992 = vpop.f32.mrf.mxu0
  %v3993 = vadd.f32 %v3904, %v3992
  %3994 = vmatmul.bf16.gmra.mxu0 %v1369
  %v3995 = vpop.f32.mrf.mxu0
  %v3996 = vadd.f32 %v3907, %v3995
  %v3997 = vpop.f32.mrf.mxu0
  %v3998 = vadd.f32 %v3909, %v3997
  %3999 = vmatmul.bf16.gmra.mxu0 %v1377
  %v4000 = vpop.f32.mrf.mxu0
  %v4001 = vadd.f32 %v3912, %v4000
  %v4002 = vpop.f32.mrf.mxu0
  %v4003 = vadd.f32 %v3914, %v4002
  %4004 = vmatmul.bf16.gmra.mxu0 %v1385
  %v4005 = vpop.f32.mrf.mxu0
  %v4006 = vadd.f32 %v3917, %v4005
  %v4007 = vpop.f32.mrf.mxu0
  %v4008 = vadd.f32 %v3919, %v4007
  %4009 = vmatmul.bf16.gmra.mxu0 %v1393
  %v4010 = vpop.f32.mrf.mxu0
  %v4011 = vadd.f32 %v3922, %v4010
  %v4012 = vpop.f32.mrf.mxu0
  %v4013 = vadd.f32 %v3924, %v4012
  %4014 = vmatmul.bf16.gmra.mxu0 %v1401
  %v4015 = vpop.f32.mrf.mxu0
  %v4016 = vadd.f32 %v3927, %v4015
  %v4017 = vpop.f32.mrf.mxu0
  %v4018 = vadd.f32 %v3929, %v4017
  %4019 = vdwg.mxu0
  %4020 = vmatpush.bf16.msra.mxu0 %v2597
  %4021 = vmatpush.bf16.msra.mxu0 %v2593
  %4022 = vmatpush.bf16.msra.mxu0 %v2589
  %4023 = vmatpush.bf16.msra.mxu0 %v2585
  %4024 = vmatpush.bf16.msra.mxu0 %v2581
  %4025 = vmatpush.bf16.msra.mxu0 %v2577
  %4026 = vmatpush.bf16.msra.mxu0 %v2573
  %4027 = vmatpush.bf16.msra.mxu0 %v2569
  %4028 = vmatmul.bf16.gmra.mxu0 %v1282
  %v4029 = vpop.f32.mrf.mxu0
  %v4030 = vadd.f32 %v3941, %v4029
  %v4031 = vpop.f32.mrf.mxu0
  %v4032 = vadd.f32 %v3943, %v4031
  %4033 = vmatmul.bf16.gmra.mxu0 %v1290
  %v4034 = vpop.f32.mrf.mxu0
  %v4035 = vadd.f32 %v3946, %v4034
  %v4036 = vpop.f32.mrf.mxu0
  %v4037 = vadd.f32 %v3948, %v4036
  %4038 = vmatmul.bf16.gmra.mxu0 %v1298
  %v4039 = vpop.f32.mrf.mxu0
  %v4040 = vadd.f32 %v3951, %v4039
  %v4041 = vpop.f32.mrf.mxu0
  %v4042 = vadd.f32 %v3953, %v4041
  %4043 = vmatmul.bf16.gmra.mxu0 %v1306
  %v4044 = vpop.f32.mrf.mxu0
  %v4045 = vadd.f32 %v3956, %v4044
  %v4046 = vpop.f32.mrf.mxu0
  %v4047 = vadd.f32 %v3958, %v4046
  %4048 = vmatmul.bf16.gmra.mxu0 %v1314
  %v4049 = vpop.f32.mrf.mxu0
  %v4050 = vadd.f32 %v3961, %v4049
  %v4051 = vpop.f32.mrf.mxu0
  %v4052 = vadd.f32 %v3963, %v4051
  %4053 = vmatmul.bf16.gmra.mxu0 %v1322
  %v4054 = vpop.f32.mrf.mxu0
  %v4055 = vadd.f32 %v3966, %v4054
  %v4056 = vpop.f32.mrf.mxu0
  %v4057 = vadd.f32 %v3968, %v4056
  %4058 = vmatmul.bf16.gmra.mxu0 %v1330
  %v4059 = vpop.f32.mrf.mxu0
  %v4060 = vadd.f32 %v3971, %v4059
  %v4061 = vpop.f32.mrf.mxu0
  %v4062 = vadd.f32 %v3973, %v4061
  %4063 = vmatmul.bf16.gmra.mxu0 %v1338
  %v4064 = vpop.f32.mrf.mxu0
  %v4065 = vadd.f32 %v3976, %v4064
  %v4066 = vpop.f32.mrf.mxu0
  %v4067 = vadd.f32 %v3978, %v4066
  %4068 = vmatmul.bf16.gmra.mxu0 %v1346
  %v4069 = vpop.f32.mrf.mxu0
  %v4070 = vadd.f32 %v3981, %v4069
  %v4071 = vpop.f32.mrf.mxu0
  %v4072 = vadd.f32 %v3983, %v4071
  %4073 = vmatmul.bf16.gmra.mxu0 %v1354
  %v4074 = vpop.f32.mrf.mxu0
  %v4075 = vadd.f32 %v3986, %v4074
  %v4076 = vpop.f32.mrf.mxu0
  %v4077 = vadd.f32 %v3988, %v4076
  %4078 = vmatmul.bf16.gmra.mxu0 %v1362
  %v4079 = vpop.f32.mrf.mxu0
  %v4080 = vadd.f32 %v3991, %v4079
  %v4081 = vpop.f32.mrf.mxu0
  %v4082 = vadd.f32 %v3993, %v4081
  %4083 = vmatmul.bf16.gmra.mxu0 %v1370
  %v4084 = vpop.f32.mrf.mxu0
  %v4085 = vadd.f32 %v3996, %v4084
  %v4086 = vpop.f32.mrf.mxu0
  %v4087 = vadd.f32 %v3998, %v4086
  %4088 = vmatmul.bf16.gmra.mxu0 %v1378
  %v4089 = vpop.f32.mrf.mxu0
  %v4090 = vadd.f32 %v4001, %v4089
  %v4091 = vpop.f32.mrf.mxu0
  %v4092 = vadd.f32 %v4003, %v4091
  %4093 = vmatmul.bf16.gmra.mxu0 %v1386
  %v4094 = vpop.f32.mrf.mxu0
  %v4095 = vadd.f32 %v4006, %v4094
  %v4096 = vpop.f32.mrf.mxu0
  %v4097 = vadd.f32 %v4008, %v4096
  %4098 = vmatmul.bf16.gmra.mxu0 %v1394
  %v4099 = vpop.f32.mrf.mxu0
  %v4100 = vadd.f32 %v4011, %v4099
  %v4101 = vpop.f32.mrf.mxu0
  %v4102 = vadd.f32 %v4013, %v4101
  %4103 = vmatmul.bf16.gmra.mxu0 %v1402
  %v4104 = vpop.f32.mrf.mxu0
  %v4105 = vadd.f32 %v4016, %v4104
  %v4106 = vpop.f32.mrf.mxu0
  %v4107 = vadd.f32 %v4018, %v4106
  %4108 = vdwg.mxu0
  %4109 = vmatpush.bf16.msra.mxu0 %v2629
  %4110 = vmatpush.bf16.msra.mxu0 %v2625
  %4111 = vmatpush.bf16.msra.mxu0 %v2621
  %4112 = vmatpush.bf16.msra.mxu0 %v2617
  %4113 = vmatpush.bf16.msra.mxu0 %v2613
  %4114 = vmatpush.bf16.msra.mxu0 %v2609
  %4115 = vmatpush.bf16.msra.mxu0 %v2605
  %4116 = vmatpush.bf16.msra.mxu0 %v2601
  %4117 = vmatmul.bf16.gmra.mxu0 %v1283
  %v4118 = vpop.f32.mrf.mxu0
  %v4119 = vadd.f32 %v4030, %v4118
  %v4120 = vpop.f32.mrf.mxu0
  %v4121 = vadd.f32 %v4032, %v4120
  %4122 = vmatmul.bf16.gmra.mxu0 %v1291
  %v4123 = vpop.f32.mrf.mxu0
  %v4124 = vadd.f32 %v4035, %v4123
  %v4125 = vpop.f32.mrf.mxu0
  %v4126 = vadd.f32 %v4037, %v4125
  %4127 = vmatmul.bf16.gmra.mxu0 %v1299
  %v4128 = vpop.f32.mrf.mxu0
  %v4129 = vadd.f32 %v4040, %v4128
  %v4130 = vpop.f32.mrf.mxu0
  %v4131 = vadd.f32 %v4042, %v4130
  %4132 = vmatmul.bf16.gmra.mxu0 %v1307
  %v4133 = vpop.f32.mrf.mxu0
  %v4134 = vadd.f32 %v4045, %v4133
  %v4135 = vpop.f32.mrf.mxu0
  %v4136 = vadd.f32 %v4047, %v4135
  %4137 = vmatmul.bf16.gmra.mxu0 %v1315
  %v4138 = vpop.f32.mrf.mxu0
  %v4139 = vadd.f32 %v4050, %v4138
  %v4140 = vpop.f32.mrf.mxu0
  %v4141 = vadd.f32 %v4052, %v4140
  %4142 = vmatmul.bf16.gmra.mxu0 %v1323
  %v4143 = vpop.f32.mrf.mxu0
  %v4144 = vadd.f32 %v4055, %v4143
  %v4145 = vpop.f32.mrf.mxu0
  %v4146 = vadd.f32 %v4057, %v4145
  %4147 = vmatmul.bf16.gmra.mxu0 %v1331
  %v4148 = vpop.f32.mrf.mxu0
  %v4149 = vadd.f32 %v4060, %v4148
  %v4150 = vpop.f32.mrf.mxu0
  %v4151 = vadd.f32 %v4062, %v4150
  %4152 = vmatmul.bf16.gmra.mxu0 %v1339
  %v4153 = vpop.f32.mrf.mxu0
  %v4154 = vadd.f32 %v4065, %v4153
  %v4155 = vpop.f32.mrf.mxu0
  %v4156 = vadd.f32 %v4067, %v4155
  %4157 = vmatmul.bf16.gmra.mxu0 %v1347
  %v4158 = vpop.f32.mrf.mxu0
  %v4159 = vadd.f32 %v4070, %v4158
  %v4160 = vpop.f32.mrf.mxu0
  %v4161 = vadd.f32 %v4072, %v4160
  %4162 = vmatmul.bf16.gmra.mxu0 %v1355
  %v4163 = vpop.f32.mrf.mxu0
  %v4164 = vadd.f32 %v4075, %v4163
  %v4165 = vpop.f32.mrf.mxu0
  %v4166 = vadd.f32 %v4077, %v4165
  %4167 = vmatmul.bf16.gmra.mxu0 %v1363
  %v4168 = vpop.f32.mrf.mxu0
  %v4169 = vadd.f32 %v4080, %v4168
  %v4170 = vpop.f32.mrf.mxu0
  %v4171 = vadd.f32 %v4082, %v4170
  %4172 = vmatmul.bf16.gmra.mxu0 %v1371
  %v4173 = vpop.f32.mrf.mxu0
  %v4174 = vadd.f32 %v4085, %v4173
  %v4175 = vpop.f32.mrf.mxu0
  %v4176 = vadd.f32 %v4087, %v4175
  %4177 = vmatmul.bf16.gmra.mxu0 %v1379
  %v4178 = vpop.f32.mrf.mxu0
  %v4179 = vadd.f32 %v4090, %v4178
  %v4180 = vpop.f32.mrf.mxu0
  %v4181 = vadd.f32 %v4092, %v4180
  %4182 = vmatmul.bf16.gmra.mxu0 %v1387
  %v4183 = vpop.f32.mrf.mxu0
  %v4184 = vadd.f32 %v4095, %v4183
  %v4185 = vpop.f32.mrf.mxu0
  %v4186 = vadd.f32 %v4097, %v4185
  %4187 = vmatmul.bf16.gmra.mxu0 %v1395
  %v4188 = vpop.f32.mrf.mxu0
  %v4189 = vadd.f32 %v4100, %v4188
  %v4190 = vpop.f32.mrf.mxu0
  %v4191 = vadd.f32 %v4102, %v4190
  %4192 = vmatmul.bf16.gmra.mxu0 %v1403
  %v4193 = vpop.f32.mrf.mxu0
  %v4194 = vadd.f32 %v4105, %v4193
  %v4195 = vpop.f32.mrf.mxu0
  %v4196 = vadd.f32 %v4107, %v4195
  %4197 = vdwg.mxu0
  %4198 = vmatpush.bf16.msra.mxu0 %v2661
  %4199 = vmatpush.bf16.msra.mxu0 %v2657
  %4200 = vmatpush.bf16.msra.mxu0 %v2653
  %4201 = vmatpush.bf16.msra.mxu0 %v2649
  %4202 = vmatpush.bf16.msra.mxu0 %v2645
  %4203 = vmatpush.bf16.msra.mxu0 %v2641
  %4204 = vmatpush.bf16.msra.mxu0 %v2637
  %4205 = vmatpush.bf16.msra.mxu0 %v2633
  %4206 = vmatmul.bf16.gmra.mxu0 %v1284
  %v4207 = vpop.f32.mrf.mxu0
  %v4208 = vadd.f32 %v4119, %v4207
  %v4209 = vpop.f32.mrf.mxu0
  %v4210 = vadd.f32 %v4121, %v4209
  %4211 = vmatmul.bf16.gmra.mxu0 %v1292
  %v4212 = vpop.f32.mrf.mxu0
  %v4213 = vadd.f32 %v4124, %v4212
  %v4214 = vpop.f32.mrf.mxu0
  %v4215 = vadd.f32 %v4126, %v4214
  %4216 = vmatmul.bf16.gmra.mxu0 %v1300
  %v4217 = vpop.f32.mrf.mxu0
  %v4218 = vadd.f32 %v4129, %v4217
  %v4219 = vpop.f32.mrf.mxu0
  %v4220 = vadd.f32 %v4131, %v4219
  %4221 = vmatmul.bf16.gmra.mxu0 %v1308
  %v4222 = vpop.f32.mrf.mxu0
  %v4223 = vadd.f32 %v4134, %v4222
  %v4224 = vpop.f32.mrf.mxu0
  %v4225 = vadd.f32 %v4136, %v4224
  %4226 = vmatmul.bf16.gmra.mxu0 %v1316
  %v4227 = vpop.f32.mrf.mxu0
  %v4228 = vadd.f32 %v4139, %v4227
  %v4229 = vpop.f32.mrf.mxu0
  %v4230 = vadd.f32 %v4141, %v4229
  %4231 = vmatmul.bf16.gmra.mxu0 %v1324
  %v4232 = vpop.f32.mrf.mxu0
  %v4233 = vadd.f32 %v4144, %v4232
  %v4234 = vpop.f32.mrf.mxu0
  %v4235 = vadd.f32 %v4146, %v4234
  %4236 = vmatmul.bf16.gmra.mxu0 %v1332
  %v4237 = vpop.f32.mrf.mxu0
  %v4238 = vadd.f32 %v4149, %v4237
  %v4239 = vpop.f32.mrf.mxu0
  %v4240 = vadd.f32 %v4151, %v4239
  %4241 = vmatmul.bf16.gmra.mxu0 %v1340
  %v4242 = vpop.f32.mrf.mxu0
  %v4243 = vadd.f32 %v4154, %v4242
  %v4244 = vpop.f32.mrf.mxu0
  %v4245 = vadd.f32 %v4156, %v4244
  %4246 = vmatmul.bf16.gmra.mxu0 %v1348
  %v4247 = vpop.f32.mrf.mxu0
  %v4248 = vadd.f32 %v4159, %v4247
  %v4249 = vpop.f32.mrf.mxu0
  %v4250 = vadd.f32 %v4161, %v4249
  %4251 = vmatmul.bf16.gmra.mxu0 %v1356
  %v4252 = vpop.f32.mrf.mxu0
  %v4253 = vadd.f32 %v4164, %v4252
  %v4254 = vpop.f32.mrf.mxu0
  %v4255 = vadd.f32 %v4166, %v4254
  %4256 = vmatmul.bf16.gmra.mxu0 %v1364
  %v4257 = vpop.f32.mrf.mxu0
  %v4258 = vadd.f32 %v4169, %v4257
  %v4259 = vpop.f32.mrf.mxu0
  %v4260 = vadd.f32 %v4171, %v4259
  %4261 = vmatmul.bf16.gmra.mxu0 %v1372
  %v4262 = vpop.f32.mrf.mxu0
  %v4263 = vadd.f32 %v4174, %v4262
  %v4264 = vpop.f32.mrf.mxu0
  %v4265 = vadd.f32 %v4176, %v4264
  %4266 = vmatmul.bf16.gmra.mxu0 %v1380
  %v4267 = vpop.f32.mrf.mxu0
  %v4268 = vadd.f32 %v4179, %v4267
  %v4269 = vpop.f32.mrf.mxu0
  %v4270 = vadd.f32 %v4181, %v4269
  %4271 = vmatmul.bf16.gmra.mxu0 %v1388
  %v4272 = vpop.f32.mrf.mxu0
  %v4273 = vadd.f32 %v4184, %v4272
  %v4274 = vpop.f32.mrf.mxu0
  %v4275 = vadd.f32 %v4186, %v4274
  %4276 = vmatmul.bf16.gmra.mxu0 %v1396
  %v4277 = vpop.f32.mrf.mxu0
  %v4278 = vadd.f32 %v4189, %v4277
  %v4279 = vpop.f32.mrf.mxu0
  %v4280 = vadd.f32 %v4191, %v4279
  %4281 = vmatmul.bf16.gmra.mxu0 %v1404
  %v4282 = vpop.f32.mrf.mxu0
  %v4283 = vadd.f32 %v4194, %v4282
  %v4284 = vpop.f32.mrf.mxu0
  %v4285 = vadd.f32 %v4196, %v4284
  %4286 = vdwg.mxu0
  %4287 = vmatpush.bf16.msra.mxu0 %v2693
  %4288 = vmatpush.bf16.msra.mxu0 %v2689
  %4289 = vmatpush.bf16.msra.mxu0 %v2685
  %4290 = vmatpush.bf16.msra.mxu0 %v2681
  %4291 = vmatpush.bf16.msra.mxu0 %v2677
  %4292 = vmatpush.bf16.msra.mxu0 %v2673
  %4293 = vmatpush.bf16.msra.mxu0 %v2669
  %4294 = vmatpush.bf16.msra.mxu0 %v2665
  %4295 = vmatmul.bf16.gmra.mxu0 %v1285
  %v4296 = vpop.f32.mrf.mxu0
  %v4297 = vadd.f32 %v4208, %v4296
  %v4298 = vpop.f32.mrf.mxu0
  %v4299 = vadd.f32 %v4210, %v4298
  %4300 = vmatmul.bf16.gmra.mxu0 %v1293
  %v4301 = vpop.f32.mrf.mxu0
  %v4302 = vadd.f32 %v4213, %v4301
  %v4303 = vpop.f32.mrf.mxu0
  %v4304 = vadd.f32 %v4215, %v4303
  %4305 = vmatmul.bf16.gmra.mxu0 %v1301
  %v4306 = vpop.f32.mrf.mxu0
  %v4307 = vadd.f32 %v4218, %v4306
  %v4308 = vpop.f32.mrf.mxu0
  %v4309 = vadd.f32 %v4220, %v4308
  %4310 = vmatmul.bf16.gmra.mxu0 %v1309
  %v4311 = vpop.f32.mrf.mxu0
  %v4312 = vadd.f32 %v4223, %v4311
  %v4313 = vpop.f32.mrf.mxu0
  %v4314 = vadd.f32 %v4225, %v4313
  %4315 = vmatmul.bf16.gmra.mxu0 %v1317
  %v4316 = vpop.f32.mrf.mxu0
  %v4317 = vadd.f32 %v4228, %v4316
  %v4318 = vpop.f32.mrf.mxu0
  %v4319 = vadd.f32 %v4230, %v4318
  %4320 = vmatmul.bf16.gmra.mxu0 %v1325
  %v4321 = vpop.f32.mrf.mxu0
  %v4322 = vadd.f32 %v4233, %v4321
  %v4323 = vpop.f32.mrf.mxu0
  %v4324 = vadd.f32 %v4235, %v4323
  %4325 = vmatmul.bf16.gmra.mxu0 %v1333
  %v4326 = vpop.f32.mrf.mxu0
  %v4327 = vadd.f32 %v4238, %v4326
  %v4328 = vpop.f32.mrf.mxu0
  %v4329 = vadd.f32 %v4240, %v4328
  %4330 = vmatmul.bf16.gmra.mxu0 %v1341
  %v4331 = vpop.f32.mrf.mxu0
  %v4332 = vadd.f32 %v4243, %v4331
  %v4333 = vpop.f32.mrf.mxu0
  %v4334 = vadd.f32 %v4245, %v4333
  %4335 = vmatmul.bf16.gmra.mxu0 %v1349
  %v4336 = vpop.f32.mrf.mxu0
  %v4337 = vadd.f32 %v4248, %v4336
  %v4338 = vpop.f32.mrf.mxu0
  %v4339 = vadd.f32 %v4250, %v4338
  %4340 = vmatmul.bf16.gmra.mxu0 %v1357
  %v4341 = vpop.f32.mrf.mxu0
  %v4342 = vadd.f32 %v4253, %v4341
  %v4343 = vpop.f32.mrf.mxu0
  %v4344 = vadd.f32 %v4255, %v4343
  %4345 = vmatmul.bf16.gmra.mxu0 %v1365
  %v4346 = vpop.f32.mrf.mxu0
  %v4347 = vadd.f32 %v4258, %v4346
  %v4348 = vpop.f32.mrf.mxu0
  %v4349 = vadd.f32 %v4260, %v4348
  %4350 = vmatmul.bf16.gmra.mxu0 %v1373
  %v4351 = vpop.f32.mrf.mxu0
  %v4352 = vadd.f32 %v4263, %v4351
  %v4353 = vpop.f32.mrf.mxu0
  %v4354 = vadd.f32 %v4265, %v4353
  %4355 = vmatmul.bf16.gmra.mxu0 %v1381
  %v4356 = vpop.f32.mrf.mxu0
  %v4357 = vadd.f32 %v4268, %v4356
  %v4358 = vpop.f32.mrf.mxu0
  %v4359 = vadd.f32 %v4270, %v4358
  %4360 = vmatmul.bf16.gmra.mxu0 %v1389
  %v4361 = vpop.f32.mrf.mxu0
  %v4362 = vadd.f32 %v4273, %v4361
  %v4363 = vpop.f32.mrf.mxu0
  %v4364 = vadd.f32 %v4275, %v4363
  %4365 = vmatmul.bf16.gmra.mxu0 %v1397
  %v4366 = vpop.f32.mrf.mxu0
  %v4367 = vadd.f32 %v4278, %v4366
  %v4368 = vpop.f32.mrf.mxu0
  %v4369 = vadd.f32 %v4280, %v4368
  %4370 = vmatmul.bf16.gmra.mxu0 %v1405
  %v4371 = vpop.f32.mrf.mxu0
  %v4372 = vadd.f32 %v4283, %v4371
  %v4373 = vpop.f32.mrf.mxu0
  %v4374 = vadd.f32 %v4285, %v4373
  %4375 = vdwg.mxu0
  %4376 = vmatpush.bf16.msra.mxu0 %v2470
  %4377 = vmatpush.bf16.msra.mxu0 %v2466
  %4378 = vmatpush.bf16.msra.mxu0 %v2462
  %4379 = vmatpush.bf16.msra.mxu0 %v2458
  %4380 = vmatpush.bf16.msra.mxu0 %v2454
  %4381 = vmatpush.bf16.msra.mxu0 %v2450
  %4382 = vmatpush.bf16.msra.mxu0 %v2446
  %4383 = vmatpush.bf16.msra.mxu0 %v2442
  %4384 = vmatmul.bf16.gmra.mxu0 %v1278
  %v4385 = vpop.f32.mrf.mxu0
  %v4386 = vadd.f32 %v1666, %v4385
  %v4387 = vpop.f32.mrf.mxu0
  %v4388 = vadd.f32 %v1666, %v4387
  %4389 = vmatmul.bf16.gmra.mxu0 %v1286
  %v4390 = vpop.f32.mrf.mxu0
  %v4391 = vadd.f32 %v1666, %v4390
  %v4392 = vpop.f32.mrf.mxu0
  %v4393 = vadd.f32 %v1666, %v4392
  %4394 = vmatmul.bf16.gmra.mxu0 %v1294
  %v4395 = vpop.f32.mrf.mxu0
  %v4396 = vadd.f32 %v1666, %v4395
  %v4397 = vpop.f32.mrf.mxu0
  %v4398 = vadd.f32 %v1666, %v4397
  %4399 = vmatmul.bf16.gmra.mxu0 %v1302
  %v4400 = vpop.f32.mrf.mxu0
  %v4401 = vadd.f32 %v1666, %v4400
  %v4402 = vpop.f32.mrf.mxu0
  %v4403 = vadd.f32 %v1666, %v4402
  %4404 = vmatmul.bf16.gmra.mxu0 %v1310
  %v4405 = vpop.f32.mrf.mxu0
  %v4406 = vadd.f32 %v1666, %v4405
  %v4407 = vpop.f32.mrf.mxu0
  %v4408 = vadd.f32 %v1666, %v4407
  %4409 = vmatmul.bf16.gmra.mxu0 %v1318
  %v4410 = vpop.f32.mrf.mxu0
  %v4411 = vadd.f32 %v1666, %v4410
  %v4412 = vpop.f32.mrf.mxu0
  %v4413 = vadd.f32 %v1666, %v4412
  %4414 = vmatmul.bf16.gmra.mxu0 %v1326
  %v4415 = vpop.f32.mrf.mxu0
  %v4416 = vadd.f32 %v1666, %v4415
  %v4417 = vpop.f32.mrf.mxu0
  %v4418 = vadd.f32 %v1666, %v4417
  %4419 = vmatmul.bf16.gmra.mxu0 %v1334
  %v4420 = vpop.f32.mrf.mxu0
  %v4421 = vadd.f32 %v1666, %v4420
  %v4422 = vpop.f32.mrf.mxu0
  %v4423 = vadd.f32 %v1666, %v4422
  %4424 = vmatmul.bf16.gmra.mxu0 %v1342
  %v4425 = vpop.f32.mrf.mxu0
  %v4426 = vadd.f32 %v1666, %v4425
  %v4427 = vpop.f32.mrf.mxu0
  %v4428 = vadd.f32 %v1666, %v4427
  %4429 = vmatmul.bf16.gmra.mxu0 %v1350
  %v4430 = vpop.f32.mrf.mxu0
  %v4431 = vadd.f32 %v1666, %v4430
  %v4432 = vpop.f32.mrf.mxu0
  %v4433 = vadd.f32 %v1666, %v4432
  %4434 = vmatmul.bf16.gmra.mxu0 %v1358
  %v4435 = vpop.f32.mrf.mxu0
  %v4436 = vadd.f32 %v1666, %v4435
  %v4437 = vpop.f32.mrf.mxu0
  %v4438 = vadd.f32 %v1666, %v4437
  %4439 = vmatmul.bf16.gmra.mxu0 %v1366
  %v4440 = vpop.f32.mrf.mxu0
  %v4441 = vadd.f32 %v1666, %v4440
  %v4442 = vpop.f32.mrf.mxu0
  %v4443 = vadd.f32 %v1666, %v4442
  %4444 = vmatmul.bf16.gmra.mxu0 %v1374
  %v4445 = vpop.f32.mrf.mxu0
  %v4446 = vadd.f32 %v1666, %v4445
  %v4447 = vpop.f32.mrf.mxu0
  %v4448 = vadd.f32 %v1666, %v4447
  %4449 = vmatmul.bf16.gmra.mxu0 %v1382
  %v4450 = vpop.f32.mrf.mxu0
  %v4451 = vadd.f32 %v1666, %v4450
  %v4452 = vpop.f32.mrf.mxu0
  %v4453 = vadd.f32 %v1666, %v4452
  %4454 = vmatmul.bf16.gmra.mxu0 %v1390
  %v4455 = vpop.f32.mrf.mxu0
  %v4456 = vadd.f32 %v1666, %v4455
  %v4457 = vpop.f32.mrf.mxu0
  %v4458 = vadd.f32 %v1666, %v4457
  %4459 = vmatmul.bf16.gmra.mxu0 %v1398
  %v4460 = vpop.f32.mrf.mxu0
  %v4461 = vadd.f32 %v1666, %v4460
  %v4462 = vpop.f32.mrf.mxu0
  %v4463 = vadd.f32 %v1666, %v4462
  %4464 = vdwg.mxu0
  %4465 = vmatpush.bf16.msra.mxu0 %v2502
  %4466 = vmatpush.bf16.msra.mxu0 %v2498
  %4467 = vmatpush.bf16.msra.mxu0 %v2494
  %4468 = vmatpush.bf16.msra.mxu0 %v2490
  %4469 = vmatpush.bf16.msra.mxu0 %v2486
  %4470 = vmatpush.bf16.msra.mxu0 %v2482
  %4471 = vmatpush.bf16.msra.mxu0 %v2478
  %4472 = vmatpush.bf16.msra.mxu0 %v2474
  %4473 = vmatmul.bf16.gmra.mxu0 %v1279
  %v4474 = vpop.f32.mrf.mxu0
  %v4475 = vadd.f32 %v4386, %v4474
  %v4476 = vpop.f32.mrf.mxu0
  %v4477 = vadd.f32 %v4388, %v4476
  %4478 = vmatmul.bf16.gmra.mxu0 %v1287
  %v4479 = vpop.f32.mrf.mxu0
  %v4480 = vadd.f32 %v4391, %v4479
  %v4481 = vpop.f32.mrf.mxu0
  %v4482 = vadd.f32 %v4393, %v4481
  %4483 = vmatmul.bf16.gmra.mxu0 %v1295
  %v4484 = vpop.f32.mrf.mxu0
  %v4485 = vadd.f32 %v4396, %v4484
  %v4486 = vpop.f32.mrf.mxu0
  %v4487 = vadd.f32 %v4398, %v4486
  %4488 = vmatmul.bf16.gmra.mxu0 %v1303
  %v4489 = vpop.f32.mrf.mxu0
  %v4490 = vadd.f32 %v4401, %v4489
  %v4491 = vpop.f32.mrf.mxu0
  %v4492 = vadd.f32 %v4403, %v4491
  %4493 = vmatmul.bf16.gmra.mxu0 %v1311
  %v4494 = vpop.f32.mrf.mxu0
  %v4495 = vadd.f32 %v4406, %v4494
  %v4496 = vpop.f32.mrf.mxu0
  %v4497 = vadd.f32 %v4408, %v4496
  %4498 = vmatmul.bf16.gmra.mxu0 %v1319
  %v4499 = vpop.f32.mrf.mxu0
  %v4500 = vadd.f32 %v4411, %v4499
  %v4501 = vpop.f32.mrf.mxu0
  %v4502 = vadd.f32 %v4413, %v4501
  %4503 = vmatmul.bf16.gmra.mxu0 %v1327
  %v4504 = vpop.f32.mrf.mxu0
  %v4505 = vadd.f32 %v4416, %v4504
  %v4506 = vpop.f32.mrf.mxu0
  %v4507 = vadd.f32 %v4418, %v4506
  %4508 = vmatmul.bf16.gmra.mxu0 %v1335
  %v4509 = vpop.f32.mrf.mxu0
  %v4510 = vadd.f32 %v4421, %v4509
  %v4511 = vpop.f32.mrf.mxu0
  %v4512 = vadd.f32 %v4423, %v4511
  %4513 = vmatmul.bf16.gmra.mxu0 %v1343
  %v4514 = vpop.f32.mrf.mxu0
  %v4515 = vadd.f32 %v4426, %v4514
  %v4516 = vpop.f32.mrf.mxu0
  %v4517 = vadd.f32 %v4428, %v4516
  %4518 = vmatmul.bf16.gmra.mxu0 %v1351
  %v4519 = vpop.f32.mrf.mxu0
  %v4520 = vadd.f32 %v4431, %v4519
  %v4521 = vpop.f32.mrf.mxu0
  %v4522 = vadd.f32 %v4433, %v4521
  %4523 = vmatmul.bf16.gmra.mxu0 %v1359
  %v4524 = vpop.f32.mrf.mxu0
  %v4525 = vadd.f32 %v4436, %v4524
  %v4526 = vpop.f32.mrf.mxu0
  %v4527 = vadd.f32 %v4438, %v4526
  %4528 = vmatmul.bf16.gmra.mxu0 %v1367
  %v4529 = vpop.f32.mrf.mxu0
  %v4530 = vadd.f32 %v4441, %v4529
  %v4531 = vpop.f32.mrf.mxu0
  %v4532 = vadd.f32 %v4443, %v4531
  %4533 = vmatmul.bf16.gmra.mxu0 %v1375
  %v4534 = vpop.f32.mrf.mxu0
  %v4535 = vadd.f32 %v4446, %v4534
  %v4536 = vpop.f32.mrf.mxu0
  %v4537 = vadd.f32 %v4448, %v4536
  %4538 = vmatmul.bf16.gmra.mxu0 %v1383
  %v4539 = vpop.f32.mrf.mxu0
  %v4540 = vadd.f32 %v4451, %v4539
  %v4541 = vpop.f32.mrf.mxu0
  %v4542 = vadd.f32 %v4453, %v4541
  %4543 = vmatmul.bf16.gmra.mxu0 %v1391
  %v4544 = vpop.f32.mrf.mxu0
  %v4545 = vadd.f32 %v4456, %v4544
  %v4546 = vpop.f32.mrf.mxu0
  %v4547 = vadd.f32 %v4458, %v4546
  %4548 = vmatmul.bf16.gmra.mxu0 %v1399
  %v4549 = vpop.f32.mrf.mxu0
  %v4550 = vadd.f32 %v4461, %v4549
  %v4551 = vpop.f32.mrf.mxu0
  %v4552 = vadd.f32 %v4463, %v4551
  %4553 = vdwg.mxu0
  %4554 = vmatpush.bf16.msra.mxu0 %v2534
  %4555 = vmatpush.bf16.msra.mxu0 %v2530
  %4556 = vmatpush.bf16.msra.mxu0 %v2526
  %4557 = vmatpush.bf16.msra.mxu0 %v2522
  %4558 = vmatpush.bf16.msra.mxu0 %v2518
  %4559 = vmatpush.bf16.msra.mxu0 %v2514
  %4560 = vmatpush.bf16.msra.mxu0 %v2510
  %4561 = vmatpush.bf16.msra.mxu0 %v2506
  %4562 = vmatmul.bf16.gmra.mxu0 %v1280
  %v4563 = vpop.f32.mrf.mxu0
  %v4564 = vadd.f32 %v4475, %v4563
  %v4565 = vpop.f32.mrf.mxu0
  %v4566 = vadd.f32 %v4477, %v4565
  %4567 = vmatmul.bf16.gmra.mxu0 %v1288
  %v4568 = vpop.f32.mrf.mxu0
  %v4569 = vadd.f32 %v4480, %v4568
  %v4570 = vpop.f32.mrf.mxu0
  %v4571 = vadd.f32 %v4482, %v4570
  %4572 = vmatmul.bf16.gmra.mxu0 %v1296
  %v4573 = vpop.f32.mrf.mxu0
  %v4574 = vadd.f32 %v4485, %v4573
  %v4575 = vpop.f32.mrf.mxu0
  %v4576 = vadd.f32 %v4487, %v4575
  %4577 = vmatmul.bf16.gmra.mxu0 %v1304
  %v4578 = vpop.f32.mrf.mxu0
  %v4579 = vadd.f32 %v4490, %v4578
  %v4580 = vpop.f32.mrf.mxu0
  %v4581 = vadd.f32 %v4492, %v4580
  %4582 = vmatmul.bf16.gmra.mxu0 %v1312
  %v4583 = vpop.f32.mrf.mxu0
  %v4584 = vadd.f32 %v4495, %v4583
  %v4585 = vpop.f32.mrf.mxu0
  %v4586 = vadd.f32 %v4497, %v4585
  %4587 = vmatmul.bf16.gmra.mxu0 %v1320
  %v4588 = vpop.f32.mrf.mxu0
  %v4589 = vadd.f32 %v4500, %v4588
  %v4590 = vpop.f32.mrf.mxu0
  %v4591 = vadd.f32 %v4502, %v4590
  %4592 = vmatmul.bf16.gmra.mxu0 %v1328
  %v4593 = vpop.f32.mrf.mxu0
  %v4594 = vadd.f32 %v4505, %v4593
  %v4595 = vpop.f32.mrf.mxu0
  %v4596 = vadd.f32 %v4507, %v4595
  %4597 = vmatmul.bf16.gmra.mxu0 %v1336
  %v4598 = vpop.f32.mrf.mxu0
  %v4599 = vadd.f32 %v4510, %v4598
  %v4600 = vpop.f32.mrf.mxu0
  %v4601 = vadd.f32 %v4512, %v4600
  %4602 = vmatmul.bf16.gmra.mxu0 %v1344
  %v4603 = vpop.f32.mrf.mxu0
  %v4604 = vadd.f32 %v4515, %v4603
  %v4605 = vpop.f32.mrf.mxu0
  %v4606 = vadd.f32 %v4517, %v4605
  %4607 = vmatmul.bf16.gmra.mxu0 %v1352
  %v4608 = vpop.f32.mrf.mxu0
  %v4609 = vadd.f32 %v4520, %v4608
  %v4610 = vpop.f32.mrf.mxu0
  %v4611 = vadd.f32 %v4522, %v4610
  %4612 = vmatmul.bf16.gmra.mxu0 %v1360
  %v4613 = vpop.f32.mrf.mxu0
  %v4614 = vadd.f32 %v4525, %v4613
  %v4615 = vpop.f32.mrf.mxu0
  %v4616 = vadd.f32 %v4527, %v4615
  %4617 = vmatmul.bf16.gmra.mxu0 %v1368
  %v4618 = vpop.f32.mrf.mxu0
  %v4619 = vadd.f32 %v4530, %v4618
  %v4620 = vpop.f32.mrf.mxu0
  %v4621 = vadd.f32 %v4532, %v4620
  %4622 = vmatmul.bf16.gmra.mxu0 %v1376
  %v4623 = vpop.f32.mrf.mxu0
  %v4624 = vadd.f32 %v4535, %v4623
  %v4625 = vpop.f32.mrf.mxu0
  %v4626 = vadd.f32 %v4537, %v4625
  %4627 = vmatmul.bf16.gmra.mxu0 %v1384
  %v4628 = vpop.f32.mrf.mxu0
  %v4629 = vadd.f32 %v4540, %v4628
  %v4630 = vpop.f32.mrf.mxu0
  %v4631 = vadd.f32 %v4542, %v4630
  %4632 = vmatmul.bf16.gmra.mxu0 %v1392
  %v4633 = vpop.f32.mrf.mxu0
  %v4634 = vadd.f32 %v4545, %v4633
  %v4635 = vpop.f32.mrf.mxu0
  %v4636 = vadd.f32 %v4547, %v4635
  %4637 = vmatmul.bf16.gmra.mxu0 %v1400
  %v4638 = vpop.f32.mrf.mxu0
  %v4639 = vadd.f32 %v4550, %v4638
  %v4640 = vpop.f32.mrf.mxu0
  %v4641 = vadd.f32 %v4552, %v4640
  %4642 = vdwg.mxu0
  %4643 = vmatpush.bf16.msra.mxu0 %v2566
  %4644 = vmatpush.bf16.msra.mxu0 %v2562
  %4645 = vmatpush.bf16.msra.mxu0 %v2558
  %4646 = vmatpush.bf16.msra.mxu0 %v2554
  %4647 = vmatpush.bf16.msra.mxu0 %v2550
  %4648 = vmatpush.bf16.msra.mxu0 %v2546
  %4649 = vmatpush.bf16.msra.mxu0 %v2542
  %4650 = vmatpush.bf16.msra.mxu0 %v2538
  %4651 = vmatmul.bf16.gmra.mxu0 %v1281
  %v4652 = vpop.f32.mrf.mxu0
  %v4653 = vadd.f32 %v4564, %v4652
  %v4654 = vpop.f32.mrf.mxu0
  %v4655 = vadd.f32 %v4566, %v4654
  %4656 = vmatmul.bf16.gmra.mxu0 %v1289
  %v4657 = vpop.f32.mrf.mxu0
  %v4658 = vadd.f32 %v4569, %v4657
  %v4659 = vpop.f32.mrf.mxu0
  %v4660 = vadd.f32 %v4571, %v4659
  %4661 = vmatmul.bf16.gmra.mxu0 %v1297
  %v4662 = vpop.f32.mrf.mxu0
  %v4663 = vadd.f32 %v4574, %v4662
  %v4664 = vpop.f32.mrf.mxu0
  %v4665 = vadd.f32 %v4576, %v4664
  %4666 = vmatmul.bf16.gmra.mxu0 %v1305
  %v4667 = vpop.f32.mrf.mxu0
  %v4668 = vadd.f32 %v4579, %v4667
  %v4669 = vpop.f32.mrf.mxu0
  %v4670 = vadd.f32 %v4581, %v4669
  %4671 = vmatmul.bf16.gmra.mxu0 %v1313
  %v4672 = vpop.f32.mrf.mxu0
  %v4673 = vadd.f32 %v4584, %v4672
  %v4674 = vpop.f32.mrf.mxu0
  %v4675 = vadd.f32 %v4586, %v4674
  %4676 = vmatmul.bf16.gmra.mxu0 %v1321
  %v4677 = vpop.f32.mrf.mxu0
  %v4678 = vadd.f32 %v4589, %v4677
  %v4679 = vpop.f32.mrf.mxu0
  %v4680 = vadd.f32 %v4591, %v4679
  %4681 = vmatmul.bf16.gmra.mxu0 %v1329
  %v4682 = vpop.f32.mrf.mxu0
  %v4683 = vadd.f32 %v4594, %v4682
  %v4684 = vpop.f32.mrf.mxu0
  %v4685 = vadd.f32 %v4596, %v4684
  %4686 = vmatmul.bf16.gmra.mxu0 %v1337
  %v4687 = vpop.f32.mrf.mxu0
  %v4688 = vadd.f32 %v4599, %v4687
  %v4689 = vpop.f32.mrf.mxu0
  %v4690 = vadd.f32 %v4601, %v4689
  %4691 = vmatmul.bf16.gmra.mxu0 %v1345
  %v4692 = vpop.f32.mrf.mxu0
  %v4693 = vadd.f32 %v4604, %v4692
  %v4694 = vpop.f32.mrf.mxu0
  %v4695 = vadd.f32 %v4606, %v4694
  %4696 = vmatmul.bf16.gmra.mxu0 %v1353
  %v4697 = vpop.f32.mrf.mxu0
  %v4698 = vadd.f32 %v4609, %v4697
  %v4699 = vpop.f32.mrf.mxu0
  %v4700 = vadd.f32 %v4611, %v4699
  %4701 = vmatmul.bf16.gmra.mxu0 %v1361
  %v4702 = vpop.f32.mrf.mxu0
  %v4703 = vadd.f32 %v4614, %v4702
  %v4704 = vpop.f32.mrf.mxu0
  %v4705 = vadd.f32 %v4616, %v4704
  %4706 = vmatmul.bf16.gmra.mxu0 %v1369
  %v4707 = vpop.f32.mrf.mxu0
  %v4708 = vadd.f32 %v4619, %v4707
  %v4709 = vpop.f32.mrf.mxu0
  %v4710 = vadd.f32 %v4621, %v4709
  %4711 = vmatmul.bf16.gmra.mxu0 %v1377
  %v4712 = vpop.f32.mrf.mxu0
  %v4713 = vadd.f32 %v4624, %v4712
  %v4714 = vpop.f32.mrf.mxu0
  %v4715 = vadd.f32 %v4626, %v4714
  %4716 = vmatmul.bf16.gmra.mxu0 %v1385
  %v4717 = vpop.f32.mrf.mxu0
  %v4718 = vadd.f32 %v4629, %v4717
  %v4719 = vpop.f32.mrf.mxu0
  %v4720 = vadd.f32 %v4631, %v4719
  %4721 = vmatmul.bf16.gmra.mxu0 %v1393
  %v4722 = vpop.f32.mrf.mxu0
  %v4723 = vadd.f32 %v4634, %v4722
  %v4724 = vpop.f32.mrf.mxu0
  %v4725 = vadd.f32 %v4636, %v4724
  %4726 = vmatmul.bf16.gmra.mxu0 %v1401
  %v4727 = vpop.f32.mrf.mxu0
  %v4728 = vadd.f32 %v4639, %v4727
  %v4729 = vpop.f32.mrf.mxu0
  %v4730 = vadd.f32 %v4641, %v4729
  %4731 = vdwg.mxu0
  %4732 = vmatpush.bf16.msra.mxu0 %v2598
  %4733 = vmatpush.bf16.msra.mxu0 %v2594
  %4734 = vmatpush.bf16.msra.mxu0 %v2590
  %4735 = vmatpush.bf16.msra.mxu0 %v2586
  %4736 = vmatpush.bf16.msra.mxu0 %v2582
  %4737 = vmatpush.bf16.msra.mxu0 %v2578
  %4738 = vmatpush.bf16.msra.mxu0 %v2574
  %4739 = vmatpush.bf16.msra.mxu0 %v2570
  %4740 = vmatmul.bf16.gmra.mxu0 %v1282
  %v4741 = vpop.f32.mrf.mxu0
  %v4742 = vadd.f32 %v4653, %v4741
  %v4743 = vpop.f32.mrf.mxu0
  %v4744 = vadd.f32 %v4655, %v4743
  %4745 = vmatmul.bf16.gmra.mxu0 %v1290
  %v4746 = vpop.f32.mrf.mxu0
  %v4747 = vadd.f32 %v4658, %v4746
  %v4748 = vpop.f32.mrf.mxu0
  %v4749 = vadd.f32 %v4660, %v4748
  %4750 = vmatmul.bf16.gmra.mxu0 %v1298
  %v4751 = vpop.f32.mrf.mxu0
  %v4752 = vadd.f32 %v4663, %v4751
  %v4753 = vpop.f32.mrf.mxu0
  %v4754 = vadd.f32 %v4665, %v4753
  %4755 = vmatmul.bf16.gmra.mxu0 %v1306
  %v4756 = vpop.f32.mrf.mxu0
  %v4757 = vadd.f32 %v4668, %v4756
  %v4758 = vpop.f32.mrf.mxu0
  %v4759 = vadd.f32 %v4670, %v4758
  %4760 = vmatmul.bf16.gmra.mxu0 %v1314
  %v4761 = vpop.f32.mrf.mxu0
  %v4762 = vadd.f32 %v4673, %v4761
  %v4763 = vpop.f32.mrf.mxu0
  %v4764 = vadd.f32 %v4675, %v4763
  %4765 = vmatmul.bf16.gmra.mxu0 %v1322
  %v4766 = vpop.f32.mrf.mxu0
  %v4767 = vadd.f32 %v4678, %v4766
  %v4768 = vpop.f32.mrf.mxu0
  %v4769 = vadd.f32 %v4680, %v4768
  %4770 = vmatmul.bf16.gmra.mxu0 %v1330
  %v4771 = vpop.f32.mrf.mxu0
  %v4772 = vadd.f32 %v4683, %v4771
  %v4773 = vpop.f32.mrf.mxu0
  %v4774 = vadd.f32 %v4685, %v4773
  %4775 = vmatmul.bf16.gmra.mxu0 %v1338
  %v4776 = vpop.f32.mrf.mxu0
  %v4777 = vadd.f32 %v4688, %v4776
  %v4778 = vpop.f32.mrf.mxu0
  %v4779 = vadd.f32 %v4690, %v4778
  %4780 = vmatmul.bf16.gmra.mxu0 %v1346
  %v4781 = vpop.f32.mrf.mxu0
  %v4782 = vadd.f32 %v4693, %v4781
  %v4783 = vpop.f32.mrf.mxu0
  %v4784 = vadd.f32 %v4695, %v4783
  %4785 = vmatmul.bf16.gmra.mxu0 %v1354
  %v4786 = vpop.f32.mrf.mxu0
  %v4787 = vadd.f32 %v4698, %v4786
  %v4788 = vpop.f32.mrf.mxu0
  %v4789 = vadd.f32 %v4700, %v4788
  %4790 = vmatmul.bf16.gmra.mxu0 %v1362
  %v4791 = vpop.f32.mrf.mxu0
  %v4792 = vadd.f32 %v4703, %v4791
  %v4793 = vpop.f32.mrf.mxu0
  %v4794 = vadd.f32 %v4705, %v4793
  %4795 = vmatmul.bf16.gmra.mxu0 %v1370
  %v4796 = vpop.f32.mrf.mxu0
  %v4797 = vadd.f32 %v4708, %v4796
  %v4798 = vpop.f32.mrf.mxu0
  %v4799 = vadd.f32 %v4710, %v4798
  %4800 = vmatmul.bf16.gmra.mxu0 %v1378
  %v4801 = vpop.f32.mrf.mxu0
  %v4802 = vadd.f32 %v4713, %v4801
  %v4803 = vpop.f32.mrf.mxu0
  %v4804 = vadd.f32 %v4715, %v4803
  %4805 = vmatmul.bf16.gmra.mxu0 %v1386
  %v4806 = vpop.f32.mrf.mxu0
  %v4807 = vadd.f32 %v4718, %v4806
  %v4808 = vpop.f32.mrf.mxu0
  %v4809 = vadd.f32 %v4720, %v4808
  %4810 = vmatmul.bf16.gmra.mxu0 %v1394
  %v4811 = vpop.f32.mrf.mxu0
  %v4812 = vadd.f32 %v4723, %v4811
  %v4813 = vpop.f32.mrf.mxu0
  %v4814 = vadd.f32 %v4725, %v4813
  %4815 = vmatmul.bf16.gmra.mxu0 %v1402
  %v4816 = vpop.f32.mrf.mxu0
  %v4817 = vadd.f32 %v4728, %v4816
  %v4818 = vpop.f32.mrf.mxu0
  %v4819 = vadd.f32 %v4730, %v4818
  %4820 = vdwg.mxu0
  %4821 = vmatpush.bf16.msra.mxu0 %v2630
  %4822 = vmatpush.bf16.msra.mxu0 %v2626
  %4823 = vmatpush.bf16.msra.mxu0 %v2622
  %4824 = vmatpush.bf16.msra.mxu0 %v2618
  %4825 = vmatpush.bf16.msra.mxu0 %v2614
  %4826 = vmatpush.bf16.msra.mxu0 %v2610
  %4827 = vmatpush.bf16.msra.mxu0 %v2606
  %4828 = vmatpush.bf16.msra.mxu0 %v2602
  %4829 = vmatmul.bf16.gmra.mxu0 %v1283
  %v4830 = vpop.f32.mrf.mxu0
  %v4831 = vadd.f32 %v4742, %v4830
  %v4832 = vpop.f32.mrf.mxu0
  %v4833 = vadd.f32 %v4744, %v4832
  %4834 = vmatmul.bf16.gmra.mxu0 %v1291
  %v4835 = vpop.f32.mrf.mxu0
  %v4836 = vadd.f32 %v4747, %v4835
  %v4837 = vpop.f32.mrf.mxu0
  %v4838 = vadd.f32 %v4749, %v4837
  %4839 = vmatmul.bf16.gmra.mxu0 %v1299
  %v4840 = vpop.f32.mrf.mxu0
  %v4841 = vadd.f32 %v4752, %v4840
  %v4842 = vpop.f32.mrf.mxu0
  %v4843 = vadd.f32 %v4754, %v4842
  %4844 = vmatmul.bf16.gmra.mxu0 %v1307
  %v4845 = vpop.f32.mrf.mxu0
  %v4846 = vadd.f32 %v4757, %v4845
  %v4847 = vpop.f32.mrf.mxu0
  %v4848 = vadd.f32 %v4759, %v4847
  %4849 = vmatmul.bf16.gmra.mxu0 %v1315
  %v4850 = vpop.f32.mrf.mxu0
  %v4851 = vadd.f32 %v4762, %v4850
  %v4852 = vpop.f32.mrf.mxu0
  %v4853 = vadd.f32 %v4764, %v4852
  %4854 = vmatmul.bf16.gmra.mxu0 %v1323
  %v4855 = vpop.f32.mrf.mxu0
  %v4856 = vadd.f32 %v4767, %v4855
  %v4857 = vpop.f32.mrf.mxu0
  %v4858 = vadd.f32 %v4769, %v4857
  %4859 = vmatmul.bf16.gmra.mxu0 %v1331
  %v4860 = vpop.f32.mrf.mxu0
  %v4861 = vadd.f32 %v4772, %v4860
  %v4862 = vpop.f32.mrf.mxu0
  %v4863 = vadd.f32 %v4774, %v4862
  %4864 = vmatmul.bf16.gmra.mxu0 %v1339
  %v4865 = vpop.f32.mrf.mxu0
  %v4866 = vadd.f32 %v4777, %v4865
  %v4867 = vpop.f32.mrf.mxu0
  %v4868 = vadd.f32 %v4779, %v4867
  %4869 = vmatmul.bf16.gmra.mxu0 %v1347
  %v4870 = vpop.f32.mrf.mxu0
  %v4871 = vadd.f32 %v4782, %v4870
  %v4872 = vpop.f32.mrf.mxu0
  %v4873 = vadd.f32 %v4784, %v4872
  %4874 = vmatmul.bf16.gmra.mxu0 %v1355
  %v4875 = vpop.f32.mrf.mxu0
  %v4876 = vadd.f32 %v4787, %v4875
  %v4877 = vpop.f32.mrf.mxu0
  %v4878 = vadd.f32 %v4789, %v4877
  %4879 = vmatmul.bf16.gmra.mxu0 %v1363
  %v4880 = vpop.f32.mrf.mxu0
  %v4881 = vadd.f32 %v4792, %v4880
  %v4882 = vpop.f32.mrf.mxu0
  %v4883 = vadd.f32 %v4794, %v4882
  %4884 = vmatmul.bf16.gmra.mxu0 %v1371
  %v4885 = vpop.f32.mrf.mxu0
  %v4886 = vadd.f32 %v4797, %v4885
  %v4887 = vpop.f32.mrf.mxu0
  %v4888 = vadd.f32 %v4799, %v4887
  %4889 = vmatmul.bf16.gmra.mxu0 %v1379
  %v4890 = vpop.f32.mrf.mxu0
  %v4891 = vadd.f32 %v4802, %v4890
  %v4892 = vpop.f32.mrf.mxu0
  %v4893 = vadd.f32 %v4804, %v4892
  %4894 = vmatmul.bf16.gmra.mxu0 %v1387
  %v4895 = vpop.f32.mrf.mxu0
  %v4896 = vadd.f32 %v4807, %v4895
  %v4897 = vpop.f32.mrf.mxu0
  %v4898 = vadd.f32 %v4809, %v4897
  %4899 = vmatmul.bf16.gmra.mxu0 %v1395
  %v4900 = vpop.f32.mrf.mxu0
  %v4901 = vadd.f32 %v4812, %v4900
  %v4902 = vpop.f32.mrf.mxu0
  %v4903 = vadd.f32 %v4814, %v4902
  %4904 = vmatmul.bf16.gmra.mxu0 %v1403
  %v4905 = vpop.f32.mrf.mxu0
  %v4906 = vadd.f32 %v4817, %v4905
  %v4907 = vpop.f32.mrf.mxu0
  %v4908 = vadd.f32 %v4819, %v4907
  %4909 = vdwg.mxu0
  %4910 = vmatpush.bf16.msra.mxu0 %v2662
  %4911 = vmatpush.bf16.msra.mxu0 %v2658
  %4912 = vmatpush.bf16.msra.mxu0 %v2654
  %4913 = vmatpush.bf16.msra.mxu0 %v2650
  %4914 = vmatpush.bf16.msra.mxu0 %v2646
  %4915 = vmatpush.bf16.msra.mxu0 %v2642
  %4916 = vmatpush.bf16.msra.mxu0 %v2638
  %4917 = vmatpush.bf16.msra.mxu0 %v2634
  %4918 = vmatmul.bf16.gmra.mxu0 %v1284
  %v4919 = vpop.f32.mrf.mxu0
  %v4920 = vadd.f32 %v4831, %v4919
  %v4921 = vpop.f32.mrf.mxu0
  %v4922 = vadd.f32 %v4833, %v4921
  %4923 = vmatmul.bf16.gmra.mxu0 %v1292
  %v4924 = vpop.f32.mrf.mxu0
  %v4925 = vadd.f32 %v4836, %v4924
  %v4926 = vpop.f32.mrf.mxu0
  %v4927 = vadd.f32 %v4838, %v4926
  %4928 = vmatmul.bf16.gmra.mxu0 %v1300
  %v4929 = vpop.f32.mrf.mxu0
  %v4930 = vadd.f32 %v4841, %v4929
  %v4931 = vpop.f32.mrf.mxu0
  %v4932 = vadd.f32 %v4843, %v4931
  %4933 = vmatmul.bf16.gmra.mxu0 %v1308
  %v4934 = vpop.f32.mrf.mxu0
  %v4935 = vadd.f32 %v4846, %v4934
  %v4936 = vpop.f32.mrf.mxu0
  %v4937 = vadd.f32 %v4848, %v4936
  %4938 = vmatmul.bf16.gmra.mxu0 %v1316
  %v4939 = vpop.f32.mrf.mxu0
  %v4940 = vadd.f32 %v4851, %v4939
  %v4941 = vpop.f32.mrf.mxu0
  %v4942 = vadd.f32 %v4853, %v4941
  %4943 = vmatmul.bf16.gmra.mxu0 %v1324
  %v4944 = vpop.f32.mrf.mxu0
  %v4945 = vadd.f32 %v4856, %v4944
  %v4946 = vpop.f32.mrf.mxu0
  %v4947 = vadd.f32 %v4858, %v4946
  %4948 = vmatmul.bf16.gmra.mxu0 %v1332
  %v4949 = vpop.f32.mrf.mxu0
  %v4950 = vadd.f32 %v4861, %v4949
  %v4951 = vpop.f32.mrf.mxu0
  %v4952 = vadd.f32 %v4863, %v4951
  %4953 = vmatmul.bf16.gmra.mxu0 %v1340
  %v4954 = vpop.f32.mrf.mxu0
  %v4955 = vadd.f32 %v4866, %v4954
  %v4956 = vpop.f32.mrf.mxu0
  %v4957 = vadd.f32 %v4868, %v4956
  %4958 = vmatmul.bf16.gmra.mxu0 %v1348
  %v4959 = vpop.f32.mrf.mxu0
  %v4960 = vadd.f32 %v4871, %v4959
  %v4961 = vpop.f32.mrf.mxu0
  %v4962 = vadd.f32 %v4873, %v4961
  %4963 = vmatmul.bf16.gmra.mxu0 %v1356
  %v4964 = vpop.f32.mrf.mxu0
  %v4965 = vadd.f32 %v4876, %v4964
  %v4966 = vpop.f32.mrf.mxu0
  %v4967 = vadd.f32 %v4878, %v4966
  %4968 = vmatmul.bf16.gmra.mxu0 %v1364
  %v4969 = vpop.f32.mrf.mxu0
  %v4970 = vadd.f32 %v4881, %v4969
  %v4971 = vpop.f32.mrf.mxu0
  %v4972 = vadd.f32 %v4883, %v4971
  %4973 = vmatmul.bf16.gmra.mxu0 %v1372
  %v4974 = vpop.f32.mrf.mxu0
  %v4975 = vadd.f32 %v4886, %v4974
  %v4976 = vpop.f32.mrf.mxu0
  %v4977 = vadd.f32 %v4888, %v4976
  %4978 = vmatmul.bf16.gmra.mxu0 %v1380
  %v4979 = vpop.f32.mrf.mxu0
  %v4980 = vadd.f32 %v4891, %v4979
  %v4981 = vpop.f32.mrf.mxu0
  %v4982 = vadd.f32 %v4893, %v4981
  %4983 = vmatmul.bf16.gmra.mxu0 %v1388
  %v4984 = vpop.f32.mrf.mxu0
  %v4985 = vadd.f32 %v4896, %v4984
  %v4986 = vpop.f32.mrf.mxu0
  %v4987 = vadd.f32 %v4898, %v4986
  %4988 = vmatmul.bf16.gmra.mxu0 %v1396
  %v4989 = vpop.f32.mrf.mxu0
  %v4990 = vadd.f32 %v4901, %v4989
  %v4991 = vpop.f32.mrf.mxu0
  %v4992 = vadd.f32 %v4903, %v4991
  %4993 = vmatmul.bf16.gmra.mxu0 %v1404
  %v4994 = vpop.f32.mrf.mxu0
  %v4995 = vadd.f32 %v4906, %v4994
  %v4996 = vpop.f32.mrf.mxu0
  %v4997 = vadd.f32 %v4908, %v4996
  %4998 = vdwg.mxu0
  %4999 = vmatpush.bf16.msra.mxu0 %v2694
  %5000 = vmatpush.bf16.msra.mxu0 %v2690
  %5001 = vmatpush.bf16.msra.mxu0 %v2686
  %5002 = vmatpush.bf16.msra.mxu0 %v2682
  %5003 = vmatpush.bf16.msra.mxu0 %v2678
  %5004 = vmatpush.bf16.msra.mxu0 %v2674
  %5005 = vmatpush.bf16.msra.mxu0 %v2670
  %5006 = vmatpush.bf16.msra.mxu0 %v2666
  %5007 = vmatmul.bf16.gmra.mxu0 %v1285
  %v5008 = vpop.f32.mrf.mxu0
  %v5009 = vadd.f32 %v4920, %v5008
  %v5010 = vpop.f32.mrf.mxu0
  %v5011 = vadd.f32 %v4922, %v5010
  %5012 = vmatmul.bf16.gmra.mxu0 %v1293
  %v5013 = vpop.f32.mrf.mxu0
  %v5014 = vadd.f32 %v4925, %v5013
  %v5015 = vpop.f32.mrf.mxu0
  %v5016 = vadd.f32 %v4927, %v5015
  %5017 = vmatmul.bf16.gmra.mxu0 %v1301
  %v5018 = vpop.f32.mrf.mxu0
  %v5019 = vadd.f32 %v4930, %v5018
  %v5020 = vpop.f32.mrf.mxu0
  %v5021 = vadd.f32 %v4932, %v5020
  %5022 = vmatmul.bf16.gmra.mxu0 %v1309
  %v5023 = vpop.f32.mrf.mxu0
  %v5024 = vadd.f32 %v4935, %v5023
  %v5025 = vpop.f32.mrf.mxu0
  %v5026 = vadd.f32 %v4937, %v5025
  %5027 = vmatmul.bf16.gmra.mxu0 %v1317
  %v5028 = vpop.f32.mrf.mxu0
  %v5029 = vadd.f32 %v4940, %v5028
  %v5030 = vpop.f32.mrf.mxu0
  %v5031 = vadd.f32 %v4942, %v5030
  %5032 = vmatmul.bf16.gmra.mxu0 %v1325
  %v5033 = vpop.f32.mrf.mxu0
  %v5034 = vadd.f32 %v4945, %v5033
  %v5035 = vpop.f32.mrf.mxu0
  %v5036 = vadd.f32 %v4947, %v5035
  %5037 = vmatmul.bf16.gmra.mxu0 %v1333
  %v5038 = vpop.f32.mrf.mxu0
  %v5039 = vadd.f32 %v4950, %v5038
  %v5040 = vpop.f32.mrf.mxu0
  %v5041 = vadd.f32 %v4952, %v5040
  %5042 = vmatmul.bf16.gmra.mxu0 %v1341
  %v5043 = vpop.f32.mrf.mxu0
  %v5044 = vadd.f32 %v4955, %v5043
  %v5045 = vpop.f32.mrf.mxu0
  %v5046 = vadd.f32 %v4957, %v5045
  %5047 = vmatmul.bf16.gmra.mxu0 %v1349
  %v5048 = vpop.f32.mrf.mxu0
  %v5049 = vadd.f32 %v4960, %v5048
  %v5050 = vpop.f32.mrf.mxu0
  %v5051 = vadd.f32 %v4962, %v5050
  %5052 = vmatmul.bf16.gmra.mxu0 %v1357
  %v5053 = vpop.f32.mrf.mxu0
  %v5054 = vadd.f32 %v4965, %v5053
  %v5055 = vpop.f32.mrf.mxu0
  %v5056 = vadd.f32 %v4967, %v5055
  %5057 = vmatmul.bf16.gmra.mxu0 %v1365
  %v5058 = vpop.f32.mrf.mxu0
  %v5059 = vadd.f32 %v4970, %v5058
  %v5060 = vpop.f32.mrf.mxu0
  %v5061 = vadd.f32 %v4972, %v5060
  %5062 = vmatmul.bf16.gmra.mxu0 %v1373
  %v5063 = vpop.f32.mrf.mxu0
  %v5064 = vadd.f32 %v4975, %v5063
  %v5065 = vpop.f32.mrf.mxu0
  %v5066 = vadd.f32 %v4977, %v5065
  %5067 = vmatmul.bf16.gmra.mxu0 %v1381
  %v5068 = vpop.f32.mrf.mxu0
  %v5069 = vadd.f32 %v4980, %v5068
  %v5070 = vpop.f32.mrf.mxu0
  %v5071 = vadd.f32 %v4982, %v5070
  %5072 = vmatmul.bf16.gmra.mxu0 %v1389
  %v5073 = vpop.f32.mrf.mxu0
  %v5074 = vadd.f32 %v4985, %v5073
  %v5075 = vpop.f32.mrf.mxu0
  %v5076 = vadd.f32 %v4987, %v5075
  %5077 = vmatmul.bf16.gmra.mxu0 %v1397
  %v5078 = vpop.f32.mrf.mxu0
  %v5079 = vadd.f32 %v4990, %v5078
  %v5080 = vpop.f32.mrf.mxu0
  %v5081 = vadd.f32 %v4992, %v5080
  %5082 = vmatmul.bf16.gmra.mxu0 %v1405
  %v5083 = vpop.f32.mrf.mxu0
  %v5084 = vadd.f32 %v4995, %v5083
  %v5085 = vpop.f32.mrf.mxu0
  %v5086 = vadd.f32 %v4997, %v5085
  %5087 = vdwg.mxu0
  %5088 = vmatpush.bf16.msra.mxu0 %v2471
  %5089 = vmatpush.bf16.msra.mxu0 %v2467
  %5090 = vmatpush.bf16.msra.mxu0 %v2463
  %5091 = vmatpush.bf16.msra.mxu0 %v2459
  %5092 = vmatpush.bf16.msra.mxu0 %v2455
  %5093 = vmatpush.bf16.msra.mxu0 %v2451
  %5094 = vmatpush.bf16.msra.mxu0 %v2447
  %5095 = vmatpush.bf16.msra.mxu0 %v2443
  %5096 = vmatmul.bf16.gmra.mxu0 %v1278
  %v5097 = vpop.f32.mrf.mxu0
  %v5098 = vadd.f32 %v1667, %v5097
  %v5099 = vpop.f32.mrf.mxu0
  %v5100 = vadd.f32 %v1667, %v5099
  %5101 = vmatmul.bf16.gmra.mxu0 %v1286
  %v5102 = vpop.f32.mrf.mxu0
  %v5103 = vadd.f32 %v1667, %v5102
  %v5104 = vpop.f32.mrf.mxu0
  %v5105 = vadd.f32 %v1667, %v5104
  %5106 = vmatmul.bf16.gmra.mxu0 %v1294
  %v5107 = vpop.f32.mrf.mxu0
  %v5108 = vadd.f32 %v1667, %v5107
  %v5109 = vpop.f32.mrf.mxu0
  %v5110 = vadd.f32 %v1667, %v5109
  %5111 = vmatmul.bf16.gmra.mxu0 %v1302
  %v5112 = vpop.f32.mrf.mxu0
  %v5113 = vadd.f32 %v1667, %v5112
  %v5114 = vpop.f32.mrf.mxu0
  %v5115 = vadd.f32 %v1667, %v5114
  %5116 = vmatmul.bf16.gmra.mxu0 %v1310
  %v5117 = vpop.f32.mrf.mxu0
  %v5118 = vadd.f32 %v1667, %v5117
  %v5119 = vpop.f32.mrf.mxu0
  %v5120 = vadd.f32 %v1667, %v5119
  %5121 = vmatmul.bf16.gmra.mxu0 %v1318
  %v5122 = vpop.f32.mrf.mxu0
  %v5123 = vadd.f32 %v1667, %v5122
  %v5124 = vpop.f32.mrf.mxu0
  %v5125 = vadd.f32 %v1667, %v5124
  %5126 = vmatmul.bf16.gmra.mxu0 %v1326
  %v5127 = vpop.f32.mrf.mxu0
  %v5128 = vadd.f32 %v1667, %v5127
  %v5129 = vpop.f32.mrf.mxu0
  %v5130 = vadd.f32 %v1667, %v5129
  %5131 = vmatmul.bf16.gmra.mxu0 %v1334
  %v5132 = vpop.f32.mrf.mxu0
  %v5133 = vadd.f32 %v1667, %v5132
  %v5134 = vpop.f32.mrf.mxu0
  %v5135 = vadd.f32 %v1667, %v5134
  %5136 = vmatmul.bf16.gmra.mxu0 %v1342
  %v5137 = vpop.f32.mrf.mxu0
  %v5138 = vadd.f32 %v1667, %v5137
  %v5139 = vpop.f32.mrf.mxu0
  %v5140 = vadd.f32 %v1667, %v5139
  %5141 = vmatmul.bf16.gmra.mxu0 %v1350
  %v5142 = vpop.f32.mrf.mxu0
  %v5143 = vadd.f32 %v1667, %v5142
  %v5144 = vpop.f32.mrf.mxu0
  %v5145 = vadd.f32 %v1667, %v5144
  %5146 = vmatmul.bf16.gmra.mxu0 %v1358
  %v5147 = vpop.f32.mrf.mxu0
  %v5148 = vadd.f32 %v1667, %v5147
  %v5149 = vpop.f32.mrf.mxu0
  %v5150 = vadd.f32 %v1667, %v5149
  %5151 = vmatmul.bf16.gmra.mxu0 %v1366
  %v5152 = vpop.f32.mrf.mxu0
  %v5153 = vadd.f32 %v1667, %v5152
  %v5154 = vpop.f32.mrf.mxu0
  %v5155 = vadd.f32 %v1667, %v5154
  %5156 = vmatmul.bf16.gmra.mxu0 %v1374
  %v5157 = vpop.f32.mrf.mxu0
  %v5158 = vadd.f32 %v1667, %v5157
  %v5159 = vpop.f32.mrf.mxu0
  %v5160 = vadd.f32 %v1667, %v5159
  %5161 = vmatmul.bf16.gmra.mxu0 %v1382
  %v5162 = vpop.f32.mrf.mxu0
  %v5163 = vadd.f32 %v1667, %v5162
  %v5164 = vpop.f32.mrf.mxu0
  %v5165 = vadd.f32 %v1667, %v5164
  %5166 = vmatmul.bf16.gmra.mxu0 %v1390
  %v5167 = vpop.f32.mrf.mxu0
  %v5168 = vadd.f32 %v1667, %v5167
  %v5169 = vpop.f32.mrf.mxu0
  %v5170 = vadd.f32 %v1667, %v5169
  %5171 = vmatmul.bf16.gmra.mxu0 %v1398
  %v5172 = vpop.f32.mrf.mxu0
  %v5173 = vadd.f32 %v1667, %v5172
  %v5174 = vpop.f32.mrf.mxu0
  %v5175 = vadd.f32 %v1667, %v5174
  %5176 = vdwg.mxu0
  %5177 = vmatpush.bf16.msra.mxu0 %v2503
  %5178 = vmatpush.bf16.msra.mxu0 %v2499
  %5179 = vmatpush.bf16.msra.mxu0 %v2495
  %5180 = vmatpush.bf16.msra.mxu0 %v2491
  %5181 = vmatpush.bf16.msra.mxu0 %v2487
  %5182 = vmatpush.bf16.msra.mxu0 %v2483
  %5183 = vmatpush.bf16.msra.mxu0 %v2479
  %5184 = vmatpush.bf16.msra.mxu0 %v2475
  %5185 = vmatmul.bf16.gmra.mxu0 %v1279
  %v5186 = vpop.f32.mrf.mxu0
  %v5187 = vadd.f32 %v5098, %v5186
  %v5188 = vpop.f32.mrf.mxu0
  %v5189 = vadd.f32 %v5100, %v5188
  %5190 = vmatmul.bf16.gmra.mxu0 %v1287
  %v5191 = vpop.f32.mrf.mxu0
  %v5192 = vadd.f32 %v5103, %v5191
  %v5193 = vpop.f32.mrf.mxu0
  %v5194 = vadd.f32 %v5105, %v5193
  %5195 = vmatmul.bf16.gmra.mxu0 %v1295
  %v5196 = vpop.f32.mrf.mxu0
  %v5197 = vadd.f32 %v5108, %v5196
  %v5198 = vpop.f32.mrf.mxu0
  %v5199 = vadd.f32 %v5110, %v5198
  %5200 = vmatmul.bf16.gmra.mxu0 %v1303
  %v5201 = vpop.f32.mrf.mxu0
  %v5202 = vadd.f32 %v5113, %v5201
  %v5203 = vpop.f32.mrf.mxu0
  %v5204 = vadd.f32 %v5115, %v5203
  %5205 = vmatmul.bf16.gmra.mxu0 %v1311
  %v5206 = vpop.f32.mrf.mxu0
  %v5207 = vadd.f32 %v5118, %v5206
  %v5208 = vpop.f32.mrf.mxu0
  %v5209 = vadd.f32 %v5120, %v5208
  %5210 = vmatmul.bf16.gmra.mxu0 %v1319
  %v5211 = vpop.f32.mrf.mxu0
  %v5212 = vadd.f32 %v5123, %v5211
  %v5213 = vpop.f32.mrf.mxu0
  %v5214 = vadd.f32 %v5125, %v5213
  %5215 = vmatmul.bf16.gmra.mxu0 %v1327
  %v5216 = vpop.f32.mrf.mxu0
  %v5217 = vadd.f32 %v5128, %v5216
  %v5218 = vpop.f32.mrf.mxu0
  %v5219 = vadd.f32 %v5130, %v5218
  %5220 = vmatmul.bf16.gmra.mxu0 %v1335
  %v5221 = vpop.f32.mrf.mxu0
  %v5222 = vadd.f32 %v5133, %v5221
  %v5223 = vpop.f32.mrf.mxu0
  %v5224 = vadd.f32 %v5135, %v5223
  %5225 = vmatmul.bf16.gmra.mxu0 %v1343
  %v5226 = vpop.f32.mrf.mxu0
  %v5227 = vadd.f32 %v5138, %v5226
  %v5228 = vpop.f32.mrf.mxu0
  %v5229 = vadd.f32 %v5140, %v5228
  %5230 = vmatmul.bf16.gmra.mxu0 %v1351
  %v5231 = vpop.f32.mrf.mxu0
  %v5232 = vadd.f32 %v5143, %v5231
  %v5233 = vpop.f32.mrf.mxu0
  %v5234 = vadd.f32 %v5145, %v5233
  %5235 = vmatmul.bf16.gmra.mxu0 %v1359
  %v5236 = vpop.f32.mrf.mxu0
  %v5237 = vadd.f32 %v5148, %v5236
  %v5238 = vpop.f32.mrf.mxu0
  %v5239 = vadd.f32 %v5150, %v5238
  %5240 = vmatmul.bf16.gmra.mxu0 %v1367
  %v5241 = vpop.f32.mrf.mxu0
  %v5242 = vadd.f32 %v5153, %v5241
  %v5243 = vpop.f32.mrf.mxu0
  %v5244 = vadd.f32 %v5155, %v5243
  %5245 = vmatmul.bf16.gmra.mxu0 %v1375
  %v5246 = vpop.f32.mrf.mxu0
  %v5247 = vadd.f32 %v5158, %v5246
  %v5248 = vpop.f32.mrf.mxu0
  %v5249 = vadd.f32 %v5160, %v5248
  %5250 = vmatmul.bf16.gmra.mxu0 %v1383
  %v5251 = vpop.f32.mrf.mxu0
  %v5252 = vadd.f32 %v5163, %v5251
  %v5253 = vpop.f32.mrf.mxu0
  %v5254 = vadd.f32 %v5165, %v5253
  %5255 = vmatmul.bf16.gmra.mxu0 %v1391
  %v5256 = vpop.f32.mrf.mxu0
  %v5257 = vadd.f32 %v5168, %v5256
  %v5258 = vpop.f32.mrf.mxu0
  %v5259 = vadd.f32 %v5170, %v5258
  %5260 = vmatmul.bf16.gmra.mxu0 %v1399
  %v5261 = vpop.f32.mrf.mxu0
  %v5262 = vadd.f32 %v5173, %v5261
  %v5263 = vpop.f32.mrf.mxu0
  %v5264 = vadd.f32 %v5175, %v5263
  %5265 = vdwg.mxu0
  %5266 = vmatpush.bf16.msra.mxu0 %v2535
  %5267 = vmatpush.bf16.msra.mxu0 %v2531
  %5268 = vmatpush.bf16.msra.mxu0 %v2527
  %5269 = vmatpush.bf16.msra.mxu0 %v2523
  %5270 = vmatpush.bf16.msra.mxu0 %v2519
  %5271 = vmatpush.bf16.msra.mxu0 %v2515
  %5272 = vmatpush.bf16.msra.mxu0 %v2511
  %5273 = vmatpush.bf16.msra.mxu0 %v2507
  %5274 = vmatmul.bf16.gmra.mxu0 %v1280
  %v5275 = vpop.f32.mrf.mxu0
  %v5276 = vadd.f32 %v5187, %v5275
  %v5277 = vpop.f32.mrf.mxu0
  %v5278 = vadd.f32 %v5189, %v5277
  %5279 = vmatmul.bf16.gmra.mxu0 %v1288
  %v5280 = vpop.f32.mrf.mxu0
  %v5281 = vadd.f32 %v5192, %v5280
  %v5282 = vpop.f32.mrf.mxu0
  %v5283 = vadd.f32 %v5194, %v5282
  %5284 = vmatmul.bf16.gmra.mxu0 %v1296
  %v5285 = vpop.f32.mrf.mxu0
  %v5286 = vadd.f32 %v5197, %v5285
  %v5287 = vpop.f32.mrf.mxu0
  %v5288 = vadd.f32 %v5199, %v5287
  %5289 = vmatmul.bf16.gmra.mxu0 %v1304
  %v5290 = vpop.f32.mrf.mxu0
  %v5291 = vadd.f32 %v5202, %v5290
  %v5292 = vpop.f32.mrf.mxu0
  %v5293 = vadd.f32 %v5204, %v5292
  %5294 = vmatmul.bf16.gmra.mxu0 %v1312
  %v5295 = vpop.f32.mrf.mxu0
  %v5296 = vadd.f32 %v5207, %v5295
  %v5297 = vpop.f32.mrf.mxu0
  %v5298 = vadd.f32 %v5209, %v5297
  %5299 = vmatmul.bf16.gmra.mxu0 %v1320
  %v5300 = vpop.f32.mrf.mxu0
  %v5301 = vadd.f32 %v5212, %v5300
  %v5302 = vpop.f32.mrf.mxu0
  %v5303 = vadd.f32 %v5214, %v5302
  %5304 = vmatmul.bf16.gmra.mxu0 %v1328
  %v5305 = vpop.f32.mrf.mxu0
  %v5306 = vadd.f32 %v5217, %v5305
  %v5307 = vpop.f32.mrf.mxu0
  %v5308 = vadd.f32 %v5219, %v5307
  %5309 = vmatmul.bf16.gmra.mxu0 %v1336
  %v5310 = vpop.f32.mrf.mxu0
  %v5311 = vadd.f32 %v5222, %v5310
  %v5312 = vpop.f32.mrf.mxu0
  %v5313 = vadd.f32 %v5224, %v5312
  %5314 = vmatmul.bf16.gmra.mxu0 %v1344
  %v5315 = vpop.f32.mrf.mxu0
  %v5316 = vadd.f32 %v5227, %v5315
  %v5317 = vpop.f32.mrf.mxu0
  %v5318 = vadd.f32 %v5229, %v5317
  %5319 = vmatmul.bf16.gmra.mxu0 %v1352
  %v5320 = vpop.f32.mrf.mxu0
  %v5321 = vadd.f32 %v5232, %v5320
  %v5322 = vpop.f32.mrf.mxu0
  %v5323 = vadd.f32 %v5234, %v5322
  %5324 = vmatmul.bf16.gmra.mxu0 %v1360
  %v5325 = vpop.f32.mrf.mxu0
  %v5326 = vadd.f32 %v5237, %v5325
  %v5327 = vpop.f32.mrf.mxu0
  %v5328 = vadd.f32 %v5239, %v5327
  %5329 = vmatmul.bf16.gmra.mxu0 %v1368
  %v5330 = vpop.f32.mrf.mxu0
  %v5331 = vadd.f32 %v5242, %v5330
  %v5332 = vpop.f32.mrf.mxu0
  %v5333 = vadd.f32 %v5244, %v5332
  %5334 = vmatmul.bf16.gmra.mxu0 %v1376
  %v5335 = vpop.f32.mrf.mxu0
  %v5336 = vadd.f32 %v5247, %v5335
  %v5337 = vpop.f32.mrf.mxu0
  %v5338 = vadd.f32 %v5249, %v5337
  %5339 = vmatmul.bf16.gmra.mxu0 %v1384
  %v5340 = vpop.f32.mrf.mxu0
  %v5341 = vadd.f32 %v5252, %v5340
  %v5342 = vpop.f32.mrf.mxu0
  %v5343 = vadd.f32 %v5254, %v5342
  %5344 = vmatmul.bf16.gmra.mxu0 %v1392
  %v5345 = vpop.f32.mrf.mxu0
  %v5346 = vadd.f32 %v5257, %v5345
  %v5347 = vpop.f32.mrf.mxu0
  %v5348 = vadd.f32 %v5259, %v5347
  %5349 = vmatmul.bf16.gmra.mxu0 %v1400
  %v5350 = vpop.f32.mrf.mxu0
  %v5351 = vadd.f32 %v5262, %v5350
  %v5352 = vpop.f32.mrf.mxu0
  %v5353 = vadd.f32 %v5264, %v5352
  %5354 = vdwg.mxu0
  %5355 = vmatpush.bf16.msra.mxu0 %v2567
  %5356 = vmatpush.bf16.msra.mxu0 %v2563
  %5357 = vmatpush.bf16.msra.mxu0 %v2559
  %5358 = vmatpush.bf16.msra.mxu0 %v2555
  %5359 = vmatpush.bf16.msra.mxu0 %v2551
  %5360 = vmatpush.bf16.msra.mxu0 %v2547
  %5361 = vmatpush.bf16.msra.mxu0 %v2543
  %5362 = vmatpush.bf16.msra.mxu0 %v2539
  %5363 = vmatmul.bf16.gmra.mxu0 %v1281
  %v5364 = vpop.f32.mrf.mxu0
  %v5365 = vadd.f32 %v5276, %v5364
  %v5366 = vpop.f32.mrf.mxu0
  %v5367 = vadd.f32 %v5278, %v5366
  %5368 = vmatmul.bf16.gmra.mxu0 %v1289
  %v5369 = vpop.f32.mrf.mxu0
  %v5370 = vadd.f32 %v5281, %v5369
  %v5371 = vpop.f32.mrf.mxu0
  %v5372 = vadd.f32 %v5283, %v5371
  %5373 = vmatmul.bf16.gmra.mxu0 %v1297
  %v5374 = vpop.f32.mrf.mxu0
  %v5375 = vadd.f32 %v5286, %v5374
  %v5376 = vpop.f32.mrf.mxu0
  %v5377 = vadd.f32 %v5288, %v5376
  %5378 = vmatmul.bf16.gmra.mxu0 %v1305
  %v5379 = vpop.f32.mrf.mxu0
  %v5380 = vadd.f32 %v5291, %v5379
  %v5381 = vpop.f32.mrf.mxu0
  %v5382 = vadd.f32 %v5293, %v5381
  %5383 = vmatmul.bf16.gmra.mxu0 %v1313
  %v5384 = vpop.f32.mrf.mxu0
  %v5385 = vadd.f32 %v5296, %v5384
  %v5386 = vpop.f32.mrf.mxu0
  %v5387 = vadd.f32 %v5298, %v5386
  %5388 = vmatmul.bf16.gmra.mxu0 %v1321
  %v5389 = vpop.f32.mrf.mxu0
  %v5390 = vadd.f32 %v5301, %v5389
  %v5391 = vpop.f32.mrf.mxu0
  %v5392 = vadd.f32 %v5303, %v5391
  %5393 = vmatmul.bf16.gmra.mxu0 %v1329
  %v5394 = vpop.f32.mrf.mxu0
  %v5395 = vadd.f32 %v5306, %v5394
  %v5396 = vpop.f32.mrf.mxu0
  %v5397 = vadd.f32 %v5308, %v5396
  %5398 = vmatmul.bf16.gmra.mxu0 %v1337
  %v5399 = vpop.f32.mrf.mxu0
  %v5400 = vadd.f32 %v5311, %v5399
  %v5401 = vpop.f32.mrf.mxu0
  %v5402 = vadd.f32 %v5313, %v5401
  %5403 = vmatmul.bf16.gmra.mxu0 %v1345
  %v5404 = vpop.f32.mrf.mxu0
  %v5405 = vadd.f32 %v5316, %v5404
  %v5406 = vpop.f32.mrf.mxu0
  %v5407 = vadd.f32 %v5318, %v5406
  %5408 = vmatmul.bf16.gmra.mxu0 %v1353
  %v5409 = vpop.f32.mrf.mxu0
  %v5410 = vadd.f32 %v5321, %v5409
  %v5411 = vpop.f32.mrf.mxu0
  %v5412 = vadd.f32 %v5323, %v5411
  %5413 = vmatmul.bf16.gmra.mxu0 %v1361
  %v5414 = vpop.f32.mrf.mxu0
  %v5415 = vadd.f32 %v5326, %v5414
  %v5416 = vpop.f32.mrf.mxu0
  %v5417 = vadd.f32 %v5328, %v5416
  %5418 = vmatmul.bf16.gmra.mxu0 %v1369
  %v5419 = vpop.f32.mrf.mxu0
  %v5420 = vadd.f32 %v5331, %v5419
  %v5421 = vpop.f32.mrf.mxu0
  %v5422 = vadd.f32 %v5333, %v5421
  %5423 = vmatmul.bf16.gmra.mxu0 %v1377
  %v5424 = vpop.f32.mrf.mxu0
  %v5425 = vadd.f32 %v5336, %v5424
  %v5426 = vpop.f32.mrf.mxu0
  %v5427 = vadd.f32 %v5338, %v5426
  %5428 = vmatmul.bf16.gmra.mxu0 %v1385
  %v5429 = vpop.f32.mrf.mxu0
  %v5430 = vadd.f32 %v5341, %v5429
  %v5431 = vpop.f32.mrf.mxu0
  %v5432 = vadd.f32 %v5343, %v5431
  %5433 = vmatmul.bf16.gmra.mxu0 %v1393
  %v5434 = vpop.f32.mrf.mxu0
  %v5435 = vadd.f32 %v5346, %v5434
  %v5436 = vpop.f32.mrf.mxu0
  %v5437 = vadd.f32 %v5348, %v5436
  %5438 = vmatmul.bf16.gmra.mxu0 %v1401
  %v5439 = vpop.f32.mrf.mxu0
  %v5440 = vadd.f32 %v5351, %v5439
  %v5441 = vpop.f32.mrf.mxu0
  %v5442 = vadd.f32 %v5353, %v5441
  %5443 = vdwg.mxu0
  %5444 = vmatpush.bf16.msra.mxu0 %v2599
  %5445 = vmatpush.bf16.msra.mxu0 %v2595
  %5446 = vmatpush.bf16.msra.mxu0 %v2591
  %5447 = vmatpush.bf16.msra.mxu0 %v2587
  %5448 = vmatpush.bf16.msra.mxu0 %v2583
  %5449 = vmatpush.bf16.msra.mxu0 %v2579
  %5450 = vmatpush.bf16.msra.mxu0 %v2575
  %5451 = vmatpush.bf16.msra.mxu0 %v2571
  %5452 = vmatmul.bf16.gmra.mxu0 %v1282
  %v5453 = vpop.f32.mrf.mxu0
  %v5454 = vadd.f32 %v5365, %v5453
  %v5455 = vpop.f32.mrf.mxu0
  %v5456 = vadd.f32 %v5367, %v5455
  %5457 = vmatmul.bf16.gmra.mxu0 %v1290
  %v5458 = vpop.f32.mrf.mxu0
  %v5459 = vadd.f32 %v5370, %v5458
  %v5460 = vpop.f32.mrf.mxu0
  %v5461 = vadd.f32 %v5372, %v5460
  %5462 = vmatmul.bf16.gmra.mxu0 %v1298
  %v5463 = vpop.f32.mrf.mxu0
  %v5464 = vadd.f32 %v5375, %v5463
  %v5465 = vpop.f32.mrf.mxu0
  %v5466 = vadd.f32 %v5377, %v5465
  %5467 = vmatmul.bf16.gmra.mxu0 %v1306
  %v5468 = vpop.f32.mrf.mxu0
  %v5469 = vadd.f32 %v5380, %v5468
  %v5470 = vpop.f32.mrf.mxu0
  %v5471 = vadd.f32 %v5382, %v5470
  %5472 = vmatmul.bf16.gmra.mxu0 %v1314
  %v5473 = vpop.f32.mrf.mxu0
  %v5474 = vadd.f32 %v5385, %v5473
  %v5475 = vpop.f32.mrf.mxu0
  %v5476 = vadd.f32 %v5387, %v5475
  %5477 = vmatmul.bf16.gmra.mxu0 %v1322
  %v5478 = vpop.f32.mrf.mxu0
  %v5479 = vadd.f32 %v5390, %v5478
  %v5480 = vpop.f32.mrf.mxu0
  %v5481 = vadd.f32 %v5392, %v5480
  %5482 = vmatmul.bf16.gmra.mxu0 %v1330
  %v5483 = vpop.f32.mrf.mxu0
  %v5484 = vadd.f32 %v5395, %v5483
  %v5485 = vpop.f32.mrf.mxu0
  %v5486 = vadd.f32 %v5397, %v5485
  %5487 = vmatmul.bf16.gmra.mxu0 %v1338
  %v5488 = vpop.f32.mrf.mxu0
  %v5489 = vadd.f32 %v5400, %v5488
  %v5490 = vpop.f32.mrf.mxu0
  %v5491 = vadd.f32 %v5402, %v5490
  %5492 = vmatmul.bf16.gmra.mxu0 %v1346
  %v5493 = vpop.f32.mrf.mxu0
  %v5494 = vadd.f32 %v5405, %v5493
  %v5495 = vpop.f32.mrf.mxu0
  %v5496 = vadd.f32 %v5407, %v5495
  %5497 = vmatmul.bf16.gmra.mxu0 %v1354
  %v5498 = vpop.f32.mrf.mxu0
  %v5499 = vadd.f32 %v5410, %v5498
  %v5500 = vpop.f32.mrf.mxu0
  %v5501 = vadd.f32 %v5412, %v5500
  %5502 = vmatmul.bf16.gmra.mxu0 %v1362
  %v5503 = vpop.f32.mrf.mxu0
  %v5504 = vadd.f32 %v5415, %v5503
  %v5505 = vpop.f32.mrf.mxu0
  %v5506 = vadd.f32 %v5417, %v5505
  %5507 = vmatmul.bf16.gmra.mxu0 %v1370
  %v5508 = vpop.f32.mrf.mxu0
  %v5509 = vadd.f32 %v5420, %v5508
  %v5510 = vpop.f32.mrf.mxu0
  %v5511 = vadd.f32 %v5422, %v5510
  %5512 = vmatmul.bf16.gmra.mxu0 %v1378
  %v5513 = vpop.f32.mrf.mxu0
  %v5514 = vadd.f32 %v5425, %v5513
  %v5515 = vpop.f32.mrf.mxu0
  %v5516 = vadd.f32 %v5427, %v5515
  %5517 = vmatmul.bf16.gmra.mxu0 %v1386
  %v5518 = vpop.f32.mrf.mxu0
  %v5519 = vadd.f32 %v5430, %v5518
  %v5520 = vpop.f32.mrf.mxu0
  %v5521 = vadd.f32 %v5432, %v5520
  %5522 = vmatmul.bf16.gmra.mxu0 %v1394
  %v5523 = vpop.f32.mrf.mxu0
  %v5524 = vadd.f32 %v5435, %v5523
  %v5525 = vpop.f32.mrf.mxu0
  %v5526 = vadd.f32 %v5437, %v5525
  %5527 = vmatmul.bf16.gmra.mxu0 %v1402
  %v5528 = vpop.f32.mrf.mxu0
  %v5529 = vadd.f32 %v5440, %v5528
  %v5530 = vpop.f32.mrf.mxu0
  %v5531 = vadd.f32 %v5442, %v5530
  %5532 = vdwg.mxu0
  %5533 = vmatpush.bf16.msra.mxu0 %v2631
  %5534 = vmatpush.bf16.msra.mxu0 %v2627
  %5535 = vmatpush.bf16.msra.mxu0 %v2623
  %5536 = vmatpush.bf16.msra.mxu0 %v2619
  %5537 = vmatpush.bf16.msra.mxu0 %v2615
  %5538 = vmatpush.bf16.msra.mxu0 %v2611
  %5539 = vmatpush.bf16.msra.mxu0 %v2607
  %5540 = vmatpush.bf16.msra.mxu0 %v2603
  %5541 = vmatmul.bf16.gmra.mxu0 %v1283
  %v5542 = vpop.f32.mrf.mxu0
  %v5543 = vadd.f32 %v5454, %v5542
  %v5544 = vpop.f32.mrf.mxu0
  %v5545 = vadd.f32 %v5456, %v5544
  %5546 = vmatmul.bf16.gmra.mxu0 %v1291
  %v5547 = vpop.f32.mrf.mxu0
  %v5548 = vadd.f32 %v5459, %v5547
  %v5549 = vpop.f32.mrf.mxu0
  %v5550 = vadd.f32 %v5461, %v5549
  %5551 = vmatmul.bf16.gmra.mxu0 %v1299
  %v5552 = vpop.f32.mrf.mxu0
  %v5553 = vadd.f32 %v5464, %v5552
  %v5554 = vpop.f32.mrf.mxu0
  %v5555 = vadd.f32 %v5466, %v5554
  %5556 = vmatmul.bf16.gmra.mxu0 %v1307
  %v5557 = vpop.f32.mrf.mxu0
  %v5558 = vadd.f32 %v5469, %v5557
  %v5559 = vpop.f32.mrf.mxu0
  %v5560 = vadd.f32 %v5471, %v5559
  %5561 = vmatmul.bf16.gmra.mxu0 %v1315
  %v5562 = vpop.f32.mrf.mxu0
  %v5563 = vadd.f32 %v5474, %v5562
  %v5564 = vpop.f32.mrf.mxu0
  %v5565 = vadd.f32 %v5476, %v5564
  %5566 = vmatmul.bf16.gmra.mxu0 %v1323
  %v5567 = vpop.f32.mrf.mxu0
  %v5568 = vadd.f32 %v5479, %v5567
  %v5569 = vpop.f32.mrf.mxu0
  %v5570 = vadd.f32 %v5481, %v5569
  %5571 = vmatmul.bf16.gmra.mxu0 %v1331
  %v5572 = vpop.f32.mrf.mxu0
  %v5573 = vadd.f32 %v5484, %v5572
  %v5574 = vpop.f32.mrf.mxu0
  %v5575 = vadd.f32 %v5486, %v5574
  %5576 = vmatmul.bf16.gmra.mxu0 %v1339
  %v5577 = vpop.f32.mrf.mxu0
  %v5578 = vadd.f32 %v5489, %v5577
  %v5579 = vpop.f32.mrf.mxu0
  %v5580 = vadd.f32 %v5491, %v5579
  %5581 = vmatmul.bf16.gmra.mxu0 %v1347
  %v5582 = vpop.f32.mrf.mxu0
  %v5583 = vadd.f32 %v5494, %v5582
  %v5584 = vpop.f32.mrf.mxu0
  %v5585 = vadd.f32 %v5496, %v5584
  %5586 = vmatmul.bf16.gmra.mxu0 %v1355
  %v5587 = vpop.f32.mrf.mxu0
  %v5588 = vadd.f32 %v5499, %v5587
  %v5589 = vpop.f32.mrf.mxu0
  %v5590 = vadd.f32 %v5501, %v5589
  %5591 = vmatmul.bf16.gmra.mxu0 %v1363
  %v5592 = vpop.f32.mrf.mxu0
  %v5593 = vadd.f32 %v5504, %v5592
  %v5594 = vpop.f32.mrf.mxu0
  %v5595 = vadd.f32 %v5506, %v5594
  %5596 = vmatmul.bf16.gmra.mxu0 %v1371
  %v5597 = vpop.f32.mrf.mxu0
  %v5598 = vadd.f32 %v5509, %v5597
  %v5599 = vpop.f32.mrf.mxu0
  %v5600 = vadd.f32 %v5511, %v5599
  %5601 = vmatmul.bf16.gmra.mxu0 %v1379
  %v5602 = vpop.f32.mrf.mxu0
  %v5603 = vadd.f32 %v5514, %v5602
  %v5604 = vpop.f32.mrf.mxu0
  %v5605 = vadd.f32 %v5516, %v5604
  %5606 = vmatmul.bf16.gmra.mxu0 %v1387
  %v5607 = vpop.f32.mrf.mxu0
  %v5608 = vadd.f32 %v5519, %v5607
  %v5609 = vpop.f32.mrf.mxu0
  %v5610 = vadd.f32 %v5521, %v5609
  %5611 = vmatmul.bf16.gmra.mxu0 %v1395
  %v5612 = vpop.f32.mrf.mxu0
  %v5613 = vadd.f32 %v5524, %v5612
  %v5614 = vpop.f32.mrf.mxu0
  %v5615 = vadd.f32 %v5526, %v5614
  %5616 = vmatmul.bf16.gmra.mxu0 %v1403
  %v5617 = vpop.f32.mrf.mxu0
  %v5618 = vadd.f32 %v5529, %v5617
  %v5619 = vpop.f32.mrf.mxu0
  %v5620 = vadd.f32 %v5531, %v5619
  %5621 = vdwg.mxu0
  %5622 = vmatpush.bf16.msra.mxu0 %v2663
  %5623 = vmatpush.bf16.msra.mxu0 %v2659
  %5624 = vmatpush.bf16.msra.mxu0 %v2655
  %5625 = vmatpush.bf16.msra.mxu0 %v2651
  %5626 = vmatpush.bf16.msra.mxu0 %v2647
  %5627 = vmatpush.bf16.msra.mxu0 %v2643
  %5628 = vmatpush.bf16.msra.mxu0 %v2639
  %5629 = vmatpush.bf16.msra.mxu0 %v2635
  %5630 = vmatmul.bf16.gmra.mxu0 %v1284
  %v5631 = vpop.f32.mrf.mxu0
  %v5632 = vadd.f32 %v5543, %v5631
  %v5633 = vpop.f32.mrf.mxu0
  %v5634 = vadd.f32 %v5545, %v5633
  %5635 = vmatmul.bf16.gmra.mxu0 %v1292
  %v5636 = vpop.f32.mrf.mxu0
  %v5637 = vadd.f32 %v5548, %v5636
  %v5638 = vpop.f32.mrf.mxu0
  %v5639 = vadd.f32 %v5550, %v5638
  %5640 = vmatmul.bf16.gmra.mxu0 %v1300
  %v5641 = vpop.f32.mrf.mxu0
  %v5642 = vadd.f32 %v5553, %v5641
  %v5643 = vpop.f32.mrf.mxu0
  %v5644 = vadd.f32 %v5555, %v5643
  %5645 = vmatmul.bf16.gmra.mxu0 %v1308
  %v5646 = vpop.f32.mrf.mxu0
  %v5647 = vadd.f32 %v5558, %v5646
  %v5648 = vpop.f32.mrf.mxu0
  %v5649 = vadd.f32 %v5560, %v5648
  %5650 = vmatmul.bf16.gmra.mxu0 %v1316
  %v5651 = vpop.f32.mrf.mxu0
  %v5652 = vadd.f32 %v5563, %v5651
  %v5653 = vpop.f32.mrf.mxu0
  %v5654 = vadd.f32 %v5565, %v5653
  %5655 = vmatmul.bf16.gmra.mxu0 %v1324
  %v5656 = vpop.f32.mrf.mxu0
  %v5657 = vadd.f32 %v5568, %v5656
  %v5658 = vpop.f32.mrf.mxu0
  %v5659 = vadd.f32 %v5570, %v5658
  %5660 = vmatmul.bf16.gmra.mxu0 %v1332
  %v5661 = vpop.f32.mrf.mxu0
  %v5662 = vadd.f32 %v5573, %v5661
  %v5663 = vpop.f32.mrf.mxu0
  %v5664 = vadd.f32 %v5575, %v5663
  %5665 = vmatmul.bf16.gmra.mxu0 %v1340
  %v5666 = vpop.f32.mrf.mxu0
  %v5667 = vadd.f32 %v5578, %v5666
  %v5668 = vpop.f32.mrf.mxu0
  %v5669 = vadd.f32 %v5580, %v5668
  %5670 = vmatmul.bf16.gmra.mxu0 %v1348
  %v5671 = vpop.f32.mrf.mxu0
  %v5672 = vadd.f32 %v5583, %v5671
  %v5673 = vpop.f32.mrf.mxu0
  %v5674 = vadd.f32 %v5585, %v5673
  %5675 = vmatmul.bf16.gmra.mxu0 %v1356
  %v5676 = vpop.f32.mrf.mxu0
  %v5677 = vadd.f32 %v5588, %v5676
  %v5678 = vpop.f32.mrf.mxu0
  %v5679 = vadd.f32 %v5590, %v5678
  %5680 = vmatmul.bf16.gmra.mxu0 %v1364
  %v5681 = vpop.f32.mrf.mxu0
  %v5682 = vadd.f32 %v5593, %v5681
  %v5683 = vpop.f32.mrf.mxu0
  %v5684 = vadd.f32 %v5595, %v5683
  %5685 = vmatmul.bf16.gmra.mxu0 %v1372
  %v5686 = vpop.f32.mrf.mxu0
  %v5687 = vadd.f32 %v5598, %v5686
  %v5688 = vpop.f32.mrf.mxu0
  %v5689 = vadd.f32 %v5600, %v5688
  %5690 = vmatmul.bf16.gmra.mxu0 %v1380
  %v5691 = vpop.f32.mrf.mxu0
  %v5692 = vadd.f32 %v5603, %v5691
  %v5693 = vpop.f32.mrf.mxu0
  %v5694 = vadd.f32 %v5605, %v5693
  %5695 = vmatmul.bf16.gmra.mxu0 %v1388
  %v5696 = vpop.f32.mrf.mxu0
  %v5697 = vadd.f32 %v5608, %v5696
  %v5698 = vpop.f32.mrf.mxu0
  %v5699 = vadd.f32 %v5610, %v5698
  %5700 = vmatmul.bf16.gmra.mxu0 %v1396
  %v5701 = vpop.f32.mrf.mxu0
  %v5702 = vadd.f32 %v5613, %v5701
  %v5703 = vpop.f32.mrf.mxu0
  %v5704 = vadd.f32 %v5615, %v5703
  %5705 = vmatmul.bf16.gmra.mxu0 %v1404
  %v5706 = vpop.f32.mrf.mxu0
  %v5707 = vadd.f32 %v5618, %v5706
  %v5708 = vpop.f32.mrf.mxu0
  %v5709 = vadd.f32 %v5620, %v5708
  %5710 = vdwg.mxu0
  %5711 = vmatpush.bf16.msra.mxu0 %v2695
  %5712 = vmatpush.bf16.msra.mxu0 %v2691
  %5713 = vmatpush.bf16.msra.mxu0 %v2687
  %5714 = vmatpush.bf16.msra.mxu0 %v2683
  %5715 = vmatpush.bf16.msra.mxu0 %v2679
  %5716 = vmatpush.bf16.msra.mxu0 %v2675
  %5717 = vmatpush.bf16.msra.mxu0 %v2671
  %5718 = vmatpush.bf16.msra.mxu0 %v2667
  %5719 = vmatmul.bf16.gmra.mxu0 %v1285
  %v5720 = vpop.f32.mrf.mxu0
  %v5721 = vadd.f32 %v5632, %v5720
  %v5722 = vpop.f32.mrf.mxu0
  %v5723 = vadd.f32 %v5634, %v5722
  %5724 = vmatmul.bf16.gmra.mxu0 %v1293
  %v5725 = vpop.f32.mrf.mxu0
  %v5726 = vadd.f32 %v5637, %v5725
  %v5727 = vpop.f32.mrf.mxu0
  %v5728 = vadd.f32 %v5639, %v5727
  %5729 = vmatmul.bf16.gmra.mxu0 %v1301
  %v5730 = vpop.f32.mrf.mxu0
  %v5731 = vadd.f32 %v5642, %v5730
  %v5732 = vpop.f32.mrf.mxu0
  %v5733 = vadd.f32 %v5644, %v5732
  %5734 = vmatmul.bf16.gmra.mxu0 %v1309
  %v5735 = vpop.f32.mrf.mxu0
  %v5736 = vadd.f32 %v5647, %v5735
  %v5737 = vpop.f32.mrf.mxu0
  %v5738 = vadd.f32 %v5649, %v5737
  %5739 = vmatmul.bf16.gmra.mxu0 %v1317
  %v5740 = vpop.f32.mrf.mxu0
  %v5741 = vadd.f32 %v5652, %v5740
  %v5742 = vpop.f32.mrf.mxu0
  %v5743 = vadd.f32 %v5654, %v5742
  %5744 = vmatmul.bf16.gmra.mxu0 %v1325
  %v5745 = vpop.f32.mrf.mxu0
  %v5746 = vadd.f32 %v5657, %v5745
  %v5747 = vpop.f32.mrf.mxu0
  %v5748 = vadd.f32 %v5659, %v5747
  %5749 = vmatmul.bf16.gmra.mxu0 %v1333
  %v5750 = vpop.f32.mrf.mxu0
  %v5751 = vadd.f32 %v5662, %v5750
  %v5752 = vpop.f32.mrf.mxu0
  %v5753 = vadd.f32 %v5664, %v5752
  %5754 = vmatmul.bf16.gmra.mxu0 %v1341
  %v5755 = vpop.f32.mrf.mxu0
  %v5756 = vadd.f32 %v5667, %v5755
  %v5757 = vpop.f32.mrf.mxu0
  %v5758 = vadd.f32 %v5669, %v5757
  %5759 = vmatmul.bf16.gmra.mxu0 %v1349
  %v5760 = vpop.f32.mrf.mxu0
  %v5761 = vadd.f32 %v5672, %v5760
  %v5762 = vpop.f32.mrf.mxu0
  %v5763 = vadd.f32 %v5674, %v5762
  %5764 = vmatmul.bf16.gmra.mxu0 %v1357
  %v5765 = vpop.f32.mrf.mxu0
  %v5766 = vadd.f32 %v5677, %v5765
  %v5767 = vpop.f32.mrf.mxu0
  %v5768 = vadd.f32 %v5679, %v5767
  %5769 = vmatmul.bf16.gmra.mxu0 %v1365
  %v5770 = vpop.f32.mrf.mxu0
  %v5771 = vadd.f32 %v5682, %v5770
  %v5772 = vpop.f32.mrf.mxu0
  %v5773 = vadd.f32 %v5684, %v5772
  %5774 = vmatmul.bf16.gmra.mxu0 %v1373
  %v5775 = vpop.f32.mrf.mxu0
  %v5776 = vadd.f32 %v5687, %v5775
  %v5777 = vpop.f32.mrf.mxu0
  %v5778 = vadd.f32 %v5689, %v5777
  %5779 = vmatmul.bf16.gmra.mxu0 %v1381
  %v5780 = vpop.f32.mrf.mxu0
  %v5781 = vadd.f32 %v5692, %v5780
  %v5782 = vpop.f32.mrf.mxu0
  %v5783 = vadd.f32 %v5694, %v5782
  %5784 = vmatmul.bf16.gmra.mxu0 %v1389
  %v5785 = vpop.f32.mrf.mxu0
  %v5786 = vadd.f32 %v5697, %v5785
  %v5787 = vpop.f32.mrf.mxu0
  %v5788 = vadd.f32 %v5699, %v5787
  %5789 = vmatmul.bf16.gmra.mxu0 %v1397
  %v5790 = vpop.f32.mrf.mxu0
  %v5791 = vadd.f32 %v5702, %v5790
  %v5792 = vpop.f32.mrf.mxu0
  %v5793 = vadd.f32 %v5704, %v5792
  %5794 = vmatmul.bf16.gmra.mxu0 %v1405
  %v5795 = vpop.f32.mrf.mxu0
  %v5796 = vadd.f32 %v5707, %v5795
  %v5797 = vpop.f32.mrf.mxu0
  %v5798 = vadd.f32 %v5709, %v5797
  %5799 = vdwg.mxu0
  %v5800 = vmax.f32 %v3585, 0.0
  %v5801 = vmax.f32 %v4297, 0.0
  %v5802 = vmax.f32 %v5009, 0.0
  %v5803 = vmax.f32 %v5721, 0.0
  %v5804 = vmax.f32 %v3587, 0.0
  %v5805 = vmax.f32 %v4299, 0.0
  %v5806 = vmax.f32 %v5011, 0.0
  %v5807 = vmax.f32 %v5723, 0.0
  %v5808 = vmax.f32 %v3590, 0.0
  %v5809 = vmax.f32 %v4302, 0.0
  %v5810 = vmax.f32 %v5014, 0.0
  %v5811 = vmax.f32 %v5726, 0.0
  %v5812 = vmax.f32 %v3592, 0.0
  %v5813 = vmax.f32 %v4304, 0.0
  %v5814 = vmax.f32 %v5016, 0.0
  %v5815 = vmax.f32 %v5728, 0.0
  %v5816 = vmax.f32 %v3595, 0.0
  %v5817 = vmax.f32 %v4307, 0.0
  %v5818 = vmax.f32 %v5019, 0.0
  %v5819 = vmax.f32 %v5731, 0.0
  %v5820 = vmax.f32 %v3597, 0.0
  %v5821 = vmax.f32 %v4309, 0.0
  %v5822 = vmax.f32 %v5021, 0.0
  %v5823 = vmax.f32 %v5733, 0.0
  %v5824 = vmax.f32 %v3600, 0.0
  %v5825 = vmax.f32 %v4312, 0.0
  %v5826 = vmax.f32 %v5024, 0.0
  %v5827 = vmax.f32 %v5736, 0.0
  %v5828 = vmax.f32 %v3602, 0.0
  %v5829 = vmax.f32 %v4314, 0.0
  %v5830 = vmax.f32 %v5026, 0.0
  %v5831 = vmax.f32 %v5738, 0.0
  %v5832 = vmax.f32 %v3605, 0.0
  %v5833 = vmax.f32 %v4317, 0.0
  %v5834 = vmax.f32 %v5029, 0.0
  %v5835 = vmax.f32 %v5741, 0.0
  %v5836 = vmax.f32 %v3607, 0.0
  %v5837 = vmax.f32 %v4319, 0.0
  %v5838 = vmax.f32 %v5031, 0.0
  %v5839 = vmax.f32 %v5743, 0.0
  %v5840 = vmax.f32 %v3610, 0.0
  %v5841 = vmax.f32 %v4322, 0.0
  %v5842 = vmax.f32 %v5034, 0.0
  %v5843 = vmax.f32 %v5746, 0.0
  %v5844 = vmax.f32 %v3612, 0.0
  %v5845 = vmax.f32 %v4324, 0.0
  %v5846 = vmax.f32 %v5036, 0.0
  %v5847 = vmax.f32 %v5748, 0.0
  %v5848 = vmax.f32 %v3615, 0.0
  %v5849 = vmax.f32 %v4327, 0.0
  %v5850 = vmax.f32 %v5039, 0.0
  %v5851 = vmax.f32 %v5751, 0.0
  %v5852 = vmax.f32 %v3617, 0.0
  %v5853 = vmax.f32 %v4329, 0.0
  %v5854 = vmax.f32 %v5041, 0.0
  %v5855 = vmax.f32 %v5753, 0.0
  %v5856 = vmax.f32 %v3620, 0.0
  %v5857 = vmax.f32 %v4332, 0.0
  %v5858 = vmax.f32 %v5044, 0.0
  %v5859 = vmax.f32 %v5756, 0.0
  %v5860 = vmax.f32 %v3622, 0.0
  %v5861 = vmax.f32 %v4334, 0.0
  %v5862 = vmax.f32 %v5046, 0.0
  %v5863 = vmax.f32 %v5758, 0.0
  %v5864 = vmax.f32 %v3625, 0.0
  %v5865 = vmax.f32 %v4337, 0.0
  %v5866 = vmax.f32 %v5049, 0.0
  %v5867 = vmax.f32 %v5761, 0.0
  %v5868 = vmax.f32 %v3627, 0.0
  %v5869 = vmax.f32 %v4339, 0.0
  %v5870 = vmax.f32 %v5051, 0.0
  %v5871 = vmax.f32 %v5763, 0.0
  %v5872 = vmax.f32 %v3630, 0.0
  %v5873 = vmax.f32 %v4342, 0.0
  %v5874 = vmax.f32 %v5054, 0.0
  %v5875 = vmax.f32 %v5766, 0.0
  %v5876 = vmax.f32 %v3632, 0.0
  %v5877 = vmax.f32 %v4344, 0.0
  %v5878 = vmax.f32 %v5056, 0.0
  %v5879 = vmax.f32 %v5768, 0.0
  %v5880 = vmax.f32 %v3635, 0.0
  %v5881 = vmax.f32 %v4347, 0.0
  %v5882 = vmax.f32 %v5059, 0.0
  %v5883 = vmax.f32 %v5771, 0.0
  %v5884 = vmax.f32 %v3637, 0.0
  %v5885 = vmax.f32 %v4349, 0.0
  %v5886 = vmax.f32 %v5061, 0.0
  %v5887 = vmax.f32 %v5773, 0.0
  %v5888 = vmax.f32 %v3640, 0.0
  %v5889 = vmax.f32 %v4352, 0.0
  %v5890 = vmax.f32 %v5064, 0.0
  %v5891 = vmax.f32 %v5776, 0.0
  %v5892 = vmax.f32 %v3642, 0.0
  %v5893 = vmax.f32 %v4354, 0.0
  %v5894 = vmax.f32 %v5066, 0.0
  %v5895 = vmax.f32 %v5778, 0.0
  %v5896 = vmax.f32 %v3645, 0.0
  %v5897 = vmax.f32 %v4357, 0.0
  %v5898 = vmax.f32 %v5069, 0.0
  %v5899 = vmax.f32 %v5781, 0.0
  %v5900 = vmax.f32 %v3647, 0.0
  %v5901 = vmax.f32 %v4359, 0.0
  %v5902 = vmax.f32 %v5071, 0.0
  %v5903 = vmax.f32 %v5783, 0.0
  %v5904 = vmax.f32 %v3650, 0.0
  %v5905 = vmax.f32 %v4362, 0.0
  %v5906 = vmax.f32 %v5074, 0.0
  %v5907 = vmax.f32 %v5786, 0.0
  %v5908 = vmax.f32 %v3652, 0.0
  %v5909 = vmax.f32 %v4364, 0.0
  %v5910 = vmax.f32 %v5076, 0.0
  %v5911 = vmax.f32 %v5788, 0.0
  %v5912 = vmax.f32 %v3655, 0.0
  %v5913 = vmax.f32 %v4367, 0.0
  %v5914 = vmax.f32 %v5079, 0.0
  %v5915 = vmax.f32 %v5791, 0.0
  %v5916 = vmax.f32 %v3657, 0.0
  %v5917 = vmax.f32 %v4369, 0.0
  %v5918 = vmax.f32 %v5081, 0.0
  %v5919 = vmax.f32 %v5793, 0.0
  %v5920 = vmax.f32 %v3660, 0.0
  %v5921 = vmax.f32 %v4372, 0.0
  %v5922 = vmax.f32 %v5084, 0.0
  %v5923 = vmax.f32 %v5796, 0.0
  %v5924 = vmax.f32 %v3662, 0.0
  %v5925 = vmax.f32 %v4374, 0.0
  %v5926 = vmax.f32 %v5086, 0.0
  %v5927 = vmax.f32 %v5798, 0.0
  %v5928 = vpack.c.bf16 %v5804, %v5800
  %v5929 = vpack.c.bf16 %v5805, %v5801
  %v5930 = vpack.c.bf16 %v5806, %v5802
  %v5931 = vpack.c.bf16 %v5807, %v5803
  %v5932 = vpack.c.bf16 %v5812, %v5808
  %v5933 = vpack.c.bf16 %v5813, %v5809
  %v5934 = vpack.c.bf16 %v5814, %v5810
  %v5935 = vpack.c.bf16 %v5815, %v5811
  %v5936 = vpack.c.bf16 %v5820, %v5816
  %v5937 = vpack.c.bf16 %v5821, %v5817
  %v5938 = vpack.c.bf16 %v5822, %v5818
  %v5939 = vpack.c.bf16 %v5823, %v5819
  %v5940 = vpack.c.bf16 %v5828, %v5824
  %v5941 = vpack.c.bf16 %v5829, %v5825
  %v5942 = vpack.c.bf16 %v5830, %v5826
  %v5943 = vpack.c.bf16 %v5831, %v5827
  %v5944 = vpack.c.bf16 %v5836, %v5832
  %v5945 = vpack.c.bf16 %v5837, %v5833
  %v5946 = vpack.c.bf16 %v5838, %v5834
  %v5947 = vpack.c.bf16 %v5839, %v5835
  %v5948 = vpack.c.bf16 %v5844, %v5840
  %v5949 = vpack.c.bf16 %v5845, %v5841
  %v5950 = vpack.c.bf16 %v5846, %v5842
  %v5951 = vpack.c.bf16 %v5847, %v5843
  %v5952 = vpack.c.bf16 %v5852, %v5848
  %v5953 = vpack.c.bf16 %v5853, %v5849
  %v5954 = vpack.c.bf16 %v5854, %v5850
  %v5955 = vpack.c.bf16 %v5855, %v5851
  %v5956 = vpack.c.bf16 %v5860, %v5856
  %v5957 = vpack.c.bf16 %v5861, %v5857
  %v5958 = vpack.c.bf16 %v5862, %v5858
  %v5959 = vpack.c.bf16 %v5863, %v5859
  %v5960 = vpack.c.bf16 %v5868, %v5864
  %v5961 = vpack.c.bf16 %v5869, %v5865
  %v5962 = vpack.c.bf16 %v5870, %v5866
  %v5963 = vpack.c.bf16 %v5871, %v5867
  %v5964 = vpack.c.bf16 %v5876, %v5872
  %v5965 = vpack.c.bf16 %v5877, %v5873
  %v5966 = vpack.c.bf16 %v5878, %v5874
  %v5967 = vpack.c.bf16 %v5879, %v5875
  %v5968 = vpack.c.bf16 %v5884, %v5880
  %v5969 = vpack.c.bf16 %v5885, %v5881
  %v5970 = vpack.c.bf16 %v5886, %v5882
  %v5971 = vpack.c.bf16 %v5887, %v5883
  %v5972 = vpack.c.bf16 %v5892, %v5888
  %v5973 = vpack.c.bf16 %v5893, %v5889
  %v5974 = vpack.c.bf16 %v5894, %v5890
  %v5975 = vpack.c.bf16 %v5895, %v5891
  %v5976 = vpack.c.bf16 %v5900, %v5896
  %v5977 = vpack.c.bf16 %v5901, %v5897
  %v5978 = vpack.c.bf16 %v5902, %v5898
  %v5979 = vpack.c.bf16 %v5903, %v5899
  %v5980 = vpack.c.bf16 %v5908, %v5904
  %v5981 = vpack.c.bf16 %v5909, %v5905
  %v5982 = vpack.c.bf16 %v5910, %v5906
  %v5983 = vpack.c.bf16 %v5911, %v5907
  %v5984 = vpack.c.bf16 %v5916, %v5912
  %v5985 = vpack.c.bf16 %v5917, %v5913
  %v5986 = vpack.c.bf16 %v5918, %v5914
  %v5987 = vpack.c.bf16 %v5919, %v5915
  %v5988 = vpack.c.bf16 %v5924, %v5920
  %v5989 = vpack.c.bf16 %v5925, %v5921
  %v5990 = vpack.c.bf16 %v5926, %v5922
  %v5991 = vpack.c.bf16 %v5927, %v5923
  %v5992 = vld [vmem:[%s5] sm:$0xff]
  %v5993 = vld [vmem:[%s5 + $0x8] sm:$0xff]
  %v5994 = vld [vmem:[%s5 + $0x10] sm:$0xff]
  %v5995 = vld [vmem:[%s5 + $0x18] sm:$0xff]
  %v5996 = vld [vmem:[%s5 + $0x20] sm:$0xff]
  %v5997 = vld [vmem:[%s5 + $0x28] sm:$0xff]
  %v5998 = vld [vmem:[%s5 + $0x30] sm:$0xff]
  %v5999 = vld [vmem:[%s5 + $0x38] sm:$0xff]
  %v6000 = vld [vmem:[%s5 + $0x40] sm:$0xff]
  %v6001 = vld [vmem:[%s5 + $0x48] sm:$0xff]
  %v6002 = vld [vmem:[%s5 + $0x50] sm:$0xff]
  %v6003 = vld [vmem:[%s5 + $0x58] sm:$0xff]
  %v6004 = vld [vmem:[%s5 + $0x60] sm:$0xff]
  %v6005 = vld [vmem:[%s5 + $0x68] sm:$0xff]
  %v6006 = vld [vmem:[%s5 + $0x70] sm:$0xff]
  %v6007 = vld [vmem:[%s5 + $0x78] sm:$0xff]
  %v6008 = vld [vmem:[%s5 + $0x80] sm:$0xff]
  %v6009 = vld [vmem:[%s5 + $0x88] sm:$0xff]
  %v6010 = vld [vmem:[%s5 + $0x90] sm:$0xff]
  %v6011 = vld [vmem:[%s5 + $0x98] sm:$0xff]
  %v6012 = vld [vmem:[%s5 + $0xa0] sm:$0xff]
  %v6013 = vld [vmem:[%s5 + $0xa8] sm:$0xff]
  %v6014 = vld [vmem:[%s5 + $0xb0] sm:$0xff]
  %v6015 = vld [vmem:[%s5 + $0xb8] sm:$0xff]
  %v6016 = vld [vmem:[%s5 + $0xc0] sm:$0xff]
  %v6017 = vld [vmem:[%s5 + $0xc8] sm:$0xff]
  %v6018 = vld [vmem:[%s5 + $0xd0] sm:$0xff]
  %v6019 = vld [vmem:[%s5 + $0xd8] sm:$0xff]
  %v6020 = vld [vmem:[%s5 + $0xe0] sm:$0xff]
  %v6021 = vld [vmem:[%s5 + $0xe8] sm:$0xff]
  %v6022 = vld [vmem:[%s5 + $0xf0] sm:$0xff]
  %v6023 = vld [vmem:[%s5 + $0xf8] sm:$0xff]
  %v6024 = vld [vmem:[%s5 + $0x100] sm:$0xff]
  %v6025 = vld [vmem:[%s5 + $0x108] sm:$0xff]
  %v6026 = vld [vmem:[%s5 + $0x110] sm:$0xff]
  %v6027 = vld [vmem:[%s5 + $0x118] sm:$0xff]
  %v6028 = vld [vmem:[%s5 + $0x120] sm:$0xff]
  %v6029 = vld [vmem:[%s5 + $0x128] sm:$0xff]
  %v6030 = vld [vmem:[%s5 + $0x130] sm:$0xff]
  %v6031 = vld [vmem:[%s5 + $0x138] sm:$0xff]
  %v6032 = vld [vmem:[%s5 + $0x140] sm:$0xff]
  %v6033 = vld [vmem:[%s5 + $0x148] sm:$0xff]
  %v6034 = vld [vmem:[%s5 + $0x150] sm:$0xff]
  %v6035 = vld [vmem:[%s5 + $0x158] sm:$0xff]
  %v6036 = vld [vmem:[%s5 + $0x160] sm:$0xff]
  %v6037 = vld [vmem:[%s5 + $0x168] sm:$0xff]
  %v6038 = vld [vmem:[%s5 + $0x170] sm:$0xff]
  %v6039 = vld [vmem:[%s5 + $0x178] sm:$0xff]
  %v6040 = vld [vmem:[%s5 + $0x180] sm:$0xff]
  %v6041 = vld [vmem:[%s5 + $0x188] sm:$0xff]
  %v6042 = vld [vmem:[%s5 + $0x190] sm:$0xff]
  %v6043 = vld [vmem:[%s5 + $0x198] sm:$0xff]
  %v6044 = vld [vmem:[%s5 + $0x1a0] sm:$0xff]
  %v6045 = vld [vmem:[%s5 + $0x1a8] sm:$0xff]
  %v6046 = vld [vmem:[%s5 + $0x1b0] sm:$0xff]
  %v6047 = vld [vmem:[%s5 + $0x1b8] sm:$0xff]
  %v6048 = vld [vmem:[%s5 + $0x1c0] sm:$0xff]
  %v6049 = vld [vmem:[%s5 + $0x1c8] sm:$0xff]
  %v6050 = vld [vmem:[%s5 + $0x1d0] sm:$0xff]
  %v6051 = vld [vmem:[%s5 + $0x1d8] sm:$0xff]
  %v6052 = vld [vmem:[%s5 + $0x1e0] sm:$0xff]
  %v6053 = vld [vmem:[%s5 + $0x1e8] sm:$0xff]
  %v6054 = vld [vmem:[%s5 + $0x1f0] sm:$0xff]
  %v6055 = vld [vmem:[%s5 + $0x1f8] sm:$0xff]
  %v6056 = vld [vmem:[%s6] sm:$0x3]
  %v6058 = vperm.slane %v6056, 0
  %v6059 = vperm.slane %v6056, 1
  %v6126 = vunpack.c.l.b16 %v5992
  %v6127 = vunpack.c.h.b16 %v5992
  %v6128 = vunpack.c.l.b16 %v5993
  %v6129 = vunpack.c.h.b16 %v5993
  %v6130 = vunpack.c.l.b16 %v5994
  %v6131 = vunpack.c.h.b16 %v5994
  %v6132 = vunpack.c.l.b16 %v5995
  %v6133 = vunpack.c.h.b16 %v5995
  %v6134 = vunpack.c.l.b16 %v5996
  %v6135 = vunpack.c.h.b16 %v5996
  %v6136 = vunpack.c.l.b16 %v5997
  %v6137 = vunpack.c.h.b16 %v5997
  %v6138 = vunpack.c.l.b16 %v5998
  %v6139 = vunpack.c.h.b16 %v5998
  %v6140 = vunpack.c.l.b16 %v5999
  %v6141 = vunpack.c.h.b16 %v5999
  %v6142 = vunpack.c.l.b16 %v6000
  %v6143 = vunpack.c.h.b16 %v6000
  %v6144 = vunpack.c.l.b16 %v6001
  %v6145 = vunpack.c.h.b16 %v6001
  %v6146 = vunpack.c.l.b16 %v6002
  %v6147 = vunpack.c.h.b16 %v6002
  %v6148 = vunpack.c.l.b16 %v6003
  %v6149 = vunpack.c.h.b16 %v6003
  %v6150 = vunpack.c.l.b16 %v6004
  %v6151 = vunpack.c.h.b16 %v6004
  %v6152 = vunpack.c.l.b16 %v6005
  %v6153 = vunpack.c.h.b16 %v6005
  %v6154 = vunpack.c.l.b16 %v6006
  %v6155 = vunpack.c.h.b16 %v6006
  %v6156 = vunpack.c.l.b16 %v6007
  %v6157 = vunpack.c.h.b16 %v6007
  %v6158 = vunpack.c.l.b16 %v6008
  %v6159 = vunpack.c.h.b16 %v6008
  %v6160 = vunpack.c.l.b16 %v6009
  %v6161 = vunpack.c.h.b16 %v6009
  %v6162 = vunpack.c.l.b16 %v6010
  %v6163 = vunpack.c.h.b16 %v6010
  %v6164 = vunpack.c.l.b16 %v6011
  %v6165 = vunpack.c.h.b16 %v6011
  %v6166 = vunpack.c.l.b16 %v6012
  %v6167 = vunpack.c.h.b16 %v6012
  %v6168 = vunpack.c.l.b16 %v6013
  %v6169 = vunpack.c.h.b16 %v6013
  %v6170 = vunpack.c.l.b16 %v6014
  %v6171 = vunpack.c.h.b16 %v6014
  %v6172 = vunpack.c.l.b16 %v6015
  %v6173 = vunpack.c.h.b16 %v6015
  %v6174 = vunpack.c.l.b16 %v6016
  %v6175 = vunpack.c.h.b16 %v6016
  %v6176 = vunpack.c.l.b16 %v6017
  %v6177 = vunpack.c.h.b16 %v6017
  %v6178 = vunpack.c.l.b16 %v6018
  %v6179 = vunpack.c.h.b16 %v6018
  %v6180 = vunpack.c.l.b16 %v6019
  %v6181 = vunpack.c.h.b16 %v6019
  %v6182 = vunpack.c.l.b16 %v6020
  %v6183 = vunpack.c.h.b16 %v6020
  %v6184 = vunpack.c.l.b16 %v6021
  %v6185 = vunpack.c.h.b16 %v6021
  %v6186 = vunpack.c.l.b16 %v6022
  %v6187 = vunpack.c.h.b16 %v6022
  %v6188 = vunpack.c.l.b16 %v6023
  %v6189 = vunpack.c.h.b16 %v6023
  %v6190 = vunpack.c.l.b16 %v6024
  %v6191 = vunpack.c.h.b16 %v6024
  %v6192 = vunpack.c.l.b16 %v6025
  %v6193 = vunpack.c.h.b16 %v6025
  %v6194 = vunpack.c.l.b16 %v6026
  %v6195 = vunpack.c.h.b16 %v6026
  %v6196 = vunpack.c.l.b16 %v6027
  %v6197 = vunpack.c.h.b16 %v6027
  %v6198 = vunpack.c.l.b16 %v6028
  %v6199 = vunpack.c.h.b16 %v6028
  %v6200 = vunpack.c.l.b16 %v6029
  %v6201 = vunpack.c.h.b16 %v6029
  %v6202 = vunpack.c.l.b16 %v6030
  %v6203 = vunpack.c.h.b16 %v6030
  %v6204 = vunpack.c.l.b16 %v6031
  %v6205 = vunpack.c.h.b16 %v6031
  %v6206 = vunpack.c.l.b16 %v6032
  %v6207 = vunpack.c.h.b16 %v6032
  %v6208 = vunpack.c.l.b16 %v6033
  %v6209 = vunpack.c.h.b16 %v6033
  %v6210 = vunpack.c.l.b16 %v6034
  %v6211 = vunpack.c.h.b16 %v6034
  %v6212 = vunpack.c.l.b16 %v6035
  %v6213 = vunpack.c.h.b16 %v6035
  %v6214 = vunpack.c.l.b16 %v6036
  %v6215 = vunpack.c.h.b16 %v6036
  %v6216 = vunpack.c.l.b16 %v6037
  %v6217 = vunpack.c.h.b16 %v6037
  %v6218 = vunpack.c.l.b16 %v6038
  %v6219 = vunpack.c.h.b16 %v6038
  %v6220 = vunpack.c.l.b16 %v6039
  %v6221 = vunpack.c.h.b16 %v6039
  %v6222 = vunpack.c.l.b16 %v6040
  %v6223 = vunpack.c.h.b16 %v6040
  %v6224 = vunpack.c.l.b16 %v6041
  %v6225 = vunpack.c.h.b16 %v6041
  %v6226 = vunpack.c.l.b16 %v6042
  %v6227 = vunpack.c.h.b16 %v6042
  %v6228 = vunpack.c.l.b16 %v6043
  %v6229 = vunpack.c.h.b16 %v6043
  %v6230 = vunpack.c.l.b16 %v6044
  %v6231 = vunpack.c.h.b16 %v6044
  %v6232 = vunpack.c.l.b16 %v6045
  %v6233 = vunpack.c.h.b16 %v6045
  %v6234 = vunpack.c.l.b16 %v6046
  %v6235 = vunpack.c.h.b16 %v6046
  %v6236 = vunpack.c.l.b16 %v6047
  %v6237 = vunpack.c.h.b16 %v6047
  %v6238 = vunpack.c.l.b16 %v6048
  %v6239 = vunpack.c.h.b16 %v6048
  %v6240 = vunpack.c.l.b16 %v6049
  %v6241 = vunpack.c.h.b16 %v6049
  %v6242 = vunpack.c.l.b16 %v6050
  %v6243 = vunpack.c.h.b16 %v6050
  %v6244 = vunpack.c.l.b16 %v6051
  %v6245 = vunpack.c.h.b16 %v6051
  %v6246 = vunpack.c.l.b16 %v6052
  %v6247 = vunpack.c.h.b16 %v6052
  %v6248 = vunpack.c.l.b16 %v6053
  %v6249 = vunpack.c.h.b16 %v6053
  %v6250 = vunpack.c.l.b16 %v6054
  %v6251 = vunpack.c.h.b16 %v6054
  %v6252 = vunpack.c.l.b16 %v6055
  %v6253 = vunpack.c.h.b16 %v6055
  %v6254 = vpack.c.b16 %v6128, %v6126
  %v6255 = vpack.c.b16 %v6129, %v6127
  %v6256 = vpack.c.b16 %v6132, %v6130
  %v6257 = vpack.c.b16 %v6133, %v6131
  %v6258 = vpack.c.b16 %v6136, %v6134
  %v6259 = vpack.c.b16 %v6137, %v6135
  %v6260 = vpack.c.b16 %v6140, %v6138
  %v6261 = vpack.c.b16 %v6141, %v6139
  %v6262 = vpack.c.b16 %v6144, %v6142
  %v6263 = vpack.c.b16 %v6145, %v6143
  %v6264 = vpack.c.b16 %v6148, %v6146
  %v6265 = vpack.c.b16 %v6149, %v6147
  %v6266 = vpack.c.b16 %v6152, %v6150
  %v6267 = vpack.c.b16 %v6153, %v6151
  %v6268 = vpack.c.b16 %v6156, %v6154
  %v6269 = vpack.c.b16 %v6157, %v6155
  %v6270 = vpack.c.b16 %v6160, %v6158
  %v6271 = vpack.c.b16 %v6161, %v6159
  %v6272 = vpack.c.b16 %v6164, %v6162
  %v6273 = vpack.c.b16 %v6165, %v6163
  %v6274 = vpack.c.b16 %v6168, %v6166
  %v6275 = vpack.c.b16 %v6169, %v6167
  %v6276 = vpack.c.b16 %v6172, %v6170
  %v6277 = vpack.c.b16 %v6173, %v6171
  %v6278 = vpack.c.b16 %v6176, %v6174
  %v6279 = vpack.c.b16 %v6177, %v6175
  %v6280 = vpack.c.b16 %v6180, %v6178
  %v6281 = vpack.c.b16 %v6181, %v6179
  %v6282 = vpack.c.b16 %v6184, %v6182
  %v6283 = vpack.c.b16 %v6185, %v6183
  %v6284 = vpack.c.b16 %v6188, %v6186
  %v6285 = vpack.c.b16 %v6189, %v6187
  %v6286 = vpack.c.b16 %v6192, %v6190
  %v6287 = vpack.c.b16 %v6193, %v6191
  %v6288 = vpack.c.b16 %v6196, %v6194
  %v6289 = vpack.c.b16 %v6197, %v6195
  %v6290 = vpack.c.b16 %v6200, %v6198
  %v6291 = vpack.c.b16 %v6201, %v6199
  %v6292 = vpack.c.b16 %v6204, %v6202
  %v6293 = vpack.c.b16 %v6205, %v6203
  %v6294 = vpack.c.b16 %v6208, %v6206
  %v6295 = vpack.c.b16 %v6209, %v6207
  %v6296 = vpack.c.b16 %v6212, %v6210
  %v6297 = vpack.c.b16 %v6213, %v6211
  %v6298 = vpack.c.b16 %v6216, %v6214
  %v6299 = vpack.c.b16 %v6217, %v6215
  %v6300 = vpack.c.b16 %v6220, %v6218
  %v6301 = vpack.c.b16 %v6221, %v6219
  %v6302 = vpack.c.b16 %v6224, %v6222
  %v6303 = vpack.c.b16 %v6225, %v6223
  %v6304 = vpack.c.b16 %v6228, %v6226
  %v6305 = vpack.c.b16 %v6229, %v6227
  %v6306 = vpack.c.b16 %v6232, %v6230
  %v6307 = vpack.c.b16 %v6233, %v6231
  %v6308 = vpack.c.b16 %v6236, %v6234
  %v6309 = vpack.c.b16 %v6237, %v6235
  %v6310 = vpack.c.b16 %v6240, %v6238
  %v6311 = vpack.c.b16 %v6241, %v6239
  %v6312 = vpack.c.b16 %v6244, %v6242
  %v6313 = vpack.c.b16 %v6245, %v6243
  %v6314 = vpack.c.b16 %v6248, %v6246
  %v6315 = vpack.c.b16 %v6249, %v6247
  %v6316 = vpack.c.b16 %v6252, %v6250
  %v6317 = vpack.c.b16 %v6253, %v6251
  %6382 = vmatpush.bf16.msra.mxu0 %v6268
  %6383 = vmatpush.bf16.msra.mxu0 %v6266
  %6384 = vmatpush.bf16.msra.mxu0 %v6264
  %6385 = vmatpush.bf16.msra.mxu0 %v6262
  %6386 = vmatpush.bf16.msra.mxu0 %v6260
  %6387 = vmatpush.bf16.msra.mxu0 %v6258
  %6388 = vmatpush.bf16.msra.mxu0 %v6256
  %6389 = vmatpush.bf16.msra.mxu0 %v6254
  %6390 = vmatmul.bf16.gmra.mxu0 %v5928
  %v6391 = vpop.f32.mrf.mxu0
  %v6392 = vadd.f32 %v6058, %v6391
  %v6393 = vpop.f32.mrf.mxu0
  %v6394 = vadd.f32 %v6058, %v6393
  %6395 = vmatmul.bf16.gmra.mxu0 %v5932
  %v6396 = vpop.f32.mrf.mxu0
  %v6397 = vadd.f32 %v6058, %v6396
  %v6398 = vpop.f32.mrf.mxu0
  %v6399 = vadd.f32 %v6058, %v6398
  %6400 = vmatmul.bf16.gmra.mxu0 %v5936
  %v6401 = vpop.f32.mrf.mxu0
  %v6402 = vadd.f32 %v6058, %v6401
  %v6403 = vpop.f32.mrf.mxu0
  %v6404 = vadd.f32 %v6058, %v6403
  %6405 = vmatmul.bf16.gmra.mxu0 %v5940
  %v6406 = vpop.f32.mrf.mxu0
  %v6407 = vadd.f32 %v6058, %v6406
  %v6408 = vpop.f32.mrf.mxu0
  %v6409 = vadd.f32 %v6058, %v6408
  %6410 = vmatmul.bf16.gmra.mxu0 %v5944
  %v6411 = vpop.f32.mrf.mxu0
  %v6412 = vadd.f32 %v6058, %v6411
  %v6413 = vpop.f32.mrf.mxu0
  %v6414 = vadd.f32 %v6058, %v6413
  %6415 = vmatmul.bf16.gmra.mxu0 %v5948
  %v6416 = vpop.f32.mrf.mxu0
  %v6417 = vadd.f32 %v6058, %v6416
  %v6418 = vpop.f32.mrf.mxu0
  %v6419 = vadd.f32 %v6058, %v6418
  %6420 = vmatmul.bf16.gmra.mxu0 %v5952
  %v6421 = vpop.f32.mrf.mxu0
  %v6422 = vadd.f32 %v6058, %v6421
  %v6423 = vpop.f32.mrf.mxu0
  %v6424 = vadd.f32 %v6058, %v6423
  %6425 = vmatmul.bf16.gmra.mxu0 %v5956
  %v6426 = vpop.f32.mrf.mxu0
  %v6427 = vadd.f32 %v6058, %v6426
  %v6428 = vpop.f32.mrf.mxu0
  %v6429 = vadd.f32 %v6058, %v6428
  %6430 = vmatmul.bf16.gmra.mxu0 %v5960
  %v6431 = vpop.f32.mrf.mxu0
  %v6432 = vadd.f32 %v6058, %v6431
  %v6433 = vpop.f32.mrf.mxu0
  %v6434 = vadd.f32 %v6058, %v6433
  %6435 = vmatmul.bf16.gmra.mxu0 %v5964
  %v6436 = vpop.f32.mrf.mxu0
  %v6437 = vadd.f32 %v6058, %v6436
  %v6438 = vpop.f32.mrf.mxu0
  %v6439 = vadd.f32 %v6058, %v6438
  %6440 = vmatmul.bf16.gmra.mxu0 %v5968
  %v6441 = vpop.f32.mrf.mxu0
  %v6442 = vadd.f32 %v6058, %v6441
  %v6443 = vpop.f32.mrf.mxu0
  %v6444 = vadd.f32 %v6058, %v6443
  %6445 = vmatmul.bf16.gmra.mxu0 %v5972
  %v6446 = vpop.f32.mrf.mxu0
  %v6447 = vadd.f32 %v6058, %v6446
  %v6448 = vpop.f32.mrf.mxu0
  %v6449 = vadd.f32 %v6058, %v6448
  %6450 = vmatmul.bf16.gmra.mxu0 %v5976
  %v6451 = vpop.f32.mrf.mxu0
  %v6452 = vadd.f32 %v6058, %v6451
  %v6453 = vpop.f32.mrf.mxu0
  %v6454 = vadd.f32 %v6058, %v6453
  %6455 = vmatmul.bf16.gmra.mxu0 %v5980
  %v6456 = vpop.f32.mrf.mxu0
  %v6457 = vadd.f32 %v6058, %v6456
  %v6458 = vpop.f32.mrf.mxu0
  %v6459 = vadd.f32 %v6058, %v6458
  %6460 = vmatmul.bf16.gmra.mxu0 %v5984
  %v6461 = vpop.f32.mrf.mxu0
  %v6462 = vadd.f32 %v6058, %v6461
  %v6463 = vpop.f32.mrf.mxu0
  %v6464 = vadd.f32 %v6058, %v6463
  %6465 = vmatmul.bf16.gmra.mxu0 %v5988
  %v6466 = vpop.f32.mrf.mxu0
  %v6467 = vadd.f32 %v6058, %v6466
  %v6468 = vpop.f32.mrf.mxu0
  %v6469 = vadd.f32 %v6058, %v6468
  %6470 = vdwg.mxu0
  %6471 = vmatpush.bf16.msra.mxu0 %v6284
  %6472 = vmatpush.bf16.msra.mxu0 %v6282
  %6473 = vmatpush.bf16.msra.mxu0 %v6280
  %6474 = vmatpush.bf16.msra.mxu0 %v6278
  %6475 = vmatpush.bf16.msra.mxu0 %v6276
  %6476 = vmatpush.bf16.msra.mxu0 %v6274
  %6477 = vmatpush.bf16.msra.mxu0 %v6272
  %6478 = vmatpush.bf16.msra.mxu0 %v6270
  %6479 = vmatmul.bf16.gmra.mxu0 %v5929
  %v6480 = vpop.f32.mrf.mxu0
  %v6481 = vadd.f32 %v6392, %v6480
  %v6482 = vpop.f32.mrf.mxu0
  %v6483 = vadd.f32 %v6394, %v6482
  %6484 = vmatmul.bf16.gmra.mxu0 %v5933
  %v6485 = vpop.f32.mrf.mxu0
  %v6486 = vadd.f32 %v6397, %v6485
  %v6487 = vpop.f32.mrf.mxu0
  %v6488 = vadd.f32 %v6399, %v6487
  %6489 = vmatmul.bf16.gmra.mxu0 %v5937
  %v6490 = vpop.f32.mrf.mxu0
  %v6491 = vadd.f32 %v6402, %v6490
  %v6492 = vpop.f32.mrf.mxu0
  %v6493 = vadd.f32 %v6404, %v6492
  %6494 = vmatmul.bf16.gmra.mxu0 %v5941
  %v6495 = vpop.f32.mrf.mxu0
  %v6496 = vadd.f32 %v6407, %v6495
  %v6497 = vpop.f32.mrf.mxu0
  %v6498 = vadd.f32 %v6409, %v6497
  %6499 = vmatmul.bf16.gmra.mxu0 %v5945
  %v6500 = vpop.f32.mrf.mxu0
  %v6501 = vadd.f32 %v6412, %v6500
  %v6502 = vpop.f32.mrf.mxu0
  %v6503 = vadd.f32 %v6414, %v6502
  %6504 = vmatmul.bf16.gmra.mxu0 %v5949
  %v6505 = vpop.f32.mrf.mxu0
  %v6506 = vadd.f32 %v6417, %v6505
  %v6507 = vpop.f32.mrf.mxu0
  %v6508 = vadd.f32 %v6419, %v6507
  %6509 = vmatmul.bf16.gmra.mxu0 %v5953
  %v6510 = vpop.f32.mrf.mxu0
  %v6511 = vadd.f32 %v6422, %v6510
  %v6512 = vpop.f32.mrf.mxu0
  %v6513 = vadd.f32 %v6424, %v6512
  %6514 = vmatmul.bf16.gmra.mxu0 %v5957
  %v6515 = vpop.f32.mrf.mxu0
  %v6516 = vadd.f32 %v6427, %v6515
  %v6517 = vpop.f32.mrf.mxu0
  %v6518 = vadd.f32 %v6429, %v6517
  %6519 = vmatmul.bf16.gmra.mxu0 %v5961
  %v6520 = vpop.f32.mrf.mxu0
  %v6521 = vadd.f32 %v6432, %v6520
  %v6522 = vpop.f32.mrf.mxu0
  %v6523 = vadd.f32 %v6434, %v6522
  %6524 = vmatmul.bf16.gmra.mxu0 %v5965
  %v6525 = vpop.f32.mrf.mxu0
  %v6526 = vadd.f32 %v6437, %v6525
  %v6527 = vpop.f32.mrf.mxu0
  %v6528 = vadd.f32 %v6439, %v6527
  %6529 = vmatmul.bf16.gmra.mxu0 %v5969
  %v6530 = vpop.f32.mrf.mxu0
  %v6531 = vadd.f32 %v6442, %v6530
  %v6532 = vpop.f32.mrf.mxu0
  %v6533 = vadd.f32 %v6444, %v6532
  %6534 = vmatmul.bf16.gmra.mxu0 %v5973
  %v6535 = vpop.f32.mrf.mxu0
  %v6536 = vadd.f32 %v6447, %v6535
  %v6537 = vpop.f32.mrf.mxu0
  %v6538 = vadd.f32 %v6449, %v6537
  %6539 = vmatmul.bf16.gmra.mxu0 %v5977
  %v6540 = vpop.f32.mrf.mxu0
  %v6541 = vadd.f32 %v6452, %v6540
  %v6542 = vpop.f32.mrf.mxu0
  %v6543 = vadd.f32 %v6454, %v6542
  %6544 = vmatmul.bf16.gmra.mxu0 %v5981
  %v6545 = vpop.f32.mrf.mxu0
  %v6546 = vadd.f32 %v6457, %v6545
  %v6547 = vpop.f32.mrf.mxu0
  %v6548 = vadd.f32 %v6459, %v6547
  %6549 = vmatmul.bf16.gmra.mxu0 %v5985
  %v6550 = vpop.f32.mrf.mxu0
  %v6551 = vadd.f32 %v6462, %v6550
  %v6552 = vpop.f32.mrf.mxu0
  %v6553 = vadd.f32 %v6464, %v6552
  %6554 = vmatmul.bf16.gmra.mxu0 %v5989
  %v6555 = vpop.f32.mrf.mxu0
  %v6556 = vadd.f32 %v6467, %v6555
  %v6557 = vpop.f32.mrf.mxu0
  %v6558 = vadd.f32 %v6469, %v6557
  %6559 = vdwg.mxu0
  %6560 = vmatpush.bf16.msra.mxu0 %v6300
  %6561 = vmatpush.bf16.msra.mxu0 %v6298
  %6562 = vmatpush.bf16.msra.mxu0 %v6296
  %6563 = vmatpush.bf16.msra.mxu0 %v6294
  %6564 = vmatpush.bf16.msra.mxu0 %v6292
  %6565 = vmatpush.bf16.msra.mxu0 %v6290
  %6566 = vmatpush.bf16.msra.mxu0 %v6288
  %6567 = vmatpush.bf16.msra.mxu0 %v6286
  %6568 = vmatmul.bf16.gmra.mxu0 %v5930
  %v6569 = vpop.f32.mrf.mxu0
  %v6570 = vadd.f32 %v6481, %v6569
  %v6571 = vpop.f32.mrf.mxu0
  %v6572 = vadd.f32 %v6483, %v6571
  %6573 = vmatmul.bf16.gmra.mxu0 %v5934
  %v6574 = vpop.f32.mrf.mxu0
  %v6575 = vadd.f32 %v6486, %v6574
  %v6576 = vpop.f32.mrf.mxu0
  %v6577 = vadd.f32 %v6488, %v6576
  %6578 = vmatmul.bf16.gmra.mxu0 %v5938
  %v6579 = vpop.f32.mrf.mxu0
  %v6580 = vadd.f32 %v6491, %v6579
  %v6581 = vpop.f32.mrf.mxu0
  %v6582 = vadd.f32 %v6493, %v6581
  %6583 = vmatmul.bf16.gmra.mxu0 %v5942
  %v6584 = vpop.f32.mrf.mxu0
  %v6585 = vadd.f32 %v6496, %v6584
  %v6586 = vpop.f32.mrf.mxu0
  %v6587 = vadd.f32 %v6498, %v6586
  %6588 = vmatmul.bf16.gmra.mxu0 %v5946
  %v6589 = vpop.f32.mrf.mxu0
  %v6590 = vadd.f32 %v6501, %v6589
  %v6591 = vpop.f32.mrf.mxu0
  %v6592 = vadd.f32 %v6503, %v6591
  %6593 = vmatmul.bf16.gmra.mxu0 %v5950
  %v6594 = vpop.f32.mrf.mxu0
  %v6595 = vadd.f32 %v6506, %v6594
  %v6596 = vpop.f32.mrf.mxu0
  %v6597 = vadd.f32 %v6508, %v6596
  %6598 = vmatmul.bf16.gmra.mxu0 %v5954
  %v6599 = vpop.f32.mrf.mxu0
  %v6600 = vadd.f32 %v6511, %v6599
  %v6601 = vpop.f32.mrf.mxu0
  %v6602 = vadd.f32 %v6513, %v6601
  %6603 = vmatmul.bf16.gmra.mxu0 %v5958
  %v6604 = vpop.f32.mrf.mxu0
  %v6605 = vadd.f32 %v6516, %v6604
  %v6606 = vpop.f32.mrf.mxu0
  %v6607 = vadd.f32 %v6518, %v6606
  %6608 = vmatmul.bf16.gmra.mxu0 %v5962
  %v6609 = vpop.f32.mrf.mxu0
  %v6610 = vadd.f32 %v6521, %v6609
  %v6611 = vpop.f32.mrf.mxu0
  %v6612 = vadd.f32 %v6523, %v6611
  %6613 = vmatmul.bf16.gmra.mxu0 %v5966
  %v6614 = vpop.f32.mrf.mxu0
  %v6615 = vadd.f32 %v6526, %v6614
  %v6616 = vpop.f32.mrf.mxu0
  %v6617 = vadd.f32 %v6528, %v6616
  %6618 = vmatmul.bf16.gmra.mxu0 %v5970
  %v6619 = vpop.f32.mrf.mxu0
  %v6620 = vadd.f32 %v6531, %v6619
  %v6621 = vpop.f32.mrf.mxu0
  %v6622 = vadd.f32 %v6533, %v6621
  %6623 = vmatmul.bf16.gmra.mxu0 %v5974
  %v6624 = vpop.f32.mrf.mxu0
  %v6625 = vadd.f32 %v6536, %v6624
  %v6626 = vpop.f32.mrf.mxu0
  %v6627 = vadd.f32 %v6538, %v6626
  %6628 = vmatmul.bf16.gmra.mxu0 %v5978
  %v6629 = vpop.f32.mrf.mxu0
  %v6630 = vadd.f32 %v6541, %v6629
  %v6631 = vpop.f32.mrf.mxu0
  %v6632 = vadd.f32 %v6543, %v6631
  %6633 = vmatmul.bf16.gmra.mxu0 %v5982
  %v6634 = vpop.f32.mrf.mxu0
  %v6635 = vadd.f32 %v6546, %v6634
  %v6636 = vpop.f32.mrf.mxu0
  %v6637 = vadd.f32 %v6548, %v6636
  %6638 = vmatmul.bf16.gmra.mxu0 %v5986
  %v6639 = vpop.f32.mrf.mxu0
  %v6640 = vadd.f32 %v6551, %v6639
  %v6641 = vpop.f32.mrf.mxu0
  %v6642 = vadd.f32 %v6553, %v6641
  %6643 = vmatmul.bf16.gmra.mxu0 %v5990
  %v6644 = vpop.f32.mrf.mxu0
  %v6645 = vadd.f32 %v6556, %v6644
  %v6646 = vpop.f32.mrf.mxu0
  %v6647 = vadd.f32 %v6558, %v6646
  %6648 = vdwg.mxu0
  %6649 = vmatpush.bf16.msra.mxu0 %v6316
  %6650 = vmatpush.bf16.msra.mxu0 %v6314
  %6651 = vmatpush.bf16.msra.mxu0 %v6312
  %6652 = vmatpush.bf16.msra.mxu0 %v6310
  %6653 = vmatpush.bf16.msra.mxu0 %v6308
  %6654 = vmatpush.bf16.msra.mxu0 %v6306
  %6655 = vmatpush.bf16.msra.mxu0 %v6304
  %6656 = vmatpush.bf16.msra.mxu0 %v6302
  %6657 = vmatmul.bf16.gmra.mxu0 %v5931
  %v6658 = vpop.f32.mrf.mxu0
  %v6659 = vadd.f32 %v6570, %v6658
  %v6660 = vpop.f32.mrf.mxu0
  %v6661 = vadd.f32 %v6572, %v6660
  %6662 = vmatmul.bf16.gmra.mxu0 %v5935
  %v6663 = vpop.f32.mrf.mxu0
  %v6664 = vadd.f32 %v6575, %v6663
  %v6665 = vpop.f32.mrf.mxu0
  %v6666 = vadd.f32 %v6577, %v6665
  %6667 = vmatmul.bf16.gmra.mxu0 %v5939
  %v6668 = vpop.f32.mrf.mxu0
  %v6669 = vadd.f32 %v6580, %v6668
  %v6670 = vpop.f32.mrf.mxu0
  %v6671 = vadd.f32 %v6582, %v6670
  %6672 = vmatmul.bf16.gmra.mxu0 %v5943
  %v6673 = vpop.f32.mrf.mxu0
  %v6674 = vadd.f32 %v6585, %v6673
  %v6675 = vpop.f32.mrf.mxu0
  %v6676 = vadd.f32 %v6587, %v6675
  %6677 = vmatmul.bf16.gmra.mxu0 %v5947
  %v6678 = vpop.f32.mrf.mxu0
  %v6679 = vadd.f32 %v6590, %v6678
  %v6680 = vpop.f32.mrf.mxu0
  %v6681 = vadd.f32 %v6592, %v6680
  %6682 = vmatmul.bf16.gmra.mxu0 %v5951
  %v6683 = vpop.f32.mrf.mxu0
  %v6684 = vadd.f32 %v6595, %v6683
  %v6685 = vpop.f32.mrf.mxu0
  %v6686 = vadd.f32 %v6597, %v6685
  %6687 = vmatmul.bf16.gmra.mxu0 %v5955
  %v6688 = vpop.f32.mrf.mxu0
  %v6689 = vadd.f32 %v6600, %v6688
  %v6690 = vpop.f32.mrf.mxu0
  %v6691 = vadd.f32 %v6602, %v6690
  %6692 = vmatmul.bf16.gmra.mxu0 %v5959
  %v6693 = vpop.f32.mrf.mxu0
  %v6694 = vadd.f32 %v6605, %v6693
  %v6695 = vpop.f32.mrf.mxu0
  %v6696 = vadd.f32 %v6607, %v6695
  %6697 = vmatmul.bf16.gmra.mxu0 %v5963
  %v6698 = vpop.f32.mrf.mxu0
  %v6699 = vadd.f32 %v6610, %v6698
  %v6700 = vpop.f32.mrf.mxu0
  %v6701 = vadd.f32 %v6612, %v6700
  %6702 = vmatmul.bf16.gmra.mxu0 %v5967
  %v6703 = vpop.f32.mrf.mxu0
  %v6704 = vadd.f32 %v6615, %v6703
  %v6705 = vpop.f32.mrf.mxu0
  %v6706 = vadd.f32 %v6617, %v6705
  %6707 = vmatmul.bf16.gmra.mxu0 %v5971
  %v6708 = vpop.f32.mrf.mxu0
  %v6709 = vadd.f32 %v6620, %v6708
  %v6710 = vpop.f32.mrf.mxu0
  %v6711 = vadd.f32 %v6622, %v6710
  %6712 = vmatmul.bf16.gmra.mxu0 %v5975
  %v6713 = vpop.f32.mrf.mxu0
  %v6714 = vadd.f32 %v6625, %v6713
  %v6715 = vpop.f32.mrf.mxu0
  %v6716 = vadd.f32 %v6627, %v6715
  %6717 = vmatmul.bf16.gmra.mxu0 %v5979
  %v6718 = vpop.f32.mrf.mxu0
  %v6719 = vadd.f32 %v6630, %v6718
  %v6720 = vpop.f32.mrf.mxu0
  %v6721 = vadd.f32 %v6632, %v6720
  %6722 = vmatmul.bf16.gmra.mxu0 %v5983
  %v6723 = vpop.f32.mrf.mxu0
  %v6724 = vadd.f32 %v6635, %v6723
  %v6725 = vpop.f32.mrf.mxu0
  %v6726 = vadd.f32 %v6637, %v6725
  %6727 = vmatmul.bf16.gmra.mxu0 %v5987
  %v6728 = vpop.f32.mrf.mxu0
  %v6729 = vadd.f32 %v6640, %v6728
  %v6730 = vpop.f32.mrf.mxu0
  %v6731 = vadd.f32 %v6642, %v6730
  %6732 = vmatmul.bf16.gmra.mxu0 %v5991
  %v6733 = vpop.f32.mrf.mxu0
  %v6734 = vadd.f32 %v6645, %v6733
  %v6735 = vpop.f32.mrf.mxu0
  %v6736 = vadd.f32 %v6647, %v6735
  %6737 = vdwg.mxu0
  %6738 = vmatpush.bf16.msra.mxu0 %v6269
  %6739 = vmatpush.bf16.msra.mxu0 %v6267
  %6740 = vmatpush.bf16.msra.mxu0 %v6265
  %6741 = vmatpush.bf16.msra.mxu0 %v6263
  %6742 = vmatpush.bf16.msra.mxu0 %v6261
  %6743 = vmatpush.bf16.msra.mxu0 %v6259
  %6744 = vmatpush.bf16.msra.mxu0 %v6257
  %6745 = vmatpush.bf16.msra.mxu0 %v6255
  %6746 = vmatmul.bf16.gmra.mxu0 %v5928
  %v6747 = vpop.f32.mrf.mxu0
  %v6748 = vadd.f32 %v6059, %v6747
  %v6749 = vpop.f32.mrf.mxu0
  %v6750 = vadd.f32 %v6059, %v6749
  %6751 = vmatmul.bf16.gmra.mxu0 %v5932
  %v6752 = vpop.f32.mrf.mxu0
  %v6753 = vadd.f32 %v6059, %v6752
  %v6754 = vpop.f32.mrf.mxu0
  %v6755 = vadd.f32 %v6059, %v6754
  %6756 = vmatmul.bf16.gmra.mxu0 %v5936
  %v6757 = vpop.f32.mrf.mxu0
  %v6758 = vadd.f32 %v6059, %v6757
  %v6759 = vpop.f32.mrf.mxu0
  %v6760 = vadd.f32 %v6059, %v6759
  %6761 = vmatmul.bf16.gmra.mxu0 %v5940
  %v6762 = vpop.f32.mrf.mxu0
  %v6763 = vadd.f32 %v6059, %v6762
  %v6764 = vpop.f32.mrf.mxu0
  %v6765 = vadd.f32 %v6059, %v6764
  %6766 = vmatmul.bf16.gmra.mxu0 %v5944
  %v6767 = vpop.f32.mrf.mxu0
  %v6768 = vadd.f32 %v6059, %v6767
  %v6769 = vpop.f32.mrf.mxu0
  %v6770 = vadd.f32 %v6059, %v6769
  %6771 = vmatmul.bf16.gmra.mxu0 %v5948
  %v6772 = vpop.f32.mrf.mxu0
  %v6773 = vadd.f32 %v6059, %v6772
  %v6774 = vpop.f32.mrf.mxu0
  %v6775 = vadd.f32 %v6059, %v6774
  %6776 = vmatmul.bf16.gmra.mxu0 %v5952
  %v6777 = vpop.f32.mrf.mxu0
  %v6778 = vadd.f32 %v6059, %v6777
  %v6779 = vpop.f32.mrf.mxu0
  %v6780 = vadd.f32 %v6059, %v6779
  %6781 = vmatmul.bf16.gmra.mxu0 %v5956
  %v6782 = vpop.f32.mrf.mxu0
  %v6783 = vadd.f32 %v6059, %v6782
  %v6784 = vpop.f32.mrf.mxu0
  %v6785 = vadd.f32 %v6059, %v6784
  %6786 = vmatmul.bf16.gmra.mxu0 %v5960
  %v6787 = vpop.f32.mrf.mxu0
  %v6788 = vadd.f32 %v6059, %v6787
  %v6789 = vpop.f32.mrf.mxu0
  %v6790 = vadd.f32 %v6059, %v6789
  %6791 = vmatmul.bf16.gmra.mxu0 %v5964
  %v6792 = vpop.f32.mrf.mxu0
  %v6793 = vadd.f32 %v6059, %v6792
  %v6794 = vpop.f32.mrf.mxu0
  %v6795 = vadd.f32 %v6059, %v6794
  %6796 = vmatmul.bf16.gmra.mxu0 %v5968
  %v6797 = vpop.f32.mrf.mxu0
  %v6798 = vadd.f32 %v6059, %v6797
  %v6799 = vpop.f32.mrf.mxu0
  %v6800 = vadd.f32 %v6059, %v6799
  %6801 = vmatmul.bf16.gmra.mxu0 %v5972
  %v6802 = vpop.f32.mrf.mxu0
  %v6803 = vadd.f32 %v6059, %v6802
  %v6804 = vpop.f32.mrf.mxu0
  %v6805 = vadd.f32 %v6059, %v6804
  %6806 = vmatmul.bf16.gmra.mxu0 %v5976
  %v6807 = vpop.f32.mrf.mxu0
  %v6808 = vadd.f32 %v6059, %v6807
  %v6809 = vpop.f32.mrf.mxu0
  %v6810 = vadd.f32 %v6059, %v6809
  %6811 = vmatmul.bf16.gmra.mxu0 %v5980
  %v6812 = vpop.f32.mrf.mxu0
  %v6813 = vadd.f32 %v6059, %v6812
  %v6814 = vpop.f32.mrf.mxu0
  %v6815 = vadd.f32 %v6059, %v6814
  %6816 = vmatmul.bf16.gmra.mxu0 %v5984
  %v6817 = vpop.f32.mrf.mxu0
  %v6818 = vadd.f32 %v6059, %v6817
  %v6819 = vpop.f32.mrf.mxu0
  %v6820 = vadd.f32 %v6059, %v6819
  %6821 = vmatmul.bf16.gmra.mxu0 %v5988
  %v6822 = vpop.f32.mrf.mxu0
  %v6823 = vadd.f32 %v6059, %v6822
  %v6824 = vpop.f32.mrf.mxu0
  %v6825 = vadd.f32 %v6059, %v6824
  %6826 = vdwg.mxu0
  %6827 = vmatpush.bf16.msra.mxu0 %v6285
  %6828 = vmatpush.bf16.msra.mxu0 %v6283
  %6829 = vmatpush.bf16.msra.mxu0 %v6281
  %6830 = vmatpush.bf16.msra.mxu0 %v6279
  %6831 = vmatpush.bf16.msra.mxu0 %v6277
  %6832 = vmatpush.bf16.msra.mxu0 %v6275
  %6833 = vmatpush.bf16.msra.mxu0 %v6273
  %6834 = vmatpush.bf16.msra.mxu0 %v6271
  %6835 = vmatmul.bf16.gmra.mxu0 %v5929
  %v6836 = vpop.f32.mrf.mxu0
  %v6837 = vadd.f32 %v6748, %v6836
  %v6838 = vpop.f32.mrf.mxu0
  %v6839 = vadd.f32 %v6750, %v6838
  %6840 = vmatmul.bf16.gmra.mxu0 %v5933
  %v6841 = vpop.f32.mrf.mxu0
  %v6842 = vadd.f32 %v6753, %v6841
  %v6843 = vpop.f32.mrf.mxu0
  %v6844 = vadd.f32 %v6755, %v6843
  %6845 = vmatmul.bf16.gmra.mxu0 %v5937
  %v6846 = vpop.f32.mrf.mxu0
  %v6847 = vadd.f32 %v6758, %v6846
  %v6848 = vpop.f32.mrf.mxu0
  %v6849 = vadd.f32 %v6760, %v6848
  %6850 = vmatmul.bf16.gmra.mxu0 %v5941
  %v6851 = vpop.f32.mrf.mxu0
  %v6852 = vadd.f32 %v6763, %v6851
  %v6853 = vpop.f32.mrf.mxu0
  %v6854 = vadd.f32 %v6765, %v6853
  %6855 = vmatmul.bf16.gmra.mxu0 %v5945
  %v6856 = vpop.f32.mrf.mxu0
  %v6857 = vadd.f32 %v6768, %v6856
  %v6858 = vpop.f32.mrf.mxu0
  %v6859 = vadd.f32 %v6770, %v6858
  %6860 = vmatmul.bf16.gmra.mxu0 %v5949
  %v6861 = vpop.f32.mrf.mxu0
  %v6862 = vadd.f32 %v6773, %v6861
  %v6863 = vpop.f32.mrf.mxu0
  %v6864 = vadd.f32 %v6775, %v6863
  %6865 = vmatmul.bf16.gmra.mxu0 %v5953
  %v6866 = vpop.f32.mrf.mxu0
  %v6867 = vadd.f32 %v6778, %v6866
  %v6868 = vpop.f32.mrf.mxu0
  %v6869 = vadd.f32 %v6780, %v6868
  %6870 = vmatmul.bf16.gmra.mxu0 %v5957
  %v6871 = vpop.f32.mrf.mxu0
  %v6872 = vadd.f32 %v6783, %v6871
  %v6873 = vpop.f32.mrf.mxu0
  %v6874 = vadd.f32 %v6785, %v6873
  %6875 = vmatmul.bf16.gmra.mxu0 %v5961
  %v6876 = vpop.f32.mrf.mxu0
  %v6877 = vadd.f32 %v6788, %v6876
  %v6878 = vpop.f32.mrf.mxu0
  %v6879 = vadd.f32 %v6790, %v6878
  %6880 = vmatmul.bf16.gmra.mxu0 %v5965
  %v6881 = vpop.f32.mrf.mxu0
  %v6882 = vadd.f32 %v6793, %v6881
  %v6883 = vpop.f32.mrf.mxu0
  %v6884 = vadd.f32 %v6795, %v6883
  %6885 = vmatmul.bf16.gmra.mxu0 %v5969
  %v6886 = vpop.f32.mrf.mxu0
  %v6887 = vadd.f32 %v6798, %v6886
  %v6888 = vpop.f32.mrf.mxu0
  %v6889 = vadd.f32 %v6800, %v6888
  %6890 = vmatmul.bf16.gmra.mxu0 %v5973
  %v6891 = vpop.f32.mrf.mxu0
  %v6892 = vadd.f32 %v6803, %v6891
  %v6893 = vpop.f32.mrf.mxu0
  %v6894 = vadd.f32 %v6805, %v6893
  %6895 = vmatmul.bf16.gmra.mxu0 %v5977
  %v6896 = vpop.f32.mrf.mxu0
  %v6897 = vadd.f32 %v6808, %v6896
  %v6898 = vpop.f32.mrf.mxu0
  %v6899 = vadd.f32 %v6810, %v6898
  %6900 = vmatmul.bf16.gmra.mxu0 %v5981
  %v6901 = vpop.f32.mrf.mxu0
  %v6902 = vadd.f32 %v6813, %v6901
  %v6903 = vpop.f32.mrf.mxu0
  %v6904 = vadd.f32 %v6815, %v6903
  %6905 = vmatmul.bf16.gmra.mxu0 %v5985
  %v6906 = vpop.f32.mrf.mxu0
  %v6907 = vadd.f32 %v6818, %v6906
  %v6908 = vpop.f32.mrf.mxu0
  %v6909 = vadd.f32 %v6820, %v6908
  %6910 = vmatmul.bf16.gmra.mxu0 %v5989
  %v6911 = vpop.f32.mrf.mxu0
  %v6912 = vadd.f32 %v6823, %v6911
  %v6913 = vpop.f32.mrf.mxu0
  %v6914 = vadd.f32 %v6825, %v6913
  %6915 = vdwg.mxu0
  %6916 = vmatpush.bf16.msra.mxu0 %v6301
  %6917 = vmatpush.bf16.msra.mxu0 %v6299
  %6918 = vmatpush.bf16.msra.mxu0 %v6297
  %6919 = vmatpush.bf16.msra.mxu0 %v6295
  %6920 = vmatpush.bf16.msra.mxu0 %v6293
  %6921 = vmatpush.bf16.msra.mxu0 %v6291
  %6922 = vmatpush.bf16.msra.mxu0 %v6289
  %6923 = vmatpush.bf16.msra.mxu0 %v6287
  %6924 = vmatmul.bf16.gmra.mxu0 %v5930
  %v6925 = vpop.f32.mrf.mxu0
  %v6926 = vadd.f32 %v6837, %v6925
  %v6927 = vpop.f32.mrf.mxu0
  %v6928 = vadd.f32 %v6839, %v6927
  %6929 = vmatmul.bf16.gmra.mxu0 %v5934
  %v6930 = vpop.f32.mrf.mxu0
  %v6931 = vadd.f32 %v6842, %v6930
  %v6932 = vpop.f32.mrf.mxu0
  %v6933 = vadd.f32 %v6844, %v6932
  %6934 = vmatmul.bf16.gmra.mxu0 %v5938
  %v6935 = vpop.f32.mrf.mxu0
  %v6936 = vadd.f32 %v6847, %v6935
  %v6937 = vpop.f32.mrf.mxu0
  %v6938 = vadd.f32 %v6849, %v6937
  %6939 = vmatmul.bf16.gmra.mxu0 %v5942
  %v6940 = vpop.f32.mrf.mxu0
  %v6941 = vadd.f32 %v6852, %v6940
  %v6942 = vpop.f32.mrf.mxu0
  %v6943 = vadd.f32 %v6854, %v6942
  %6944 = vmatmul.bf16.gmra.mxu0 %v5946
  %v6945 = vpop.f32.mrf.mxu0
  %v6946 = vadd.f32 %v6857, %v6945
  %v6947 = vpop.f32.mrf.mxu0
  %v6948 = vadd.f32 %v6859, %v6947
  %6949 = vmatmul.bf16.gmra.mxu0 %v5950
  %v6950 = vpop.f32.mrf.mxu0
  %v6951 = vadd.f32 %v6862, %v6950
  %v6952 = vpop.f32.mrf.mxu0
  %v6953 = vadd.f32 %v6864, %v6952
  %6954 = vmatmul.bf16.gmra.mxu0 %v5954
  %v6955 = vpop.f32.mrf.mxu0
  %v6956 = vadd.f32 %v6867, %v6955
  %v6957 = vpop.f32.mrf.mxu0
  %v6958 = vadd.f32 %v6869, %v6957
  %6959 = vmatmul.bf16.gmra.mxu0 %v5958
  %v6960 = vpop.f32.mrf.mxu0
  %v6961 = vadd.f32 %v6872, %v6960
  %v6962 = vpop.f32.mrf.mxu0
  %v6963 = vadd.f32 %v6874, %v6962
  %6964 = vmatmul.bf16.gmra.mxu0 %v5962
  %v6965 = vpop.f32.mrf.mxu0
  %v6966 = vadd.f32 %v6877, %v6965
  %v6967 = vpop.f32.mrf.mxu0
  %v6968 = vadd.f32 %v6879, %v6967
  %6969 = vmatmul.bf16.gmra.mxu0 %v5966
  %v6970 = vpop.f32.mrf.mxu0
  %v6971 = vadd.f32 %v6882, %v6970
  %v6972 = vpop.f32.mrf.mxu0
  %v6973 = vadd.f32 %v6884, %v6972
  %6974 = vmatmul.bf16.gmra.mxu0 %v5970
  %v6975 = vpop.f32.mrf.mxu0
  %v6976 = vadd.f32 %v6887, %v6975
  %v6977 = vpop.f32.mrf.mxu0
  %v6978 = vadd.f32 %v6889, %v6977
  %6979 = vmatmul.bf16.gmra.mxu0 %v5974
  %v6980 = vpop.f32.mrf.mxu0
  %v6981 = vadd.f32 %v6892, %v6980
  %v6982 = vpop.f32.mrf.mxu0
  %v6983 = vadd.f32 %v6894, %v6982
  %6984 = vmatmul.bf16.gmra.mxu0 %v5978
  %v6985 = vpop.f32.mrf.mxu0
  %v6986 = vadd.f32 %v6897, %v6985
  %v6987 = vpop.f32.mrf.mxu0
  %v6988 = vadd.f32 %v6899, %v6987
  %6989 = vmatmul.bf16.gmra.mxu0 %v5982
  %v6990 = vpop.f32.mrf.mxu0
  %v6991 = vadd.f32 %v6902, %v6990
  %v6992 = vpop.f32.mrf.mxu0
  %v6993 = vadd.f32 %v6904, %v6992
  %6994 = vmatmul.bf16.gmra.mxu0 %v5986
  %v6995 = vpop.f32.mrf.mxu0
  %v6996 = vadd.f32 %v6907, %v6995
  %v6997 = vpop.f32.mrf.mxu0
  %v6998 = vadd.f32 %v6909, %v6997
  %6999 = vmatmul.bf16.gmra.mxu0 %v5990
  %v7000 = vpop.f32.mrf.mxu0
  %v7001 = vadd.f32 %v6912, %v7000
  %v7002 = vpop.f32.mrf.mxu0
  %v7003 = vadd.f32 %v6914, %v7002
  %7004 = vdwg.mxu0
  %7005 = vmatpush.bf16.msra.mxu0 %v6317
  %7006 = vmatpush.bf16.msra.mxu0 %v6315
  %7007 = vmatpush.bf16.msra.mxu0 %v6313
  %7008 = vmatpush.bf16.msra.mxu0 %v6311
  %7009 = vmatpush.bf16.msra.mxu0 %v6309
  %7010 = vmatpush.bf16.msra.mxu0 %v6307
  %7011 = vmatpush.bf16.msra.mxu0 %v6305
  %7012 = vmatpush.bf16.msra.mxu0 %v6303
  %7013 = vmatmul.bf16.gmra.mxu0 %v5931
  %v7014 = vpop.f32.mrf.mxu0
  %v7015 = vadd.f32 %v6926, %v7014
  %v7016 = vpop.f32.mrf.mxu0
  %v7017 = vadd.f32 %v6928, %v7016
  %7018 = vmatmul.bf16.gmra.mxu0 %v5935
  %v7019 = vpop.f32.mrf.mxu0
  %v7020 = vadd.f32 %v6931, %v7019
  %v7021 = vpop.f32.mrf.mxu0
  %v7022 = vadd.f32 %v6933, %v7021
  %7023 = vmatmul.bf16.gmra.mxu0 %v5939
  %v7024 = vpop.f32.mrf.mxu0
  %v7025 = vadd.f32 %v6936, %v7024
  %v7026 = vpop.f32.mrf.mxu0
  %v7027 = vadd.f32 %v6938, %v7026
  %7028 = vmatmul.bf16.gmra.mxu0 %v5943
  %v7029 = vpop.f32.mrf.mxu0
  %v7030 = vadd.f32 %v6941, %v7029
  %v7031 = vpop.f32.mrf.mxu0
  %v7032 = vadd.f32 %v6943, %v7031
  %7033 = vmatmul.bf16.gmra.mxu0 %v5947
  %v7034 = vpop.f32.mrf.mxu0
  %v7035 = vadd.f32 %v6946, %v7034
  %v7036 = vpop.f32.mrf.mxu0
  %v7037 = vadd.f32 %v6948, %v7036
  %7038 = vmatmul.bf16.gmra.mxu0 %v5951
  %v7039 = vpop.f32.mrf.mxu0
  %v7040 = vadd.f32 %v6951, %v7039
  %v7041 = vpop.f32.mrf.mxu0
  %v7042 = vadd.f32 %v6953, %v7041
  %7043 = vmatmul.bf16.gmra.mxu0 %v5955
  %v7044 = vpop.f32.mrf.mxu0
  %v7045 = vadd.f32 %v6956, %v7044
  %v7046 = vpop.f32.mrf.mxu0
  %v7047 = vadd.f32 %v6958, %v7046
  %7048 = vmatmul.bf16.gmra.mxu0 %v5959
  %v7049 = vpop.f32.mrf.mxu0
  %v7050 = vadd.f32 %v6961, %v7049
  %v7051 = vpop.f32.mrf.mxu0
  %v7052 = vadd.f32 %v6963, %v7051
  %7053 = vmatmul.bf16.gmra.mxu0 %v5963
  %v7054 = vpop.f32.mrf.mxu0
  %v7055 = vadd.f32 %v6966, %v7054
  %v7056 = vpop.f32.mrf.mxu0
  %v7057 = vadd.f32 %v6968, %v7056
  %7058 = vmatmul.bf16.gmra.mxu0 %v5967
  %v7059 = vpop.f32.mrf.mxu0
  %v7060 = vadd.f32 %v6971, %v7059
  %v7061 = vpop.f32.mrf.mxu0
  %v7062 = vadd.f32 %v6973, %v7061
  %7063 = vmatmul.bf16.gmra.mxu0 %v5971
  %v7064 = vpop.f32.mrf.mxu0
  %v7065 = vadd.f32 %v6976, %v7064
  %v7066 = vpop.f32.mrf.mxu0
  %v7067 = vadd.f32 %v6978, %v7066
  %7068 = vmatmul.bf16.gmra.mxu0 %v5975
  %v7069 = vpop.f32.mrf.mxu0
  %v7070 = vadd.f32 %v6981, %v7069
  %v7071 = vpop.f32.mrf.mxu0
  %v7072 = vadd.f32 %v6983, %v7071
  %7073 = vmatmul.bf16.gmra.mxu0 %v5979
  %v7074 = vpop.f32.mrf.mxu0
  %v7075 = vadd.f32 %v6986, %v7074
  %v7076 = vpop.f32.mrf.mxu0
  %v7077 = vadd.f32 %v6988, %v7076
  %7078 = vmatmul.bf16.gmra.mxu0 %v5983
  %v7079 = vpop.f32.mrf.mxu0
  %v7080 = vadd.f32 %v6991, %v7079
  %v7081 = vpop.f32.mrf.mxu0
  %v7082 = vadd.f32 %v6993, %v7081
  %7083 = vmatmul.bf16.gmra.mxu0 %v5987
  %v7084 = vpop.f32.mrf.mxu0
  %v7085 = vadd.f32 %v6996, %v7084
  %v7086 = vpop.f32.mrf.mxu0
  %v7087 = vadd.f32 %v6998, %v7086
  %7088 = vmatmul.bf16.gmra.mxu0 %v5991
  %v7089 = vpop.f32.mrf.mxu0
  %v7090 = vadd.f32 %v7001, %v7089
  %v7091 = vpop.f32.mrf.mxu0
  %v7092 = vadd.f32 %v7003, %v7091
  %7093 = vdwg.mxu0
  %v7094 = vmax.f32 %v6659, 0.0
  %v7095 = vmax.f32 %v7015, 0.0
  %v7096 = vmax.f32 %v6661, 0.0
  %v7097 = vmax.f32 %v7017, 0.0
  %v7098 = vmax.f32 %v6664, 0.0
  %v7099 = vmax.f32 %v7020, 0.0
  %v7100 = vmax.f32 %v6666, 0.0
  %v7101 = vmax.f32 %v7022, 0.0
  %v7102 = vmax.f32 %v6669, 0.0
  %v7103 = vmax.f32 %v7025, 0.0
  %v7104 = vmax.f32 %v6671, 0.0
  %v7105 = vmax.f32 %v7027, 0.0
  %v7106 = vmax.f32 %v6674, 0.0
  %v7107 = vmax.f32 %v7030, 0.0
  %v7108 = vmax.f32 %v6676, 0.0
  %v7109 = vmax.f32 %v7032, 0.0
  %v7110 = vmax.f32 %v6679, 0.0
  %v7111 = vmax.f32 %v7035, 0.0
  %v7112 = vmax.f32 %v6681, 0.0
  %v7113 = vmax.f32 %v7037, 0.0
  %v7114 = vmax.f32 %v6684, 0.0
  %v7115 = vmax.f32 %v7040, 0.0
  %v7116 = vmax.f32 %v6686, 0.0
  %v7117 = vmax.f32 %v7042, 0.0
  %v7118 = vmax.f32 %v6689, 0.0
  %v7119 = vmax.f32 %v7045, 0.0
  %v7120 = vmax.f32 %v6691, 0.0
  %v7121 = vmax.f32 %v7047, 0.0
  %v7122 = vmax.f32 %v6694, 0.0
  %v7123 = vmax.f32 %v7050, 0.0
  %v7124 = vmax.f32 %v6696, 0.0
  %v7125 = vmax.f32 %v7052, 0.0
  %v7126 = vmax.f32 %v6699, 0.0
  %v7127 = vmax.f32 %v7055, 0.0
  %v7128 = vmax.f32 %v6701, 0.0
  %v7129 = vmax.f32 %v7057, 0.0
  %v7130 = vmax.f32 %v6704, 0.0
  %v7131 = vmax.f32 %v7060, 0.0
  %v7132 = vmax.f32 %v6706, 0.0
  %v7133 = vmax.f32 %v7062, 0.0
  %v7134 = vmax.f32 %v6709, 0.0
  %v7135 = vmax.f32 %v7065, 0.0
  %v7136 = vmax.f32 %v6711, 0.0
  %v7137 = vmax.f32 %v7067, 0.0
  %v7138 = vmax.f32 %v6714, 0.0
  %v7139 = vmax.f32 %v7070, 0.0
  %v7140 = vmax.f32 %v6716, 0.0
  %v7141 = vmax.f32 %v7072, 0.0
  %v7142 = vmax.f32 %v6719, 0.0
  %v7143 = vmax.f32 %v7075, 0.0
  %v7144 = vmax.f32 %v6721, 0.0
  %v7145 = vmax.f32 %v7077, 0.0
  %v7146 = vmax.f32 %v6724, 0.0
  %v7147 = vmax.f32 %v7080, 0.0
  %v7148 = vmax.f32 %v6726, 0.0
  %v7149 = vmax.f32 %v7082, 0.0
  %v7150 = vmax.f32 %v6729, 0.0
  %v7151 = vmax.f32 %v7085, 0.0
  %v7152 = vmax.f32 %v6731, 0.0
  %v7153 = vmax.f32 %v7087, 0.0
  %v7154 = vmax.f32 %v6734, 0.0
  %v7155 = vmax.f32 %v7090, 0.0
  %v7156 = vmax.f32 %v6736, 0.0
  %v7157 = vmax.f32 %v7092, 0.0
  %v7158 = vld [vmem:[%s7] sm:$0x3]
  %v7160 = vperm.slane %v7158, 0
  %v7161 = vperm.slane %v7158, 1
  %v7164 = vmul.f32 %v7094, %v7160
  %v7165 = vmul.f32 %v7095, %v7161
  %v7166 = vmul.f32 %v7096, %v7160
  %v7167 = vmul.f32 %v7097, %v7161
  %v7168 = vmul.f32 %v7098, %v7160
  %v7169 = vmul.f32 %v7099, %v7161
  %v7170 = vmul.f32 %v7100, %v7160
  %v7171 = vmul.f32 %v7101, %v7161
  %v7172 = vmul.f32 %v7102, %v7160
  %v7173 = vmul.f32 %v7103, %v7161
  %v7174 = vmul.f32 %v7104, %v7160
  %v7175 = vmul.f32 %v7105, %v7161
  %v7176 = vmul.f32 %v7106, %v7160
  %v7177 = vmul.f32 %v7107, %v7161
  %v7178 = vmul.f32 %v7108, %v7160
  %v7179 = vmul.f32 %v7109, %v7161
  %v7180 = vmul.f32 %v7110, %v7160
  %v7181 = vmul.f32 %v7111, %v7161
  %v7182 = vmul.f32 %v7112, %v7160
  %v7183 = vmul.f32 %v7113, %v7161
  %v7184 = vmul.f32 %v7114, %v7160
  %v7185 = vmul.f32 %v7115, %v7161
  %v7186 = vmul.f32 %v7116, %v7160
  %v7187 = vmul.f32 %v7117, %v7161
  %v7188 = vmul.f32 %v7118, %v7160
  %v7189 = vmul.f32 %v7119, %v7161
  %v7190 = vmul.f32 %v7120, %v7160
  %v7191 = vmul.f32 %v7121, %v7161
  %v7192 = vmul.f32 %v7122, %v7160
  %v7193 = vmul.f32 %v7123, %v7161
  %v7194 = vmul.f32 %v7124, %v7160
  %v7195 = vmul.f32 %v7125, %v7161
  %v7196 = vmul.f32 %v7126, %v7160
  %v7197 = vmul.f32 %v7127, %v7161
  %v7198 = vmul.f32 %v7128, %v7160
  %v7199 = vmul.f32 %v7129, %v7161
  %v7200 = vmul.f32 %v7130, %v7160
  %v7201 = vmul.f32 %v7131, %v7161
  %v7202 = vmul.f32 %v7132, %v7160
  %v7203 = vmul.f32 %v7133, %v7161
  %v7204 = vmul.f32 %v7134, %v7160
  %v7205 = vmul.f32 %v7135, %v7161
  %v7206 = vmul.f32 %v7136, %v7160
  %v7207 = vmul.f32 %v7137, %v7161
  %v7208 = vmul.f32 %v7138, %v7160
  %v7209 = vmul.f32 %v7139, %v7161
  %v7210 = vmul.f32 %v7140, %v7160
  %v7211 = vmul.f32 %v7141, %v7161
  %v7212 = vmul.f32 %v7142, %v7160
  %v7213 = vmul.f32 %v7143, %v7161
  %v7214 = vmul.f32 %v7144, %v7160
  %v7215 = vmul.f32 %v7145, %v7161
  %v7216 = vmul.f32 %v7146, %v7160
  %v7217 = vmul.f32 %v7147, %v7161
  %v7218 = vmul.f32 %v7148, %v7160
  %v7219 = vmul.f32 %v7149, %v7161
  %v7220 = vmul.f32 %v7150, %v7160
  %v7221 = vmul.f32 %v7151, %v7161
  %v7222 = vmul.f32 %v7152, %v7160
  %v7223 = vmul.f32 %v7153, %v7161
  %v7224 = vmul.f32 %v7154, %v7160
  %v7225 = vmul.f32 %v7155, %v7161
  %v7226 = vmul.f32 %v7156, %v7160
  %v7227 = vmul.f32 %v7157, %v7161
  %v7228 = vadd.f32 %v7164, %v7165
  %7229 = vadd.xlane.f32.xlu0 %v7228
  %v7230 = vpop.xlane.xlu0 %7229
  %v7231 = vadd.f32 %v7166, %v7167
  %7232 = vadd.xlane.f32.xlu0 %v7231
  %v7233 = vpop.xlane.xlu0 %7232
  %v7234 = vadd.f32 %v7168, %v7169
  %7235 = vadd.xlane.f32.xlu0 %v7234
  %v7236 = vpop.xlane.xlu0 %7235
  %v7237 = vadd.f32 %v7170, %v7171
  %7238 = vadd.xlane.f32.xlu0 %v7237
  %v7239 = vpop.xlane.xlu0 %7238
  %v7240 = vadd.f32 %v7172, %v7173
  %7241 = vadd.xlane.f32.xlu0 %v7240
  %v7242 = vpop.xlane.xlu0 %7241
  %v7243 = vadd.f32 %v7174, %v7175
  %7244 = vadd.xlane.f32.xlu0 %v7243
  %v7245 = vpop.xlane.xlu0 %7244
  %v7246 = vadd.f32 %v7176, %v7177
  %7247 = vadd.xlane.f32.xlu0 %v7246
  %v7248 = vpop.xlane.xlu0 %7247
  %v7249 = vadd.f32 %v7178, %v7179
  %7250 = vadd.xlane.f32.xlu0 %v7249
  %v7251 = vpop.xlane.xlu0 %7250
  %v7252 = vadd.f32 %v7180, %v7181
  %7253 = vadd.xlane.f32.xlu0 %v7252
  %v7254 = vpop.xlane.xlu0 %7253
  %v7255 = vadd.f32 %v7182, %v7183
  %7256 = vadd.xlane.f32.xlu0 %v7255
  %v7257 = vpop.xlane.xlu0 %7256
  %v7258 = vadd.f32 %v7184, %v7185
  %7259 = vadd.xlane.f32.xlu0 %v7258
  %v7260 = vpop.xlane.xlu0 %7259
  %v7261 = vadd.f32 %v7186, %v7187
  %7262 = vadd.xlane.f32.xlu0 %v7261
  %v7263 = vpop.xlane.xlu0 %7262
  %v7264 = vadd.f32 %v7188, %v7189
  %7265 = vadd.xlane.f32.xlu0 %v7264
  %v7266 = vpop.xlane.xlu0 %7265
  %v7267 = vadd.f32 %v7190, %v7191
  %7268 = vadd.xlane.f32.xlu0 %v7267
  %v7269 = vpop.xlane.xlu0 %7268
  %v7270 = vadd.f32 %v7192, %v7193
  %7271 = vadd.xlane.f32.xlu0 %v7270
  %v7272 = vpop.xlane.xlu0 %7271
  %v7273 = vadd.f32 %v7194, %v7195
  %7274 = vadd.xlane.f32.xlu0 %v7273
  %v7275 = vpop.xlane.xlu0 %7274
  %v7276 = vadd.f32 %v7196, %v7197
  %7277 = vadd.xlane.f32.xlu0 %v7276
  %v7278 = vpop.xlane.xlu0 %7277
  %v7279 = vadd.f32 %v7198, %v7199
  %7280 = vadd.xlane.f32.xlu0 %v7279
  %v7281 = vpop.xlane.xlu0 %7280
  %v7282 = vadd.f32 %v7200, %v7201
  %7283 = vadd.xlane.f32.xlu0 %v7282
  %v7284 = vpop.xlane.xlu0 %7283
  %v7285 = vadd.f32 %v7202, %v7203
  %7286 = vadd.xlane.f32.xlu0 %v7285
  %v7287 = vpop.xlane.xlu0 %7286
  %v7288 = vadd.f32 %v7204, %v7205
  %7289 = vadd.xlane.f32.xlu0 %v7288
  %v7290 = vpop.xlane.xlu0 %7289
  %v7291 = vadd.f32 %v7206, %v7207
  %7292 = vadd.xlane.f32.xlu0 %v7291
  %v7293 = vpop.xlane.xlu0 %7292
  %v7294 = vadd.f32 %v7208, %v7209
  %7295 = vadd.xlane.f32.xlu0 %v7294
  %v7296 = vpop.xlane.xlu0 %7295
  %v7297 = vadd.f32 %v7210, %v7211
  %7298 = vadd.xlane.f32.xlu0 %v7297
  %v7299 = vpop.xlane.xlu0 %7298
  %v7300 = vadd.f32 %v7212, %v7213
  %7301 = vadd.xlane.f32.xlu0 %v7300
  %v7302 = vpop.xlane.xlu0 %7301
  %v7303 = vadd.f32 %v7214, %v7215
  %7304 = vadd.xlane.f32.xlu0 %v7303
  %v7305 = vpop.xlane.xlu0 %7304
  %v7306 = vadd.f32 %v7216, %v7217
  %7307 = vadd.xlane.f32.xlu0 %v7306
  %v7308 = vpop.xlane.xlu0 %7307
  %v7309 = vadd.f32 %v7218, %v7219
  %7310 = vadd.xlane.f32.xlu0 %v7309
  %v7311 = vpop.xlane.xlu0 %7310
  %v7312 = vadd.f32 %v7220, %v7221
  %7313 = vadd.xlane.f32.xlu0 %v7312
  %v7314 = vpop.xlane.xlu0 %7313
  %v7315 = vadd.f32 %v7222, %v7223
  %7316 = vadd.xlane.f32.xlu0 %v7315
  %v7317 = vpop.xlane.xlu0 %7316
  %v7318 = vadd.f32 %v7224, %v7225
  %7319 = vadd.xlane.f32.xlu0 %v7318
  %v7320 = vpop.xlane.xlu0 %7319
  %v7321 = vadd.f32 %v7226, %v7227
  %7322 = vadd.xlane.f32.xlu0 %v7321
  %v7323 = vpop.xlane.xlu0 %7322
  %v7324 = vld [vmem:[#allocation2] sm:$0x1]
  %v7326 = vperm.slane %v7324, 0
  %v7328 = vadd.f32 %v7230, %v7326
  %v7329 = vadd.f32 %v7233, %v7326
  %v7330 = vadd.f32 %v7236, %v7326
  %v7331 = vadd.f32 %v7239, %v7326
  %v7332 = vadd.f32 %v7242, %v7326
  %v7333 = vadd.f32 %v7245, %v7326
  %v7334 = vadd.f32 %v7248, %v7326
  %v7335 = vadd.f32 %v7251, %v7326
  %v7336 = vadd.f32 %v7254, %v7326
  %v7337 = vadd.f32 %v7257, %v7326
  %v7338 = vadd.f32 %v7260, %v7326
  %v7339 = vadd.f32 %v7263, %v7326
  %v7340 = vadd.f32 %v7266, %v7326
  %v7341 = vadd.f32 %v7269, %v7326
  %v7342 = vadd.f32 %v7272, %v7326
  %v7343 = vadd.f32 %v7275, %v7326
  %v7344 = vadd.f32 %v7278, %v7326
  %v7345 = vadd.f32 %v7281, %v7326
  %v7346 = vadd.f32 %v7284, %v7326
  %v7347 = vadd.f32 %v7287, %v7326
  %v7348 = vadd.f32 %v7290, %v7326
  %v7349 = vadd.f32 %v7293, %v7326
  %v7350 = vadd.f32 %v7296, %v7326
  %v7351 = vadd.f32 %v7299, %v7326
  %v7352 = vadd.f32 %v7302, %v7326
  %v7353 = vadd.f32 %v7305, %v7326
  %v7354 = vadd.f32 %v7308, %v7326
  %v7355 = vadd.f32 %v7311, %v7326
  %v7356 = vadd.f32 %v7314, %v7326
  %v7357 = vadd.f32 %v7317, %v7326
  %v7358 = vadd.f32 %v7320, %v7326
  %v7359 = vadd.f32 %v7323, %v7326
  %v7360 = vsub.f32 0.0, %v7328
  %v7361 = vsub.f32 0.0, %v7329
  %v7362 = vsub.f32 0.0, %v7330
  %v7363 = vsub.f32 0.0, %v7331
  %v7364 = vsub.f32 0.0, %v7332
  %v7365 = vsub.f32 0.0, %v7333
  %v7366 = vsub.f32 0.0, %v7334
  %v7367 = vsub.f32 0.0, %v7335
  %v7368 = vsub.f32 0.0, %v7336
  %v7369 = vsub.f32 0.0, %v7337
  %v7370 = vsub.f32 0.0, %v7338
  %v7371 = vsub.f32 0.0, %v7339
  %v7372 = vsub.f32 0.0, %v7340
  %v7373 = vsub.f32 0.0, %v7341
  %v7374 = vsub.f32 0.0, %v7342
  %v7375 = vsub.f32 0.0, %v7343
  %v7376 = vsub.f32 0.0, %v7344
  %v7377 = vsub.f32 0.0, %v7345
  %v7378 = vsub.f32 0.0, %v7346
  %v7379 = vsub.f32 0.0, %v7347
  %v7380 = vsub.f32 0.0, %v7348
  %v7381 = vsub.f32 0.0, %v7349
  %v7382 = vsub.f32 0.0, %v7350
  %v7383 = vsub.f32 0.0, %v7351
  %v7384 = vsub.f32 0.0, %v7352
  %v7385 = vsub.f32 0.0, %v7353
  %v7386 = vsub.f32 0.0, %v7354
  %v7387 = vsub.f32 0.0, %v7355
  %v7388 = vsub.f32 0.0, %v7356
  %v7389 = vsub.f32 0.0, %v7357
  %v7390 = vsub.f32 0.0, %v7358
  %v7391 = vsub.f32 0.0, %v7359
  %v7392 = vmul.f32 %v7360, 1.442695
  %v7393 = vpow.pop %v7392
  %v7394 = vmul.f32 %v7361, 1.442695
  %v7395 = vpow.pop %v7394
  %v7396 = vmul.f32 %v7362, 1.442695
  %v7397 = vpow.pop %v7396
  %v7398 = vmul.f32 %v7363, 1.442695
  %v7399 = vpow.pop %v7398
  %v7400 = vmul.f32 %v7364, 1.442695
  %v7401 = vpow.pop %v7400
  %v7402 = vmul.f32 %v7365, 1.442695
  %v7403 = vpow.pop %v7402
  %v7404 = vmul.f32 %v7366, 1.442695
  %v7405 = vpow.pop %v7404
  %v7406 = vmul.f32 %v7367, 1.442695
  %v7407 = vpow.pop %v7406
  %v7408 = vmul.f32 %v7368, 1.442695
  %v7409 = vpow.pop %v7408
  %v7410 = vmul.f32 %v7369, 1.442695
  %v7411 = vpow.pop %v7410
  %v7412 = vmul.f32 %v7370, 1.442695
  %v7413 = vpow.pop %v7412
  %v7414 = vmul.f32 %v7371, 1.442695
  %v7415 = vpow.pop %v7414
  %v7416 = vmul.f32 %v7372, 1.442695
  %v7417 = vpow.pop %v7416
  %v7418 = vmul.f32 %v7373, 1.442695
  %v7419 = vpow.pop %v7418
  %v7420 = vmul.f32 %v7374, 1.442695
  %v7421 = vpow.pop %v7420
  %v7422 = vmul.f32 %v7375, 1.442695
  %v7423 = vpow.pop %v7422
  %v7424 = vmul.f32 %v7376, 1.442695
  %v7425 = vpow.pop %v7424
  %v7426 = vmul.f32 %v7377, 1.442695
  %v7427 = vpow.pop %v7426
  %v7428 = vmul.f32 %v7378, 1.442695
  %v7429 = vpow.pop %v7428
  %v7430 = vmul.f32 %v7379, 1.442695
  %v7431 = vpow.pop %v7430
  %v7432 = vmul.f32 %v7380, 1.442695
  %v7433 = vpow.pop %v7432
  %v7434 = vmul.f32 %v7381, 1.442695
  %v7435 = vpow.pop %v7434
  %v7436 = vmul.f32 %v7382, 1.442695
  %v7437 = vpow.pop %v7436
  %v7438 = vmul.f32 %v7383, 1.442695
  %v7439 = vpow.pop %v7438
  %v7440 = vmul.f32 %v7384, 1.442695
  %v7441 = vpow.pop %v7440
  %v7442 = vmul.f32 %v7385, 1.442695
  %v7443 = vpow.pop %v7442
  %v7444 = vmul.f32 %v7386, 1.442695
  %v7445 = vpow.pop %v7444
  %v7446 = vmul.f32 %v7387, 1.442695
  %v7447 = vpow.pop %v7446
  %v7448 = vmul.f32 %v7388, 1.442695
  %v7449 = vpow.pop %v7448
  %v7450 = vmul.f32 %v7389, 1.442695
  %v7451 = vpow.pop %v7450
  %v7452 = vmul.f32 %v7390, 1.442695
  %v7453 = vpow.pop %v7452
  %v7454 = vmul.f32 %v7391, 1.442695
  %v7455 = vpow.pop %v7454
  %v7456 = vadd.f32 %v7393, 1.0
  %v7457 = vadd.f32 %v7395, 1.0
  %v7458 = vadd.f32 %v7397, 1.0
  %v7459 = vadd.f32 %v7399, 1.0
  %v7460 = vadd.f32 %v7401, 1.0
  %v7461 = vadd.f32 %v7403, 1.0
  %v7462 = vadd.f32 %v7405, 1.0
  %v7463 = vadd.f32 %v7407, 1.0
  %v7464 = vadd.f32 %v7409, 1.0
  %v7465 = vadd.f32 %v7411, 1.0
  %v7466 = vadd.f32 %v7413, 1.0
  %v7467 = vadd.f32 %v7415, 1.0
  %v7468 = vadd.f32 %v7417, 1.0
  %v7469 = vadd.f32 %v7419, 1.0
  %v7470 = vadd.f32 %v7421, 1.0
  %v7471 = vadd.f32 %v7423, 1.0
  %v7472 = vadd.f32 %v7425, 1.0
  %v7473 = vadd.f32 %v7427, 1.0
  %v7474 = vadd.f32 %v7429, 1.0
  %v7475 = vadd.f32 %v7431, 1.0
  %v7476 = vadd.f32 %v7433, 1.0
  %v7477 = vadd.f32 %v7435, 1.0
  %v7478 = vadd.f32 %v7437, 1.0
  %v7479 = vadd.f32 %v7439, 1.0
  %v7480 = vadd.f32 %v7441, 1.0
  %v7481 = vadd.f32 %v7443, 1.0
  %v7482 = vadd.f32 %v7445, 1.0
  %v7483 = vadd.f32 %v7447, 1.0
  %v7484 = vadd.f32 %v7449, 1.0
  %v7485 = vadd.f32 %v7451, 1.0
  %v7486 = vadd.f32 %v7453, 1.0
  %v7487 = vadd.f32 %v7455, 1.0
  %v7488 = vrcp.pop %v7456
  %v7489 = vrcp.pop %v7457
  %v7490 = vrcp.pop %v7458
  %v7491 = vrcp.pop %v7459
  %v7492 = vrcp.pop %v7460
  %v7493 = vrcp.pop %v7461
  %v7494 = vrcp.pop %v7462
  %v7495 = vrcp.pop %v7463
  %v7496 = vrcp.pop %v7464
  %v7497 = vrcp.pop %v7465
  %v7498 = vrcp.pop %v7466
  %v7499 = vrcp.pop %v7467
  %v7500 = vrcp.pop %v7468
  %v7501 = vrcp.pop %v7469
  %v7502 = vrcp.pop %v7470
  %v7503 = vrcp.pop %v7471
  %v7504 = vrcp.pop %v7472
  %v7505 = vrcp.pop %v7473
  %v7506 = vrcp.pop %v7474
  %v7507 = vrcp.pop %v7475
  %v7508 = vrcp.pop %v7476
  %v7509 = vrcp.pop %v7477
  %v7510 = vrcp.pop %v7478
  %v7511 = vrcp.pop %v7479
  %v7512 = vrcp.pop %v7480
  %v7513 = vrcp.pop %v7481
  %v7514 = vrcp.pop %v7482
  %v7515 = vrcp.pop %v7483
  %v7516 = vrcp.pop %v7484
  %v7517 = vrcp.pop %v7485
  %v7518 = vrcp.pop %v7486
  %v7519 = vrcp.pop %v7487
  %vm7520 = vcmask 7168
  %7521 = vst.msk [vmem:[%s9] sm:$0xff] %vm7520, %v7488
  %7522 = vst.msk [vmem:[%s9 + $0x8] sm:$0xff] %vm7520, %v7489
  %7523 = vst.msk [vmem:[%s9 + $0x10] sm:$0xff] %vm7520, %v7490
  %7524 = vst.msk [vmem:[%s9 + $0x18] sm:$0xff] %vm7520, %v7491
  %7525 = vst.msk [vmem:[%s9 + $0x20] sm:$0xff] %vm7520, %v7492
  %7526 = vst.msk [vmem:[%s9 + $0x28] sm:$0xff] %vm7520, %v7493
  %7527 = vst.msk [vmem:[%s9 + $0x30] sm:$0xff] %vm7520, %v7494
  %7528 = vst.msk [vmem:[%s9 + $0x38] sm:$0xff] %vm7520, %v7495
  %7529 = vst.msk [vmem:[%s9 + $0x40] sm:$0xff] %vm7520, %v7496
  %7530 = vst.msk [vmem:[%s9 + $0x48] sm:$0xff] %vm7520, %v7497
  %7531 = vst.msk [vmem:[%s9 + $0x50] sm:$0xff] %vm7520, %v7498
  %7532 = vst.msk [vmem:[%s9 + $0x58] sm:$0xff] %vm7520, %v7499
  %7533 = vst.msk [vmem:[%s9 + $0x60] sm:$0xff] %vm7520, %v7500
  %7534 = vst.msk [vmem:[%s9 + $0x68] sm:$0xff] %vm7520, %v7501
  %7535 = vst.msk [vmem:[%s9 + $0x70] sm:$0xff] %vm7520, %v7502
  %7536 = vst.msk [vmem:[%s9 + $0x78] sm:$0xff] %vm7520, %v7503
  %7537 = vst.msk [vmem:[%s9 + $0x80] sm:$0xff] %vm7520, %v7504
  %7538 = vst.msk [vmem:[%s9 + $0x88] sm:$0xff] %vm7520, %v7505
  %7539 = vst.msk [vmem:[%s9 + $0x90] sm:$0xff] %vm7520, %v7506
  %7540 = vst.msk [vmem:[%s9 + $0x98] sm:$0xff] %vm7520, %v7507
  %7541 = vst.msk [vmem:[%s9 + $0xa0] sm:$0xff] %vm7520, %v7508
  %7542 = vst.msk [vmem:[%s9 + $0xa8] sm:$0xff] %vm7520, %v7509
  %7543 = vst.msk [vmem:[%s9 + $0xb0] sm:$0xff] %vm7520, %v7510
  %7544 = vst.msk [vmem:[%s9 + $0xb8] sm:$0xff] %vm7520, %v7511
  %7545 = vst.msk [vmem:[%s9 + $0xc0] sm:$0xff] %vm7520, %v7512
  %7546 = vst.msk [vmem:[%s9 + $0xc8] sm:$0xff] %vm7520, %v7513
  %7547 = vst.msk [vmem:[%s9 + $0xd0] sm:$0xff] %vm7520, %v7514
  %7548 = vst.msk [vmem:[%s9 + $0xd8] sm:$0xff] %vm7520, %v7515
  %7549 = vst.msk [vmem:[%s9 + $0xe0] sm:$0xff] %vm7520, %v7516
  %7550 = vst.msk [vmem:[%s9 + $0xe8] sm:$0xff] %vm7520, %v7517
  %7551 = vst.msk [vmem:[%s9 + $0xf0] sm:$0xff] %vm7520, %v7518
  %7552 = vst.msk [vmem:[%s9 + $0xf8] sm:$0xff] %vm7520, %v7519
  // Predicated region
  $region38: #{discriminator_forward.1} parent=0 // pred_check
    _
  $region39: #{discriminator_forward.1} parent=0 // pred_check_branch
    %7554 = sbr.rel (0) target = $region41
  $region40: #{discriminator_forward.1} parent=0 // pred_region
    _
  $region41: #{discriminator_forward.1} parent=0 // pred_fallthru
    _
  // Predicated region
  $region42: #{discriminator_forward.1} parent=0 // pred_check
    _
  $region43: #{discriminator_forward.1} parent=0 // pred_check_branch
    %7556 = sbr.rel (0) target = $region45
  $region44: #{discriminator_forward.1} parent=0 // pred_region
    _
  $region45: #{discriminator_forward.1} parent=0 // pred_fallthru
    _

</llo_original>
